<compile_context>
chip_gen: v7x
topology: tpu7x:2x2x1
jax: 0.10.0
libtpu: 0.0.40
codegen_flags: <defaults>
</compile_context>

<pallas_src>
import functools
import math

import jax
import jax.numpy as jnp
from jax.experimental import pallas as pl
from jax.experimental.pallas import tpu as pltpu

LANE = 128                            # TPU lane width: keep minor dims multiples of this
COMPUTE_DTYPE = jnp.bfloat16          # MXU-native operand dtype (accumulation stays f32)
VMEM_LIMIT_BYTES = 32 * 1024 * 1024   # safe on v5e/v6e/v7x; tune per-gen at real VGG sizes


def _round_up(v, m):
    return (v + m - 1) // m * m


# ----------------------------- conv 3x3 + ReLU ------------------------------

def _conv3x3_kernel(xp_ref, w_ref, b_ref, o_ref, acc_ref):
    """3x3 same-conv + bias + ReLU for one image.

    xp_ref : (1, hp*wp, cin_pad) bf16  zero-padded image, spatial rows flattened row-major
    w_ref  : (9, cin_pad, cout_pad) bf16  taps ordered kh*3+kw (resident in VMEM)
    b_ref  : (1, cout_pad) f32
    o_ref  : (1, h, w, cout_pad) bf16
    acc_ref: (h*wp, cout_pad) f32 VMEM scratch accumulator

    Tap (kh, kw) is a flat shift of kh*wp+kw into the padded image, so each tap is a
    single contiguous-window matmul on the MXU — no im2col, no gathers.
    """
    _, h, w, _ = o_ref.shape
    wp = w + 2
    for kh in range(3):
        for kw in range(3):
            shift = kh * wp + kw
            a = xp_ref[0, shift:shift + h * wp, :]               # (h*wp, cin_pad)
            p = jnp.dot(a, w_ref[kh * 3 + kw],
                        preferred_element_type=jnp.float32)      # MXU, f32 accumulate
            if kh == 0 and kw == 0:
                acc_ref[...] = p
            else:
                acc_ref[...] += p
    out = jnp.maximum(acc_ref[...] + b_ref[...], 0.0).astype(o_ref.dtype)
    # Rows of `out` use the padded width wp; copy the w valid columns of each image row
    # into the lane-dense output block (h is small and static -> unrolled stores).
    for r in range(h):
        o_ref[0, r, :, :] = out[r * wp:r * wp + w, :]


def conv3x3_relu(x, w, b):
    """Conv2d(k=3, s=1, p=1) + ReLU.  x: (N,H,W,Cin_pad) bf16 NHWC (C padded to 128s),
    w: (9, Cin_pad, Cout_pad) bf16, b: (1, Cout_pad) f32."""
    n, h, wd, cinp = x.shape
    coutp = w.shape[-1]
    wp = wd + 2
    # Zero halo (1 each side) + 1 extra bottom row so every shifted flat window of
    # h*wp rows stays inside the flattened buffer.
    xp = jnp.pad(x, ((0, 0), (1, 2), (1, 1), (0, 0)))
    xp = xp.reshape(n, (h + 3) * wp, cinp)                 # contiguous -> free reshape
    return pl.pallas_call(
        _conv3x3_kernel,
        out_shape=jax.ShapeDtypeStruct((n, h, wd, coutp), x.dtype),
        grid=(n,),
        in_specs=[
            pl.BlockSpec((1, (h + 3) * wp, cinp), lambda i: (i, 0, 0)),
            pl.BlockSpec((9, cinp, coutp), lambda i: (0, 0, 0)),   # resident weights
            pl.BlockSpec((1, coutp), lambda i: (0, 0)),            # resident bias
        ],
        out_specs=pl.BlockSpec((1, h, wd, coutp), lambda i: (i, 0, 0, 0)),
        scratch_shapes=[pltpu.VMEM((h * wp, coutp), jnp.float32)],
        compiler_params=pltpu.CompilerParams(
            dimension_semantics=("parallel",),
            vmem_limit_bytes=VMEM_LIMIT_BYTES),
    )(xp, w, b)


# ------------------------------ maxpool 2x2 ---------------------------------

def _maxpool2x2_kernel(x_ref, o_ref):
    """x_ref: (1, H, W/2, 2*C) — adjacent column pairs pre-grouped into the lane dim.
    o_ref: (1, H/2, W/2, C)."""
    _, hh, wo, c2 = x_ref.shape
    c = c2 // 2
    y = x_ref[0]                                   # (H, wo, 2C)
    m = jnp.maximum(y[:, :, :c], y[:, :, c:])      # horizontal max (lane-aligned halves)
    m = m.reshape(hh // 2, 2, wo, c)               # split leading dim (free)
    o_ref[0] = jnp.maximum(m[:, 0], m[:, 1])       # vertical max


def maxpool2x2(x):
    """2x2/stride-2 max pool, NHWC with lane-padded C; one HBM read, one HBM write."""
    n, h, w, c = x.shape
    ho, wo = h // 2, w // 2
    xr = x.reshape(n, h, wo, 2 * c)                # contiguous regroup -> free
    return pl.pallas_call(
        _maxpool2x2_kernel,
        out_shape=jax.ShapeDtypeStruct((n, ho, wo, c), x.dtype),
        grid=(n,),
        in_specs=[pl.BlockSpec((1, h, wo, 2 * c), lambda i: (i, 0, 0, 0))],
        out_specs=pl.BlockSpec((1, ho, wo, c), lambda i: (i, 0, 0, 0)),
        compiler_params=pltpu.CompilerParams(
            dimension_semantics=("parallel",),
            vmem_limit_bytes=VMEM_LIMIT_BYTES),
    )(xr)


# ------------------------------ linear (+ReLU) -------------------------------

def _linear_kernel(a_ref, w_ref, b_ref, o_ref, *, relu):
    acc = jnp.dot(a_ref[...], w_ref[...], preferred_element_type=jnp.float32)
    acc = acc + b_ref[...]
    if relu:
        acc = jnp.maximum(acc, 0.0)
    o_ref[...] = acc.astype(o_ref.dtype)


def linear(a, w, b, *, relu, out_dtype):
    """a: (M, K) bf16, w: (K, Np) bf16 (Np multiple of 128), b: (1, Np) f32."""
    m, k = a.shape
    np_ = w.shape[1]
    tm = m if m <= 512 else 512            # large M tile; single block for small batches
    pad = (-m) % tm
    if pad:
        # TODO(synk): for very large ragged batches, mask the last tile in-kernel
        # instead of padding A in HBM.
        a = jnp.pad(a, ((0, pad), (0, 0)))
    mp = m + pad
    out = pl.pallas_call(
        functools.partial(_linear_kernel, relu=relu),
        out_shape=jax.ShapeDtypeStruct((mp, np_), out_dtype),
        grid=(mp // tm,),
        in_specs=[
            pl.BlockSpec((tm, k), lambda i: (i, 0)),
            pl.BlockSpec((k, np_), lambda i: (0, 0)),    # resident weights
            pl.BlockSpec((1, np_), lambda i: (0, 0)),    # resident bias
        ],
        out_specs=pl.BlockSpec((tm, np_), lambda i: (i, 0)),
        compiler_params=pltpu.CompilerParams(
            dimension_semantics=("parallel",),
            vmem_limit_bytes=VMEM_LIMIT_BYTES),
    )(a, w, b)
    return out if pad == 0 else out[:m]


# --------------------------- parameter creation ------------------------------

def _xavier_uniform(key, shape, fan_in, fan_out):
    bound = math.sqrt(6.0 / (fan_in + fan_out))
    return jax.random.uniform(key, shape, jnp.float32, minval=-bound, maxval=bound)


def make_vgg_params(key, cfg, in_channels, spatial, hidden, num_classes):
    """PyTorch-equivalent params (xavier-uniform weights, zero biases), converted once
    into kernel-ready layouts: bf16, channel/output dims zero-padded to multiples of
    128, conv weights as (9, cin_pad, cout_pad), linear weights as (K_pad, N_pad), and
    fc1 rows permuted to consume the NHWC/padded-C flattened feature map directly."""
    params = {"features": [], "num_classes": num_classes}
    c, cp = in_channels, _round_up(in_channels, LANE)
    params["cin_pad"] = cp
    hw = spatial
    for v in cfg:
        if v == "M":
            params["features"].append("M")
            hw //= 2
        else:
            vp = _round_up(v, LANE)
            key, sub = jax.random.split(key)
            wt = _xavier_uniform(sub, (v, c, 3, 3), fan_in=c * 9, fan_out=v * 9)
            wk = jnp.transpose(wt, (2, 3, 1, 0)).reshape(9, c, v)       # (tap, cin, cout)
            wk = jnp.pad(wk, ((0, 0), (0, cp - c), (0, vp - v))).astype(COMPUTE_DTYPE)
            bk = jnp.zeros((1, vp), jnp.float32)                        # zero bias
            params["features"].append((wk, bk))
            c, cp = v, vp
    hf = wf = hw
    hp_ = _round_up(hidden, LANE)
    ncp = _round_up(num_classes, LANE)
    # fc1: torch (hidden, C*Hf*Wf); permute/pad input dim to NHWC/padded-C order.
    key, sub = jax.random.split(key)
    w1 = _xavier_uniform(sub, (hidden, c * hf * wf), fan_in=c * hf * wf, fan_out=hidden)
    w1k = jnp.transpose(w1.reshape(hidden, c, hf, wf), (2, 3, 1, 0))    # (Hf, Wf, C, hid)
    w1k = jnp.pad(w1k, ((0, 0), (0, 0), (0, cp - c), (0, hp_ - hidden)))
    w1k = w1k.reshape(hf * wf * cp, hp_).astype(COMPUTE_DTYPE)
    params["fc1"] = (w1k, jnp.zeros((1, hp_), jnp.float32))
    # fc2: torch (hidden, hidden)
    key, sub = jax.random.split(key)
    w2 = _xavier_uniform(sub, (hidden, hidden), fan_in=hidden, fan_out=hidden)
    w2k = jnp.pad(w2.T, ((0, hp_ - hidden), (0, hp_ - hidden))).astype(COMPUTE_DTYPE)
    params["fc2"] = (w2k, jnp.zeros((1, hp_), jnp.float32))
    # fc3: torch (num_classes, hidden)
    key, sub = jax.random.split(key)
    w3 = _xavier_uniform(sub, (num_classes, hidden), fan_in=hidden, fan_out=num_classes)
    w3k = jnp.pad(w3.T, ((0, hp_ - hidden), (0, ncp - num_classes))).astype(COMPUTE_DTYPE)
    params["fc3"] = (w3k, jnp.zeros((1, ncp), jnp.float32))
    return params


# -------------------------------- forward ------------------------------------

def vgg_forward(params, x_nchw):
    n, cin = x_nchw.shape[0], x_nchw.shape[1]
    cp = params["cin_pad"]
    x = jnp.transpose(x_nchw, (0, 2, 3, 1))                      # NCHW -> NHWC (once)
    x = jnp.pad(x, ((0, 0), (0, 0), (0, 0), (0, cp - cin)))      # lane-pad channels
    x = x.astype(COMPUTE_DTYPE)
    for layer in params["features"]:
        if isinstance(layer, str):                               # "M"
            x = maxpool2x2(x)
        else:
            w, b = layer
            x = conv3x3_relu(x, w, b)
    # torch.flatten(x, 1) semantics are recovered via the permuted fc1 weight rows,
    # so no NCHW transpose of the feature map is needed here.
    x = x.reshape(n, -1)
    w1, b1 = params["fc1"]
    x = linear(x, w1, b1, relu=True, out_dtype=COMPUTE_DTYPE)
    # TODO(synk): nn.Dropout(p=0.5) -> inference-mode identity (no-op here).
    w2, b2 = params["fc2"]
    x = linear(x, w2, b2, relu=True, out_dtype=COMPUTE_DTYPE)
    w3, b3 = params["fc3"]
    x = linear(x, w3, b3, relu=False, out_dtype=jnp.float32)
    return x[:, :params["num_classes"]]


# --------------------------------- main ---------------------------------------

if __name__ == "__main__":
    key = jax.random.PRNGKey(0)

    # Scaled-down VGG: features cfg [8,'M',16,'M',32,'M'] on 16x16 RGB input
    # -> (N, 32, 2, 2) -> flatten 128; classifier 128->128->128->10
    # (structure mirrors Linear(512*7*7,4096)/ReLU/Dropout/.../Linear(...,1000)).
    cfg = [8, "M", 16, "M", 32, "M"]
    batch, in_ch, spatial = 2, 3, 16
    hidden, num_classes = 128, 10

    key, kp, kx = jax.random.split(key, 3)
    params = make_vgg_params(kp, cfg, in_ch, spatial, hidden, num_classes)
    x = jax.random.normal(kx, (batch, in_ch, spatial, spatial), jnp.float32)

    fwd = jax.jit(lambda inp: vgg_forward(params, inp))
    out = jax.block_until_ready(fwd(x))
    assert out.shape == (batch, num_classes), out.shape
    assert bool(jnp.all(jnp.isfinite(out)))
    print("KERNEL_OK")
</pallas_src>

<mosaic_0001>
module attributes {stable_mosaic.version = 11 : i64} {
  func.func @_maxpool2x2_kernel(%arg0: i32, %arg1: memref<1x16x8x256xbf16, #tpu.memory_space<vmem>>, %arg2: memref<1x8x8x128xbf16, #tpu.memory_space<vmem>>) attributes {dimension_semantics = [#tpu.dimension_semantics<parallel>], iteration_bounds = array<i64: 2>, scalar_prefetch = 0 : i64, scratch_operands = 0 : i64, tpu.core_type = #tpu.core_type<tc>, window_params = [{transform_indices = @transform_0, window_bounds = array<i64: 1, 16, 8, 256>}, {transform_indices = @transform_1, window_bounds = array<i64: 1, 8, 8, 128>}]} {
    %c0 = arith.constant 0 : index
    %c0_0 = arith.constant 0 : index
    %c0_1 = arith.constant 0 : index
    %c0_2 = arith.constant 0 : index
    %0 = vector.load %arg1[%c0, %c0_0, %c0_1, %c0_2] : memref<1x16x8x256xbf16, #tpu.memory_space<vmem>>, vector<1x16x8x256xbf16>
    %1 = vector.shape_cast %0 : vector<1x16x8x256xbf16> to vector<16x8x256xbf16>
    %2 = vector.extract_strided_slice %1 {offsets = [0, 0, 0], sizes = [16, 8, 128], strides = [1, 1, 1]} : vector<16x8x256xbf16> to vector<16x8x128xbf16>
    %3 = vector.extract_strided_slice %1 {offsets = [0, 0, 128], sizes = [16, 8, 128], strides = [1, 1, 1]} : vector<16x8x256xbf16> to vector<16x8x128xbf16>
    %4 = arith.maximumf %2, %3 : vector<16x8x128xbf16>
    %5 = vector.shape_cast %4 : vector<16x8x128xbf16> to vector<8x2x8x128xbf16>
    %6 = vector.extract_strided_slice %5 {offsets = [0, 0, 0, 0], sizes = [8, 1, 8, 128], strides = [1, 1, 1, 1]} : vector<8x2x8x128xbf16> to vector<8x1x8x128xbf16>
    %7 = vector.shape_cast %6 : vector<8x1x8x128xbf16> to vector<8x8x128xbf16>
    %8 = vector.extract_strided_slice %5 {offsets = [0, 1, 0, 0], sizes = [8, 1, 8, 128], strides = [1, 1, 1, 1]} : vector<8x2x8x128xbf16> to vector<8x1x8x128xbf16>
    %9 = vector.shape_cast %8 : vector<8x1x8x128xbf16> to vector<8x8x128xbf16>
    %10 = arith.maximumf %7, %9 : vector<8x8x128xbf16>
    %c0_3 = arith.constant 0 : index
    %c0_4 = arith.constant 0 : index
    %c0_5 = arith.constant 0 : index
    %c0_6 = arith.constant 0 : index
    %11 = vector.load %arg2[%c0_3, %c0_4, %c0_5, %c0_6] : memref<1x8x8x128xbf16, #tpu.memory_space<vmem>>, vector<1x8x8x128xbf16>
    %12 = vector.shape_cast %11 : vector<1x8x8x128xbf16> to vector<8x8x128xbf16>
    %13 = vector.shape_cast %10 : vector<8x8x128xbf16> to vector<1x8x8x128xbf16>
    tpu.vector_store %arg2[%c0_3, %c0_4, %c0_5, %c0_6], %13 {strides = array<i32>} : memref<1x8x8x128xbf16, #tpu.memory_space<vmem>>, vector<1x8x8x128xbf16>,
    return
  }
  func.func @transform_0(%arg0: i32) -> (i32, i32, i32, i32) {
    %c0_i32 = arith.constant 0 : i32
    %c0_i32_0 = arith.constant 0 : i32
    %c0_i32_1 = arith.constant 0 : i32
    %c0_i32_2 = arith.constant 0 : i32
    return %arg0, %c0_i32, %c0_i32_0, %c0_i32_1 : i32, i32, i32, i32
  }
  func.func @transform_1(%arg0: i32) -> (i32, i32, i32, i32) {
    %c0_i32 = arith.constant 0 : i32
    %c0_i32_0 = arith.constant 0 : i32
    %c0_i32_1 = arith.constant 0 : i32
    %c0_i32_2 = arith.constant 0 : i32
    return %arg0, %c0_i32, %c0_i32_0, %c0_i32_1 : i32, i32, i32, i32
  }
}

module attributes {stable_mosaic.version = 11 : i64} {
  func.func @_conv3x3_kernel(%arg0: i32, %arg1: memref<1x342x128xbf16, #tpu.memory_space<vmem>>, %arg2: memref<9x128x128xbf16, #tpu.memory_space<vmem>>, %arg3: memref<1x128xf32, #tpu.memory_space<vmem>>, %arg4: memref<1x16x16x128xbf16, #tpu.memory_space<vmem>>, %arg5: memref<288x128xf32, #tpu.memory_space<vmem>>) attributes {dimension_semantics = [#tpu.dimension_semantics<parallel>], iteration_bounds = array<i64: 2>, scalar_prefetch = 0 : i64, scratch_operands = 1 : i64, tpu.core_type = #tpu.core_type<tc>, window_params = [{transform_indices = @transform_0, window_bounds = array<i64: 1, 342, 128>}, {pipeline_mode = #tpu.pipeline_mode<synchronous>, transform_indices = @transform_1, window_bounds = array<i64: 9, 128, 128>}, {pipeline_mode = #tpu.pipeline_mode<synchronous>, transform_indices = @transform_2, window_bounds = array<i64: 1, 128>}, {transform_indices = @transform_3, window_bounds = array<i64: 1, 16, 16, 128>}]} {
    %c0 = arith.constant 0 : index
    %c0_0 = arith.constant 0 : index
    %c0_1 = arith.constant 0 : index
    %0 = vector.load %arg1[%c0, %c0_0, %c0_1] : memref<1x342x128xbf16, #tpu.memory_space<vmem>>, vector<1x288x128xbf16>
    %1 = vector.shape_cast %0 : vector<1x288x128xbf16> to vector<288x128xbf16>
    %c0_2 = arith.constant 0 : index
    %c0_3 = arith.constant 0 : index
    %c0_4 = arith.constant 0 : index
    %2 = vector.load %arg2[%c0_2, %c0_3, %c0_4] : memref<9x128x128xbf16, #tpu.memory_space<vmem>>, vector<1x128x128xbf16>
    %3 = vector.shape_cast %2 : vector<1x128x128xbf16> to vector<128x128xbf16>
    %cst = arith.constant dense<0.000000e+00> : vector<288x128xf32>
    %4 = tpu.matmul %1, %3, %cst {dimension_numbers = #tpu.dot_dimension_numbers<[1], [0], [0], [1], [0, 0, 1, 1], [], []>} : vector<288x128xbf16>, vector<128x128xbf16>, vector<288x128xf32> -> vector<288x128xf32>
    %c0_5 = arith.constant 0 : index
    %c0_6 = arith.constant 0 : index
    %5 = vector.load %arg5[%c0_5, %c0_6] : memref<288x128xf32, #tpu.memory_space<vmem>>, vector<288x128xf32>
    tpu.vector_store %arg5[%c0_5, %c0_6], %4 {strides = array<i32>} : memref<288x128xf32, #tpu.memory_space<vmem>>, vector<288x128xf32>,
    %c0_7 = arith.constant 0 : index
    %c1 = arith.constant 1 : index
    %c0_8 = arith.constant 0 : index
    %6 = vector.load %arg1[%c0_7, %c1, %c0_8] : memref<1x342x128xbf16, #tpu.memory_space<vmem>>, vector<1x288x128xbf16>
    %7 = vector.shape_cast %6 : vector<1x288x128xbf16> to vector<288x128xbf16>
    %c1_9 = arith.constant 1 : index
    %c0_10 = arith.constant 0 : index
    %c0_11 = arith.constant 0 : index
    %8 = vector.load %arg2[%c1_9, %c0_10, %c0_11] : memref<9x128x128xbf16, #tpu.memory_space<vmem>>, vector<1x128x128xbf16>
    %9 = vector.shape_cast %8 : vector<1x128x128xbf16> to vector<128x128xbf16>
    %cst_12 = arith.constant dense<0.000000e+00> : vector<288x128xf32>
    %10 = tpu.matmul %7, %9, %cst_12 {dimension_numbers = #tpu.dot_dimension_numbers<[1], [0], [0], [1], [0, 0, 1, 1], [], []>} : vector<288x128xbf16>, vector<128x128xbf16>, vector<288x128xf32> -> vector<288x128xf32>
    %c0_13 = arith.constant 0 : index
    %c0_14 = arith.constant 0 : index
    %11 = vector.load %arg5[%c0_13, %c0_14] : memref<288x128xf32, #tpu.memory_space<vmem>>, vector<288x128xf32>
    %12 = arith.addf %11, %10 : vector<288x128xf32>
    %c0_15 = arith.constant 0 : index
    %c0_16 = arith.constant 0 : index
    %13 = vector.load %arg5[%c0_15, %c0_16] : memref<288x128xf32, #tpu.memory_space<vmem>>, vector<288x128xf32>
    tpu.vector_store %arg5[%c0_15, %c0_16], %12 {strides = array<i32>} : memref<288x128xf32, #tpu.memory_space<vmem>>, vector<288x128xf32>,
    %c0_17 = arith.constant 0 : index
    %c2 = arith.constant 2 : index
    %c0_18 = arith.constant 0 : index
    %14 = vector.load %arg1[%c0_17, %c2, %c0_18] : memref<1x342x128xbf16, #tpu.memory_space<vmem>>, vector<1x288x128xbf16>
    %15 = vector.shape_cast %14 : vector<1x288x128xbf16> to vector<288x128xbf16>
    %c2_19 = arith.constant 2 : index
    %c0_20 = arith.constant 0 : index
    %c0_21 = arith.constant 0 : index
    %16 = vector.load %arg2[%c2_19, %c0_20, %c0_21] : memref<9x128x128xbf16, #tpu.memory_space<vmem>>, vector<1x128x128xbf16>
    %17 = vector.shape_cast %16 : vector<1x128x128xbf16> to vector<128x128xbf16>
    %cst_22 = arith.constant dense<0.000000e+00> : vector<288x128xf32>
    %18 = tpu.matmul %15, %17, %cst_22 {dimension_numbers = #tpu.dot_dimension_numbers<[1], [0], [0], [1], [0, 0, 1, 1], [], []>} : vector<288x128xbf16>, vector<128x128xbf16>, vector<288x128xf32> -> vector<288x128xf32>
    %c0_23 = arith.constant 0 : index
    %c0_24 = arith.constant 0 : index
    %19 = vector.load %arg5[%c0_23, %c0_24] : memref<288x128xf32, #tpu.memory_space<vmem>>, vector<288x128xf32>
    %20 = arith.addf %19, %18 : vector<288x128xf32>
    %c0_25 = arith.constant 0 : index
    %c0_26 = arith.constant 0 : index
    %21 = vector.load %arg5[%c0_25, %c0_26] : memref<288x128xf32, #tpu.memory_space<vmem>>, vector<288x128xf32>
    tpu.vector_store %arg5[%c0_25, %c0_26], %20 {strides = array<i32>} : memref<288x128xf32, #tpu.memory_space<vmem>>, vector<288x128xf32>,
    %c0_27 = arith.constant 0 : index
    %c18 = arith.constant 18 : index
    %c0_28 = arith.constant 0 : index
    %22 = vector.load %arg1[%c0_27, %c18, %c0_28] : memref<1x342x128xbf16, #tpu.memory_space<vmem>>, vector<1x288x128xbf16>
    %23 = vector.shape_cast %22 : vector<1x288x128xbf16> to vector<288x128xbf16>
    %c3 = arith.constant 3 : index
    %c0_29 = arith.constant 0 : index
    %c0_30 = arith.constant 0 : index
    %24 = vector.load %arg2[%c3, %c0_29, %c0_30] : memref<9x128x128xbf16, #tpu.memory_space<vmem>>, vector<1x128x128xbf16>
    %25 = vector.shape_cast %24 : vector<1x128x128xbf16> to vector<128x128xbf16>
    %cst_31 = arith.constant dense<0.000000e+00> : vector<288x128xf32>
    %26 = tpu.matmul %23, %25, %cst_31 {dimension_numbers = #tpu.dot_dimension_numbers<[1], [0], [0], [1], [0, 0, 1, 1], [], []>} : vector<288x128xbf16>, vector<128x128xbf16>, vector<288x128xf32> -> vector<288x128xf32>
    %c0_32 = arith.constant 0 : index
    %c0_33 = arith.constant 0 : index
    %27 = vector.load %arg5[%c0_32, %c0_33] : memref<288x128xf32, #tpu.memory_space<vmem>>, vector<288x128xf32>
    %28 = arith.addf %27, %26 : vector<288x128xf32>
    %c0_34 = arith.constant 0 : index
    %c0_35 = arith.constant 0 : index
    %29 = vector.load %arg5[%c0_34, %c0_35] : memref<288x128xf32, #tpu.memory_space<vmem>>, vector<288x128xf32>
    tpu.vector_store %arg5[%c0_34, %c0_35], %28 {strides = array<i32>} : memref<288x128xf32, #tpu.memory_space<vmem>>, vector<288x128xf32>,
    %c0_36 = arith.constant 0 : index
    %c19 = arith.constant 19 : index
    %c0_37 = arith.constant 0 : index
    %30 = vector.load %arg1[%c0_36, %c19, %c0_37] : memref<1x342x128xbf16, #tpu.memory_space<vmem>>, vector<1x288x128xbf16>
    %31 = vector.shape_cast %30 : vector<1x288x128xbf16> to vector<288x128xbf16>
    %c4 = arith.constant 4 : index
    %c0_38 = arith.constant 0 : index
    %c0_39 = arith.constant 0 : index
    %32 = vector.load %arg2[%c4, %c0_38, %c0_39] : memref<9x128x128xbf16, #tpu.memory_space<vmem>>, vector<1x128x128xbf16>
    %33 = vector.shape_cast %32 : vector<1x128x128xbf16> to vector<128x128xbf16>
    %cst_40 = arith.constant dense<0.000000e+00> : vector<288x128xf32>
    %34 = tpu.matmul %31, %33, %cst_40 {dimension_numbers = #tpu.dot_dimension_numbers<[1], [0], [0], [1], [0, 0, 1, 1], [], []>} : vector<288x128xbf16>, vector<128x128xbf16>, vector<288x128xf32> -> vector<288x128xf32>
    %c0_41 = arith.constant 0 : index
    %c0_42 = arith.constant 0 : index
    %35 = vector.load %arg5[%c0_41, %c0_42] : memref<288x128xf32, #tpu.memory_space<vmem>>, vector<288x128xf32>
    %36 = arith.addf %35, %34 : vector<288x128xf32>
    %c0_43 = arith.constant 0 : index
    %c0_44 = arith.constant 0 : index
    %37 = vector.load %arg5[%c0_43, %c0_44] : memref<288x128xf32, #tpu.memory_space<vmem>>, vector<288x128xf32>
    tpu.vector_store %arg5[%c0_43, %c0_44], %36 {strides = array<i32>} : memref<288x128xf32, #tpu.memory_space<vmem>>, vector<288x128xf32>,
    %c0_45 = arith.constant 0 : index
    %c20 = arith.constant 20 : index
    %c0_46 = arith.constant 0 : index
    %38 = vector.load %arg1[%c0_45, %c20, %c0_46] : memref<1x342x128xbf16, #tpu.memory_space<vmem>>, vector<1x288x128xbf16>
    %39 = vector.shape_cast %38 : vector<1x288x128xbf16> to vector<288x128xbf16>
    %c5 = arith.constant 5 : index
    %c0_47 = arith.constant 0 : index
    %c0_48 = arith.constant 0 : index
    %40 = vector.load %arg2[%c5, %c0_47, %c0_48] : memref<9x128x128xbf16, #tpu.memory_space<vmem>>, vector<1x128x128xbf16>
    %41 = vector.shape_cast %40 : vector<1x128x128xbf16> to vector<128x128xbf16>
    %cst_49 = arith.constant dense<0.000000e+00> : vector<288x128xf32>
    %42 = tpu.matmul %39, %41, %cst_49 {dimension_numbers = #tpu.dot_dimension_numbers<[1], [0], [0], [1], [0, 0, 1, 1], [], []>} : vector<288x128xbf16>, vector<128x128xbf16>, vector<288x128xf32> -> vector<288x128xf32>
    %c0_50 = arith.constant 0 : index
    %c0_51 = arith.constant 0 : index
    %43 = vector.load %arg5[%c0_50, %c0_51] : memref<288x128xf32, #tpu.memory_space<vmem>>, vector<288x128xf32>
    %44 = arith.addf %43, %42 : vector<288x128xf32>
    %c0_52 = arith.constant 0 : index
    %c0_53 = arith.constant 0 : index
    %45 = vector.load %arg5[%c0_52, %c0_53] : memref<288x128xf32, #tpu.memory_space<vmem>>, vector<288x128xf32>
    tpu.vector_store %arg5[%c0_52, %c0_53], %44 {strides = array<i32>} : memref<288x128xf32, #tpu.memory_space<vmem>>, vector<288x128xf32>,
    %c0_54 = arith.constant 0 : index
    %c36 = arith.constant 36 : index
    %c0_55 = arith.constant 0 : index
    %46 = vector.load %arg1[%c0_54, %c36, %c0_55] : memref<1x342x128xbf16, #tpu.memory_space<vmem>>, vector<1x288x128xbf16>
    %47 = vector.shape_cast %46 : vector<1x288x128xbf16> to vector<288x128xbf16>
    %c6 = arith.constant 6 : index
    %c0_56 = arith.constant 0 : index
    %c0_57 = arith.constant 0 : index
    %48 = vector.load %arg2[%c6, %c0_56, %c0_57] : memref<9x128x128xbf16, #tpu.memory_space<vmem>>, vector<1x128x128xbf16>
    %49 = vector.shape_cast %48 : vector<1x128x128xbf16> to vector<128x128xbf16>
    %cst_58 = arith.constant dense<0.000000e+00> : vector<288x128xf32>
    %50 = tpu.matmul %47, %49, %cst_58 {dimension_numbers = #tpu.dot_dimension_numbers<[1], [0], [0], [1], [0, 0, 1, 1], [], []>} : vector<288x128xbf16>, vector<128x128xbf16>, vector<288x128xf32> -> vector<288x128xf32>
    %c0_59 = arith.constant 0 : index
    %c0_60 = arith.constant 0 : index
    %51 = vector.load %arg5[%c0_59, %c0_60] : memref<288x128xf32, #tpu.memory_space<vmem>>, vector<288x128xf32>
    %52 = arith.addf %51, %50 : vector<288x128xf32>
    %c0_61 = arith.constant 0 : index
    %c0_62 = arith.constant 0 : index
    %53 = vector.load %arg5[%c0_61, %c0_62] : memref<288x128xf32, #tpu.memory_space<vmem>>, vector<288x128xf32>
    tpu.vector_store %arg5[%c0_61, %c0_62], %52 {strides = array<i32>} : memref<288x128xf32, #tpu.memory_space<vmem>>, vector<288x128xf32>,
    %c0_63 = arith.constant 0 : index
    %c37 = arith.constant 37 : index
    %c0_64 = arith.constant 0 : index
    %54 = vector.load %arg1[%c0_63, %c37, %c0_64] : memref<1x342x128xbf16, #tpu.memory_space<vmem>>, vector<1x288x128xbf16>
    %55 = vector.shape_cast %54 : vector<1x288x128xbf16> to vector<288x128xbf16>
    %c7 = arith.constant 7 : index
    %c0_65 = arith.constant 0 : index
    %c0_66 = arith.constant 0 : index
    %56 = vector.load %arg2[%c7, %c0_65, %c0_66] : memref<9x128x128xbf16, #tpu.memory_space<vmem>>, vector<1x128x128xbf16>
    %57 = vector.shape_cast %56 : vector<1x128x128xbf16> to vector<128x128xbf16>
    %cst_67 = arith.constant dense<0.000000e+00> : vector<288x128xf32>
    %58 = tpu.matmul %55, %57, %cst_67 {dimension_numbers = #tpu.dot_dimension_numbers<[1], [0], [0], [1], [0, 0, 1, 1], [], []>} : vector<288x128xbf16>, vector<128x128xbf16>, vector<288x128xf32> -> vector<288x128xf32>
    %c0_68 = arith.constant 0 : index
    %c0_69 = arith.constant 0 : index
    %59 = vector.load %arg5[%c0_68, %c0_69] : memref<288x128xf32, #tpu.memory_space<vmem>>, vector<288x128xf32>
    %60 = arith.addf %59, %58 : vector<288x128xf32>
    %c0_70 = arith.constant 0 : index
    %c0_71 = arith.constant 0 : index
    %61 = vector.load %arg5[%c0_70, %c0_71] : memref<288x128xf32, #tpu.memory_space<vmem>>, vector<288x128xf32>
    tpu.vector_store %arg5[%c0_70, %c0_71], %60 {strides = array<i32>} : memref<288x128xf32, #tpu.memory_space<vmem>>, vector<288x128xf32>,
    %c0_72 = arith.constant 0 : index
    %c38 = arith.constant 38 : index
    %c0_73 = arith.constant 0 : index
    %62 = vector.load %arg1[%c0_72, %c38, %c0_73] : memref<1x342x128xbf16, #tpu.memory_space<vmem>>, vector<1x288x128xbf16>
    %63 = vector.shape_cast %62 : vector<1x288x128xbf16> to vector<288x128xbf16>
    %c8 = arith.constant 8 : index
    %c0_74 = arith.constant 0 : index
    %c0_75 = arith.constant 0 : index
    %64 = vector.load %arg2[%c8, %c0_74, %c0_75] : memref<9x128x128xbf16, #tpu.memory_space<vmem>>, vector<1x128x128xbf16>
    %65 = vector.shape_cast %64 : vector<1x128x128xbf16> to vector<128x128xbf16>
    %cst_76 = arith.constant dense<0.000000e+00> : vector<288x128xf32>
    %66 = tpu.matmul %63, %65, %cst_76 {dimension_numbers = #tpu.dot_dimension_numbers<[1], [0], [0], [1], [0, 0, 1, 1], [], []>} : vector<288x128xbf16>, vector<128x128xbf16>, vector<288x128xf32> -> vector<288x128xf32>
    %c0_77 = arith.constant 0 : index
    %c0_78 = arith.constant 0 : index
    %67 = vector.load %arg5[%c0_77, %c0_78] : memref<288x128xf32, #tpu.memory_space<vmem>>, vector<288x128xf32>
    %68 = arith.addf %67, %66 : vector<288x128xf32>
    %c0_79 = arith.constant 0 : index
    %c0_80 = arith.constant 0 : index
    %69 = vector.load %arg5[%c0_79, %c0_80] : memref<288x128xf32, #tpu.memory_space<vmem>>, vector<288x128xf32>
    tpu.vector_store %arg5[%c0_79, %c0_80], %68 {strides = array<i32>} : memref<288x128xf32, #tpu.memory_space<vmem>>, vector<288x128xf32>,
    %c0_81 = arith.constant 0 : index
    %c0_82 = arith.constant 0 : index
    %70 = vector.load %arg5[%c0_81, %c0_82] : memref<288x128xf32, #tpu.memory_space<vmem>>, vector<288x128xf32>
    %c0_83 = arith.constant 0 : index
    %c0_84 = arith.constant 0 : index
    %71 = vector.load %arg3[%c0_83, %c0_84] : memref<1x128xf32, #tpu.memory_space<vmem>>, vector<1x128xf32>
    %72 = vector.broadcast %71 : vector<1x128xf32> to vector<288x128xf32>
    %73 = arith.addf %70, %72 : vector<288x128xf32>
    %cst_85 = arith.constant 0.000000e+00 : f32
    %74 = vector.broadcast %cst_85 : f32 to vector<288x128xf32>
    %75 = arith.maximumf %73, %74 : vector<288x128xf32>
    %76 = arith.truncf %75 : vector<288x128xf32> to vector<288x128xbf16>
    %77 = vector.extract_strided_slice %76 {offsets = [0, 0], sizes = [16, 128], strides = [1, 1]} : vector<288x128xbf16> to vector<16x128xbf16>
    %c0_86 = arith.constant 0 : index
    %c0_87 = arith.constant 0 : index
    %c0_88 = arith.constant 0 : index
    %c0_89 = arith.constant 0 : index
    %78 = vector.load %arg4[%c0_86, %c0_87, %c0_88, %c0_89] : memref<1x16x16x128xbf16, #tpu.memory_space<vmem>>, vector<1x1x16x128xbf16>
    %79 = vector.shape_cast %78 : vector<1x1x16x128xbf16> to vector<16x128xbf16>
    %80 = vector.shape_cast %77 : vector<16x128xbf16> to vector<1x1x16x128xbf16>
    tpu.vector_store %arg4[%c0_86, %c0_87, %c0_88, %c0_89], %80 {strides = array<i32>} : memref<1x16x16x128xbf16, #tpu.memory_space<vmem>>, vector<1x1x16x128xbf16>,
    %81 = vector.extract_strided_slice %76 {offsets = [18, 0], sizes = [16, 128], strides = [1, 1]} : vector<288x128xbf16> to vector<16x128xbf16>
    %c0_90 = arith.constant 0 : index
    %c1_91 = arith.constant 1 : index
    %c0_92 = arith.constant 0 : index
    %c0_93 = arith.constant 0 : index
    %82 = vector.load %arg4[%c0_90, %c1_91, %c0_92, %c0_93] : memref<1x16x16x128xbf16, #tpu.memory_space<vmem>>, vector<1x1x16x128xbf16>
    %83 = vector.shape_cast %82 : vector<1x1x16x128xbf16> to vector<16x128xbf16>
    %84 = vector.shape_cast %81 : vector<16x128xbf16> to vector<1x1x16x128xbf16>
    tpu.vector_store %arg4[%c0_90, %c1_91, %c0_92, %c0_93], %84 {strides = array<i32>} : memref<1x16x16x128xbf16, #tpu.memory_space<vmem>>, vector<1x1x16x128xbf16>,
    %85 = vector.extract_strided_slice %76 {offsets = [36, 0], sizes = [16, 128], strides = [1, 1]} : vector<288x128xbf16> to vector<16x128xbf16>
    %c0_94 = arith.constant 0 : index
    %c2_95 = arith.constant 2 : index
    %c0_96 = arith.constant 0 : index
    %c0_97 = arith.constant 0 : index
    %86 = vector.load %arg4[%c0_94, %c2_95, %c0_96, %c0_97] : memref<1x16x16x128xbf16, #tpu.memory_space<vmem>>, vector<1x1x16x128xbf16>
    %87 = vector.shape_cast %86 : vector<1x1x16x128xbf16> to vector<16x128xbf16>
    %88 = vector.shape_cast %85 : vector<16x128xbf16> to vector<1x1x16x128xbf16>
    tpu.vector_store %arg4[%c0_94, %c2_95, %c0_96, %c0_97], %88 {strides = array<i32>} : memref<1x16x16x128xbf16, #tpu.memory_space<vmem>>, vector<1x1x16x128xbf16>,
    %89 = vector.extract_strided_slice %76 {offsets = [54, 0], sizes = [16, 128], strides = [1, 1]} : vector<288x128xbf16> to vector<16x128xbf16>
    %c0_98 = arith.constant 0 : index
    %c3_99 = arith.constant 3 : index
    %c0_100 = arith.constant 0 : index
    %c0_101 = arith.constant 0 : index
    %90 = vector.load %arg4[%c0_98, %c3_99, %c0_100, %c0_101] : memref<1x16x16x128xbf16, #tpu.memory_space<vmem>>, vector<1x1x16x128xbf16>
    %91 = vector.shape_cast %90 : vector<1x1x16x128xbf16> to vector<16x128xbf16>
    %92 = vector.shape_cast %89 : vector<16x128xbf16> to vector<1x1x16x128xbf16>
    tpu.vector_store %arg4[%c0_98, %c3_99, %c0_100, %c0_101], %92 {strides = array<i32>} : memref<1x16x16x128xbf16, #tpu.memory_space<vmem>>, vector<1x1x16x128xbf16>,
    %93 = vector.extract_strided_slice %76 {offsets = [72, 0], sizes = [16, 128], strides = [1, 1]} : vector<288x128xbf16> to vector<16x128xbf16>
    %c0_102 = arith.constant 0 : index
    %c4_103 = arith.constant 4 : index
    %c0_104 = arith.constant 0 : index
    %c0_105 = arith.constant 0 : index
    %94 = vector.load %arg4[%c0_102, %c4_103, %c0_104, %c0_105] : memref<1x16x16x128xbf16, #tpu.memory_space<vmem>>, vector<1x1x16x128xbf16>
    %95 = vector.shape_cast %94 : vector<1x1x16x128xbf16> to vector<16x128xbf16>
    %96 = vector.shape_cast %93 : vector<16x128xbf16> to vector<1x1x16x128xbf16>
    tpu.vector_store %arg4[%c0_102, %c4_103, %c0_104, %c0_105], %96 {strides = array<i32>} : memref<1x16x16x128xbf16, #tpu.memory_space<vmem>>, vector<1x1x16x128xbf16>,
    %97 = vector.extract_strided_slice %76 {offsets = [90, 0], sizes = [16, 128], strides = [1, 1]} : vector<288x128xbf16> to vector<16x128xbf16>
    %c0_106 = arith.constant 0 : index
    %c5_107 = arith.constant 5 : index
    %c0_108 = arith.constant 0 : index
    %c0_109 = arith.constant 0 : index
    %98 = vector.load %arg4[%c0_106, %c5_107, %c0_108, %c0_109] : memref<1x16x16x128xbf16, #tpu.memory_space<vmem>>, vector<1x1x16x128xbf16>
    %99 = vector.shape_cast %98 : vector<1x1x16x128xbf16> to vector<16x128xbf16>
    %100 = vector.shape_cast %97 : vector<16x128xbf16> to vector<1x1x16x128xbf16>
    tpu.vector_store %arg4[%c0_106, %c5_107, %c0_108, %c0_109], %100 {strides = array<i32>} : memref<1x16x16x128xbf16, #tpu.memory_space<vmem>>, vector<1x1x16x128xbf16>,
    %101 = vector.extract_strided_slice %76 {offsets = [108, 0], sizes = [16, 128], strides = [1, 1]} : vector<288x128xbf16> to vector<16x128xbf16>
    %c0_110 = arith.constant 0 : index
    %c6_111 = arith.constant 6 : index
    %c0_112 = arith.constant 0 : index
    %c0_113 = arith.constant 0 : index
    %102 = vector.load %arg4[%c0_110, %c6_111, %c0_112, %c0_113] : memref<1x16x16x128xbf16, #tpu.memory_space<vmem>>, vector<1x1x16x128xbf16>
    %103 = vector.shape_cast %102 : vector<1x1x16x128xbf16> to vector<16x128xbf16>
    %104 = vector.shape_cast %101 : vector<16x128xbf16> to vector<1x1x16x128xbf16>
    tpu.vector_store %arg4[%c0_110, %c6_111, %c0_112, %c0_113], %104 {strides = array<i32>} : memref<1x16x16x128xbf16, #tpu.memory_space<vmem>>, vector<1x1x16x128xbf16>,
    %105 = vector.extract_strided_slice %76 {offsets = [126, 0], sizes = [16, 128], strides = [1, 1]} : vector<288x128xbf16> to vector<16x128xbf16>
    %c0_114 = arith.constant 0 : index
    %c7_115 = arith.constant 7 : index
    %c0_116 = arith.constant 0 : index
    %c0_117 = arith.constant 0 : index
    %106 = vector.load %arg4[%c0_114, %c7_115, %c0_116, %c0_117] : memref<1x16x16x128xbf16, #tpu.memory_space<vmem>>, vector<1x1x16x128xbf16>
    %107 = vector.shape_cast %106 : vector<1x1x16x128xbf16> to vector<16x128xbf16>
    %108 = vector.shape_cast %105 : vector<16x128xbf16> to vector<1x1x16x128xbf16>
    tpu.vector_store %arg4[%c0_114, %c7_115, %c0_116, %c0_117], %108 {strides = array<i32>} : memref<1x16x16x128xbf16, #tpu.memory_space<vmem>>, vector<1x1x16x128xbf16>,
    %109 = vector.extract_strided_slice %76 {offsets = [144, 0], sizes = [16, 128], strides = [1, 1]} : vector<288x128xbf16> to vector<16x128xbf16>
    %c0_118 = arith.constant 0 : index
    %c8_119 = arith.constant 8 : index
    %c0_120 = arith.constant 0 : index
    %c0_121 = arith.constant 0 : index
    %110 = vector.load %arg4[%c0_118, %c8_119, %c0_120, %c0_121] : memref<1x16x16x128xbf16, #tpu.memory_space<vmem>>, vector<1x1x16x128xbf16>
    %111 = vector.shape_cast %110 : vector<1x1x16x128xbf16> to vector<16x128xbf16>
    %112 = vector.shape_cast %109 : vector<16x128xbf16> to vector<1x1x16x128xbf16>
    tpu.vector_store %arg4[%c0_118, %c8_119, %c0_120, %c0_121], %112 {strides = array<i32>} : memref<1x16x16x128xbf16, #tpu.memory_space<vmem>>, vector<1x1x16x128xbf16>,
    %113 = vector.extract_strided_slice %76 {offsets = [162, 0], sizes = [16, 128], strides = [1, 1]} : vector<288x128xbf16> to vector<16x128xbf16>
    %c0_122 = arith.constant 0 : index
    %c9 = arith.constant 9 : index
    %c0_123 = arith.constant 0 : index
    %c0_124 = arith.constant 0 : index
    %114 = vector.load %arg4[%c0_122, %c9, %c0_123, %c0_124] : memref<1x16x16x128xbf16, #tpu.memory_space<vmem>>, vector<1x1x16x128xbf16>
    %115 = vector.shape_cast %114 : vector<1x1x16x128xbf16> to vector<16x128xbf16>
    %116 = vector.shape_cast %113 : vector<16x128xbf16> to vector<1x1x16x128xbf16>
    tpu.vector_store %arg4[%c0_122, %c9, %c0_123, %c0_124], %116 {strides = array<i32>} : memref<1x16x16x128xbf16, #tpu.memory_space<vmem>>, vector<1x1x16x128xbf16>,
    %117 = vector.extract_strided_slice %76 {offsets = [180, 0], sizes = [16, 128], strides = [1, 1]} : vector<288x128xbf16> to vector<16x128xbf16>
    %c0_125 = arith.constant 0 : index
    %c10 = arith.constant 10 : index
    %c0_126 = arith.constant 0 : index
    %c0_127 = arith.constant 0 : index
    %118 = vector.load %arg4[%c0_125, %c10, %c0_126, %c0_127] : memref<1x16x16x128xbf16, #tpu.memory_space<vmem>>, vector<1x1x16x128xbf16>
    %119 = vector.shape_cast %118 : vector<1x1x16x128xbf16> to vector<16x128xbf16>
    %120 = vector.shape_cast %117 : vector<16x128xbf16> to vector<1x1x16x128xbf16>
    tpu.vector_store %arg4[%c0_125, %c10, %c0_126, %c0_127], %120 {strides = array<i32>} : memref<1x16x16x128xbf16, #tpu.memory_space<vmem>>, vector<1x1x16x128xbf16>,
    %121 = vector.extract_strided_slice %76 {offsets = [198, 0], sizes = [16, 128], strides = [1, 1]} : vector<288x128xbf16> to vector<16x128xbf16>
    %c0_128 = arith.constant 0 : index
    %c11 = arith.constant 11 : index
    %c0_129 = arith.constant 0 : index
    %c0_130 = arith.constant 0 : index
    %122 = vector.load %arg4[%c0_128, %c11, %c0_129, %c0_130] : memref<1x16x16x128xbf16, #tpu.memory_space<vmem>>, vector<1x1x16x128xbf16>
    %123 = vector.shape_cast %122 : vector<1x1x16x128xbf16> to vector<16x128xbf16>
    %124 = vector.shape_cast %121 : vector<16x128xbf16> to vector<1x1x16x128xbf16>
    tpu.vector_store %arg4[%c0_128, %c11, %c0_129, %c0_130], %124 {strides = array<i32>} : memref<1x16x16x128xbf16, #tpu.memory_space<vmem>>, vector<1x1x16x128xbf16>,
    %125 = vector.extract_strided_slice %76 {offsets = [216, 0], sizes = [16, 128], strides = [1, 1]} : vector<288x128xbf16> to vector<16x128xbf16>
    %c0_131 = arith.constant 0 : index
    %c12 = arith.constant 12 : index
    %c0_132 = arith.constant 0 : index
    %c0_133 = arith.constant 0 : index
    %126 = vector.load %arg4[%c0_131, %c12, %c0_132, %c0_133] : memref<1x16x16x128xbf16, #tpu.memory_space<vmem>>, vector<1x1x16x128xbf16>
    %127 = vector.shape_cast %126 : vector<1x1x16x128xbf16> to vector<16x128xbf16>
    %128 = vector.shape_cast %125 : vector<16x128xbf16> to vector<1x1x16x128xbf16>
    tpu.vector_store %arg4[%c0_131, %c12, %c0_132, %c0_133], %128 {strides = array<i32>} : memref<1x16x16x128xbf16, #tpu.memory_space<vmem>>, vector<1x1x16x128xbf16>,
    %129 = vector.extract_strided_slice %76 {offsets = [234, 0], sizes = [16, 128], strides = [1, 1]} : vector<288x128xbf16> to vector<16x128xbf16>
    %c0_134 = arith.constant 0 : index
    %c13 = arith.constant 13 : index
    %c0_135 = arith.constant 0 : index
    %c0_136 = arith.constant 0 : index
    %130 = vector.load %arg4[%c0_134, %c13, %c0_135, %c0_136] : memref<1x16x16x128xbf16, #tpu.memory_space<vmem>>, vector<1x1x16x128xbf16>
    %131 = vector.shape_cast %130 : vector<1x1x16x128xbf16> to vector<16x128xbf16>
    %132 = vector.shape_cast %129 : vector<16x128xbf16> to vector<1x1x16x128xbf16>
    tpu.vector_store %arg4[%c0_134, %c13, %c0_135, %c0_136], %132 {strides = array<i32>} : memref<1x16x16x128xbf16, #tpu.memory_space<vmem>>, vector<1x1x16x128xbf16>,
    %133 = vector.extract_strided_slice %76 {offsets = [252, 0], sizes = [16, 128], strides = [1, 1]} : vector<288x128xbf16> to vector<16x128xbf16>
    %c0_137 = arith.constant 0 : index
    %c14 = arith.constant 14 : index
    %c0_138 = arith.constant 0 : index
    %c0_139 = arith.constant 0 : index
    %134 = vector.load %arg4[%c0_137, %c14, %c0_138, %c0_139] : memref<1x16x16x128xbf16, #tpu.memory_space<vmem>>, vector<1x1x16x128xbf16>
    %135 = vector.shape_cast %134 : vector<1x1x16x128xbf16> to vector<16x128xbf16>
    %136 = vector.shape_cast %133 : vector<16x128xbf16> to vector<1x1x16x128xbf16>
    tpu.vector_store %arg4[%c0_137, %c14, %c0_138, %c0_139], %136 {strides = array<i32>} : memref<1x16x16x128xbf16, #tpu.memory_space<vmem>>, vector<1x1x16x128xbf16>,
    %137 = vector.extract_strided_slice %76 {offsets = [270, 0], sizes = [16, 128], strides = [1, 1]} : vector<288x128xbf16> to vector<16x128xbf16>
    %c0_140 = arith.constant 0 : index
    %c15 = arith.constant 15 : index
    %c0_141 = arith.constant 0 : index
    %c0_142 = arith.constant 0 : index
    %138 = vector.load %arg4[%c0_140, %c15, %c0_141, %c0_142] : memref<1x16x16x128xbf16, #tpu.memory_space<vmem>>, vector<1x1x16x128xbf16>
    %139 = vector.shape_cast %138 : vector<1x1x16x128xbf16> to vector<16x128xbf16>
    %140 = vector.shape_cast %137 : vector<16x128xbf16> to vector<1x1x16x128xbf16>
    tpu.vector_store %arg4[%c0_140, %c15, %c0_141, %c0_142], %140 {strides = array<i32>} : memref<1x16x16x128xbf16, #tpu.memory_space<vmem>>, vector<1x1x16x128xbf16>,
    return
  }
  func.func @transform_0(%arg0: i32) -> (i32, i32, i32) {
    %c0_i32 = arith.constant 0 : i32
    %c0_i32_0 = arith.constant 0 : i32
    %c0_i32_1 = arith.constant 0 : i32
    return %arg0, %c0_i32, %c0_i32_0 : i32, i32, i32
  }
  func.func @transform_1(%arg0: i32) -> (i32, i32, i32) {
    %c0_i32 = arith.constant 0 : i32
    %c0_i32_0 = arith.constant 0 : i32
    %c0_i32_1 = arith.constant 0 : i32
    %c0_i32_2 = arith.constant 0 : i32
    return %c0_i32, %c0_i32_0, %c0_i32_1 : i32, i32, i32
  }
  func.func @transform_2(%arg0: i32) -> (i32, i32) {
    %c0_i32 = arith.constant 0 : i32
    %c0_i32_0 = arith.constant 0 : i32
    %c0_i32_1 = arith.constant 0 : i32
    return %c0_i32, %c0_i32_0 : i32, i32
  }
  func.func @transform_3(%arg0: i32) -> (i32, i32, i32, i32) {
    %c0_i32 = arith.constant 0 : i32
    %c0_i32_0 = arith.constant 0 : i32
    %c0_i32_1 = arith.constant 0 : i32
    %c0_i32_2 = arith.constant 0 : i32
    return %arg0, %c0_i32, %c0_i32_0, %c0_i32_1 : i32, i32, i32, i32
  }
}

module attributes {stable_mosaic.version = 11 : i64} {
  func.func @_conv3x3_kernel(%arg0: i32, %arg1: memref<1x110x128xbf16, #tpu.memory_space<vmem>>, %arg2: memref<9x128x128xbf16, #tpu.memory_space<vmem>>, %arg3: memref<1x128xf32, #tpu.memory_space<vmem>>, %arg4: memref<1x8x8x128xbf16, #tpu.memory_space<vmem>>, %arg5: memref<80x128xf32, #tpu.memory_space<vmem>>) attributes {dimension_semantics = [#tpu.dimension_semantics<parallel>], iteration_bounds = array<i64: 2>, scalar_prefetch = 0 : i64, scratch_operands = 1 : i64, tpu.core_type = #tpu.core_type<tc>, window_params = [{transform_indices = @transform_0, window_bounds = array<i64: 1, 110, 128>}, {pipeline_mode = #tpu.pipeline_mode<synchronous>, transform_indices = @transform_1, window_bounds = array<i64: 9, 128, 128>}, {pipeline_mode = #tpu.pipeline_mode<synchronous>, transform_indices = @transform_2, window_bounds = array<i64: 1, 128>}, {transform_indices = @transform_3, window_bounds = array<i64: 1, 8, 8, 128>}]} {
    %c0 = arith.constant 0 : index
    %c0_0 = arith.constant 0 : index
    %c0_1 = arith.constant 0 : index
    %0 = vector.load %arg1[%c0, %c0_0, %c0_1] : memref<1x110x128xbf16, #tpu.memory_space<vmem>>, vector<1x80x128xbf16>
    %1 = vector.shape_cast %0 : vector<1x80x128xbf16> to vector<80x128xbf16>
    %c0_2 = arith.constant 0 : index
    %c0_3 = arith.constant 0 : index
    %c0_4 = arith.constant 0 : index
    %2 = vector.load %arg2[%c0_2, %c0_3, %c0_4] : memref<9x128x128xbf16, #tpu.memory_space<vmem>>, vector<1x128x128xbf16>
    %3 = vector.shape_cast %2 : vector<1x128x128xbf16> to vector<128x128xbf16>
    %cst = arith.constant dense<0.000000e+00> : vector<80x128xf32>
    %4 = tpu.matmul %1, %3, %cst {dimension_numbers = #tpu.dot_dimension_numbers<[1], [0], [0], [1], [0, 0, 1, 1], [], []>} : vector<80x128xbf16>, vector<128x128xbf16>, vector<80x128xf32> -> vector<80x128xf32>
    %c0_5 = arith.constant 0 : index
    %c0_6 = arith.constant 0 : index
    %5 = vector.load %arg5[%c0_5, %c0_6] : memref<80x128xf32, #tpu.memory_space<vmem>>, vector<80x128xf32>
    tpu.vector_store %arg5[%c0_5, %c0_6], %4 {strides = array<i32>} : memref<80x128xf32, #tpu.memory_space<vmem>>, vector<80x128xf32>,
    %c0_7 = arith.constant 0 : index
    %c1 = arith.constant 1 : index
    %c0_8 = arith.constant 0 : index
    %6 = vector.load %arg1[%c0_7, %c1, %c0_8] : memref<1x110x128xbf16, #tpu.memory_space<vmem>>, vector<1x80x128xbf16>
    %7 = vector.shape_cast %6 : vector<1x80x128xbf16> to vector<80x128xbf16>
    %c1_9 = arith.constant 1 : index
    %c0_10 = arith.constant 0 : index
    %c0_11 = arith.constant 0 : index
    %8 = vector.load %arg2[%c1_9, %c0_10, %c0_11] : memref<9x128x128xbf16, #tpu.memory_space<vmem>>, vector<1x128x128xbf16>
    %9 = vector.shape_cast %8 : vector<1x128x128xbf16> to vector<128x128xbf16>
    %cst_12 = arith.constant dense<0.000000e+00> : vector<80x128xf32>
    %10 = tpu.matmul %7, %9, %cst_12 {dimension_numbers = #tpu.dot_dimension_numbers<[1], [0], [0], [1], [0, 0, 1, 1], [], []>} : vector<80x128xbf16>, vector<128x128xbf16>, vector<80x128xf32> -> vector<80x128xf32>
    %c0_13 = arith.constant 0 : index
    %c0_14 = arith.constant 0 : index
    %11 = vector.load %arg5[%c0_13, %c0_14] : memref<80x128xf32, #tpu.memory_space<vmem>>, vector<80x128xf32>
    %12 = arith.addf %11, %10 : vector<80x128xf32>
    %c0_15 = arith.constant 0 : index
    %c0_16 = arith.constant 0 : index
    %13 = vector.load %arg5[%c0_15, %c0_16] : memref<80x128xf32, #tpu.memory_space<vmem>>, vector<80x128xf32>
    tpu.vector_store %arg5[%c0_15, %c0_16], %12 {strides = array<i32>} : memref<80x128xf32, #tpu.memory_space<vmem>>, vector<80x128xf32>,
    %c0_17 = arith.constant 0 : index
    %c2 = arith.constant 2 : index
    %c0_18 = arith.constant 0 : index
    %14 = vector.load %arg1[%c0_17, %c2, %c0_18] : memref<1x110x128xbf16, #tpu.memory_space<vmem>>, vector<1x80x128xbf16>
    %15 = vector.shape_cast %14 : vector<1x80x128xbf16> to vector<80x128xbf16>
    %c2_19 = arith.constant 2 : index
    %c0_20 = arith.constant 0 : index
    %c0_21 = arith.constant 0 : index
    %16 = vector.load %arg2[%c2_19, %c0_20, %c0_21] : memref<9x128x128xbf16, #tpu.memory_space<vmem>>, vector<1x128x128xbf16>
    %17 = vector.shape_cast %16 : vector<1x128x128xbf16> to vector<128x128xbf16>
    %cst_22 = arith.constant dense<0.000000e+00> : vector<80x128xf32>
    %18 = tpu.matmul %15, %17, %cst_22 {dimension_numbers = #tpu.dot_dimension_numbers<[1], [0], [0], [1], [0, 0, 1, 1], [], []>} : vector<80x128xbf16>, vector<128x128xbf16>, vector<80x128xf32> -> vector<80x128xf32>
    %c0_23 = arith.constant 0 : index
    %c0_24 = arith.constant 0 : index
    %19 = vector.load %arg5[%c0_23, %c0_24] : memref<80x128xf32, #tpu.memory_space<vmem>>, vector<80x128xf32>
    %20 = arith.addf %19, %18 : vector<80x128xf32>
    %c0_25 = arith.constant 0 : index
    %c0_26 = arith.constant 0 : index
    %21 = vector.load %arg5[%c0_25, %c0_26] : memref<80x128xf32, #tpu.memory_space<vmem>>, vector<80x128xf32>
    tpu.vector_store %arg5[%c0_25, %c0_26], %20 {strides = array<i32>} : memref<80x128xf32, #tpu.memory_space<vmem>>, vector<80x128xf32>,
    %c0_27 = arith.constant 0 : index
    %c10 = arith.constant 10 : index
    %c0_28 = arith.constant 0 : index
    %22 = vector.load %arg1[%c0_27, %c10, %c0_28] : memref<1x110x128xbf16, #tpu.memory_space<vmem>>, vector<1x80x128xbf16>
    %23 = vector.shape_cast %22 : vector<1x80x128xbf16> to vector<80x128xbf16>
    %c3 = arith.constant 3 : index
    %c0_29 = arith.constant 0 : index
    %c0_30 = arith.constant 0 : index
    %24 = vector.load %arg2[%c3, %c0_29, %c0_30] : memref<9x128x128xbf16, #tpu.memory_space<vmem>>, vector<1x128x128xbf16>
    %25 = vector.shape_cast %24 : vector<1x128x128xbf16> to vector<128x128xbf16>
    %cst_31 = arith.constant dense<0.000000e+00> : vector<80x128xf32>
    %26 = tpu.matmul %23, %25, %cst_31 {dimension_numbers = #tpu.dot_dimension_numbers<[1], [0], [0], [1], [0, 0, 1, 1], [], []>} : vector<80x128xbf16>, vector<128x128xbf16>, vector<80x128xf32> -> vector<80x128xf32>
    %c0_32 = arith.constant 0 : index
    %c0_33 = arith.constant 0 : index
    %27 = vector.load %arg5[%c0_32, %c0_33] : memref<80x128xf32, #tpu.memory_space<vmem>>, vector<80x128xf32>
    %28 = arith.addf %27, %26 : vector<80x128xf32>
    %c0_34 = arith.constant 0 : index
    %c0_35 = arith.constant 0 : index
    %29 = vector.load %arg5[%c0_34, %c0_35] : memref<80x128xf32, #tpu.memory_space<vmem>>, vector<80x128xf32>
    tpu.vector_store %arg5[%c0_34, %c0_35], %28 {strides = array<i32>} : memref<80x128xf32, #tpu.memory_space<vmem>>, vector<80x128xf32>,
    %c0_36 = arith.constant 0 : index
    %c11 = arith.constant 11 : index
    %c0_37 = arith.constant 0 : index
    %30 = vector.load %arg1[%c0_36, %c11, %c0_37] : memref<1x110x128xbf16, #tpu.memory_space<vmem>>, vector<1x80x128xbf16>
    %31 = vector.shape_cast %30 : vector<1x80x128xbf16> to vector<80x128xbf16>
    %c4 = arith.constant 4 : index
    %c0_38 = arith.constant 0 : index
    %c0_39 = arith.constant 0 : index
    %32 = vector.load %arg2[%c4, %c0_38, %c0_39] : memref<9x128x128xbf16, #tpu.memory_space<vmem>>, vector<1x128x128xbf16>
    %33 = vector.shape_cast %32 : vector<1x128x128xbf16> to vector<128x128xbf16>
    %cst_40 = arith.constant dense<0.000000e+00> : vector<80x128xf32>
    %34 = tpu.matmul %31, %33, %cst_40 {dimension_numbers = #tpu.dot_dimension_numbers<[1], [0], [0], [1], [0, 0, 1, 1], [], []>} : vector<80x128xbf16>, vector<128x128xbf16>, vector<80x128xf32> -> vector<80x128xf32>
    %c0_41 = arith.constant 0 : index
    %c0_42 = arith.constant 0 : index
    %35 = vector.load %arg5[%c0_41, %c0_42] : memref<80x128xf32, #tpu.memory_space<vmem>>, vector<80x128xf32>
    %36 = arith.addf %35, %34 : vector<80x128xf32>
    %c0_43 = arith.constant 0 : index
    %c0_44 = arith.constant 0 : index
    %37 = vector.load %arg5[%c0_43, %c0_44] : memref<80x128xf32, #tpu.memory_space<vmem>>, vector<80x128xf32>
    tpu.vector_store %arg5[%c0_43, %c0_44], %36 {strides = array<i32>} : memref<80x128xf32, #tpu.memory_space<vmem>>, vector<80x128xf32>,
    %c0_45 = arith.constant 0 : index
    %c12 = arith.constant 12 : index
    %c0_46 = arith.constant 0 : index
    %38 = vector.load %arg1[%c0_45, %c12, %c0_46] : memref<1x110x128xbf16, #tpu.memory_space<vmem>>, vector<1x80x128xbf16>
    %39 = vector.shape_cast %38 : vector<1x80x128xbf16> to vector<80x128xbf16>
    %c5 = arith.constant 5 : index
    %c0_47 = arith.constant 0 : index
    %c0_48 = arith.constant 0 : index
    %40 = vector.load %arg2[%c5, %c0_47, %c0_48] : memref<9x128x128xbf16, #tpu.memory_space<vmem>>, vector<1x128x128xbf16>
    %41 = vector.shape_cast %40 : vector<1x128x128xbf16> to vector<128x128xbf16>
    %cst_49 = arith.constant dense<0.000000e+00> : vector<80x128xf32>
    %42 = tpu.matmul %39, %41, %cst_49 {dimension_numbers = #tpu.dot_dimension_numbers<[1], [0], [0], [1], [0, 0, 1, 1], [], []>} : vector<80x128xbf16>, vector<128x128xbf16>, vector<80x128xf32> -> vector<80x128xf32>
    %c0_50 = arith.constant 0 : index
    %c0_51 = arith.constant 0 : index
    %43 = vector.load %arg5[%c0_50, %c0_51] : memref<80x128xf32, #tpu.memory_space<vmem>>, vector<80x128xf32>
    %44 = arith.addf %43, %42 : vector<80x128xf32>
    %c0_52 = arith.constant 0 : index
    %c0_53 = arith.constant 0 : index
    %45 = vector.load %arg5[%c0_52, %c0_53] : memref<80x128xf32, #tpu.memory_space<vmem>>, vector<80x128xf32>
    tpu.vector_store %arg5[%c0_52, %c0_53], %44 {strides = array<i32>} : memref<80x128xf32, #tpu.memory_space<vmem>>, vector<80x128xf32>,
    %c0_54 = arith.constant 0 : index
    %c20 = arith.constant 20 : index
    %c0_55 = arith.constant 0 : index
    %46 = vector.load %arg1[%c0_54, %c20, %c0_55] : memref<1x110x128xbf16, #tpu.memory_space<vmem>>, vector<1x80x128xbf16>
    %47 = vector.shape_cast %46 : vector<1x80x128xbf16> to vector<80x128xbf16>
    %c6 = arith.constant 6 : index
    %c0_56 = arith.constant 0 : index
    %c0_57 = arith.constant 0 : index
    %48 = vector.load %arg2[%c6, %c0_56, %c0_57] : memref<9x128x128xbf16, #tpu.memory_space<vmem>>, vector<1x128x128xbf16>
    %49 = vector.shape_cast %48 : vector<1x128x128xbf16> to vector<128x128xbf16>
    %cst_58 = arith.constant dense<0.000000e+00> : vector<80x128xf32>
    %50 = tpu.matmul %47, %49, %cst_58 {dimension_numbers = #tpu.dot_dimension_numbers<[1], [0], [0], [1], [0, 0, 1, 1], [], []>} : vector<80x128xbf16>, vector<128x128xbf16>, vector<80x128xf32> -> vector<80x128xf32>
    %c0_59 = arith.constant 0 : index
    %c0_60 = arith.constant 0 : index
    %51 = vector.load %arg5[%c0_59, %c0_60] : memref<80x128xf32, #tpu.memory_space<vmem>>, vector<80x128xf32>
    %52 = arith.addf %51, %50 : vector<80x128xf32>
    %c0_61 = arith.constant 0 : index
    %c0_62 = arith.constant 0 : index
    %53 = vector.load %arg5[%c0_61, %c0_62] : memref<80x128xf32, #tpu.memory_space<vmem>>, vector<80x128xf32>
    tpu.vector_store %arg5[%c0_61, %c0_62], %52 {strides = array<i32>} : memref<80x128xf32, #tpu.memory_space<vmem>>, vector<80x128xf32>,
    %c0_63 = arith.constant 0 : index
    %c21 = arith.constant 21 : index
    %c0_64 = arith.constant 0 : index
    %54 = vector.load %arg1[%c0_63, %c21, %c0_64] : memref<1x110x128xbf16, #tpu.memory_space<vmem>>, vector<1x80x128xbf16>
    %55 = vector.shape_cast %54 : vector<1x80x128xbf16> to vector<80x128xbf16>
    %c7 = arith.constant 7 : index
    %c0_65 = arith.constant 0 : index
    %c0_66 = arith.constant 0 : index
    %56 = vector.load %arg2[%c7, %c0_65, %c0_66] : memref<9x128x128xbf16, #tpu.memory_space<vmem>>, vector<1x128x128xbf16>
    %57 = vector.shape_cast %56 : vector<1x128x128xbf16> to vector<128x128xbf16>
    %cst_67 = arith.constant dense<0.000000e+00> : vector<80x128xf32>
    %58 = tpu.matmul %55, %57, %cst_67 {dimension_numbers = #tpu.dot_dimension_numbers<[1], [0], [0], [1], [0, 0, 1, 1], [], []>} : vector<80x128xbf16>, vector<128x128xbf16>, vector<80x128xf32> -> vector<80x128xf32>
    %c0_68 = arith.constant 0 : index
    %c0_69 = arith.constant 0 : index
    %59 = vector.load %arg5[%c0_68, %c0_69] : memref<80x128xf32, #tpu.memory_space<vmem>>, vector<80x128xf32>
    %60 = arith.addf %59, %58 : vector<80x128xf32>
    %c0_70 = arith.constant 0 : index
    %c0_71 = arith.constant 0 : index
    %61 = vector.load %arg5[%c0_70, %c0_71] : memref<80x128xf32, #tpu.memory_space<vmem>>, vector<80x128xf32>
    tpu.vector_store %arg5[%c0_70, %c0_71], %60 {strides = array<i32>} : memref<80x128xf32, #tpu.memory_space<vmem>>, vector<80x128xf32>,
    %c0_72 = arith.constant 0 : index
    %c22 = arith.constant 22 : index
    %c0_73 = arith.constant 0 : index
    %62 = vector.load %arg1[%c0_72, %c22, %c0_73] : memref<1x110x128xbf16, #tpu.memory_space<vmem>>, vector<1x80x128xbf16>
    %63 = vector.shape_cast %62 : vector<1x80x128xbf16> to vector<80x128xbf16>
    %c8 = arith.constant 8 : index
    %c0_74 = arith.constant 0 : index
    %c0_75 = arith.constant 0 : index
    %64 = vector.load %arg2[%c8, %c0_74, %c0_75] : memref<9x128x128xbf16, #tpu.memory_space<vmem>>, vector<1x128x128xbf16>
    %65 = vector.shape_cast %64 : vector<1x128x128xbf16> to vector<128x128xbf16>
    %cst_76 = arith.constant dense<0.000000e+00> : vector<80x128xf32>
    %66 = tpu.matmul %63, %65, %cst_76 {dimension_numbers = #tpu.dot_dimension_numbers<[1], [0], [0], [1], [0, 0, 1, 1], [], []>} : vector<80x128xbf16>, vector<128x128xbf16>, vector<80x128xf32> -> vector<80x128xf32>
    %c0_77 = arith.constant 0 : index
    %c0_78 = arith.constant 0 : index
    %67 = vector.load %arg5[%c0_77, %c0_78] : memref<80x128xf32, #tpu.memory_space<vmem>>, vector<80x128xf32>
    %68 = arith.addf %67, %66 : vector<80x128xf32>
    %c0_79 = arith.constant 0 : index
    %c0_80 = arith.constant 0 : index
    %69 = vector.load %arg5[%c0_79, %c0_80] : memref<80x128xf32, #tpu.memory_space<vmem>>, vector<80x128xf32>
    tpu.vector_store %arg5[%c0_79, %c0_80], %68 {strides = array<i32>} : memref<80x128xf32, #tpu.memory_space<vmem>>, vector<80x128xf32>,
    %c0_81 = arith.constant 0 : index
    %c0_82 = arith.constant 0 : index
    %70 = vector.load %arg5[%c0_81, %c0_82] : memref<80x128xf32, #tpu.memory_space<vmem>>, vector<80x128xf32>
    %c0_83 = arith.constant 0 : index
    %c0_84 = arith.constant 0 : index
    %71 = vector.load %arg3[%c0_83, %c0_84] : memref<1x128xf32, #tpu.memory_space<vmem>>, vector<1x128xf32>
    %72 = vector.broadcast %71 : vector<1x128xf32> to vector<80x128xf32>
    %73 = arith.addf %70, %72 : vector<80x128xf32>
    %cst_85 = arith.constant 0.000000e+00 : f32
    %74 = vector.broadcast %cst_85 : f32 to vector<80x128xf32>
    %75 = arith.maximumf %73, %74 : vector<80x128xf32>
    %76 = arith.truncf %75 : vector<80x128xf32> to vector<80x128xbf16>
    %77 = vector.extract_strided_slice %76 {offsets = [0, 0], sizes = [8, 128], strides = [1, 1]} : vector<80x128xbf16> to vector<8x128xbf16>
    %c0_86 = arith.constant 0 : index
    %c0_87 = arith.constant 0 : index
    %c0_88 = arith.constant 0 : index
    %c0_89 = arith.constant 0 : index
    %78 = vector.load %arg4[%c0_86, %c0_87, %c0_88, %c0_89] : memref<1x8x8x128xbf16, #tpu.memory_space<vmem>>, vector<1x1x8x128xbf16>
    %79 = vector.shape_cast %78 : vector<1x1x8x128xbf16> to vector<8x128xbf16>
    %80 = vector.shape_cast %77 : vector<8x128xbf16> to vector<1x1x8x128xbf16>
    tpu.vector_store %arg4[%c0_86, %c0_87, %c0_88, %c0_89], %80 {strides = array<i32>} : memref<1x8x8x128xbf16, #tpu.memory_space<vmem>>, vector<1x1x8x128xbf16>,
    %81 = vector.extract_strided_slice %76 {offsets = [10, 0], sizes = [8, 128], strides = [1, 1]} : vector<80x128xbf16> to vector<8x128xbf16>
    %c0_90 = arith.constant 0 : index
    %c1_91 = arith.constant 1 : index
    %c0_92 = arith.constant 0 : index
    %c0_93 = arith.constant 0 : index
    %82 = vector.load %arg4[%c0_90, %c1_91, %c0_92, %c0_93] : memref<1x8x8x128xbf16, #tpu.memory_space<vmem>>, vector<1x1x8x128xbf16>
    %83 = vector.shape_cast %82 : vector<1x1x8x128xbf16> to vector<8x128xbf16>
    %84 = vector.shape_cast %81 : vector<8x128xbf16> to vector<1x1x8x128xbf16>
    tpu.vector_store %arg4[%c0_90, %c1_91, %c0_92, %c0_93], %84 {strides = array<i32>} : memref<1x8x8x128xbf16, #tpu.memory_space<vmem>>, vector<1x1x8x128xbf16>,
    %85 = vector.extract_strided_slice %76 {offsets = [20, 0], sizes = [8, 128], strides = [1, 1]} : vector<80x128xbf16> to vector<8x128xbf16>
    %c0_94 = arith.constant 0 : index
    %c2_95 = arith.constant 2 : index
    %c0_96 = arith.constant 0 : index
    %c0_97 = arith.constant 0 : index
    %86 = vector.load %arg4[%c0_94, %c2_95, %c0_96, %c0_97] : memref<1x8x8x128xbf16, #tpu.memory_space<vmem>>, vector<1x1x8x128xbf16>
    %87 = vector.shape_cast %86 : vector<1x1x8x128xbf16> to vector<8x128xbf16>
    %88 = vector.shape_cast %85 : vector<8x128xbf16> to vector<1x1x8x128xbf16>
    tpu.vector_store %arg4[%c0_94, %c2_95, %c0_96, %c0_97], %88 {strides = array<i32>} : memref<1x8x8x128xbf16, #tpu.memory_space<vmem>>, vector<1x1x8x128xbf16>,
    %89 = vector.extract_strided_slice %76 {offsets = [30, 0], sizes = [8, 128], strides = [1, 1]} : vector<80x128xbf16> to vector<8x128xbf16>
    %c0_98 = arith.constant 0 : index
    %c3_99 = arith.constant 3 : index
    %c0_100 = arith.constant 0 : index
    %c0_101 = arith.constant 0 : index
    %90 = vector.load %arg4[%c0_98, %c3_99, %c0_100, %c0_101] : memref<1x8x8x128xbf16, #tpu.memory_space<vmem>>, vector<1x1x8x128xbf16>
    %91 = vector.shape_cast %90 : vector<1x1x8x128xbf16> to vector<8x128xbf16>
    %92 = vector.shape_cast %89 : vector<8x128xbf16> to vector<1x1x8x128xbf16>
    tpu.vector_store %arg4[%c0_98, %c3_99, %c0_100, %c0_101], %92 {strides = array<i32>} : memref<1x8x8x128xbf16, #tpu.memory_space<vmem>>, vector<1x1x8x128xbf16>,
    %93 = vector.extract_strided_slice %76 {offsets = [40, 0], sizes = [8, 128], strides = [1, 1]} : vector<80x128xbf16> to vector<8x128xbf16>
    %c0_102 = arith.constant 0 : index
    %c4_103 = arith.constant 4 : index
    %c0_104 = arith.constant 0 : index
    %c0_105 = arith.constant 0 : index
    %94 = vector.load %arg4[%c0_102, %c4_103, %c0_104, %c0_105] : memref<1x8x8x128xbf16, #tpu.memory_space<vmem>>, vector<1x1x8x128xbf16>
    %95 = vector.shape_cast %94 : vector<1x1x8x128xbf16> to vector<8x128xbf16>
    %96 = vector.shape_cast %93 : vector<8x128xbf16> to vector<1x1x8x128xbf16>
    tpu.vector_store %arg4[%c0_102, %c4_103, %c0_104, %c0_105], %96 {strides = array<i32>} : memref<1x8x8x128xbf16, #tpu.memory_space<vmem>>, vector<1x1x8x128xbf16>,
    %97 = vector.extract_strided_slice %76 {offsets = [50, 0], sizes = [8, 128], strides = [1, 1]} : vector<80x128xbf16> to vector<8x128xbf16>
    %c0_106 = arith.constant 0 : index
    %c5_107 = arith.constant 5 : index
    %c0_108 = arith.constant 0 : index
    %c0_109 = arith.constant 0 : index
    %98 = vector.load %arg4[%c0_106, %c5_107, %c0_108, %c0_109] : memref<1x8x8x128xbf16, #tpu.memory_space<vmem>>, vector<1x1x8x128xbf16>
    %99 = vector.shape_cast %98 : vector<1x1x8x128xbf16> to vector<8x128xbf16>
    %100 = vector.shape_cast %97 : vector<8x128xbf16> to vector<1x1x8x128xbf16>
    tpu.vector_store %arg4[%c0_106, %c5_107, %c0_108, %c0_109], %100 {strides = array<i32>} : memref<1x8x8x128xbf16, #tpu.memory_space<vmem>>, vector<1x1x8x128xbf16>,
    %101 = vector.extract_strided_slice %76 {offsets = [60, 0], sizes = [8, 128], strides = [1, 1]} : vector<80x128xbf16> to vector<8x128xbf16>
    %c0_110 = arith.constant 0 : index
    %c6_111 = arith.constant 6 : index
    %c0_112 = arith.constant 0 : index
    %c0_113 = arith.constant 0 : index
    %102 = vector.load %arg4[%c0_110, %c6_111, %c0_112, %c0_113] : memref<1x8x8x128xbf16, #tpu.memory_space<vmem>>, vector<1x1x8x128xbf16>
    %103 = vector.shape_cast %102 : vector<1x1x8x128xbf16> to vector<8x128xbf16>
    %104 = vector.shape_cast %101 : vector<8x128xbf16> to vector<1x1x8x128xbf16>
    tpu.vector_store %arg4[%c0_110, %c6_111, %c0_112, %c0_113], %104 {strides = array<i32>} : memref<1x8x8x128xbf16, #tpu.memory_space<vmem>>, vector<1x1x8x128xbf16>,
    %105 = vector.extract_strided_slice %76 {offsets = [70, 0], sizes = [8, 128], strides = [1, 1]} : vector<80x128xbf16> to vector<8x128xbf16>
    %c0_114 = arith.constant 0 : index
    %c7_115 = arith.constant 7 : index
    %c0_116 = arith.constant 0 : index
    %c0_117 = arith.constant 0 : index
    %106 = vector.load %arg4[%c0_114, %c7_115, %c0_116, %c0_117] : memref<1x8x8x128xbf16, #tpu.memory_space<vmem>>, vector<1x1x8x128xbf16>
    %107 = vector.shape_cast %106 : vector<1x1x8x128xbf16> to vector<8x128xbf16>
    %108 = vector.shape_cast %105 : vector<8x128xbf16> to vector<1x1x8x128xbf16>
    tpu.vector_store %arg4[%c0_114, %c7_115, %c0_116, %c0_117], %108 {strides = array<i32>} : memref<1x8x8x128xbf16, #tpu.memory_space<vmem>>, vector<1x1x8x128xbf16>,
    return
  }
  func.func @transform_0(%arg0: i32) -> (i32, i32, i32) {
    %c0_i32 = arith.constant 0 : i32
    %c0_i32_0 = arith.constant 0 : i32
    %c0_i32_1 = arith.constant 0 : i32
    return %arg0, %c0_i32, %c0_i32_0 : i32, i32, i32
  }
  func.func @transform_1(%arg0: i32) -> (i32, i32, i32) {
    %c0_i32 = arith.constant 0 : i32
    %c0_i32_0 = arith.constant 0 : i32
    %c0_i32_1 = arith.constant 0 : i32
    %c0_i32_2 = arith.constant 0 : i32
    return %c0_i32, %c0_i32_0, %c0_i32_1 : i32, i32, i32
  }
  func.func @transform_2(%arg0: i32) -> (i32, i32) {
    %c0_i32 = arith.constant 0 : i32
    %c0_i32_0 = arith.constant 0 : i32
    %c0_i32_1 = arith.constant 0 : i32
    return %c0_i32, %c0_i32_0 : i32, i32
  }
  func.func @transform_3(%arg0: i32) -> (i32, i32, i32, i32) {
    %c0_i32 = arith.constant 0 : i32
    %c0_i32_0 = arith.constant 0 : i32
    %c0_i32_1 = arith.constant 0 : i32
    %c0_i32_2 = arith.constant 0 : i32
    return %arg0, %c0_i32, %c0_i32_0, %c0_i32_1 : i32, i32, i32, i32
  }
}

module attributes {stable_mosaic.version = 11 : i64} {
  func.func @_maxpool2x2_kernel(%arg0: i32, %arg1: memref<1x8x4x256xbf16, #tpu.memory_space<vmem>>, %arg2: memref<1x4x4x128xbf16, #tpu.memory_space<vmem>>) attributes {dimension_semantics = [#tpu.dimension_semantics<parallel>], iteration_bounds = array<i64: 2>, scalar_prefetch = 0 : i64, scratch_operands = 0 : i64, tpu.core_type = #tpu.core_type<tc>, window_params = [{transform_indices = @transform_0, window_bounds = array<i64: 1, 8, 4, 256>}, {transform_indices = @transform_1, window_bounds = array<i64: 1, 4, 4, 128>}]} {
    %c0 = arith.constant 0 : index
    %c0_0 = arith.constant 0 : index
    %c0_1 = arith.constant 0 : index
    %c0_2 = arith.constant 0 : index
    %0 = vector.load %arg1[%c0, %c0_0, %c0_1, %c0_2] : memref<1x8x4x256xbf16, #tpu.memory_space<vmem>>, vector<1x8x4x256xbf16>
    %1 = vector.shape_cast %0 : vector<1x8x4x256xbf16> to vector<8x4x256xbf16>
    %2 = vector.extract_strided_slice %1 {offsets = [0, 0, 0], sizes = [8, 4, 128], strides = [1, 1, 1]} : vector<8x4x256xbf16> to vector<8x4x128xbf16>
    %3 = vector.extract_strided_slice %1 {offsets = [0, 0, 128], sizes = [8, 4, 128], strides = [1, 1, 1]} : vector<8x4x256xbf16> to vector<8x4x128xbf16>
    %4 = arith.maximumf %2, %3 : vector<8x4x128xbf16>
    %5 = vector.shape_cast %4 : vector<8x4x128xbf16> to vector<4x2x4x128xbf16>
    %6 = vector.extract_strided_slice %5 {offsets = [0, 0, 0, 0], sizes = [4, 1, 4, 128], strides = [1, 1, 1, 1]} : vector<4x2x4x128xbf16> to vector<4x1x4x128xbf16>
    %7 = vector.shape_cast %6 : vector<4x1x4x128xbf16> to vector<4x4x128xbf16>
    %8 = vector.extract_strided_slice %5 {offsets = [0, 1, 0, 0], sizes = [4, 1, 4, 128], strides = [1, 1, 1, 1]} : vector<4x2x4x128xbf16> to vector<4x1x4x128xbf16>
    %9 = vector.shape_cast %8 : vector<4x1x4x128xbf16> to vector<4x4x128xbf16>
    %10 = arith.maximumf %7, %9 : vector<4x4x128xbf16>
    %c0_3 = arith.constant 0 : index
    %c0_4 = arith.constant 0 : index
    %c0_5 = arith.constant 0 : index
    %c0_6 = arith.constant 0 : index
    %11 = vector.load %arg2[%c0_3, %c0_4, %c0_5, %c0_6] : memref<1x4x4x128xbf16, #tpu.memory_space<vmem>>, vector<1x4x4x128xbf16>
    %12 = vector.shape_cast %11 : vector<1x4x4x128xbf16> to vector<4x4x128xbf16>
    %13 = vector.shape_cast %10 : vector<4x4x128xbf16> to vector<1x4x4x128xbf16>
    tpu.vector_store %arg2[%c0_3, %c0_4, %c0_5, %c0_6], %13 {strides = array<i32>} : memref<1x4x4x128xbf16, #tpu.memory_space<vmem>>, vector<1x4x4x128xbf16>,
    return
  }
  func.func @transform_0(%arg0: i32) -> (i32, i32, i32, i32) {
    %c0_i32 = arith.constant 0 : i32
    %c0_i32_0 = arith.constant 0 : i32
    %c0_i32_1 = arith.constant 0 : i32
    %c0_i32_2 = arith.constant 0 : i32
    return %arg0, %c0_i32, %c0_i32_0, %c0_i32_1 : i32, i32, i32, i32
  }
  func.func @transform_1(%arg0: i32) -> (i32, i32, i32, i32) {
    %c0_i32 = arith.constant 0 : i32
    %c0_i32_0 = arith.constant 0 : i32
    %c0_i32_1 = arith.constant 0 : i32
    %c0_i32_2 = arith.constant 0 : i32
    return %arg0, %c0_i32, %c0_i32_0, %c0_i32_1 : i32, i32, i32, i32
  }
}

module attributes {stable_mosaic.version = 11 : i64} {
  func.func @_conv3x3_kernel(%arg0: i32, %arg1: memref<1x42x128xbf16, #tpu.memory_space<vmem>>, %arg2: memref<9x128x128xbf16, #tpu.memory_space<vmem>>, %arg3: memref<1x128xf32, #tpu.memory_space<vmem>>, %arg4: memref<1x4x4x128xbf16, #tpu.memory_space<vmem>>, %arg5: memref<24x128xf32, #tpu.memory_space<vmem>>) attributes {dimension_semantics = [#tpu.dimension_semantics<parallel>], iteration_bounds = array<i64: 2>, scalar_prefetch = 0 : i64, scratch_operands = 1 : i64, tpu.core_type = #tpu.core_type<tc>, window_params = [{transform_indices = @transform_0, window_bounds = array<i64: 1, 42, 128>}, {pipeline_mode = #tpu.pipeline_mode<synchronous>, transform_indices = @transform_1, window_bounds = array<i64: 9, 128, 128>}, {pipeline_mode = #tpu.pipeline_mode<synchronous>, transform_indices = @transform_2, window_bounds = array<i64: 1, 128>}, {transform_indices = @transform_3, window_bounds = array<i64: 1, 4, 4, 128>}]} {
    %c0 = arith.constant 0 : index
    %c0_0 = arith.constant 0 : index
    %c0_1 = arith.constant 0 : index
    %0 = vector.load %arg1[%c0, %c0_0, %c0_1] : memref<1x42x128xbf16, #tpu.memory_space<vmem>>, vector<1x24x128xbf16>
    %1 = vector.shape_cast %0 : vector<1x24x128xbf16> to vector<24x128xbf16>
    %c0_2 = arith.constant 0 : index
    %c0_3 = arith.constant 0 : index
    %c0_4 = arith.constant 0 : index
    %2 = vector.load %arg2[%c0_2, %c0_3, %c0_4] : memref<9x128x128xbf16, #tpu.memory_space<vmem>>, vector<1x128x128xbf16>
    %3 = vector.shape_cast %2 : vector<1x128x128xbf16> to vector<128x128xbf16>
    %cst = arith.constant dense<0.000000e+00> : vector<24x128xf32>
    %4 = tpu.matmul %1, %3, %cst {dimension_numbers = #tpu.dot_dimension_numbers<[1], [0], [0], [1], [0, 0, 1, 1], [], []>} : vector<24x128xbf16>, vector<128x128xbf16>, vector<24x128xf32> -> vector<24x128xf32>
    %c0_5 = arith.constant 0 : index
    %c0_6 = arith.constant 0 : index
    %5 = vector.load %arg5[%c0_5, %c0_6] : memref<24x128xf32, #tpu.memory_space<vmem>>, vector<24x128xf32>
    tpu.vector_store %arg5[%c0_5, %c0_6], %4 {strides = array<i32>} : memref<24x128xf32, #tpu.memory_space<vmem>>, vector<24x128xf32>,
    %c0_7 = arith.constant 0 : index
    %c1 = arith.constant 1 : index
    %c0_8 = arith.constant 0 : index
    %6 = vector.load %arg1[%c0_7, %c1, %c0_8] : memref<1x42x128xbf16, #tpu.memory_space<vmem>>, vector<1x24x128xbf16>
    %7 = vector.shape_cast %6 : vector<1x24x128xbf16> to vector<24x128xbf16>
    %c1_9 = arith.constant 1 : index
    %c0_10 = arith.constant 0 : index
    %c0_11 = arith.constant 0 : index
    %8 = vector.load %arg2[%c1_9, %c0_10, %c0_11] : memref<9x128x128xbf16, #tpu.memory_space<vmem>>, vector<1x128x128xbf16>
    %9 = vector.shape_cast %8 : vector<1x128x128xbf16> to vector<128x128xbf16>
    %cst_12 = arith.constant dense<0.000000e+00> : vector<24x128xf32>
    %10 = tpu.matmul %7, %9, %cst_12 {dimension_numbers = #tpu.dot_dimension_numbers<[1], [0], [0], [1], [0, 0, 1, 1], [], []>} : vector<24x128xbf16>, vector<128x128xbf16>, vector<24x128xf32> -> vector<24x128xf32>
    %c0_13 = arith.constant 0 : index
    %c0_14 = arith.constant 0 : index
    %11 = vector.load %arg5[%c0_13, %c0_14] : memref<24x128xf32, #tpu.memory_space<vmem>>, vector<24x128xf32>
    %12 = arith.addf %11, %10 : vector<24x128xf32>
    %c0_15 = arith.constant 0 : index
    %c0_16 = arith.constant 0 : index
    %13 = vector.load %arg5[%c0_15, %c0_16] : memref<24x128xf32, #tpu.memory_space<vmem>>, vector<24x128xf32>
    tpu.vector_store %arg5[%c0_15, %c0_16], %12 {strides = array<i32>} : memref<24x128xf32, #tpu.memory_space<vmem>>, vector<24x128xf32>,
    %c0_17 = arith.constant 0 : index
    %c2 = arith.constant 2 : index
    %c0_18 = arith.constant 0 : index
    %14 = vector.load %arg1[%c0_17, %c2, %c0_18] : memref<1x42x128xbf16, #tpu.memory_space<vmem>>, vector<1x24x128xbf16>
    %15 = vector.shape_cast %14 : vector<1x24x128xbf16> to vector<24x128xbf16>
    %c2_19 = arith.constant 2 : index
    %c0_20 = arith.constant 0 : index
    %c0_21 = arith.constant 0 : index
    %16 = vector.load %arg2[%c2_19, %c0_20, %c0_21] : memref<9x128x128xbf16, #tpu.memory_space<vmem>>, vector<1x128x128xbf16>
    %17 = vector.shape_cast %16 : vector<1x128x128xbf16> to vector<128x128xbf16>
    %cst_22 = arith.constant dense<0.000000e+00> : vector<24x128xf32>
    %18 = tpu.matmul %15, %17, %cst_22 {dimension_numbers = #tpu.dot_dimension_numbers<[1], [0], [0], [1], [0, 0, 1, 1], [], []>} : vector<24x128xbf16>, vector<128x128xbf16>, vector<24x128xf32> -> vector<24x128xf32>
    %c0_23 = arith.constant 0 : index
    %c0_24 = arith.constant 0 : index
    %19 = vector.load %arg5[%c0_23, %c0_24] : memref<24x128xf32, #tpu.memory_space<vmem>>, vector<24x128xf32>
    %20 = arith.addf %19, %18 : vector<24x128xf32>
    %c0_25 = arith.constant 0 : index
    %c0_26 = arith.constant 0 : index
    %21 = vector.load %arg5[%c0_25, %c0_26] : memref<24x128xf32, #tpu.memory_space<vmem>>, vector<24x128xf32>
    tpu.vector_store %arg5[%c0_25, %c0_26], %20 {strides = array<i32>} : memref<24x128xf32, #tpu.memory_space<vmem>>, vector<24x128xf32>,
    %c0_27 = arith.constant 0 : index
    %c6 = arith.constant 6 : index
    %c0_28 = arith.constant 0 : index
    %22 = vector.load %arg1[%c0_27, %c6, %c0_28] : memref<1x42x128xbf16, #tpu.memory_space<vmem>>, vector<1x24x128xbf16>
    %23 = vector.shape_cast %22 : vector<1x24x128xbf16> to vector<24x128xbf16>
    %c3 = arith.constant 3 : index
    %c0_29 = arith.constant 0 : index
    %c0_30 = arith.constant 0 : index
    %24 = vector.load %arg2[%c3, %c0_29, %c0_30] : memref<9x128x128xbf16, #tpu.memory_space<vmem>>, vector<1x128x128xbf16>
    %25 = vector.shape_cast %24 : vector<1x128x128xbf16> to vector<128x128xbf16>
    %cst_31 = arith.constant dense<0.000000e+00> : vector<24x128xf32>
    %26 = tpu.matmul %23, %25, %cst_31 {dimension_numbers = #tpu.dot_dimension_numbers<[1], [0], [0], [1], [0, 0, 1, 1], [], []>} : vector<24x128xbf16>, vector<128x128xbf16>, vector<24x128xf32> -> vector<24x128xf32>
    %c0_32 = arith.constant 0 : index
    %c0_33 = arith.constant 0 : index
    %27 = vector.load %arg5[%c0_32, %c0_33] : memref<24x128xf32, #tpu.memory_space<vmem>>, vector<24x128xf32>
    %28 = arith.addf %27, %26 : vector<24x128xf32>
    %c0_34 = arith.constant 0 : index
    %c0_35 = arith.constant 0 : index
    %29 = vector.load %arg5[%c0_34, %c0_35] : memref<24x128xf32, #tpu.memory_space<vmem>>, vector<24x128xf32>
    tpu.vector_store %arg5[%c0_34, %c0_35], %28 {strides = array<i32>} : memref<24x128xf32, #tpu.memory_space<vmem>>, vector<24x128xf32>,
    %c0_36 = arith.constant 0 : index
    %c7 = arith.constant 7 : index
    %c0_37 = arith.constant 0 : index
    %30 = vector.load %arg1[%c0_36, %c7, %c0_37] : memref<1x42x128xbf16, #tpu.memory_space<vmem>>, vector<1x24x128xbf16>
    %31 = vector.shape_cast %30 : vector<1x24x128xbf16> to vector<24x128xbf16>
    %c4 = arith.constant 4 : index
    %c0_38 = arith.constant 0 : index
    %c0_39 = arith.constant 0 : index
    %32 = vector.load %arg2[%c4, %c0_38, %c0_39] : memref<9x128x128xbf16, #tpu.memory_space<vmem>>, vector<1x128x128xbf16>
    %33 = vector.shape_cast %32 : vector<1x128x128xbf16> to vector<128x128xbf16>
    %cst_40 = arith.constant dense<0.000000e+00> : vector<24x128xf32>
    %34 = tpu.matmul %31, %33, %cst_40 {dimension_numbers = #tpu.dot_dimension_numbers<[1], [0], [0], [1], [0, 0, 1, 1], [], []>} : vector<24x128xbf16>, vector<128x128xbf16>, vector<24x128xf32> -> vector<24x128xf32>
    %c0_41 = arith.constant 0 : index
    %c0_42 = arith.constant 0 : index
    %35 = vector.load %arg5[%c0_41, %c0_42] : memref<24x128xf32, #tpu.memory_space<vmem>>, vector<24x128xf32>
    %36 = arith.addf %35, %34 : vector<24x128xf32>
    %c0_43 = arith.constant 0 : index
    %c0_44 = arith.constant 0 : index
    %37 = vector.load %arg5[%c0_43, %c0_44] : memref<24x128xf32, #tpu.memory_space<vmem>>, vector<24x128xf32>
    tpu.vector_store %arg5[%c0_43, %c0_44], %36 {strides = array<i32>} : memref<24x128xf32, #tpu.memory_space<vmem>>, vector<24x128xf32>,
    %c0_45 = arith.constant 0 : index
    %c8 = arith.constant 8 : index
    %c0_46 = arith.constant 0 : index
    %38 = vector.load %arg1[%c0_45, %c8, %c0_46] : memref<1x42x128xbf16, #tpu.memory_space<vmem>>, vector<1x24x128xbf16>
    %39 = vector.shape_cast %38 : vector<1x24x128xbf16> to vector<24x128xbf16>
    %c5 = arith.constant 5 : index
    %c0_47 = arith.constant 0 : index
    %c0_48 = arith.constant 0 : index
    %40 = vector.load %arg2[%c5, %c0_47, %c0_48] : memref<9x128x128xbf16, #tpu.memory_space<vmem>>, vector<1x128x128xbf16>
    %41 = vector.shape_cast %40 : vector<1x128x128xbf16> to vector<128x128xbf16>
    %cst_49 = arith.constant dense<0.000000e+00> : vector<24x128xf32>
    %42 = tpu.matmul %39, %41, %cst_49 {dimension_numbers = #tpu.dot_dimension_numbers<[1], [0], [0], [1], [0, 0, 1, 1], [], []>} : vector<24x128xbf16>, vector<128x128xbf16>, vector<24x128xf32> -> vector<24x128xf32>
    %c0_50 = arith.constant 0 : index
    %c0_51 = arith.constant 0 : index
    %43 = vector.load %arg5[%c0_50, %c0_51] : memref<24x128xf32, #tpu.memory_space<vmem>>, vector<24x128xf32>
    %44 = arith.addf %43, %42 : vector<24x128xf32>
    %c0_52 = arith.constant 0 : index
    %c0_53 = arith.constant 0 : index
    %45 = vector.load %arg5[%c0_52, %c0_53] : memref<24x128xf32, #tpu.memory_space<vmem>>, vector<24x128xf32>
    tpu.vector_store %arg5[%c0_52, %c0_53], %44 {strides = array<i32>} : memref<24x128xf32, #tpu.memory_space<vmem>>, vector<24x128xf32>,
    %c0_54 = arith.constant 0 : index
    %c12 = arith.constant 12 : index
    %c0_55 = arith.constant 0 : index
    %46 = vector.load %arg1[%c0_54, %c12, %c0_55] : memref<1x42x128xbf16, #tpu.memory_space<vmem>>, vector<1x24x128xbf16>
    %47 = vector.shape_cast %46 : vector<1x24x128xbf16> to vector<24x128xbf16>
    %c6_56 = arith.constant 6 : index
    %c0_57 = arith.constant 0 : index
    %c0_58 = arith.constant 0 : index
    %48 = vector.load %arg2[%c6_56, %c0_57, %c0_58] : memref<9x128x128xbf16, #tpu.memory_space<vmem>>, vector<1x128x128xbf16>
    %49 = vector.shape_cast %48 : vector<1x128x128xbf16> to vector<128x128xbf16>
    %cst_59 = arith.constant dense<0.000000e+00> : vector<24x128xf32>
    %50 = tpu.matmul %47, %49, %cst_59 {dimension_numbers = #tpu.dot_dimension_numbers<[1], [0], [0], [1], [0, 0, 1, 1], [], []>} : vector<24x128xbf16>, vector<128x128xbf16>, vector<24x128xf32> -> vector<24x128xf32>
    %c0_60 = arith.constant 0 : index
    %c0_61 = arith.constant 0 : index
    %51 = vector.load %arg5[%c0_60, %c0_61] : memref<24x128xf32, #tpu.memory_space<vmem>>, vector<24x128xf32>
    %52 = arith.addf %51, %50 : vector<24x128xf32>
    %c0_62 = arith.constant 0 : index
    %c0_63 = arith.constant 0 : index
    %53 = vector.load %arg5[%c0_62, %c0_63] : memref<24x128xf32, #tpu.memory_space<vmem>>, vector<24x128xf32>
    tpu.vector_store %arg5[%c0_62, %c0_63], %52 {strides = array<i32>} : memref<24x128xf32, #tpu.memory_space<vmem>>, vector<24x128xf32>,
    %c0_64 = arith.constant 0 : index
    %c13 = arith.constant 13 : index
    %c0_65 = arith.constant 0 : index
    %54 = vector.load %arg1[%c0_64, %c13, %c0_65] : memref<1x42x128xbf16, #tpu.memory_space<vmem>>, vector<1x24x128xbf16>
    %55 = vector.shape_cast %54 : vector<1x24x128xbf16> to vector<24x128xbf16>
    %c7_66 = arith.constant 7 : index
    %c0_67 = arith.constant 0 : index
    %c0_68 = arith.constant 0 : index
    %56 = vector.load %arg2[%c7_66, %c0_67, %c0_68] : memref<9x128x128xbf16, #tpu.memory_space<vmem>>, vector<1x128x128xbf16>
    %57 = vector.shape_cast %56 : vector<1x128x128xbf16> to vector<128x128xbf16>
    %cst_69 = arith.constant dense<0.000000e+00> : vector<24x128xf32>
    %58 = tpu.matmul %55, %57, %cst_69 {dimension_numbers = #tpu.dot_dimension_numbers<[1], [0], [0], [1], [0, 0, 1, 1], [], []>} : vector<24x128xbf16>, vector<128x128xbf16>, vector<24x128xf32> -> vector<24x128xf32>
    %c0_70 = arith.constant 0 : index
    %c0_71 = arith.constant 0 : index
    %59 = vector.load %arg5[%c0_70, %c0_71] : memref<24x128xf32, #tpu.memory_space<vmem>>, vector<24x128xf32>
    %60 = arith.addf %59, %58 : vector<24x128xf32>
    %c0_72 = arith.constant 0 : index
    %c0_73 = arith.constant 0 : index
    %61 = vector.load %arg5[%c0_72, %c0_73] : memref<24x128xf32, #tpu.memory_space<vmem>>, vector<24x128xf32>
    tpu.vector_store %arg5[%c0_72, %c0_73], %60 {strides = array<i32>} : memref<24x128xf32, #tpu.memory_space<vmem>>, vector<24x128xf32>,
    %c0_74 = arith.constant 0 : index
    %c14 = arith.constant 14 : index
    %c0_75 = arith.constant 0 : index
    %62 = vector.load %arg1[%c0_74, %c14, %c0_75] : memref<1x42x128xbf16, #tpu.memory_space<vmem>>, vector<1x24x128xbf16>
    %63 = vector.shape_cast %62 : vector<1x24x128xbf16> to vector<24x128xbf16>
    %c8_76 = arith.constant 8 : index
    %c0_77 = arith.constant 0 : index
    %c0_78 = arith.constant 0 : index
    %64 = vector.load %arg2[%c8_76, %c0_77, %c0_78] : memref<9x128x128xbf16, #tpu.memory_space<vmem>>, vector<1x128x128xbf16>
    %65 = vector.shape_cast %64 : vector<1x128x128xbf16> to vector<128x128xbf16>
    %cst_79 = arith.constant dense<0.000000e+00> : vector<24x128xf32>
    %66 = tpu.matmul %63, %65, %cst_79 {dimension_numbers = #tpu.dot_dimension_numbers<[1], [0], [0], [1], [0, 0, 1, 1], [], []>} : vector<24x128xbf16>, vector<128x128xbf16>, vector<24x128xf32> -> vector<24x128xf32>
    %c0_80 = arith.constant 0 : index
    %c0_81 = arith.constant 0 : index
    %67 = vector.load %arg5[%c0_80, %c0_81] : memref<24x128xf32, #tpu.memory_space<vmem>>, vector<24x128xf32>
    %68 = arith.addf %67, %66 : vector<24x128xf32>
    %c0_82 = arith.constant 0 : index
    %c0_83 = arith.constant 0 : index
    %69 = vector.load %arg5[%c0_82, %c0_83] : memref<24x128xf32, #tpu.memory_space<vmem>>, vector<24x128xf32>
    tpu.vector_store %arg5[%c0_82, %c0_83], %68 {strides = array<i32>} : memref<24x128xf32, #tpu.memory_space<vmem>>, vector<24x128xf32>,
    %c0_84 = arith.constant 0 : index
    %c0_85 = arith.constant 0 : index
    %70 = vector.load %arg5[%c0_84, %c0_85] : memref<24x128xf32, #tpu.memory_space<vmem>>, vector<24x128xf32>
    %c0_86 = arith.constant 0 : index
    %c0_87 = arith.constant 0 : index
    %71 = vector.load %arg3[%c0_86, %c0_87] : memref<1x128xf32, #tpu.memory_space<vmem>>, vector<1x128xf32>
    %72 = vector.broadcast %71 : vector<1x128xf32> to vector<24x128xf32>
    %73 = arith.addf %70, %72 : vector<24x128xf32>
    %cst_88 = arith.constant 0.000000e+00 : f32
    %74 = vector.broadcast %cst_88 : f32 to vector<24x128xf32>
    %75 = arith.maximumf %73, %74 : vector<24x128xf32>
    %76 = arith.truncf %75 : vector<24x128xf32> to vector<24x128xbf16>
    %77 = vector.extract_strided_slice %76 {offsets = [0, 0], sizes = [4, 128], strides = [1, 1]} : vector<24x128xbf16> to vector<4x128xbf16>
    %c0_89 = arith.constant 0 : index
    %c0_90 = arith.constant 0 : index
    %c0_91 = arith.constant 0 : index
    %c0_92 = arith.constant 0 : index
    %78 = vector.load %arg4[%c0_89, %c0_90, %c0_91, %c0_92] : memref<1x4x4x128xbf16, #tpu.memory_space<vmem>>, vector<1x1x4x128xbf16>
    %79 = vector.shape_cast %78 : vector<1x1x4x128xbf16> to vector<4x128xbf16>
    %80 = vector.shape_cast %77 : vector<4x128xbf16> to vector<1x1x4x128xbf16>
    tpu.vector_store %arg4[%c0_89, %c0_90, %c0_91, %c0_92], %80 {strides = array<i32>} : memref<1x4x4x128xbf16, #tpu.memory_space<vmem>>, vector<1x1x4x128xbf16>,
    %81 = vector.extract_strided_slice %76 {offsets = [6, 0], sizes = [4, 128], strides = [1, 1]} : vector<24x128xbf16> to vector<4x128xbf16>
    %c0_93 = arith.constant 0 : index
    %c1_94 = arith.constant 1 : index
    %c0_95 = arith.constant 0 : index
    %c0_96 = arith.constant 0 : index
    %82 = vector.load %arg4[%c0_93, %c1_94, %c0_95, %c0_96] : memref<1x4x4x128xbf16, #tpu.memory_space<vmem>>, vector<1x1x4x128xbf16>
    %83 = vector.shape_cast %82 : vector<1x1x4x128xbf16> to vector<4x128xbf16>
    %84 = vector.shape_cast %81 : vector<4x128xbf16> to vector<1x1x4x128xbf16>
    tpu.vector_store %arg4[%c0_93, %c1_94, %c0_95, %c0_96], %84 {strides = array<i32>} : memref<1x4x4x128xbf16, #tpu.memory_space<vmem>>, vector<1x1x4x128xbf16>,
    %85 = vector.extract_strided_slice %76 {offsets = [12, 0], sizes = [4, 128], strides = [1, 1]} : vector<24x128xbf16> to vector<4x128xbf16>
    %c0_97 = arith.constant 0 : index
    %c2_98 = arith.constant 2 : index
    %c0_99 = arith.constant 0 : index
    %c0_100 = arith.constant 0 : index
    %86 = vector.load %arg4[%c0_97, %c2_98, %c0_99, %c0_100] : memref<1x4x4x128xbf16, #tpu.memory_space<vmem>>, vector<1x1x4x128xbf16>
    %87 = vector.shape_cast %86 : vector<1x1x4x128xbf16> to vector<4x128xbf16>
    %88 = vector.shape_cast %85 : vector<4x128xbf16> to vector<1x1x4x128xbf16>
    tpu.vector_store %arg4[%c0_97, %c2_98, %c0_99, %c0_100], %88 {strides = array<i32>} : memref<1x4x4x128xbf16, #tpu.memory_space<vmem>>, vector<1x1x4x128xbf16>,
    %89 = vector.extract_strided_slice %76 {offsets = [18, 0], sizes = [4, 128], strides = [1, 1]} : vector<24x128xbf16> to vector<4x128xbf16>
    %c0_101 = arith.constant 0 : index
    %c3_102 = arith.constant 3 : index
    %c0_103 = arith.constant 0 : index
    %c0_104 = arith.constant 0 : index
    %90 = vector.load %arg4[%c0_101, %c3_102, %c0_103, %c0_104] : memref<1x4x4x128xbf16, #tpu.memory_space<vmem>>, vector<1x1x4x128xbf16>
    %91 = vector.shape_cast %90 : vector<1x1x4x128xbf16> to vector<4x128xbf16>
    %92 = vector.shape_cast %89 : vector<4x128xbf16> to vector<1x1x4x128xbf16>
    tpu.vector_store %arg4[%c0_101, %c3_102, %c0_103, %c0_104], %92 {strides = array<i32>} : memref<1x4x4x128xbf16, #tpu.memory_space<vmem>>, vector<1x1x4x128xbf16>,
    return
  }
  func.func @transform_0(%arg0: i32) -> (i32, i32, i32) {
    %c0_i32 = arith.constant 0 : i32
    %c0_i32_0 = arith.constant 0 : i32
    %c0_i32_1 = arith.constant 0 : i32
    return %arg0, %c0_i32, %c0_i32_0 : i32, i32, i32
  }
  func.func @transform_1(%arg0: i32) -> (i32, i32, i32) {
    %c0_i32 = arith.constant 0 : i32
    %c0_i32_0 = arith.constant 0 : i32
    %c0_i32_1 = arith.constant 0 : i32
    %c0_i32_2 = arith.constant 0 : i32
    return %c0_i32, %c0_i32_0, %c0_i32_1 : i32, i32, i32
  }
  func.func @transform_2(%arg0: i32) -> (i32, i32) {
    %c0_i32 = arith.constant 0 : i32
    %c0_i32_0 = arith.constant 0 : i32
    %c0_i32_1 = arith.constant 0 : i32
    return %c0_i32, %c0_i32_0 : i32, i32
  }
  func.func @transform_3(%arg0: i32) -> (i32, i32, i32, i32) {
    %c0_i32 = arith.constant 0 : i32
    %c0_i32_0 = arith.constant 0 : i32
    %c0_i32_1 = arith.constant 0 : i32
    %c0_i32_2 = arith.constant 0 : i32
    return %arg0, %c0_i32, %c0_i32_0, %c0_i32_1 : i32, i32, i32, i32
  }
}

module attributes {stable_mosaic.version = 11 : i64} {
  func.func @_maxpool2x2_kernel(%arg0: i32, %arg1: memref<1x4x2x256xbf16, #tpu.memory_space<vmem>>, %arg2: memref<1x2x2x128xbf16, #tpu.memory_space<vmem>>) attributes {dimension_semantics = [#tpu.dimension_semantics<parallel>], iteration_bounds = array<i64: 2>, scalar_prefetch = 0 : i64, scratch_operands = 0 : i64, tpu.core_type = #tpu.core_type<tc>, window_params = [{transform_indices = @transform_0, window_bounds = array<i64: 1, 4, 2, 256>}, {transform_indices = @transform_1, window_bounds = array<i64: 1, 2, 2, 128>}]} {
    %c0 = arith.constant 0 : index
    %c0_0 = arith.constant 0 : index
    %c0_1 = arith.constant 0 : index
    %c0_2 = arith.constant 0 : index
    %0 = vector.load %arg1[%c0, %c0_0, %c0_1, %c0_2] : memref<1x4x2x256xbf16, #tpu.memory_space<vmem>>, vector<1x4x2x256xbf16>
    %1 = vector.shape_cast %0 : vector<1x4x2x256xbf16> to vector<4x2x256xbf16>
    %2 = vector.extract_strided_slice %1 {offsets = [0, 0, 0], sizes = [4, 2, 128], strides = [1, 1, 1]} : vector<4x2x256xbf16> to vector<4x2x128xbf16>
    %3 = vector.extract_strided_slice %1 {offsets = [0, 0, 128], sizes = [4, 2, 128], strides = [1, 1, 1]} : vector<4x2x256xbf16> to vector<4x2x128xbf16>
    %4 = arith.maximumf %2, %3 : vector<4x2x128xbf16>
    %5 = vector.shape_cast %4 : vector<4x2x128xbf16> to vector<2x2x2x128xbf16>
    %6 = vector.extract_strided_slice %5 {offsets = [0, 0, 0, 0], sizes = [2, 1, 2, 128], strides = [1, 1, 1, 1]} : vector<2x2x2x128xbf16> to vector<2x1x2x128xbf16>
    %7 = vector.shape_cast %6 : vector<2x1x2x128xbf16> to vector<2x2x128xbf16>
    %8 = vector.extract_strided_slice %5 {offsets = [0, 1, 0, 0], sizes = [2, 1, 2, 128], strides = [1, 1, 1, 1]} : vector<2x2x2x128xbf16> to vector<2x1x2x128xbf16>
    %9 = vector.shape_cast %8 : vector<2x1x2x128xbf16> to vector<2x2x128xbf16>
    %10 = arith.maximumf %7, %9 : vector<2x2x128xbf16>
    %c0_3 = arith.constant 0 : index
    %c0_4 = arith.constant 0 : index
    %c0_5 = arith.constant 0 : index
    %c0_6 = arith.constant 0 : index
    %11 = vector.load %arg2[%c0_3, %c0_4, %c0_5, %c0_6] : memref<1x2x2x128xbf16, #tpu.memory_space<vmem>>, vector<1x2x2x128xbf16>
    %12 = vector.shape_cast %11 : vector<1x2x2x128xbf16> to vector<2x2x128xbf16>
    %13 = vector.shape_cast %10 : vector<2x2x128xbf16> to vector<1x2x2x128xbf16>
    tpu.vector_store %arg2[%c0_3, %c0_4, %c0_5, %c0_6], %13 {strides = array<i32>} : memref<1x2x2x128xbf16, #tpu.memory_space<vmem>>, vector<1x2x2x128xbf16>,
    return
  }
  func.func @transform_0(%arg0: i32) -> (i32, i32, i32, i32) {
    %c0_i32 = arith.constant 0 : i32
    %c0_i32_0 = arith.constant 0 : i32
    %c0_i32_1 = arith.constant 0 : i32
    %c0_i32_2 = arith.constant 0 : i32
    return %arg0, %c0_i32, %c0_i32_0, %c0_i32_1 : i32, i32, i32, i32
  }
  func.func @transform_1(%arg0: i32) -> (i32, i32, i32, i32) {
    %c0_i32 = arith.constant 0 : i32
    %c0_i32_0 = arith.constant 0 : i32
    %c0_i32_1 = arith.constant 0 : i32
    %c0_i32_2 = arith.constant 0 : i32
    return %arg0, %c0_i32, %c0_i32_0, %c0_i32_1 : i32, i32, i32, i32
  }
}

module attributes {stable_mosaic.version = 11 : i64} {
  func.func @_linear_kernel(%arg0: i32, %arg1: memref<2x512xbf16, #tpu.memory_space<vmem>>, %arg2: memref<512x128xbf16, #tpu.memory_space<vmem>>, %arg3: memref<1x128xf32, #tpu.memory_space<vmem>>, %arg4: memref<2x128xbf16, #tpu.memory_space<vmem>>) attributes {dimension_semantics = [#tpu.dimension_semantics<parallel>], iteration_bounds = array<i64: 1>, scalar_prefetch = 0 : i64, scratch_operands = 0 : i64, tpu.core_type = #tpu.core_type<tc>, window_params = [{transform_indices = @transform_0, window_bounds = array<i64: 2, 512>}, {pipeline_mode = #tpu.pipeline_mode<synchronous>, transform_indices = @transform_1, window_bounds = array<i64: 512, 128>}, {pipeline_mode = #tpu.pipeline_mode<synchronous>, transform_indices = @transform_2, window_bounds = array<i64: 1, 128>}, {transform_indices = @transform_3, window_bounds = array<i64: 2, 128>}]} {
    %c0 = arith.constant 0 : index
    %c0_0 = arith.constant 0 : index
    %0 = vector.load %arg1[%c0, %c0_0] : memref<2x512xbf16, #tpu.memory_space<vmem>>, vector<2x512xbf16>
    %c0_1 = arith.constant 0 : index
    %c0_2 = arith.constant 0 : index
    %1 = vector.load %arg2[%c0_1, %c0_2] : memref<512x128xbf16, #tpu.memory_space<vmem>>, vector<512x128xbf16>
    %cst = arith.constant dense<0.000000e+00> : vector<2x128xf32>
    %2 = tpu.matmul %0, %1, %cst {dimension_numbers = #tpu.dot_dimension_numbers<[1], [0], [0], [1], [0, 0, 1, 1], [], []>} : vector<2x512xbf16>, vector<512x128xbf16>, vector<2x128xf32> -> vector<2x128xf32>
    %c0_3 = arith.constant 0 : index
    %c0_4 = arith.constant 0 : index
    %3 = vector.load %arg3[%c0_3, %c0_4] : memref<1x128xf32, #tpu.memory_space<vmem>>, vector<1x128xf32>
    %4 = vector.broadcast %3 : vector<1x128xf32> to vector<2x128xf32>
    %5 = arith.addf %2, %4 : vector<2x128xf32>
    %cst_5 = arith.constant 0.000000e+00 : f32
    %6 = vector.broadcast %cst_5 : f32 to vector<2x128xf32>
    %7 = arith.maximumf %5, %6 : vector<2x128xf32>
    %8 = arith.truncf %7 : vector<2x128xf32> to vector<2x128xbf16>
    %c0_6 = arith.constant 0 : index
    %c0_7 = arith.constant 0 : index
    %9 = vector.load %arg4[%c0_6, %c0_7] : memref<2x128xbf16, #tpu.memory_space<vmem>>, vector<2x128xbf16>
    tpu.vector_store %arg4[%c0_6, %c0_7], %8 {strides = array<i32>} : memref<2x128xbf16, #tpu.memory_space<vmem>>, vector<2x128xbf16>,
    return
  }
  func.func @transform_0(%arg0: i32) -> (i32, i32) {
    %c0_i32 = arith.constant 0 : i32
    %c0_i32_0 = arith.constant 0 : i32
    return %arg0, %c0_i32 : i32, i32
  }
  func.func @transform_1(%arg0: i32) -> (i32, i32) {
    %c0_i32 = arith.constant 0 : i32
    %c0_i32_0 = arith.constant 0 : i32
    %c0_i32_1 = arith.constant 0 : i32
    return %c0_i32, %c0_i32_0 : i32, i32
  }
  func.func @transform_2(%arg0: i32) -> (i32, i32) {
    %c0_i32 = arith.constant 0 : i32
    %c0_i32_0 = arith.constant 0 : i32
    %c0_i32_1 = arith.constant 0 : i32
    return %c0_i32, %c0_i32_0 : i32, i32
  }
  func.func @transform_3(%arg0: i32) -> (i32, i32) {
    %c0_i32 = arith.constant 0 : i32
    %c0_i32_0 = arith.constant 0 : i32
    return %arg0, %c0_i32 : i32, i32
  }
}

module attributes {stable_mosaic.version = 11 : i64} {
  func.func @_linear_kernel(%arg0: i32, %arg1: memref<2x128xbf16, #tpu.memory_space<vmem>>, %arg2: memref<128x128xbf16, #tpu.memory_space<vmem>>, %arg3: memref<1x128xf32, #tpu.memory_space<vmem>>, %arg4: memref<2x128xbf16, #tpu.memory_space<vmem>>) attributes {dimension_semantics = [#tpu.dimension_semantics<parallel>], iteration_bounds = array<i64: 1>, scalar_prefetch = 0 : i64, scratch_operands = 0 : i64, tpu.core_type = #tpu.core_type<tc>, window_params = [{transform_indices = @transform_0, window_bounds = array<i64: 2, 128>}, {pipeline_mode = #tpu.pipeline_mode<synchronous>, transform_indices = @transform_1, window_bounds = array<i64: 128, 128>}, {pipeline_mode = #tpu.pipeline_mode<synchronous>, transform_indices = @transform_2, window_bounds = array<i64: 1, 128>}, {transform_indices = @transform_3, window_bounds = array<i64: 2, 128>}]} {
    %c0 = arith.constant 0 : index
    %c0_0 = arith.constant 0 : index
    %0 = vector.load %arg1[%c0, %c0_0] : memref<2x128xbf16, #tpu.memory_space<vmem>>, vector<2x128xbf16>
    %c0_1 = arith.constant 0 : index
    %c0_2 = arith.constant 0 : index
    %1 = vector.load %arg2[%c0_1, %c0_2] : memref<128x128xbf16, #tpu.memory_space<vmem>>, vector<128x128xbf16>
    %cst = arith.constant dense<0.000000e+00> : vector<2x128xf32>
    %2 = tpu.matmul %0, %1, %cst {dimension_numbers = #tpu.dot_dimension_numbers<[1], [0], [0], [1], [0, 0, 1, 1], [], []>} : vector<2x128xbf16>, vector<128x128xbf16>, vector<2x128xf32> -> vector<2x128xf32>
    %c0_3 = arith.constant 0 : index
    %c0_4 = arith.constant 0 : index
    %3 = vector.load %arg3[%c0_3, %c0_4] : memref<1x128xf32, #tpu.memory_space<vmem>>, vector<1x128xf32>
    %4 = vector.broadcast %3 : vector<1x128xf32> to vector<2x128xf32>
    %5 = arith.addf %2, %4 : vector<2x128xf32>
    %cst_5 = arith.constant 0.000000e+00 : f32
    %6 = vector.broadcast %cst_5 : f32 to vector<2x128xf32>
    %7 = arith.maximumf %5, %6 : vector<2x128xf32>
    %8 = arith.truncf %7 : vector<2x128xf32> to vector<2x128xbf16>
    %c0_6 = arith.constant 0 : index
    %c0_7 = arith.constant 0 : index
    %9 = vector.load %arg4[%c0_6, %c0_7] : memref<2x128xbf16, #tpu.memory_space<vmem>>, vector<2x128xbf16>
    tpu.vector_store %arg4[%c0_6, %c0_7], %8 {strides = array<i32>} : memref<2x128xbf16, #tpu.memory_space<vmem>>, vector<2x128xbf16>,
    return
  }
  func.func @transform_0(%arg0: i32) -> (i32, i32) {
    %c0_i32 = arith.constant 0 : i32
    %c0_i32_0 = arith.constant 0 : i32
    return %arg0, %c0_i32 : i32, i32
  }
  func.func @transform_1(%arg0: i32) -> (i32, i32) {
    %c0_i32 = arith.constant 0 : i32
    %c0_i32_0 = arith.constant 0 : i32
    %c0_i32_1 = arith.constant 0 : i32
    return %c0_i32, %c0_i32_0 : i32, i32
  }
  func.func @transform_2(%arg0: i32) -> (i32, i32) {
    %c0_i32 = arith.constant 0 : i32
    %c0_i32_0 = arith.constant 0 : i32
    %c0_i32_1 = arith.constant 0 : i32
    return %c0_i32, %c0_i32_0 : i32, i32
  }
  func.func @transform_3(%arg0: i32) -> (i32, i32) {
    %c0_i32 = arith.constant 0 : i32
    %c0_i32_0 = arith.constant 0 : i32
    return %arg0, %c0_i32 : i32, i32
  }
}

module attributes {stable_mosaic.version = 11 : i64} {
  func.func @_linear_kernel(%arg0: i32, %arg1: memref<2x128xbf16, #tpu.memory_space<vmem>>, %arg2: memref<128x128xbf16, #tpu.memory_space<vmem>>, %arg3: memref<1x128xf32, #tpu.memory_space<vmem>>, %arg4: memref<2x128xf32, #tpu.memory_space<vmem>>) attributes {dimension_semantics = [#tpu.dimension_semantics<parallel>], iteration_bounds = array<i64: 1>, scalar_prefetch = 0 : i64, scratch_operands = 0 : i64, tpu.core_type = #tpu.core_type<tc>, window_params = [{transform_indices = @transform_0, window_bounds = array<i64: 2, 128>}, {pipeline_mode = #tpu.pipeline_mode<synchronous>, transform_indices = @transform_1, window_bounds = array<i64: 128, 128>}, {pipeline_mode = #tpu.pipeline_mode<synchronous>, transform_indices = @transform_2, window_bounds = array<i64: 1, 128>}, {transform_indices = @transform_3, window_bounds = array<i64: 2, 128>}]} {
    %c0 = arith.constant 0 : index
    %c0_0 = arith.constant 0 : index
    %0 = vector.load %arg1[%c0, %c0_0] : memref<2x128xbf16, #tpu.memory_space<vmem>>, vector<2x128xbf16>
    %c0_1 = arith.constant 0 : index
    %c0_2 = arith.constant 0 : index
    %1 = vector.load %arg2[%c0_1, %c0_2] : memref<128x128xbf16, #tpu.memory_space<vmem>>, vector<128x128xbf16>
    %cst = arith.constant dense<0.000000e+00> : vector<2x128xf32>
    %2 = tpu.matmul %0, %1, %cst {dimension_numbers = #tpu.dot_dimension_numbers<[1], [0], [0], [1], [0, 0, 1, 1], [], []>} : vector<2x128xbf16>, vector<128x128xbf16>, vector<2x128xf32> -> vector<2x128xf32>
    %c0_3 = arith.constant 0 : index
    %c0_4 = arith.constant 0 : index
    %3 = vector.load %arg3[%c0_3, %c0_4] : memref<1x128xf32, #tpu.memory_space<vmem>>, vector<1x128xf32>
    %4 = vector.broadcast %3 : vector<1x128xf32> to vector<2x128xf32>
    %5 = arith.addf %2, %4 : vector<2x128xf32>
    %c0_5 = arith.constant 0 : index
    %c0_6 = arith.constant 0 : index
    %6 = vector.load %arg4[%c0_5, %c0_6] : memref<2x128xf32, #tpu.memory_space<vmem>>, vector<2x128xf32>
    tpu.vector_store %arg4[%c0_5, %c0_6], %5 {strides = array<i32>} : memref<2x128xf32, #tpu.memory_space<vmem>>, vector<2x128xf32>,
    return
  }
  func.func @transform_0(%arg0: i32) -> (i32, i32) {
    %c0_i32 = arith.constant 0 : i32
    %c0_i32_0 = arith.constant 0 : i32
    return %arg0, %c0_i32 : i32, i32
  }
  func.func @transform_1(%arg0: i32) -> (i32, i32) {
    %c0_i32 = arith.constant 0 : i32
    %c0_i32_0 = arith.constant 0 : i32
    %c0_i32_1 = arith.constant 0 : i32
    return %c0_i32, %c0_i32_0 : i32, i32
  }
  func.func @transform_2(%arg0: i32) -> (i32, i32) {
    %c0_i32 = arith.constant 0 : i32
    %c0_i32_0 = arith.constant 0 : i32
    %c0_i32_1 = arith.constant 0 : i32
    return %c0_i32, %c0_i32_0 : i32, i32
  }
  func.func @transform_3(%arg0: i32) -> (i32, i32) {
    %c0_i32 = arith.constant 0 : i32
    %c0_i32_0 = arith.constant 0 : i32
    return %arg0, %c0_i32 : i32, i32
  }
}

</mosaic_0001>

<llo_original>
// kernel: _lambda_.10
$region0: #{_lambda_.10}
  #allocation0 [shape = 'u32[]', space=smem, size = 0x4, offset = 0x4, fixed_abs, tag = 'smem constant byte address 0x4 - core index']
  #allocation1 [shape = 'u32[144,128]{1,0:T(1,128)}', space=vmem, size = 0x12000, scoped, tag = 'internal scratch']
  %s0 = inlined_call_operand.vmem [shape: bf16[2,16,8,256], index: 0, kind: input, shape index: {}]
  %s1 = inlined_call_operand.vmem [shape: bf16[2,8,8,128], index: 1, kind: output, shape index: {}]
  %s2 = sld [smem:[#allocation0]]
  $region37: #{_lambda_.10} parent=0
    _
  %s4 = ssub.s32 1, %s2
  %s5 = scalar_select 0, %s4, %s2
  loop: start=0, step=1, limit=4
  $region2: #{_lambda_.10} parent=0 // loop_pre_header
    _
  $region3: #{_lambda_.10} parent=0 // loop_header
    %s7 = sphi 0, %s11
    %p8 = scmp.ge.s32.totalorder %s7, 4
    %s17 = sphi 0, %s19
    %s20 = sphi 0, %s17
    %s21 = sphi 0, %s20
    %s37 = sphi 0, %s21
    %s43 = sphi 0, %s45
    %s46 = sphi 0, %s43
    %s47 = sphi 0, %s46
    %s63 = sphi 0, %s47
  $region4: #{_lambda_.10} parent=0 // loop_header_branch
    %10 = sbr.rel (%p8) target = $region8
  $region5: #{_lambda_.10} parent=0 // loop_body
    %s12 = ssub.s32 %s7, 1
    %s13 = ssub.s32 %s7, 2
    %s14 = sadd.s32 %s7, 1
    %s15 = ssub.s32 %s7, %s14
    %p16 = scmp.eq.s32.totalorder %s15, 0
    %s18 = sadd.s32 %s17, 1
    %s19 = scalar_select %p16, %s17, %s18
    %p22 = pneg %p16
    %p23 = scmp.eq.s32.totalorder %s7, 1
    %p24 = por %p22, %p23
    %p25 = scmp.ne.s32.totalorder %s17, %s20
    %p26 = scmp.eq.s32.totalorder %s7, 0
    %p27 = por %p25, %p26
    %p28 = scmp.ne.s32.totalorder %s17, %s20
    %p29 = scmp.eq.s32.totalorder %s12, 1
    %p30 = por %p28, %p29
    %p31 = scmp.ne.s32.totalorder %s20, %s21
    %p32 = scmp.eq.s32.totalorder %s12, 0
    %p33 = por %p31, %p32
    %p34 = scmp.ne.s32.totalorder %s20, %s21
    %p35 = scmp.eq.s32.totalorder %s13, 1
    %p36 = por %p34, %p35
    %p38 = scmp.ne.s32.totalorder %s21, %s37
    %p39 = scmp.eq.s32.totalorder %s13, 0
    %p40 = por %p38, %p39
    %s41 = ssub.s32 %s7, %s14
    %p42 = scmp.eq.s32.totalorder %s41, 0
    %s44 = sadd.s32 %s43, 1
    %s45 = scalar_select %p42, %s43, %s44
    %p48 = pneg %p42
    %p49 = scmp.eq.s32.totalorder %s7, 1
    %p50 = por %p48, %p49
    %p51 = scmp.ne.s32.totalorder %s43, %s46
    %p52 = scmp.eq.s32.totalorder %s7, 0
    %p53 = por %p51, %p52
    %p54 = scmp.ne.s32.totalorder %s43, %s46
    %p55 = scmp.eq.s32.totalorder %s12, 1
    %p56 = por %p54, %p55
    %p57 = scmp.ne.s32.totalorder %s46, %s47
    %p58 = scmp.eq.s32.totalorder %s12, 0
    %p59 = por %p57, %p58
    %p60 = scmp.ne.s32.totalorder %s46, %s47
    %p61 = scmp.eq.s32.totalorder %s13, 1
    %p62 = por %p60, %p61
    %p64 = scmp.ne.s32.totalorder %s47, %s63
    %p65 = scmp.eq.s32.totalorder %s13, 0
    %p66 = por %p64, %p65
    %p67 = scmp.le.s32.totalorder 1, %s7
    %p68 = scmp.lt.s32.totalorder %s7, 3
    %p69 = pnand %p67, %p68
    %p70 = pneg %p69
    // Predicated region
    $region9: #{_lambda_.10} parent=5 // pred_check
      _
    $region10: #{_lambda_.10} parent=5 // pred_check_branch
      %72 = sbr.rel (%p69) target = $region12
    $region11: #{_lambda_.10} parent=5 // pred_region
      %s73 = ssub.s32 %s7, 1
    $region12: #{_lambda_.10} parent=5 // pred_fallthru
      _
    %p74 = scmp.lt.s32.totalorder %s7, 2
    // Predicated region
    $region13: #{_lambda_.10} parent=5 // pred_check
      %p75 = pneg %p74
    $region14: #{_lambda_.10} parent=5 // pred_check_branch
      %77 = sbr.rel (%p75) target = $region16
    $region15: #{_lambda_.10} parent=5 // pred_region
      // Predicated region
      $region17: #{_lambda_.10} parent=15 // pred_check
        %p78 = pneg %p27
      $region18: #{_lambda_.10} parent=15 // pred_check_branch
        %80 = sbr.rel (%p78) target = $region20
      $region19: #{_lambda_.10} parent=15 // pred_region
        %p81 = scmp.lt.s32.totalorder %s7, 1
        %s82 = scalar_select %p81, %s7, 1
        %s83 = smul.addr %s82, 32
        %s84 = smul.addr %s83, 4
        %s85 = scalar_lea.vmem %s0, %s84
      $region20: #{_lambda_.10} parent=15 // pred_fallthru
        _
    $region16: #{_lambda_.10} parent=5 // pred_fallthru
      _
    %p86 = scmp.le.s32.totalorder 1, %s7
    %p87 = scmp.lt.s32.totalorder %s7, 3
    %p88 = pnand %p86, %p87
    %p89 = pneg %p88
    // Predicated region
    $region21: #{_lambda_.10} parent=5 // pred_check
      _
    $region22: #{_lambda_.10} parent=5 // pred_check_branch
      %91 = sbr.rel (%p88) target = $region24
    $region23: #{_lambda_.10} parent=5 // pred_region
      %s92 = ssub.s32 %s7, 1
      %p93 = scmp.lt.s32.totalorder %s12, 1
      %s94 = scalar_select %p93, %s12, 1
      %s95 = smul.addr %s94, 32
      %s96 = smul.addr %s95, 4
      %s97 = scalar_lea.vmem %s0, %s96
      %p98 = pneg %p33
      %p99 = pneg %p30
      %p100 = pneg %p59
      %p101 = pneg %p56
      %p102 = scmp.lt.s32.totalorder %s12, 1
      %s103 = scalar_select %p102, %s12, 1
      %s104 = smul.addr %s103, 8
      %s105 = smul.addr %s104, 4
      %s106 = scalar_lea.vmem %s1, %s105
      %p107 = scmp.lt.s32.totalorder %s12, 1
      %s108 = scalar_select %p107, %s12, 1
      %s109 = smul.addr %s108, 32
      %s110 = smul.addr %s109, 4
      %s111 = scalar_lea.vmem %s0, %s110
      %p112 = scmp.lt.s32.totalorder %s12, 1
      %s113 = scalar_select %p112, %s12, 1
      %s114 = smul.addr %s113, 8
      %s115 = smul.addr %s114, 4
      %s116 = scalar_lea.vmem %s1, %s115
      %v117 = vld [vmem:[%s111] sm:$0xff]
      %v118 = vld [vmem:[%s111 + $0x8] sm:$0xff]
      %v119 = vld [vmem:[%s111 + $0x10] sm:$0xff]
      %v120 = vld [vmem:[%s111 + $0x18] sm:$0xff]
      %v121 = vld [vmem:[%s111 + $0x20] sm:$0xff]
      %v122 = vld [vmem:[%s111 + $0x28] sm:$0xff]
      %v123 = vld [vmem:[%s111 + $0x30] sm:$0xff]
      %v124 = vld [vmem:[%s111 + $0x38] sm:$0xff]
      %v125 = vld [vmem:[%s111 + $0x40] sm:$0xff]
      %v126 = vld [vmem:[%s111 + $0x48] sm:$0xff]
      %v127 = vld [vmem:[%s111 + $0x50] sm:$0xff]
      %v128 = vld [vmem:[%s111 + $0x58] sm:$0xff]
      %v129 = vld [vmem:[%s111 + $0x60] sm:$0xff]
      %v130 = vld [vmem:[%s111 + $0x68] sm:$0xff]
      %v131 = vld [vmem:[%s111 + $0x70] sm:$0xff]
      %v132 = vld [vmem:[%s111 + $0x78] sm:$0xff]
      %v149 = vrot.slane %v117, 4
      %v150 = vrot.slane %v118, 4
      %v151 = vrot.slane %v119, 4
      %v152 = vrot.slane %v120, 4
      %v153 = vrot.slane %v121, 4
      %v154 = vrot.slane %v122, 4
      %v155 = vrot.slane %v123, 4
      %v156 = vrot.slane %v124, 4
      %v157 = vrot.slane %v125, 4
      %v158 = vrot.slane %v126, 4
      %v159 = vrot.slane %v127, 4
      %v160 = vrot.slane %v128, 4
      %v161 = vrot.slane %v129, 4
      %v162 = vrot.slane %v130, 4
      %v163 = vrot.slane %v131, 4
      %v164 = vrot.slane %v132, 4
      %v181 = vmax.bf16 %v117, %v149
      %v182 = vmax.bf16 %v118, %v150
      %v183 = vmax.bf16 %v119, %v151
      %v184 = vmax.bf16 %v120, %v152
      %v185 = vmax.bf16 %v121, %v153
      %v186 = vmax.bf16 %v122, %v154
      %v187 = vmax.bf16 %v123, %v155
      %v188 = vmax.bf16 %v124, %v156
      %v189 = vmax.bf16 %v125, %v157
      %v190 = vmax.bf16 %v126, %v158
      %v191 = vmax.bf16 %v127, %v159
      %v192 = vmax.bf16 %v128, %v160
      %v193 = vmax.bf16 %v129, %v161
      %v194 = vmax.bf16 %v130, %v162
      %v195 = vmax.bf16 %v131, %v163
      %v196 = vmax.bf16 %v132, %v164
      %v197 = vmax.bf16 %v181, %v182
      %v198 = vmax.bf16 %v183, %v184
      %v199 = vmax.bf16 %v185, %v186
      %v200 = vmax.bf16 %v187, %v188
      %v201 = vmax.bf16 %v189, %v190
      %v202 = vmax.bf16 %v191, %v192
      %v203 = vmax.bf16 %v193, %v194
      %v204 = vmax.bf16 %v195, %v196
      %205 = vst [vmem:[%s116] sm:$0xf] %v197
      %206 = vst [vmem:[%s116 + $0x4] sm:$0xf] %v198
      %207 = vst [vmem:[%s116 + $0x8] sm:$0xf] %v199
      %208 = vst [vmem:[%s116 + $0xc] sm:$0xf] %v200
      %209 = vst [vmem:[%s116 + $0x10] sm:$0xf] %v201
      %210 = vst [vmem:[%s116 + $0x14] sm:$0xf] %v202
      %211 = vst [vmem:[%s116 + $0x18] sm:$0xf] %v203
      %212 = vst [vmem:[%s116 + $0x1c] sm:$0xf] %v204
      %p213 = scmp.lt.s32.totalorder %s12, 1
      %s214 = scalar_select %p213, %s12, 1
      %s215 = smul.addr %s214, 8
      %s216 = smul.addr %s215, 4
      %s217 = scalar_lea.vmem %s1, %s216
      // Predicated region
      $region25: #{_lambda_.10} parent=23 // pred_check
        %p218 = pneg %p56
      $region26: #{_lambda_.10} parent=23 // pred_check_branch
        %220 = sbr.rel (%p218) target = $region28
      $region27: #{_lambda_.10} parent=23 // pred_region
        _
      $region28: #{_lambda_.10} parent=23 // pred_fallthru
        _
    $region24: #{_lambda_.10} parent=5 // pred_fallthru
      _
    %p221 = scmp.le.s32.totalorder 2, %s7
    // Predicated region
    $region29: #{_lambda_.10} parent=5 // pred_check
      %p222 = pneg %p221
    $region30: #{_lambda_.10} parent=5 // pred_check_branch
      %224 = sbr.rel (%p222) target = $region32
    $region31: #{_lambda_.10} parent=5 // pred_region
      %s225 = ssub.s32 %s7, 2
      // Predicated region
      $region33: #{_lambda_.10} parent=31 // pred_check
        %p226 = pneg %p62
      $region34: #{_lambda_.10} parent=31 // pred_check_branch
        %228 = sbr.rel (%p226) target = $region36
      $region35: #{_lambda_.10} parent=31 // pred_region
        %p229 = scmp.lt.s32.totalorder %s13, 1
        %s230 = scalar_select %p229, %s13, 1
        %s231 = smul.addr %s230, 8
        %s232 = smul.addr %s231, 4
        %s233 = scalar_lea.vmem %s1, %s232
      $region36: #{_lambda_.10} parent=31 // pred_fallthru
        _
    $region32: #{_lambda_.10} parent=5 // pred_fallthru
      _
  $region6: #{_lambda_.10} parent=0 // loop_footer
    %s11 = sadd.s32 1, %s7
  $region7: #{_lambda_.10} parent=0 // loop_footer_branch
    %6 = sbr.rel target = $region3
  $region8: #{_lambda_.10} parent=0 // loop_exit
    _

// kernel: _lambda_.12
$region0: #{_lambda_.12}
  #allocation0 [shape = 'u32[]', space=smem, size = 0x4, offset = 0x4, fixed_abs, tag = 'smem constant byte address 0x4 - core index']
  #allocation1 [shape = 'u32[144,128]{1,0:T(1,128)}', space=vmem, size = 0x12000, scoped, tag = 'internal scratch']
  %s0 = inlined_call_operand.vmem [shape: bf16[2,8,4,256], index: 0, kind: input, shape index: {}]
  %s1 = inlined_call_operand.vmem [shape: bf16[2,4,4,128], index: 1, kind: output, shape index: {}]
  %s2 = sld [smem:[#allocation0]]
  $region37: #{_lambda_.12} parent=0
    _
  %s4 = ssub.s32 1, %s2
  %s5 = scalar_select 0, %s4, %s2
  loop: start=0, step=1, limit=4
  $region2: #{_lambda_.12} parent=0 // loop_pre_header
    _
  $region3: #{_lambda_.12} parent=0 // loop_header
    %s7 = sphi 0, %s11
    %p8 = scmp.ge.s32.totalorder %s7, 4
    %s17 = sphi 0, %s19
    %s20 = sphi 0, %s17
    %s21 = sphi 0, %s20
    %s37 = sphi 0, %s21
    %s43 = sphi 0, %s45
    %s46 = sphi 0, %s43
    %s47 = sphi 0, %s46
    %s63 = sphi 0, %s47
  $region4: #{_lambda_.12} parent=0 // loop_header_branch
    %10 = sbr.rel (%p8) target = $region8
  $region5: #{_lambda_.12} parent=0 // loop_body
    %s12 = ssub.s32 %s7, 1
    %s13 = ssub.s32 %s7, 2
    %s14 = sadd.s32 %s7, 1
    %s15 = ssub.s32 %s7, %s14
    %p16 = scmp.eq.s32.totalorder %s15, 0
    %s18 = sadd.s32 %s17, 1
    %s19 = scalar_select %p16, %s17, %s18
    %p22 = pneg %p16
    %p23 = scmp.eq.s32.totalorder %s7, 1
    %p24 = por %p22, %p23
    %p25 = scmp.ne.s32.totalorder %s17, %s20
    %p26 = scmp.eq.s32.totalorder %s7, 0
    %p27 = por %p25, %p26
    %p28 = scmp.ne.s32.totalorder %s17, %s20
    %p29 = scmp.eq.s32.totalorder %s12, 1
    %p30 = por %p28, %p29
    %p31 = scmp.ne.s32.totalorder %s20, %s21
    %p32 = scmp.eq.s32.totalorder %s12, 0
    %p33 = por %p31, %p32
    %p34 = scmp.ne.s32.totalorder %s20, %s21
    %p35 = scmp.eq.s32.totalorder %s13, 1
    %p36 = por %p34, %p35
    %p38 = scmp.ne.s32.totalorder %s21, %s37
    %p39 = scmp.eq.s32.totalorder %s13, 0
    %p40 = por %p38, %p39
    %s41 = ssub.s32 %s7, %s14
    %p42 = scmp.eq.s32.totalorder %s41, 0
    %s44 = sadd.s32 %s43, 1
    %s45 = scalar_select %p42, %s43, %s44
    %p48 = pneg %p42
    %p49 = scmp.eq.s32.totalorder %s7, 1
    %p50 = por %p48, %p49
    %p51 = scmp.ne.s32.totalorder %s43, %s46
    %p52 = scmp.eq.s32.totalorder %s7, 0
    %p53 = por %p51, %p52
    %p54 = scmp.ne.s32.totalorder %s43, %s46
    %p55 = scmp.eq.s32.totalorder %s12, 1
    %p56 = por %p54, %p55
    %p57 = scmp.ne.s32.totalorder %s46, %s47
    %p58 = scmp.eq.s32.totalorder %s12, 0
    %p59 = por %p57, %p58
    %p60 = scmp.ne.s32.totalorder %s46, %s47
    %p61 = scmp.eq.s32.totalorder %s13, 1
    %p62 = por %p60, %p61
    %p64 = scmp.ne.s32.totalorder %s47, %s63
    %p65 = scmp.eq.s32.totalorder %s13, 0
    %p66 = por %p64, %p65
    %p67 = scmp.le.s32.totalorder 1, %s7
    %p68 = scmp.lt.s32.totalorder %s7, 3
    %p69 = pnand %p67, %p68
    %p70 = pneg %p69
    // Predicated region
    $region9: #{_lambda_.12} parent=5 // pred_check
      _
    $region10: #{_lambda_.12} parent=5 // pred_check_branch
      %72 = sbr.rel (%p69) target = $region12
    $region11: #{_lambda_.12} parent=5 // pred_region
      %s73 = ssub.s32 %s7, 1
    $region12: #{_lambda_.12} parent=5 // pred_fallthru
      _
    %p74 = scmp.lt.s32.totalorder %s7, 2
    // Predicated region
    $region13: #{_lambda_.12} parent=5 // pred_check
      %p75 = pneg %p74
    $region14: #{_lambda_.12} parent=5 // pred_check_branch
      %77 = sbr.rel (%p75) target = $region16
    $region15: #{_lambda_.12} parent=5 // pred_region
      // Predicated region
      $region17: #{_lambda_.12} parent=15 // pred_check
        %p78 = pneg %p27
      $region18: #{_lambda_.12} parent=15 // pred_check_branch
        %80 = sbr.rel (%p78) target = $region20
      $region19: #{_lambda_.12} parent=15 // pred_region
        %p81 = scmp.lt.s32.totalorder %s7, 1
        %s82 = scalar_select %p81, %s7, 1
        %s83 = smul.addr %s82, 16
        %s84 = smul.addr %s83, 2
        %s85 = scalar_lea.vmem %s0, %s84
      $region20: #{_lambda_.12} parent=15 // pred_fallthru
        _
    $region16: #{_lambda_.12} parent=5 // pred_fallthru
      _
    %p86 = scmp.le.s32.totalorder 1, %s7
    %p87 = scmp.lt.s32.totalorder %s7, 3
    %p88 = pnand %p86, %p87
    %p89 = pneg %p88
    // Predicated region
    $region21: #{_lambda_.12} parent=5 // pred_check
      _
    $region22: #{_lambda_.12} parent=5 // pred_check_branch
      %91 = sbr.rel (%p88) target = $region24
    $region23: #{_lambda_.12} parent=5 // pred_region
      %s92 = ssub.s32 %s7, 1
      %p93 = scmp.lt.s32.totalorder %s12, 1
      %s94 = scalar_select %p93, %s12, 1
      %s95 = smul.addr %s94, 16
      %s96 = smul.addr %s95, 2
      %s97 = scalar_lea.vmem %s0, %s96
      %p98 = pneg %p33
      %p99 = pneg %p30
      %p100 = pneg %p59
      %p101 = pneg %p56
      %p102 = scmp.lt.s32.totalorder %s12, 1
      %s103 = scalar_select %p102, %s12, 1
      %s104 = smul.addr %s103, 4
      %s105 = smul.addr %s104, 2
      %s106 = scalar_lea.vmem %s1, %s105
      %p107 = scmp.lt.s32.totalorder %s12, 1
      %s108 = scalar_select %p107, %s12, 1
      %s109 = smul.addr %s108, 16
      %s110 = smul.addr %s109, 2
      %s111 = scalar_lea.vmem %s0, %s110
      %p112 = scmp.lt.s32.totalorder %s12, 1
      %s113 = scalar_select %p112, %s12, 1
      %s114 = smul.addr %s113, 4
      %s115 = smul.addr %s114, 2
      %s116 = scalar_lea.vmem %s1, %s115
      %v117 = vld [vmem:[%s111] sm:$0xf]
      %v118 = vld [vmem:[%s111 + $0x4] sm:$0xf]
      %v119 = vld [vmem:[%s111 + $0x8] sm:$0xf]
      %v120 = vld [vmem:[%s111 + $0xc] sm:$0xf]
      %v121 = vld [vmem:[%s111 + $0x10] sm:$0xf]
      %v122 = vld [vmem:[%s111 + $0x14] sm:$0xf]
      %v123 = vld [vmem:[%s111 + $0x18] sm:$0xf]
      %v124 = vld [vmem:[%s111 + $0x1c] sm:$0xf]
      %v133 = vrot.slane %v117, 2
      %v134 = vrot.slane %v118, 2
      %v135 = vrot.slane %v119, 2
      %v136 = vrot.slane %v120, 2
      %v137 = vrot.slane %v121, 2
      %v138 = vrot.slane %v122, 2
      %v139 = vrot.slane %v123, 2
      %v140 = vrot.slane %v124, 2
      %v149 = vmax.bf16 %v117, %v133
      %v150 = vmax.bf16 %v118, %v134
      %v151 = vmax.bf16 %v119, %v135
      %v152 = vmax.bf16 %v120, %v136
      %v153 = vmax.bf16 %v121, %v137
      %v154 = vmax.bf16 %v122, %v138
      %v155 = vmax.bf16 %v123, %v139
      %v156 = vmax.bf16 %v124, %v140
      %v157 = vmax.bf16 %v149, %v150
      %v158 = vmax.bf16 %v151, %v152
      %v159 = vmax.bf16 %v153, %v154
      %v160 = vmax.bf16 %v155, %v156
      %161 = vst [vmem:[%s116] sm:$0x3] %v157
      %162 = vst [vmem:[%s116 + $0x2] sm:$0x3] %v158
      %163 = vst [vmem:[%s116 + $0x4] sm:$0x3] %v159
      %164 = vst [vmem:[%s116 + $0x6] sm:$0x3] %v160
      %p165 = scmp.lt.s32.totalorder %s12, 1
      %s166 = scalar_select %p165, %s12, 1
      %s167 = smul.addr %s166, 4
      %s168 = smul.addr %s167, 2
      %s169 = scalar_lea.vmem %s1, %s168
      // Predicated region
      $region25: #{_lambda_.12} parent=23 // pred_check
        %p170 = pneg %p56
      $region26: #{_lambda_.12} parent=23 // pred_check_branch
        %172 = sbr.rel (%p170) target = $region28
      $region27: #{_lambda_.12} parent=23 // pred_region
        _
      $region28: #{_lambda_.12} parent=23 // pred_fallthru
        _
    $region24: #{_lambda_.12} parent=5 // pred_fallthru
      _
    %p173 = scmp.le.s32.totalorder 2, %s7
    // Predicated region
    $region29: #{_lambda_.12} parent=5 // pred_check
      %p174 = pneg %p173
    $region30: #{_lambda_.12} parent=5 // pred_check_branch
      %176 = sbr.rel (%p174) target = $region32
    $region31: #{_lambda_.12} parent=5 // pred_region
      %s177 = ssub.s32 %s7, 2
      // Predicated region
      $region33: #{_lambda_.12} parent=31 // pred_check
        %p178 = pneg %p62
      $region34: #{_lambda_.12} parent=31 // pred_check_branch
        %180 = sbr.rel (%p178) target = $region36
      $region35: #{_lambda_.12} parent=31 // pred_region
        %p181 = scmp.lt.s32.totalorder %s13, 1
        %s182 = scalar_select %p181, %s13, 1
        %s183 = smul.addr %s182, 4
        %s184 = smul.addr %s183, 2
        %s185 = scalar_lea.vmem %s1, %s184
      $region36: #{_lambda_.12} parent=31 // pred_fallthru
        _
    $region32: #{_lambda_.12} parent=5 // pred_fallthru
      _
  $region6: #{_lambda_.12} parent=0 // loop_footer
    %s11 = sadd.s32 1, %s7
  $region7: #{_lambda_.12} parent=0 // loop_footer_branch
    %6 = sbr.rel target = $region3
  $region8: #{_lambda_.12} parent=0 // loop_exit
    _

// kernel: _lambda_.14
$region0: #{_lambda_.14}
  #allocation0 [shape = 'u32[]', space=smem, size = 0x4, offset = 0x4, fixed_abs, tag = 'smem constant byte address 0x4 - core index']
  #allocation1 [shape = 'u32[144,128]{1,0:T(1,128)}', space=vmem, size = 0x12000, scoped, tag = 'internal scratch']
  %s0 = inlined_call_operand.vmem [shape: bf16[2,4,2,256], index: 0, kind: input, shape index: {}]
  %s1 = inlined_call_operand.vmem [shape: bf16[2,2,2,128], index: 1, kind: output, shape index: {}]
  %s2 = sld [smem:[#allocation0]]
  $region37: #{_lambda_.14} parent=0
    _
  %s4 = ssub.s32 1, %s2
  %s5 = scalar_select 0, %s4, %s2
  loop: start=0, step=1, limit=4
  $region2: #{_lambda_.14} parent=0 // loop_pre_header
    _
  $region3: #{_lambda_.14} parent=0 // loop_header
    %s7 = sphi 0, %s11
    %p8 = scmp.ge.s32.totalorder %s7, 4
    %s17 = sphi 0, %s19
    %s20 = sphi 0, %s17
    %s21 = sphi 0, %s20
    %s37 = sphi 0, %s21
    %s43 = sphi 0, %s45
    %s46 = sphi 0, %s43
    %s47 = sphi 0, %s46
    %s63 = sphi 0, %s47
  $region4: #{_lambda_.14} parent=0 // loop_header_branch
    %10 = sbr.rel (%p8) target = $region8
  $region5: #{_lambda_.14} parent=0 // loop_body
    %s12 = ssub.s32 %s7, 1
    %s13 = ssub.s32 %s7, 2
    %s14 = sadd.s32 %s7, 1
    %s15 = ssub.s32 %s7, %s14
    %p16 = scmp.eq.s32.totalorder %s15, 0
    %s18 = sadd.s32 %s17, 1
    %s19 = scalar_select %p16, %s17, %s18
    %p22 = pneg %p16
    %p23 = scmp.eq.s32.totalorder %s7, 1
    %p24 = por %p22, %p23
    %p25 = scmp.ne.s32.totalorder %s17, %s20
    %p26 = scmp.eq.s32.totalorder %s7, 0
    %p27 = por %p25, %p26
    %p28 = scmp.ne.s32.totalorder %s17, %s20
    %p29 = scmp.eq.s32.totalorder %s12, 1
    %p30 = por %p28, %p29
    %p31 = scmp.ne.s32.totalorder %s20, %s21
    %p32 = scmp.eq.s32.totalorder %s12, 0
    %p33 = por %p31, %p32
    %p34 = scmp.ne.s32.totalorder %s20, %s21
    %p35 = scmp.eq.s32.totalorder %s13, 1
    %p36 = por %p34, %p35
    %p38 = scmp.ne.s32.totalorder %s21, %s37
    %p39 = scmp.eq.s32.totalorder %s13, 0
    %p40 = por %p38, %p39
    %s41 = ssub.s32 %s7, %s14
    %p42 = scmp.eq.s32.totalorder %s41, 0
    %s44 = sadd.s32 %s43, 1
    %s45 = scalar_select %p42, %s43, %s44
    %p48 = pneg %p42
    %p49 = scmp.eq.s32.totalorder %s7, 1
    %p50 = por %p48, %p49
    %p51 = scmp.ne.s32.totalorder %s43, %s46
    %p52 = scmp.eq.s32.totalorder %s7, 0
    %p53 = por %p51, %p52
    %p54 = scmp.ne.s32.totalorder %s43, %s46
    %p55 = scmp.eq.s32.totalorder %s12, 1
    %p56 = por %p54, %p55
    %p57 = scmp.ne.s32.totalorder %s46, %s47
    %p58 = scmp.eq.s32.totalorder %s12, 0
    %p59 = por %p57, %p58
    %p60 = scmp.ne.s32.totalorder %s46, %s47
    %p61 = scmp.eq.s32.totalorder %s13, 1
    %p62 = por %p60, %p61
    %p64 = scmp.ne.s32.totalorder %s47, %s63
    %p65 = scmp.eq.s32.totalorder %s13, 0
    %p66 = por %p64, %p65
    %p67 = scmp.le.s32.totalorder 1, %s7
    %p68 = scmp.lt.s32.totalorder %s7, 3
    %p69 = pnand %p67, %p68
    %p70 = pneg %p69
    // Predicated region
    $region9: #{_lambda_.14} parent=5 // pred_check
      _
    $region10: #{_lambda_.14} parent=5 // pred_check_branch
      %72 = sbr.rel (%p69) target = $region12
    $region11: #{_lambda_.14} parent=5 // pred_region
      %s73 = ssub.s32 %s7, 1
    $region12: #{_lambda_.14} parent=5 // pred_fallthru
      _
    %p74 = scmp.lt.s32.totalorder %s7, 2
    // Predicated region
    $region13: #{_lambda_.14} parent=5 // pred_check
      %p75 = pneg %p74
    $region14: #{_lambda_.14} parent=5 // pred_check_branch
      %77 = sbr.rel (%p75) target = $region16
    $region15: #{_lambda_.14} parent=5 // pred_region
      // Predicated region
      $region17: #{_lambda_.14} parent=15 // pred_check
        %p78 = pneg %p27
      $region18: #{_lambda_.14} parent=15 // pred_check_branch
        %80 = sbr.rel (%p78) target = $region20
      $region19: #{_lambda_.14} parent=15 // pred_region
        %p81 = scmp.lt.s32.totalorder %s7, 1
        %s82 = scalar_select %p81, %s7, 1
        %s83 = smul.addr %s82, 8
        %s84 = scalar_lea.vmem %s0, %s83
      $region20: #{_lambda_.14} parent=15 // pred_fallthru
        _
    $region16: #{_lambda_.14} parent=5 // pred_fallthru
      _
    %p85 = scmp.le.s32.totalorder 1, %s7
    %p86 = scmp.lt.s32.totalorder %s7, 3
    %p87 = pnand %p85, %p86
    %p88 = pneg %p87
    // Predicated region
    $region21: #{_lambda_.14} parent=5 // pred_check
      _
    $region22: #{_lambda_.14} parent=5 // pred_check_branch
      %90 = sbr.rel (%p87) target = $region24
    $region23: #{_lambda_.14} parent=5 // pred_region
      %s91 = ssub.s32 %s7, 1
      %p92 = scmp.lt.s32.totalorder %s12, 1
      %s93 = scalar_select %p92, %s12, 1
      %s94 = smul.addr %s93, 8
      %s95 = scalar_lea.vmem %s0, %s94
      %p96 = pneg %p33
      %p97 = pneg %p30
      %p98 = pneg %p59
      %p99 = pneg %p56
      %p100 = scmp.lt.s32.totalorder %s12, 1
      %s101 = scalar_select %p100, %s12, 1
      %s102 = smul.addr %s101, 2
      %s103 = scalar_lea.vmem %s1, %s102
      %p104 = scmp.lt.s32.totalorder %s12, 1
      %s105 = scalar_select %p104, %s12, 1
      %s106 = smul.addr %s105, 8
      %s107 = scalar_lea.vmem %s0, %s106
      %p108 = scmp.lt.s32.totalorder %s12, 1
      %s109 = scalar_select %p108, %s12, 1
      %s110 = smul.addr %s109, 2
      %s111 = scalar_lea.vmem %s1, %s110
      %v112 = vld [vmem:[%s107] sm:$0x3]
      %v113 = vld [vmem:[%s107 + $0x2] sm:$0x3]
      %v114 = vld [vmem:[%s107 + $0x4] sm:$0x3]
      %v115 = vld [vmem:[%s107 + $0x6] sm:$0x3]
      %v120 = vrot.slane %v112, 1
      %v121 = vrot.slane %v113, 1
      %v122 = vrot.slane %v114, 1
      %v123 = vrot.slane %v115, 1
      %v128 = vmax.bf16 %v112, %v120
      %v129 = vmax.bf16 %v113, %v121
      %v130 = vmax.bf16 %v114, %v122
      %v131 = vmax.bf16 %v115, %v123
      %v132 = vmax.bf16 %v128, %v129
      %v133 = vmax.bf16 %v130, %v131
      %134 = vst [vmem:[%s111] sm:$0x1] %v132
      %135 = vst [vmem:[%s111 + $0x1] sm:$0x1] %v133
      %p136 = scmp.lt.s32.totalorder %s12, 1
      %s137 = scalar_select %p136, %s12, 1
      %s138 = smul.addr %s137, 2
      %s139 = scalar_lea.vmem %s1, %s138
      // Predicated region
      $region25: #{_lambda_.14} parent=23 // pred_check
        %p140 = pneg %p56
      $region26: #{_lambda_.14} parent=23 // pred_check_branch
        %142 = sbr.rel (%p140) target = $region28
      $region27: #{_lambda_.14} parent=23 // pred_region
        _
      $region28: #{_lambda_.14} parent=23 // pred_fallthru
        _
    $region24: #{_lambda_.14} parent=5 // pred_fallthru
      _
    %p143 = scmp.le.s32.totalorder 2, %s7
    // Predicated region
    $region29: #{_lambda_.14} parent=5 // pred_check
      %p144 = pneg %p143
    $region30: #{_lambda_.14} parent=5 // pred_check_branch
      %146 = sbr.rel (%p144) target = $region32
    $region31: #{_lambda_.14} parent=5 // pred_region
      %s147 = ssub.s32 %s7, 2
      // Predicated region
      $region33: #{_lambda_.14} parent=31 // pred_check
        %p148 = pneg %p62
      $region34: #{_lambda_.14} parent=31 // pred_check_branch
        %150 = sbr.rel (%p148) target = $region36
      $region35: #{_lambda_.14} parent=31 // pred_region
        %p151 = scmp.lt.s32.totalorder %s13, 1
        %s152 = scalar_select %p151, %s13, 1
        %s153 = smul.addr %s152, 2
        %s154 = scalar_lea.vmem %s1, %s153
      $region36: #{_lambda_.14} parent=31 // pred_fallthru
        _
    $region32: #{_lambda_.14} parent=5 // pred_fallthru
      _
  $region6: #{_lambda_.14} parent=0 // loop_footer
    %s11 = sadd.s32 1, %s7
  $region7: #{_lambda_.14} parent=0 // loop_footer_branch
    %6 = sbr.rel target = $region3
  $region8: #{_lambda_.14} parent=0 // loop_exit
    _

// kernel: _lambda_.11
$region0: #{_lambda_.11}
  #allocation0 [shape = 'u32[]', space=smem, size = 0x4, offset = 0x4, fixed_abs, tag = 'smem constant byte address 0x4 - core index']
  #allocation1 [shape = 'u32[144,128]{1,0:T(1,128)}', space=vmem, size = 0x12000, scoped, tag = 'internal scratch']
  #allocation2 [shape = 'f32[80,128]{1,0:T(8,128)}', space=vmem, size = 0xa000, scoped, tag = 'scratch operand']
  %s0 = inlined_call_operand.vmem [shape: bf16[2,110,128], index: 0, kind: input, shape index: {}]
  %s1 = inlined_call_operand.vmem [shape: bf16[9,128,128], index: 1, kind: input, shape index: {}]
  %s2 = inlined_call_operand.vmem [shape: f32[1,128], index: 2, kind: input, shape index: {}]
  %s3 = inlined_call_operand.vmem [shape: bf16[2,8,8,128], index: 3, kind: output, shape index: {}]
  %s4 = sld [smem:[#allocation0]]
  $region45: #{_lambda_.11} parent=0
    _
  %s6 = ssub.s32 1, %s4
  %s7 = scalar_select 0, %s6, %s4
  loop: start=0, step=1, limit=4
  $region2: #{_lambda_.11} parent=0 // loop_pre_header
    _
  $region3: #{_lambda_.11} parent=0 // loop_header
    %s9 = sphi 0, %s13
    %p10 = scmp.ge.s32.totalorder %s9, 4
    %s19 = sphi 0, %s21
    %s22 = sphi 0, %s19
    %s23 = sphi 0, %s22
    %s39 = sphi 0, %s23
    %s43 = sphi 0, %s43
    %s45 = sphi 0, %s43
    %s46 = sphi 0, %s45
    %s60 = sphi 0, %s46
    %s64 = sphi 0, %s64
    %s66 = sphi 0, %s64
    %s67 = sphi 0, %s66
    %s81 = sphi 0, %s67
    %s87 = sphi 0, %s89
    %s90 = sphi 0, %s87
    %s91 = sphi 0, %s90
    %s107 = sphi 0, %s91
  $region4: #{_lambda_.11} parent=0 // loop_header_branch
    %12 = sbr.rel (%p10) target = $region8
  $region5: #{_lambda_.11} parent=0 // loop_body
    %s14 = ssub.s32 %s9, 1
    %s15 = ssub.s32 %s9, 2
    %s16 = sadd.s32 %s9, 1
    %s17 = ssub.s32 %s9, %s16
    %p18 = scmp.eq.s32.totalorder %s17, 0
    %s20 = sadd.s32 %s19, 1
    %s21 = scalar_select %p18, %s19, %s20
    %p24 = pneg %p18
    %p25 = scmp.eq.s32.totalorder %s9, 1
    %p26 = por %p24, %p25
    %p27 = scmp.ne.s32.totalorder %s19, %s22
    %p28 = scmp.eq.s32.totalorder %s9, 0
    %p29 = por %p27, %p28
    %p30 = scmp.ne.s32.totalorder %s19, %s22
    %p31 = scmp.eq.s32.totalorder %s14, 1
    %p32 = por %p30, %p31
    %p33 = scmp.ne.s32.totalorder %s22, %s23
    %p34 = scmp.eq.s32.totalorder %s14, 0
    %p35 = por %p33, %p34
    %p36 = scmp.ne.s32.totalorder %s22, %s23
    %p37 = scmp.eq.s32.totalorder %s15, 1
    %p38 = por %p36, %p37
    %p40 = scmp.ne.s32.totalorder %s23, %s39
    %p41 = scmp.eq.s32.totalorder %s15, 0
    %p42 = por %p40, %p41
    %s44 = sadd.s32 %s43, 1
    %p47 = scmp.eq.s32.totalorder %s9, 1
    %p48 = scmp.ne.s32.totalorder %s43, %s45
    %p49 = scmp.eq.s32.totalorder %s9, 0
    %p50 = por %p48, %p49
    %p51 = scmp.ne.s32.totalorder %s43, %s45
    %p52 = scmp.eq.s32.totalorder %s14, 1
    %p53 = por %p51, %p52
    %p54 = scmp.ne.s32.totalorder %s45, %s46
    %p55 = scmp.eq.s32.totalorder %s14, 0
    %p56 = por %p54, %p55
    %p57 = scmp.ne.s32.totalorder %s45, %s46
    %p58 = scmp.eq.s32.totalorder %s15, 1
    %p59 = por %p57, %p58
    %p61 = scmp.ne.s32.totalorder %s46, %s60
    %p62 = scmp.eq.s32.totalorder %s15, 0
    %p63 = por %p61, %p62
    %s65 = sadd.s32 %s64, 1
    %p68 = scmp.eq.s32.totalorder %s9, 1
    %p69 = scmp.ne.s32.totalorder %s64, %s66
    %p70 = scmp.eq.s32.totalorder %s9, 0
    %p71 = por %p69, %p70
    %p72 = scmp.ne.s32.totalorder %s64, %s66
    %p73 = scmp.eq.s32.totalorder %s14, 1
    %p74 = por %p72, %p73
    %p75 = scmp.ne.s32.totalorder %s66, %s67
    %p76 = scmp.eq.s32.totalorder %s14, 0
    %p77 = por %p75, %p76
    %p78 = scmp.ne.s32.totalorder %s66, %s67
    %p79 = scmp.eq.s32.totalorder %s15, 1
    %p80 = por %p78, %p79
    %p82 = scmp.ne.s32.totalorder %s67, %s81
    %p83 = scmp.eq.s32.totalorder %s15, 0
    %p84 = por %p82, %p83
    %s85 = ssub.s32 %s9, %s16
    %p86 = scmp.eq.s32.totalorder %s85, 0
    %s88 = sadd.s32 %s87, 1
    %s89 = scalar_select %p86, %s87, %s88
    %p92 = pneg %p86
    %p93 = scmp.eq.s32.totalorder %s9, 1
    %p94 = por %p92, %p93
    %p95 = scmp.ne.s32.totalorder %s87, %s90
    %p96 = scmp.eq.s32.totalorder %s9, 0
    %p97 = por %p95, %p96
    %p98 = scmp.ne.s32.totalorder %s87, %s90
    %p99 = scmp.eq.s32.totalorder %s14, 1
    %p100 = por %p98, %p99
    %p101 = scmp.ne.s32.totalorder %s90, %s91
    %p102 = scmp.eq.s32.totalorder %s14, 0
    %p103 = por %p101, %p102
    %p104 = scmp.ne.s32.totalorder %s90, %s91
    %p105 = scmp.eq.s32.totalorder %s15, 1
    %p106 = por %p104, %p105
    %p108 = scmp.ne.s32.totalorder %s91, %s107
    %p109 = scmp.eq.s32.totalorder %s15, 0
    %p110 = por %p108, %p109
    %p111 = scmp.le.s32.totalorder 1, %s9
    %p112 = scmp.lt.s32.totalorder %s9, 3
    %p113 = pnand %p111, %p112
    %p114 = pneg %p113
    // Predicated region
    $region9: #{_lambda_.11} parent=5 // pred_check
      _
    $region10: #{_lambda_.11} parent=5 // pred_check_branch
      %116 = sbr.rel (%p113) target = $region12
    $region11: #{_lambda_.11} parent=5 // pred_region
      %s117 = ssub.s32 %s9, 1
      // Predicated region
      $region13: #{_lambda_.11} parent=11 // pred_check
        %p118 = pneg %p56
      $region14: #{_lambda_.11} parent=11 // pred_check_branch
        %120 = sbr.rel (%p118) target = $region16
      $region15: #{_lambda_.11} parent=11 // pred_region
        _
      $region16: #{_lambda_.11} parent=11 // pred_fallthru
        _
      // Predicated region
      $region17: #{_lambda_.11} parent=11 // pred_check
        %p121 = pneg %p77
      $region18: #{_lambda_.11} parent=11 // pred_check_branch
        %123 = sbr.rel (%p121) target = $region20
      $region19: #{_lambda_.11} parent=11 // pred_region
        _
      $region20: #{_lambda_.11} parent=11 // pred_fallthru
        _
    $region12: #{_lambda_.11} parent=5 // pred_fallthru
      _
    %p124 = scmp.lt.s32.totalorder %s9, 2
    // Predicated region
    $region21: #{_lambda_.11} parent=5 // pred_check
      %p125 = pneg %p124
    $region22: #{_lambda_.11} parent=5 // pred_check_branch
      %127 = sbr.rel (%p125) target = $region24
    $region23: #{_lambda_.11} parent=5 // pred_region
      // Predicated region
      $region25: #{_lambda_.11} parent=23 // pred_check
        %p128 = pneg %p29
      $region26: #{_lambda_.11} parent=23 // pred_check_branch
        %130 = sbr.rel (%p128) target = $region28
      $region27: #{_lambda_.11} parent=23 // pred_region
        %p131 = scmp.lt.s32.totalorder %s9, 1
        %s132 = scalar_select %p131, %s9, 1
        %s133 = smul.addr %s132, 14
        %s134 = smul.addr %s133, 4
        %s135 = scalar_lea.vmem %s0, %s134
      $region28: #{_lambda_.11} parent=23 // pred_fallthru
        _
    $region24: #{_lambda_.11} parent=5 // pred_fallthru
      _
    %p136 = scmp.le.s32.totalorder 1, %s9
    %p137 = scmp.lt.s32.totalorder %s9, 3
    %p138 = pnand %p136, %p137
    %p139 = pneg %p138
    // Predicated region
    $region29: #{_lambda_.11} parent=5 // pred_check
      _
    $region30: #{_lambda_.11} parent=5 // pred_check_branch
      %141 = sbr.rel (%p138) target = $region32
    $region31: #{_lambda_.11} parent=5 // pred_region
      %s142 = ssub.s32 %s9, 1
      %p143 = scmp.lt.s32.totalorder %s14, 1
      %s144 = scalar_select %p143, %s14, 1
      %s145 = smul.addr %s144, 14
      %s146 = smul.addr %s145, 4
      %s147 = scalar_lea.vmem %s0, %s146
      %p148 = pneg %p35
      %p149 = pneg %p32
      %p150 = pneg %p56
      %p151 = pneg %p53
      %p152 = pneg %p77
      %p153 = pneg %p74
      %p154 = pneg %p103
      %p155 = pneg %p100
      %p156 = scmp.lt.s32.totalorder %s14, 1
      %s157 = scalar_select %p156, %s14, 1
      %s158 = smul.addr %s157, 8
      %s159 = smul.addr %s158, 4
      %s160 = scalar_lea.vmem %s3, %s159
      %p161 = scmp.lt.s32.totalorder %s14, 1
      %s162 = scalar_select %p161, %s14, 1
      %s163 = smul.addr %s162, 14
      %s164 = smul.addr %s163, 4
      %s165 = scalar_lea.vmem %s0, %s164
      %p166 = scmp.lt.s32.totalorder %s14, 1
      %s167 = scalar_select %p166, %s14, 1
      %s168 = smul.addr %s167, 8
      %s169 = smul.addr %s168, 4
      %s170 = scalar_lea.vmem %s3, %s169
      %v172 = vld [vmem:[%s165] sm:$0xf]
      %v173 = vld [vmem:[%s165 + $0x4] sm:$0xf]
      %v174 = vld [vmem:[%s165 + $0x8] sm:$0xf]
      %v175 = vld [vmem:[%s165 + $0xc] sm:$0xf]
      %v176 = vld [vmem:[%s165 + $0x10] sm:$0xf]
      %v177 = vld [vmem:[%s165 + $0x14] sm:$0xf]
      %v178 = vld [vmem:[%s165 + $0x18] sm:$0xf]
      %v179 = vld [vmem:[%s165 + $0x1c] sm:$0xf]
      %v180 = vld [vmem:[%s165 + $0x20] sm:$0xf]
      %v181 = vld [vmem:[%s165 + $0x24] sm:$0xf]
      %v182 = vld [vmem:[%s1] sm:$0xf]
      %v183 = vld [vmem:[%s1 + $0x4] sm:$0xf]
      %v184 = vld [vmem:[%s1 + $0x8] sm:$0xf]
      %v185 = vld [vmem:[%s1 + $0xc] sm:$0xf]
      %v186 = vld [vmem:[%s1 + $0x10] sm:$0xf]
      %v187 = vld [vmem:[%s1 + $0x14] sm:$0xf]
      %v188 = vld [vmem:[%s1 + $0x18] sm:$0xf]
      %v189 = vld [vmem:[%s1 + $0x1c] sm:$0xf]
      %v190 = vld [vmem:[%s1 + $0x20] sm:$0xf]
      %v191 = vld [vmem:[%s1 + $0x24] sm:$0xf]
      %v192 = vld [vmem:[%s1 + $0x28] sm:$0xf]
      %v193 = vld [vmem:[%s1 + $0x2c] sm:$0xf]
      %v194 = vld [vmem:[%s1 + $0x30] sm:$0xf]
      %v195 = vld [vmem:[%s1 + $0x34] sm:$0xf]
      %v196 = vld [vmem:[%s1 + $0x38] sm:$0xf]
      %v197 = vld [vmem:[%s1 + $0x3c] sm:$0xf]
      %v208 = vunpack.c.l.b16 %v172
      %v209 = vunpack.c.l.b16 %v173
      %v210 = vunpack.c.l.b16 %v174
      %v211 = vunpack.c.l.b16 %v175
      %v212 = vunpack.c.l.b16 %v176
      %v213 = vunpack.c.l.b16 %v177
      %v214 = vunpack.c.l.b16 %v178
      %v215 = vunpack.c.l.b16 %v179
      %v216 = vunpack.c.l.b16 %v180
      %v217 = vunpack.c.l.b16 %v181
      %v218 = vpack.c.b16 %v209, %v208
      %v219 = vpack.c.b16 %v211, %v210
      %v220 = vpack.c.b16 %v213, %v212
      %v221 = vpack.c.b16 %v215, %v214
      %v222 = vpack.c.b16 %v217, %v216
      %v244 = vunpack.c.l.b16 %v182
      %v245 = vunpack.c.l.b16 %v183
      %v246 = vunpack.c.l.b16 %v184
      %v247 = vunpack.c.l.b16 %v185
      %v248 = vunpack.c.l.b16 %v186
      %v249 = vunpack.c.l.b16 %v187
      %v250 = vunpack.c.l.b16 %v188
      %v251 = vunpack.c.l.b16 %v189
      %v252 = vunpack.c.l.b16 %v190
      %v253 = vunpack.c.l.b16 %v191
      %v254 = vunpack.c.l.b16 %v192
      %v255 = vunpack.c.l.b16 %v193
      %v256 = vunpack.c.l.b16 %v194
      %v257 = vunpack.c.l.b16 %v195
      %v258 = vunpack.c.l.b16 %v196
      %v259 = vunpack.c.l.b16 %v197
      %v260 = vpack.c.b16 %v245, %v244
      %v261 = vpack.c.b16 %v247, %v246
      %v262 = vpack.c.b16 %v249, %v248
      %v263 = vpack.c.b16 %v251, %v250
      %v264 = vpack.c.b16 %v253, %v252
      %v265 = vpack.c.b16 %v255, %v254
      %v266 = vpack.c.b16 %v257, %v256
      %v267 = vpack.c.b16 %v259, %v258
      %276 = vmatprep.subr.bf16.mxu0 0
      %277 = vmatpush1.bf16.msra.mxu0 %v260
      %278 = vmatprep.subr.bf16.mxu0 0
      %279 = vmatpush1.bf16.msra.mxu0 %v261
      %280 = vmatprep.subr.bf16.mxu0 0
      %281 = vmatpush1.bf16.msra.mxu0 %v262
      %282 = vmatprep.subr.bf16.mxu0 0
      %283 = vmatpush1.bf16.msra.mxu0 %v263
      %284 = vmatprep.subr.bf16.mxu0 0
      %285 = vmatpush1.bf16.msra.mxu0 %v264
      %286 = vmatprep.subr.bf16.mxu0 0
      %287 = vmatpush1.bf16.msra.mxu0 %v265
      %288 = vmatprep.subr.bf16.mxu0 0
      %289 = vmatpush1.bf16.msra.mxu0 %v266
      %290 = vmatprep.subr.bf16.mxu0 0
      %291 = vmatpush1.bf16.msra.mxu0 %v267
      %292 = vmatprep.subr.bf16.mxu0 0
      %293 = vmatpush1.bf16.msra.mxu0 0
      %294 = vmatprep.subr.bf16.mxu0 0
      %295 = vmatpush1.bf16.msra.mxu0 0
      %296 = vmatprep.subr.bf16.mxu0 0
      %297 = vmatpush1.bf16.msra.mxu0 0
      %298 = vmatprep.subr.bf16.mxu0 0
      %299 = vmatpush1.bf16.msra.mxu0 0
      %300 = vmatprep.subr.bf16.mxu0 0
      %301 = vmatpush1.bf16.msra.mxu0 0
      %302 = vmatprep.subr.bf16.mxu0 0
      %303 = vmatpush1.bf16.msra.mxu0 0
      %304 = vmatprep.subr.bf16.mxu0 0
      %305 = vmatpush1.bf16.msra.mxu0 0
      %306 = vmatprep.subr.bf16.mxu0 0
      %307 = vmatpush1.bf16.msra.mxu0 0
      %308 = vmatprep.mubr.bf16.mxu0 0
      %309 = vmatmul.mubr.bf16.gmra.mrb[0].mxu0 %v218
      %v310 = vpop.f32.mrb[0].mxu0
      %v311 = vadd.f32 0.0, %v310
      %v312 = vpop.f32.mrb[0].mxu0
      %v313 = vpop.f32.mrb[0].mxu0
      %v314 = vadd.f32 0.0, %v313
      %v315 = vpop.f32.mrb[0].mxu0
      %316 = vmatprep.mubr.bf16.mxu0 0
      %317 = vmatmul.mubr.bf16.gmra.mrb[0].mxu0 %v219
      %v318 = vpop.f32.mrb[0].mxu0
      %v319 = vadd.f32 0.0, %v318
      %v320 = vpop.f32.mrb[0].mxu0
      %v321 = vpop.f32.mrb[0].mxu0
      %v322 = vadd.f32 0.0, %v321
      %v323 = vpop.f32.mrb[0].mxu0
      %324 = vmatprep.mubr.bf16.mxu0 0
      %325 = vmatmul.mubr.bf16.gmra.mrb[0].mxu0 %v220
      %v326 = vpop.f32.mrb[0].mxu0
      %v327 = vadd.f32 0.0, %v326
      %v328 = vpop.f32.mrb[0].mxu0
      %v329 = vpop.f32.mrb[0].mxu0
      %v330 = vadd.f32 0.0, %v329
      %v331 = vpop.f32.mrb[0].mxu0
      %332 = vmatprep.mubr.bf16.mxu0 0
      %333 = vmatmul.mubr.bf16.gmra.mrb[0].mxu0 %v221
      %v334 = vpop.f32.mrb[0].mxu0
      %v335 = vadd.f32 0.0, %v334
      %v336 = vpop.f32.mrb[0].mxu0
      %v337 = vpop.f32.mrb[0].mxu0
      %v338 = vadd.f32 0.0, %v337
      %v339 = vpop.f32.mrb[0].mxu0
      %340 = vmatprep.mubr.bf16.mxu0 0
      %341 = vmatmul.mubr.bf16.gmra.mrb[0].mxu0 %v222
      %v342 = vpop.f32.mrb[0].mxu0
      %v343 = vadd.f32 0.0, %v342
      %v344 = vpop.f32.mrb[0].mxu0
      %v345 = vpop.f32.mrb[0].mxu0
      %v346 = vadd.f32 0.0, %v345
      %v347 = vpop.f32.mrb[0].mxu0
      %348 = vdwg.mxu0
      %349 = vst [vmem:[#allocation2] sm:$0xff] %v311
      %350 = vst [vmem:[#allocation2 + $0x8] sm:$0xff] %v314
      %351 = vst [vmem:[#allocation2 + $0x10] sm:$0xff] %v319
      %352 = vst [vmem:[#allocation2 + $0x18] sm:$0xff] %v322
      %353 = vst [vmem:[#allocation2 + $0x20] sm:$0xff] %v327
      %354 = vst [vmem:[#allocation2 + $0x28] sm:$0xff] %v330
      %355 = vst [vmem:[#allocation2 + $0x30] sm:$0xff] %v335
      %356 = vst [vmem:[#allocation2 + $0x38] sm:$0xff] %v338
      %357 = vst [vmem:[#allocation2 + $0x40] sm:$0xff] %v343
      %358 = vst [vmem:[#allocation2 + $0x48] sm:$0xff] %v346
      %v359 = vld [vmem:[%s165] sm:$0xf]
      %v360 = vld [vmem:[%s165 + $0x4] sm:$0xf]
      %v361 = vld [vmem:[%s165 + $0x8] sm:$0xf]
      %v362 = vld [vmem:[%s165 + $0xc] sm:$0xf]
      %v363 = vld [vmem:[%s165 + $0x10] sm:$0xf]
      %v364 = vld [vmem:[%s165 + $0x14] sm:$0xf]
      %v365 = vld [vmem:[%s165 + $0x18] sm:$0xf]
      %v366 = vld [vmem:[%s165 + $0x1c] sm:$0xf]
      %v367 = vld [vmem:[%s165 + $0x20] sm:$0xf]
      %v368 = vld [vmem:[%s165 + $0x24] sm:$0xf]
      %v369 = vld [vmem:[%s165 + $0x28] sm:$0x1]
      %s370 = scalar_lea.vmem %s1, 64
      %v371 = vld [vmem:[%s370] sm:$0xf]
      %v372 = vld [vmem:[%s370 + $0x4] sm:$0xf]
      %v373 = vld [vmem:[%s370 + $0x8] sm:$0xf]
      %v374 = vld [vmem:[%s370 + $0xc] sm:$0xf]
      %v375 = vld [vmem:[%s370 + $0x10] sm:$0xf]
      %v376 = vld [vmem:[%s370 + $0x14] sm:$0xf]
      %v377 = vld [vmem:[%s370 + $0x18] sm:$0xf]
      %v378 = vld [vmem:[%s370 + $0x1c] sm:$0xf]
      %v379 = vld [vmem:[%s370 + $0x20] sm:$0xf]
      %v380 = vld [vmem:[%s370 + $0x24] sm:$0xf]
      %v381 = vld [vmem:[%s370 + $0x28] sm:$0xf]
      %v382 = vld [vmem:[%s370 + $0x2c] sm:$0xf]
      %v383 = vld [vmem:[%s370 + $0x30] sm:$0xf]
      %v384 = vld [vmem:[%s370 + $0x34] sm:$0xf]
      %v385 = vld [vmem:[%s370 + $0x38] sm:$0xf]
      %v386 = vld [vmem:[%s370 + $0x3c] sm:$0xf]
      %v398 = vunpack.c.l.b16 %v359
      %v399 = vunpack.c.l.b16 %v360
      %v400 = vunpack.c.l.b16 %v361
      %v401 = vunpack.c.l.b16 %v362
      %v402 = vunpack.c.l.b16 %v363
      %v403 = vunpack.c.l.b16 %v364
      %v404 = vunpack.c.l.b16 %v365
      %v405 = vunpack.c.l.b16 %v366
      %v406 = vunpack.c.l.b16 %v367
      %v407 = vunpack.c.l.b16 %v368
      %v408 = vunpack.c.l.b16 %v369
      %v409 = vpack.c.b16 %v399, %v398
      %v410 = vpack.c.b16 %v401, %v400
      %v411 = vpack.c.b16 %v403, %v402
      %v412 = vpack.c.b16 %v405, %v404
      %v413 = vpack.c.b16 %v407, %v406
      %v414 = vpack.c.b16 %v408, %v408
      %vm415 = vsmask.f32 7424
      %v417 = vshrl.u32 %v409, 16
      %v419 = vshll.u32 %v409, 16
      %v421 = vrot.slane %v419, 1
      %v422 = vor.u32 %v417, %v421
      %v424 = vshll.u32 %v410, 16
      %v426 = vrot.slane %v424, 1
      %v427 = vsel %vm415, %v422, %v426
      %v428 = vshrl.u32 %v410, 16
      %v430 = vor.u32 %v428, %v426
      %v432 = vshll.u32 %v411, 16
      %v434 = vrot.slane %v432, 1
      %v435 = vsel %vm415, %v430, %v434
      %v436 = vshrl.u32 %v411, 16
      %v438 = vor.u32 %v436, %v434
      %v440 = vshll.u32 %v412, 16
      %v442 = vrot.slane %v440, 1
      %v443 = vsel %vm415, %v438, %v442
      %v444 = vshrl.u32 %v412, 16
      %v446 = vor.u32 %v444, %v442
      %v448 = vshll.u32 %v413, 16
      %v450 = vrot.slane %v448, 1
      %v451 = vsel %vm415, %v446, %v450
      %v452 = vshrl.u32 %v413, 16
      %v454 = vor.u32 %v452, %v450
      %v456 = vshll.u32 %v414, 16
      %v458 = vrot.slane %v456, 1
      %v459 = vsel %vm415, %v454, %v458
      %v481 = vunpack.c.l.b16 %v371
      %v482 = vunpack.c.l.b16 %v372
      %v483 = vunpack.c.l.b16 %v373
      %v484 = vunpack.c.l.b16 %v374
      %v485 = vunpack.c.l.b16 %v375
      %v486 = vunpack.c.l.b16 %v376
      %v487 = vunpack.c.l.b16 %v377
      %v488 = vunpack.c.l.b16 %v378
      %v489 = vunpack.c.l.b16 %v379
      %v490 = vunpack.c.l.b16 %v380
      %v491 = vunpack.c.l.b16 %v381
      %v492 = vunpack.c.l.b16 %v382
      %v493 = vunpack.c.l.b16 %v383
      %v494 = vunpack.c.l.b16 %v384
      %v495 = vunpack.c.l.b16 %v385
      %v496 = vunpack.c.l.b16 %v386
      %v497 = vpack.c.b16 %v482, %v481
      %v498 = vpack.c.b16 %v484, %v483
      %v499 = vpack.c.b16 %v486, %v485
      %v500 = vpack.c.b16 %v488, %v487
      %v501 = vpack.c.b16 %v490, %v489
      %v502 = vpack.c.b16 %v492, %v491
      %v503 = vpack.c.b16 %v494, %v493
      %v504 = vpack.c.b16 %v496, %v495
      %513 = vmatprep.subr.bf16.mxu0 0
      %514 = vmatpush1.bf16.msra.mxu0 %v497
      %515 = vmatprep.subr.bf16.mxu0 0
      %516 = vmatpush1.bf16.msra.mxu0 %v498
      %517 = vmatprep.subr.bf16.mxu0 0
      %518 = vmatpush1.bf16.msra.mxu0 %v499
      %519 = vmatprep.subr.bf16.mxu0 0
      %520 = vmatpush1.bf16.msra.mxu0 %v500
      %521 = vmatprep.subr.bf16.mxu0 0
      %522 = vmatpush1.bf16.msra.mxu0 %v501
      %523 = vmatprep.subr.bf16.mxu0 0
      %524 = vmatpush1.bf16.msra.mxu0 %v502
      %525 = vmatprep.subr.bf16.mxu0 0
      %526 = vmatpush1.bf16.msra.mxu0 %v503
      %527 = vmatprep.subr.bf16.mxu0 0
      %528 = vmatpush1.bf16.msra.mxu0 %v504
      %529 = vmatprep.subr.bf16.mxu0 0
      %530 = vmatpush1.bf16.msra.mxu0 0
      %531 = vmatprep.subr.bf16.mxu0 0
      %532 = vmatpush1.bf16.msra.mxu0 0
      %533 = vmatprep.subr.bf16.mxu0 0
      %534 = vmatpush1.bf16.msra.mxu0 0
      %535 = vmatprep.subr.bf16.mxu0 0
      %536 = vmatpush1.bf16.msra.mxu0 0
      %537 = vmatprep.subr.bf16.mxu0 0
      %538 = vmatpush1.bf16.msra.mxu0 0
      %539 = vmatprep.subr.bf16.mxu0 0
      %540 = vmatpush1.bf16.msra.mxu0 0
      %541 = vmatprep.subr.bf16.mxu0 0
      %542 = vmatpush1.bf16.msra.mxu0 0
      %543 = vmatprep.subr.bf16.mxu0 0
      %544 = vmatpush1.bf16.msra.mxu0 0
      %545 = vmatprep.mubr.bf16.mxu0 0
      %546 = vmatmul.mubr.bf16.gmra.mrb[0].mxu0 %v427
      %v547 = vpop.f32.mrb[0].mxu0
      %v548 = vadd.f32 0.0, %v547
      %v549 = vpop.f32.mrb[0].mxu0
      %v550 = vpop.f32.mrb[0].mxu0
      %v551 = vadd.f32 0.0, %v550
      %v552 = vpop.f32.mrb[0].mxu0
      %553 = vmatprep.mubr.bf16.mxu0 0
      %554 = vmatmul.mubr.bf16.gmra.mrb[0].mxu0 %v435
      %v555 = vpop.f32.mrb[0].mxu0
      %v556 = vadd.f32 0.0, %v555
      %v557 = vpop.f32.mrb[0].mxu0
      %v558 = vpop.f32.mrb[0].mxu0
      %v559 = vadd.f32 0.0, %v558
      %v560 = vpop.f32.mrb[0].mxu0
      %561 = vmatprep.mubr.bf16.mxu0 0
      %562 = vmatmul.mubr.bf16.gmra.mrb[0].mxu0 %v443
      %v563 = vpop.f32.mrb[0].mxu0
      %v564 = vadd.f32 0.0, %v563
      %v565 = vpop.f32.mrb[0].mxu0
      %v566 = vpop.f32.mrb[0].mxu0
      %v567 = vadd.f32 0.0, %v566
      %v568 = vpop.f32.mrb[0].mxu0
      %569 = vmatprep.mubr.bf16.mxu0 0
      %570 = vmatmul.mubr.bf16.gmra.mrb[0].mxu0 %v451
      %v571 = vpop.f32.mrb[0].mxu0
      %v572 = vadd.f32 0.0, %v571
      %v573 = vpop.f32.mrb[0].mxu0
      %v574 = vpop.f32.mrb[0].mxu0
      %v575 = vadd.f32 0.0, %v574
      %v576 = vpop.f32.mrb[0].mxu0
      %577 = vmatprep.mubr.bf16.mxu0 0
      %578 = vmatmul.mubr.bf16.gmra.mrb[0].mxu0 %v459
      %v579 = vpop.f32.mrb[0].mxu0
      %v580 = vadd.f32 0.0, %v579
      %v581 = vpop.f32.mrb[0].mxu0
      %v582 = vpop.f32.mrb[0].mxu0
      %v583 = vadd.f32 0.0, %v582
      %v584 = vpop.f32.mrb[0].mxu0
      %585 = vdwg.mxu0
      %v586 = vld [vmem:[#allocation2] sm:$0xff]
      %v587 = vld [vmem:[#allocation2 + $0x8] sm:$0xff]
      %v588 = vld [vmem:[#allocation2 + $0x10] sm:$0xff]
      %v589 = vld [vmem:[#allocation2 + $0x18] sm:$0xff]
      %v590 = vld [vmem:[#allocation2 + $0x20] sm:$0xff]
      %v591 = vld [vmem:[#allocation2 + $0x28] sm:$0xff]
      %v592 = vld [vmem:[#allocation2 + $0x30] sm:$0xff]
      %v593 = vld [vmem:[#allocation2 + $0x38] sm:$0xff]
      %v594 = vld [vmem:[#allocation2 + $0x40] sm:$0xff]
      %v595 = vld [vmem:[#allocation2 + $0x48] sm:$0xff]
      %v596 = vadd.f32 %v586, %v548
      %v597 = vadd.f32 %v587, %v551
      %v598 = vadd.f32 %v588, %v556
      %v599 = vadd.f32 %v589, %v559
      %v600 = vadd.f32 %v590, %v564
      %v601 = vadd.f32 %v591, %v567
      %v602 = vadd.f32 %v592, %v572
      %v603 = vadd.f32 %v593, %v575
      %v604 = vadd.f32 %v594, %v580
      %v605 = vadd.f32 %v595, %v583
      %606 = vst [vmem:[#allocation2] sm:$0xff] %v596
      %607 = vst [vmem:[#allocation2 + $0x8] sm:$0xff] %v597
      %608 = vst [vmem:[#allocation2 + $0x10] sm:$0xff] %v598
      %609 = vst [vmem:[#allocation2 + $0x18] sm:$0xff] %v599
      %610 = vst [vmem:[#allocation2 + $0x20] sm:$0xff] %v600
      %611 = vst [vmem:[#allocation2 + $0x28] sm:$0xff] %v601
      %612 = vst [vmem:[#allocation2 + $0x30] sm:$0xff] %v602
      %613 = vst [vmem:[#allocation2 + $0x38] sm:$0xff] %v603
      %614 = vst [vmem:[#allocation2 + $0x40] sm:$0xff] %v604
      %615 = vst [vmem:[#allocation2 + $0x48] sm:$0xff] %v605
      %v616 = vld [vmem:[%s165] sm:$0xe]
      %v617 = vld [vmem:[%s165 + $0x4] sm:$0xf]
      %v618 = vld [vmem:[%s165 + $0x8] sm:$0xf]
      %v619 = vld [vmem:[%s165 + $0xc] sm:$0xf]
      %v620 = vld [vmem:[%s165 + $0x10] sm:$0xf]
      %v621 = vld [vmem:[%s165 + $0x14] sm:$0xf]
      %v622 = vld [vmem:[%s165 + $0x18] sm:$0xf]
      %v623 = vld [vmem:[%s165 + $0x1c] sm:$0xf]
      %v624 = vld [vmem:[%s165 + $0x20] sm:$0xf]
      %v625 = vld [vmem:[%s165 + $0x24] sm:$0xf]
      %v626 = vld [vmem:[%s165 + $0x28] sm:$0x1]
      %s627 = scalar_lea.vmem %s1, 128
      %v628 = vld [vmem:[%s627] sm:$0xf]
      %v629 = vld [vmem:[%s627 + $0x4] sm:$0xf]
      %v630 = vld [vmem:[%s627 + $0x8] sm:$0xf]
      %v631 = vld [vmem:[%s627 + $0xc] sm:$0xf]
      %v632 = vld [vmem:[%s627 + $0x10] sm:$0xf]
      %v633 = vld [vmem:[%s627 + $0x14] sm:$0xf]
      %v634 = vld [vmem:[%s627 + $0x18] sm:$0xf]
      %v635 = vld [vmem:[%s627 + $0x1c] sm:$0xf]
      %v636 = vld [vmem:[%s627 + $0x20] sm:$0xf]
      %v637 = vld [vmem:[%s627 + $0x24] sm:$0xf]
      %v638 = vld [vmem:[%s627 + $0x28] sm:$0xf]
      %v639 = vld [vmem:[%s627 + $0x2c] sm:$0xf]
      %v640 = vld [vmem:[%s627 + $0x30] sm:$0xf]
      %v641 = vld [vmem:[%s627 + $0x34] sm:$0xf]
      %v642 = vld [vmem:[%s627 + $0x38] sm:$0xf]
      %v643 = vld [vmem:[%s627 + $0x3c] sm:$0xf]
      %v655 = vunpack.c.l.b16 %v616
      %v656 = vunpack.c.l.b16 %v617
      %v657 = vunpack.c.l.b16 %v618
      %v658 = vunpack.c.l.b16 %v619
      %v659 = vunpack.c.l.b16 %v620
      %v660 = vunpack.c.l.b16 %v621
      %v661 = vunpack.c.l.b16 %v622
      %v662 = vunpack.c.l.b16 %v623
      %v663 = vunpack.c.l.b16 %v624
      %v664 = vunpack.c.l.b16 %v625
      %v665 = vunpack.c.l.b16 %v626
      %v666 = vpack.c.b16 %v656, %v655
      %v667 = vpack.c.b16 %v658, %v657
      %v668 = vpack.c.b16 %v660, %v659
      %v669 = vpack.c.b16 %v662, %v661
      %v670 = vpack.c.b16 %v664, %v663
      %v671 = vpack.c.b16 %v665, %v665
      %vm672 = vcmask 1046528
      %v673 = vrot.slane %v666, 1
      %v674 = vrot.slane %v667, 1
      %v675 = vsel %vm672, %v673, %v674
      %v676 = vrot.slane %v668, 1
      %v677 = vsel %vm672, %v674, %v676
      %v678 = vrot.slane %v669, 1
      %v679 = vsel %vm672, %v676, %v678
      %v680 = vrot.slane %v670, 1
      %v681 = vsel %vm672, %v678, %v680
      %v682 = vrot.slane %v671, 1
      %v683 = vsel %vm672, %v680, %v682
      %v705 = vunpack.c.l.b16 %v628
      %v706 = vunpack.c.l.b16 %v629
      %v707 = vunpack.c.l.b16 %v630
      %v708 = vunpack.c.l.b16 %v631
      %v709 = vunpack.c.l.b16 %v632
      %v710 = vunpack.c.l.b16 %v633
      %v711 = vunpack.c.l.b16 %v634
      %v712 = vunpack.c.l.b16 %v635
      %v713 = vunpack.c.l.b16 %v636
      %v714 = vunpack.c.l.b16 %v637
      %v715 = vunpack.c.l.b16 %v638
      %v716 = vunpack.c.l.b16 %v639
      %v717 = vunpack.c.l.b16 %v640
      %v718 = vunpack.c.l.b16 %v641
      %v719 = vunpack.c.l.b16 %v642
      %v720 = vunpack.c.l.b16 %v643
      %v721 = vpack.c.b16 %v706, %v705
      %v722 = vpack.c.b16 %v708, %v707
      %v723 = vpack.c.b16 %v710, %v709
      %v724 = vpack.c.b16 %v712, %v711
      %v725 = vpack.c.b16 %v714, %v713
      %v726 = vpack.c.b16 %v716, %v715
      %v727 = vpack.c.b16 %v718, %v717
      %v728 = vpack.c.b16 %v720, %v719
      %737 = vmatprep.subr.bf16.mxu0 0
      %738 = vmatpush1.bf16.msra.mxu0 %v721
      %739 = vmatprep.subr.bf16.mxu0 0
      %740 = vmatpush1.bf16.msra.mxu0 %v722
      %741 = vmatprep.subr.bf16.mxu0 0
      %742 = vmatpush1.bf16.msra.mxu0 %v723
      %743 = vmatprep.subr.bf16.mxu0 0
      %744 = vmatpush1.bf16.msra.mxu0 %v724
      %745 = vmatprep.subr.bf16.mxu0 0
      %746 = vmatpush1.bf16.msra.mxu0 %v725
      %747 = vmatprep.subr.bf16.mxu0 0
      %748 = vmatpush1.bf16.msra.mxu0 %v726
      %749 = vmatprep.subr.bf16.mxu0 0
      %750 = vmatpush1.bf16.msra.mxu0 %v727
      %751 = vmatprep.subr.bf16.mxu0 0
      %752 = vmatpush1.bf16.msra.mxu0 %v728
      %753 = vmatprep.subr.bf16.mxu0 0
      %754 = vmatpush1.bf16.msra.mxu0 0
      %755 = vmatprep.subr.bf16.mxu0 0
      %756 = vmatpush1.bf16.msra.mxu0 0
      %757 = vmatprep.subr.bf16.mxu0 0
      %758 = vmatpush1.bf16.msra.mxu0 0
      %759 = vmatprep.subr.bf16.mxu0 0
      %760 = vmatpush1.bf16.msra.mxu0 0
      %761 = vmatprep.subr.bf16.mxu0 0
      %762 = vmatpush1.bf16.msra.mxu0 0
      %763 = vmatprep.subr.bf16.mxu0 0
      %764 = vmatpush1.bf16.msra.mxu0 0
      %765 = vmatprep.subr.bf16.mxu0 0
      %766 = vmatpush1.bf16.msra.mxu0 0
      %767 = vmatprep.subr.bf16.mxu0 0
      %768 = vmatpush1.bf16.msra.mxu0 0
      %769 = vmatprep.mubr.bf16.mxu0 0
      %770 = vmatmul.mubr.bf16.gmra.mrb[0].mxu0 %v675
      %v771 = vpop.f32.mrb[0].mxu0
      %v772 = vadd.f32 0.0, %v771
      %v773 = vpop.f32.mrb[0].mxu0
      %v774 = vpop.f32.mrb[0].mxu0
      %v775 = vadd.f32 0.0, %v774
      %v776 = vpop.f32.mrb[0].mxu0
      %777 = vmatprep.mubr.bf16.mxu0 0
      %778 = vmatmul.mubr.bf16.gmra.mrb[0].mxu0 %v677
      %v779 = vpop.f32.mrb[0].mxu0
      %v780 = vadd.f32 0.0, %v779
      %v781 = vpop.f32.mrb[0].mxu0
      %v782 = vpop.f32.mrb[0].mxu0
      %v783 = vadd.f32 0.0, %v782
      %v784 = vpop.f32.mrb[0].mxu0
      %785 = vmatprep.mubr.bf16.mxu0 0
      %786 = vmatmul.mubr.bf16.gmra.mrb[0].mxu0 %v679
      %v787 = vpop.f32.mrb[0].mxu0
      %v788 = vadd.f32 0.0, %v787
      %v789 = vpop.f32.mrb[0].mxu0
      %v790 = vpop.f32.mrb[0].mxu0
      %v791 = vadd.f32 0.0, %v790
      %v792 = vpop.f32.mrb[0].mxu0
      %793 = vmatprep.mubr.bf16.mxu0 0
      %794 = vmatmul.mubr.bf16.gmra.mrb[0].mxu0 %v681
      %v795 = vpop.f32.mrb[0].mxu0
      %v796 = vadd.f32 0.0, %v795
      %v797 = vpop.f32.mrb[0].mxu0
      %v798 = vpop.f32.mrb[0].mxu0
      %v799 = vadd.f32 0.0, %v798
      %v800 = vpop.f32.mrb[0].mxu0
      %801 = vmatprep.mubr.bf16.mxu0 0
      %802 = vmatmul.mubr.bf16.gmra.mrb[0].mxu0 %v683
      %v803 = vpop.f32.mrb[0].mxu0
      %v804 = vadd.f32 0.0, %v803
      %v805 = vpop.f32.mrb[0].mxu0
      %v806 = vpop.f32.mrb[0].mxu0
      %v807 = vadd.f32 0.0, %v806
      %v808 = vpop.f32.mrb[0].mxu0
      %809 = vdwg.mxu0
      %v810 = vld [vmem:[#allocation2] sm:$0xff]
      %v811 = vld [vmem:[#allocation2 + $0x8] sm:$0xff]
      %v812 = vld [vmem:[#allocation2 + $0x10] sm:$0xff]
      %v813 = vld [vmem:[#allocation2 + $0x18] sm:$0xff]
      %v814 = vld [vmem:[#allocation2 + $0x20] sm:$0xff]
      %v815 = vld [vmem:[#allocation2 + $0x28] sm:$0xff]
      %v816 = vld [vmem:[#allocation2 + $0x30] sm:$0xff]
      %v817 = vld [vmem:[#allocation2 + $0x38] sm:$0xff]
      %v818 = vld [vmem:[#allocation2 + $0x40] sm:$0xff]
      %v819 = vld [vmem:[#allocation2 + $0x48] sm:$0xff]
      %v820 = vadd.f32 %v810, %v772
      %v821 = vadd.f32 %v811, %v775
      %v822 = vadd.f32 %v812, %v780
      %v823 = vadd.f32 %v813, %v783
      %v824 = vadd.f32 %v814, %v788
      %v825 = vadd.f32 %v815, %v791
      %v826 = vadd.f32 %v816, %v796
      %v827 = vadd.f32 %v817, %v799
      %v828 = vadd.f32 %v818, %v804
      %v829 = vadd.f32 %v819, %v807
      %830 = vst [vmem:[#allocation2] sm:$0xff] %v820
      %831 = vst [vmem:[#allocation2 + $0x8] sm:$0xff] %v821
      %832 = vst [vmem:[#allocation2 + $0x10] sm:$0xff] %v822
      %833 = vst [vmem:[#allocation2 + $0x18] sm:$0xff] %v823
      %834 = vst [vmem:[#allocation2 + $0x20] sm:$0xff] %v824
      %835 = vst [vmem:[#allocation2 + $0x28] sm:$0xff] %v825
      %836 = vst [vmem:[#allocation2 + $0x30] sm:$0xff] %v826
      %837 = vst [vmem:[#allocation2 + $0x38] sm:$0xff] %v827
      %838 = vst [vmem:[#allocation2 + $0x40] sm:$0xff] %v828
      %839 = vst [vmem:[#allocation2 + $0x48] sm:$0xff] %v829
      %v840 = vld [vmem:[%s165 + $0x4] sm:$0xe]
      %v841 = vld [vmem:[%s165 + $0x8] sm:$0xf]
      %v842 = vld [vmem:[%s165 + $0xc] sm:$0xf]
      %v843 = vld [vmem:[%s165 + $0x10] sm:$0xf]
      %v844 = vld [vmem:[%s165 + $0x14] sm:$0xf]
      %v845 = vld [vmem:[%s165 + $0x18] sm:$0xf]
      %v846 = vld [vmem:[%s165 + $0x1c] sm:$0xf]
      %v847 = vld [vmem:[%s165 + $0x20] sm:$0xf]
      %v848 = vld [vmem:[%s165 + $0x24] sm:$0xf]
      %v849 = vld [vmem:[%s165 + $0x28] sm:$0xf]
      %v850 = vld [vmem:[%s165 + $0x2c] sm:$0x1]
      %s851 = scalar_lea.vmem %s1, 192
      %v852 = vld [vmem:[%s851] sm:$0xf]
      %v853 = vld [vmem:[%s851 + $0x4] sm:$0xf]
      %v854 = vld [vmem:[%s851 + $0x8] sm:$0xf]
      %v855 = vld [vmem:[%s851 + $0xc] sm:$0xf]
      %v856 = vld [vmem:[%s851 + $0x10] sm:$0xf]
      %v857 = vld [vmem:[%s851 + $0x14] sm:$0xf]
      %v858 = vld [vmem:[%s851 + $0x18] sm:$0xf]
      %v859 = vld [vmem:[%s851 + $0x1c] sm:$0xf]
      %v860 = vld [vmem:[%s851 + $0x20] sm:$0xf]
      %v861 = vld [vmem:[%s851 + $0x24] sm:$0xf]
      %v862 = vld [vmem:[%s851 + $0x28] sm:$0xf]
      %v863 = vld [vmem:[%s851 + $0x2c] sm:$0xf]
      %v864 = vld [vmem:[%s851 + $0x30] sm:$0xf]
      %v865 = vld [vmem:[%s851 + $0x34] sm:$0xf]
      %v866 = vld [vmem:[%s851 + $0x38] sm:$0xf]
      %v867 = vld [vmem:[%s851 + $0x3c] sm:$0xf]
      %v879 = vunpack.c.l.b16 %v840
      %v880 = vunpack.c.l.b16 %v841
      %v881 = vunpack.c.l.b16 %v842
      %v882 = vunpack.c.l.b16 %v843
      %v883 = vunpack.c.l.b16 %v844
      %v884 = vunpack.c.l.b16 %v845
      %v885 = vunpack.c.l.b16 %v846
      %v886 = vunpack.c.l.b16 %v847
      %v887 = vunpack.c.l.b16 %v848
      %v888 = vunpack.c.l.b16 %v849
      %v889 = vunpack.c.l.b16 %v850
      %v890 = vpack.c.b16 %v880, %v879
      %v891 = vpack.c.b16 %v882, %v881
      %v892 = vpack.c.b16 %v884, %v883
      %v893 = vpack.c.b16 %v886, %v885
      %v894 = vpack.c.b16 %v888, %v887
      %v895 = vpack.c.b16 %v889, %v889
      %v896 = vrot.slane %v890, 1
      %v897 = vrot.slane %v891, 1
      %v898 = vsel %vm672, %v896, %v897
      %v899 = vrot.slane %v892, 1
      %v900 = vsel %vm672, %v897, %v899
      %v901 = vrot.slane %v893, 1
      %v902 = vsel %vm672, %v899, %v901
      %v903 = vrot.slane %v894, 1
      %v904 = vsel %vm672, %v901, %v903
      %v905 = vrot.slane %v895, 1
      %v906 = vsel %vm672, %v903, %v905
      %v928 = vunpack.c.l.b16 %v852
      %v929 = vunpack.c.l.b16 %v853
      %v930 = vunpack.c.l.b16 %v854
      %v931 = vunpack.c.l.b16 %v855
      %v932 = vunpack.c.l.b16 %v856
      %v933 = vunpack.c.l.b16 %v857
      %v934 = vunpack.c.l.b16 %v858
      %v935 = vunpack.c.l.b16 %v859
      %v936 = vunpack.c.l.b16 %v860
      %v937 = vunpack.c.l.b16 %v861
      %v938 = vunpack.c.l.b16 %v862
      %v939 = vunpack.c.l.b16 %v863
      %v940 = vunpack.c.l.b16 %v864
      %v941 = vunpack.c.l.b16 %v865
      %v942 = vunpack.c.l.b16 %v866
      %v943 = vunpack.c.l.b16 %v867
      %v944 = vpack.c.b16 %v929, %v928
      %v945 = vpack.c.b16 %v931, %v930
      %v946 = vpack.c.b16 %v933, %v932
      %v947 = vpack.c.b16 %v935, %v934
      %v948 = vpack.c.b16 %v937, %v936
      %v949 = vpack.c.b16 %v939, %v938
      %v950 = vpack.c.b16 %v941, %v940
      %v951 = vpack.c.b16 %v943, %v942
      %960 = vmatprep.subr.bf16.mxu0 0
      %961 = vmatpush1.bf16.msra.mxu0 %v944
      %962 = vmatprep.subr.bf16.mxu0 0
      %963 = vmatpush1.bf16.msra.mxu0 %v945
      %964 = vmatprep.subr.bf16.mxu0 0
      %965 = vmatpush1.bf16.msra.mxu0 %v946
      %966 = vmatprep.subr.bf16.mxu0 0
      %967 = vmatpush1.bf16.msra.mxu0 %v947
      %968 = vmatprep.subr.bf16.mxu0 0
      %969 = vmatpush1.bf16.msra.mxu0 %v948
      %970 = vmatprep.subr.bf16.mxu0 0
      %971 = vmatpush1.bf16.msra.mxu0 %v949
      %972 = vmatprep.subr.bf16.mxu0 0
      %973 = vmatpush1.bf16.msra.mxu0 %v950
      %974 = vmatprep.subr.bf16.mxu0 0
      %975 = vmatpush1.bf16.msra.mxu0 %v951
      %976 = vmatprep.subr.bf16.mxu0 0
      %977 = vmatpush1.bf16.msra.mxu0 0
      %978 = vmatprep.subr.bf16.mxu0 0
      %979 = vmatpush1.bf16.msra.mxu0 0
      %980 = vmatprep.subr.bf16.mxu0 0
      %981 = vmatpush1.bf16.msra.mxu0 0
      %982 = vmatprep.subr.bf16.mxu0 0
      %983 = vmatpush1.bf16.msra.mxu0 0
      %984 = vmatprep.subr.bf16.mxu0 0
      %985 = vmatpush1.bf16.msra.mxu0 0
      %986 = vmatprep.subr.bf16.mxu0 0
      %987 = vmatpush1.bf16.msra.mxu0 0
      %988 = vmatprep.subr.bf16.mxu0 0
      %989 = vmatpush1.bf16.msra.mxu0 0
      %990 = vmatprep.subr.bf16.mxu0 0
      %991 = vmatpush1.bf16.msra.mxu0 0
      %992 = vmatprep.mubr.bf16.mxu0 0
      %993 = vmatmul.mubr.bf16.gmra.mrb[0].mxu0 %v898
      %v994 = vpop.f32.mrb[0].mxu0
      %v995 = vadd.f32 0.0, %v994
      %v996 = vpop.f32.mrb[0].mxu0
      %v997 = vpop.f32.mrb[0].mxu0
      %v998 = vadd.f32 0.0, %v997
      %v999 = vpop.f32.mrb[0].mxu0
      %1000 = vmatprep.mubr.bf16.mxu0 0
      %1001 = vmatmul.mubr.bf16.gmra.mrb[0].mxu0 %v900
      %v1002 = vpop.f32.mrb[0].mxu0
      %v1003 = vadd.f32 0.0, %v1002
      %v1004 = vpop.f32.mrb[0].mxu0
      %v1005 = vpop.f32.mrb[0].mxu0
      %v1006 = vadd.f32 0.0, %v1005
      %v1007 = vpop.f32.mrb[0].mxu0
      %1008 = vmatprep.mubr.bf16.mxu0 0
      %1009 = vmatmul.mubr.bf16.gmra.mrb[0].mxu0 %v902
      %v1010 = vpop.f32.mrb[0].mxu0
      %v1011 = vadd.f32 0.0, %v1010
      %v1012 = vpop.f32.mrb[0].mxu0
      %v1013 = vpop.f32.mrb[0].mxu0
      %v1014 = vadd.f32 0.0, %v1013
      %v1015 = vpop.f32.mrb[0].mxu0
      %1016 = vmatprep.mubr.bf16.mxu0 0
      %1017 = vmatmul.mubr.bf16.gmra.mrb[0].mxu0 %v904
      %v1018 = vpop.f32.mrb[0].mxu0
      %v1019 = vadd.f32 0.0, %v1018
      %v1020 = vpop.f32.mrb[0].mxu0
      %v1021 = vpop.f32.mrb[0].mxu0
      %v1022 = vadd.f32 0.0, %v1021
      %v1023 = vpop.f32.mrb[0].mxu0
      %1024 = vmatprep.mubr.bf16.mxu0 0
      %1025 = vmatmul.mubr.bf16.gmra.mrb[0].mxu0 %v906
      %v1026 = vpop.f32.mrb[0].mxu0
      %v1027 = vadd.f32 0.0, %v1026
      %v1028 = vpop.f32.mrb[0].mxu0
      %v1029 = vpop.f32.mrb[0].mxu0
      %v1030 = vadd.f32 0.0, %v1029
      %v1031 = vpop.f32.mrb[0].mxu0
      %1032 = vdwg.mxu0
      %v1033 = vld [vmem:[#allocation2] sm:$0xff]
      %v1034 = vld [vmem:[#allocation2 + $0x8] sm:$0xff]
      %v1035 = vld [vmem:[#allocation2 + $0x10] sm:$0xff]
      %v1036 = vld [vmem:[#allocation2 + $0x18] sm:$0xff]
      %v1037 = vld [vmem:[#allocation2 + $0x20] sm:$0xff]
      %v1038 = vld [vmem:[#allocation2 + $0x28] sm:$0xff]
      %v1039 = vld [vmem:[#allocation2 + $0x30] sm:$0xff]
      %v1040 = vld [vmem:[#allocation2 + $0x38] sm:$0xff]
      %v1041 = vld [vmem:[#allocation2 + $0x40] sm:$0xff]
      %v1042 = vld [vmem:[#allocation2 + $0x48] sm:$0xff]
      %v1043 = vadd.f32 %v1033, %v995
      %v1044 = vadd.f32 %v1034, %v998
      %v1045 = vadd.f32 %v1035, %v1003
      %v1046 = vadd.f32 %v1036, %v1006
      %v1047 = vadd.f32 %v1037, %v1011
      %v1048 = vadd.f32 %v1038, %v1014
      %v1049 = vadd.f32 %v1039, %v1019
      %v1050 = vadd.f32 %v1040, %v1022
      %v1051 = vadd.f32 %v1041, %v1027
      %v1052 = vadd.f32 %v1042, %v1030
      %1053 = vst [vmem:[#allocation2] sm:$0xff] %v1043
      %1054 = vst [vmem:[#allocation2 + $0x8] sm:$0xff] %v1044
      %1055 = vst [vmem:[#allocation2 + $0x10] sm:$0xff] %v1045
      %1056 = vst [vmem:[#allocation2 + $0x18] sm:$0xff] %v1046
      %1057 = vst [vmem:[#allocation2 + $0x20] sm:$0xff] %v1047
      %1058 = vst [vmem:[#allocation2 + $0x28] sm:$0xff] %v1048
      %1059 = vst [vmem:[#allocation2 + $0x30] sm:$0xff] %v1049
      %1060 = vst [vmem:[#allocation2 + $0x38] sm:$0xff] %v1050
      %1061 = vst [vmem:[#allocation2 + $0x40] sm:$0xff] %v1051
      %1062 = vst [vmem:[#allocation2 + $0x48] sm:$0xff] %v1052
      %v1063 = vld [vmem:[%s165 + $0x4] sm:$0xe]
      %v1064 = vld [vmem:[%s165 + $0x8] sm:$0xf]
      %v1065 = vld [vmem:[%s165 + $0xc] sm:$0xf]
      %v1066 = vld [vmem:[%s165 + $0x10] sm:$0xf]
      %v1067 = vld [vmem:[%s165 + $0x14] sm:$0xf]
      %v1068 = vld [vmem:[%s165 + $0x18] sm:$0xf]
      %v1069 = vld [vmem:[%s165 + $0x1c] sm:$0xf]
      %v1070 = vld [vmem:[%s165 + $0x20] sm:$0xf]
      %v1071 = vld [vmem:[%s165 + $0x24] sm:$0xf]
      %v1072 = vld [vmem:[%s165 + $0x28] sm:$0xf]
      %v1073 = vld [vmem:[%s165 + $0x2c] sm:$0x3]
      %s1074 = scalar_lea.vmem %s1, 256
      %v1075 = vld [vmem:[%s1074] sm:$0xf]
      %v1076 = vld [vmem:[%s1074 + $0x4] sm:$0xf]
      %v1077 = vld [vmem:[%s1074 + $0x8] sm:$0xf]
      %v1078 = vld [vmem:[%s1074 + $0xc] sm:$0xf]
      %v1079 = vld [vmem:[%s1074 + $0x10] sm:$0xf]
      %v1080 = vld [vmem:[%s1074 + $0x14] sm:$0xf]
      %v1081 = vld [vmem:[%s1074 + $0x18] sm:$0xf]
      %v1082 = vld [vmem:[%s1074 + $0x1c] sm:$0xf]
      %v1083 = vld [vmem:[%s1074 + $0x20] sm:$0xf]
      %v1084 = vld [vmem:[%s1074 + $0x24] sm:$0xf]
      %v1085 = vld [vmem:[%s1074 + $0x28] sm:$0xf]
      %v1086 = vld [vmem:[%s1074 + $0x2c] sm:$0xf]
      %v1087 = vld [vmem:[%s1074 + $0x30] sm:$0xf]
      %v1088 = vld [vmem:[%s1074 + $0x34] sm:$0xf]
      %v1089 = vld [vmem:[%s1074 + $0x38] sm:$0xf]
      %v1090 = vld [vmem:[%s1074 + $0x3c] sm:$0xf]
      %v1102 = vunpack.c.l.b16 %v1063
      %v1103 = vunpack.c.l.b16 %v1064
      %v1104 = vunpack.c.l.b16 %v1065
      %v1105 = vunpack.c.l.b16 %v1066
      %v1106 = vunpack.c.l.b16 %v1067
      %v1107 = vunpack.c.l.b16 %v1068
      %v1108 = vunpack.c.l.b16 %v1069
      %v1109 = vunpack.c.l.b16 %v1070
      %v1110 = vunpack.c.l.b16 %v1071
      %v1111 = vunpack.c.l.b16 %v1072
      %v1112 = vunpack.c.l.b16 %v1073
      %v1113 = vpack.c.b16 %v1103, %v1102
      %v1114 = vpack.c.b16 %v1105, %v1104
      %v1115 = vpack.c.b16 %v1107, %v1106
      %v1116 = vpack.c.b16 %v1109, %v1108
      %v1117 = vpack.c.b16 %v1111, %v1110
      %v1118 = vpack.c.b16 %v1112, %v1112
      %vm1119 = vsmask.f32 6400
      %v1121 = vshrl.u32 %v1113, 16
      %v1123 = vrot.slane %v1121, 1
      %v1124 = vshll.u32 %v1113, 16
      %v1126 = vrot.slane %v1124, 2
      %v1127 = vor.u32 %v1123, %v1126
      %v1129 = vshrl.u32 %v1114, 16
      %v1131 = vrot.slane %v1129, 1
      %v1132 = vshll.u32 %v1114, 16
      %v1134 = vrot.slane %v1132, 2
      %v1135 = vor.u32 %v1131, %v1134
      %v1136 = vsel %vm1119, %v1127, %v1135
      %v1138 = vshrl.u32 %v1115, 16
      %v1140 = vrot.slane %v1138, 1
      %v1141 = vshll.u32 %v1115, 16
      %v1143 = vrot.slane %v1141, 2
      %v1144 = vor.u32 %v1140, %v1143
      %v1145 = vsel %vm1119, %v1135, %v1144
      %v1147 = vshrl.u32 %v1116, 16
      %v1149 = vrot.slane %v1147, 1
      %v1150 = vshll.u32 %v1116, 16
      %v1152 = vrot.slane %v1150, 2
      %v1153 = vor.u32 %v1149, %v1152
      %v1154 = vsel %vm1119, %v1144, %v1153
      %v1156 = vshrl.u32 %v1117, 16
      %v1158 = vrot.slane %v1156, 1
      %v1159 = vshll.u32 %v1117, 16
      %v1161 = vrot.slane %v1159, 2
      %v1162 = vor.u32 %v1158, %v1161
      %v1163 = vsel %vm1119, %v1153, %v1162
      %v1165 = vshrl.u32 %v1118, 16
      %v1167 = vrot.slane %v1165, 1
      %v1168 = vshll.u32 %v1118, 16
      %v1170 = vrot.slane %v1168, 2
      %v1171 = vor.u32 %v1167, %v1170
      %v1172 = vsel %vm1119, %v1162, %v1171
      %v1194 = vunpack.c.l.b16 %v1075
      %v1195 = vunpack.c.l.b16 %v1076
      %v1196 = vunpack.c.l.b16 %v1077
      %v1197 = vunpack.c.l.b16 %v1078
      %v1198 = vunpack.c.l.b16 %v1079
      %v1199 = vunpack.c.l.b16 %v1080
      %v1200 = vunpack.c.l.b16 %v1081
      %v1201 = vunpack.c.l.b16 %v1082
      %v1202 = vunpack.c.l.b16 %v1083
      %v1203 = vunpack.c.l.b16 %v1084
      %v1204 = vunpack.c.l.b16 %v1085
      %v1205 = vunpack.c.l.b16 %v1086
      %v1206 = vunpack.c.l.b16 %v1087
      %v1207 = vunpack.c.l.b16 %v1088
      %v1208 = vunpack.c.l.b16 %v1089
      %v1209 = vunpack.c.l.b16 %v1090
      %v1210 = vpack.c.b16 %v1195, %v1194
      %v1211 = vpack.c.b16 %v1197, %v1196
      %v1212 = vpack.c.b16 %v1199, %v1198
      %v1213 = vpack.c.b16 %v1201, %v1200
      %v1214 = vpack.c.b16 %v1203, %v1202
      %v1215 = vpack.c.b16 %v1205, %v1204
      %v1216 = vpack.c.b16 %v1207, %v1206
      %v1217 = vpack.c.b16 %v1209, %v1208
      %1226 = vmatprep.subr.bf16.mxu0 0
      %1227 = vmatpush1.bf16.msra.mxu0 %v1210
      %1228 = vmatprep.subr.bf16.mxu0 0
      %1229 = vmatpush1.bf16.msra.mxu0 %v1211
      %1230 = vmatprep.subr.bf16.mxu0 0
      %1231 = vmatpush1.bf16.msra.mxu0 %v1212
      %1232 = vmatprep.subr.bf16.mxu0 0
      %1233 = vmatpush1.bf16.msra.mxu0 %v1213
      %1234 = vmatprep.subr.bf16.mxu0 0
      %1235 = vmatpush1.bf16.msra.mxu0 %v1214
      %1236 = vmatprep.subr.bf16.mxu0 0
      %1237 = vmatpush1.bf16.msra.mxu0 %v1215
      %1238 = vmatprep.subr.bf16.mxu0 0
      %1239 = vmatpush1.bf16.msra.mxu0 %v1216
      %1240 = vmatprep.subr.bf16.mxu0 0
      %1241 = vmatpush1.bf16.msra.mxu0 %v1217
      %1242 = vmatprep.subr.bf16.mxu0 0
      %1243 = vmatpush1.bf16.msra.mxu0 0
      %1244 = vmatprep.subr.bf16.mxu0 0
      %1245 = vmatpush1.bf16.msra.mxu0 0
      %1246 = vmatprep.subr.bf16.mxu0 0
      %1247 = vmatpush1.bf16.msra.mxu0 0
      %1248 = vmatprep.subr.bf16.mxu0 0
      %1249 = vmatpush1.bf16.msra.mxu0 0
      %1250 = vmatprep.subr.bf16.mxu0 0
      %1251 = vmatpush1.bf16.msra.mxu0 0
      %1252 = vmatprep.subr.bf16.mxu0 0
      %1253 = vmatpush1.bf16.msra.mxu0 0
      %1254 = vmatprep.subr.bf16.mxu0 0
      %1255 = vmatpush1.bf16.msra.mxu0 0
      %1256 = vmatprep.subr.bf16.mxu0 0
      %1257 = vmatpush1.bf16.msra.mxu0 0
      %1258 = vmatprep.mubr.bf16.mxu0 0
      %1259 = vmatmul.mubr.bf16.gmra.mrb[0].mxu0 %v1136
      %v1260 = vpop.f32.mrb[0].mxu0
      %v1261 = vadd.f32 0.0, %v1260
      %v1262 = vpop.f32.mrb[0].mxu0
      %v1263 = vpop.f32.mrb[0].mxu0
      %v1264 = vadd.f32 0.0, %v1263
      %v1265 = vpop.f32.mrb[0].mxu0
      %1266 = vmatprep.mubr.bf16.mxu0 0
      %1267 = vmatmul.mubr.bf16.gmra.mrb[0].mxu0 %v1145
      %v1268 = vpop.f32.mrb[0].mxu0
      %v1269 = vadd.f32 0.0, %v1268
      %v1270 = vpop.f32.mrb[0].mxu0
      %v1271 = vpop.f32.mrb[0].mxu0
      %v1272 = vadd.f32 0.0, %v1271
      %v1273 = vpop.f32.mrb[0].mxu0
      %1274 = vmatprep.mubr.bf16.mxu0 0
      %1275 = vmatmul.mubr.bf16.gmra.mrb[0].mxu0 %v1154
      %v1276 = vpop.f32.mrb[0].mxu0
      %v1277 = vadd.f32 0.0, %v1276
      %v1278 = vpop.f32.mrb[0].mxu0
      %v1279 = vpop.f32.mrb[0].mxu0
      %v1280 = vadd.f32 0.0, %v1279
      %v1281 = vpop.f32.mrb[0].mxu0
      %1282 = vmatprep.mubr.bf16.mxu0 0
      %1283 = vmatmul.mubr.bf16.gmra.mrb[0].mxu0 %v1163
      %v1284 = vpop.f32.mrb[0].mxu0
      %v1285 = vadd.f32 0.0, %v1284
      %v1286 = vpop.f32.mrb[0].mxu0
      %v1287 = vpop.f32.mrb[0].mxu0
      %v1288 = vadd.f32 0.0, %v1287
      %v1289 = vpop.f32.mrb[0].mxu0
      %1290 = vmatprep.mubr.bf16.mxu0 0
      %1291 = vmatmul.mubr.bf16.gmra.mrb[0].mxu0 %v1172
      %v1292 = vpop.f32.mrb[0].mxu0
      %v1293 = vadd.f32 0.0, %v1292
      %v1294 = vpop.f32.mrb[0].mxu0
      %v1295 = vpop.f32.mrb[0].mxu0
      %v1296 = vadd.f32 0.0, %v1295
      %v1297 = vpop.f32.mrb[0].mxu0
      %1298 = vdwg.mxu0
      %v1299 = vld [vmem:[#allocation2] sm:$0xff]
      %v1300 = vld [vmem:[#allocation2 + $0x8] sm:$0xff]
      %v1301 = vld [vmem:[#allocation2 + $0x10] sm:$0xff]
      %v1302 = vld [vmem:[#allocation2 + $0x18] sm:$0xff]
      %v1303 = vld [vmem:[#allocation2 + $0x20] sm:$0xff]
      %v1304 = vld [vmem:[#allocation2 + $0x28] sm:$0xff]
      %v1305 = vld [vmem:[#allocation2 + $0x30] sm:$0xff]
      %v1306 = vld [vmem:[#allocation2 + $0x38] sm:$0xff]
      %v1307 = vld [vmem:[#allocation2 + $0x40] sm:$0xff]
      %v1308 = vld [vmem:[#allocation2 + $0x48] sm:$0xff]
      %v1309 = vadd.f32 %v1299, %v1261
      %v1310 = vadd.f32 %v1300, %v1264
      %v1311 = vadd.f32 %v1301, %v1269
      %v1312 = vadd.f32 %v1302, %v1272
      %v1313 = vadd.f32 %v1303, %v1277
      %v1314 = vadd.f32 %v1304, %v1280
      %v1315 = vadd.f32 %v1305, %v1285
      %v1316 = vadd.f32 %v1306, %v1288
      %v1317 = vadd.f32 %v1307, %v1293
      %v1318 = vadd.f32 %v1308, %v1296
      %1319 = vst [vmem:[#allocation2] sm:$0xff] %v1309
      %1320 = vst [vmem:[#allocation2 + $0x8] sm:$0xff] %v1310
      %1321 = vst [vmem:[#allocation2 + $0x10] sm:$0xff] %v1311
      %1322 = vst [vmem:[#allocation2 + $0x18] sm:$0xff] %v1312
      %1323 = vst [vmem:[#allocation2 + $0x20] sm:$0xff] %v1313
      %1324 = vst [vmem:[#allocation2 + $0x28] sm:$0xff] %v1314
      %1325 = vst [vmem:[#allocation2 + $0x30] sm:$0xff] %v1315
      %1326 = vst [vmem:[#allocation2 + $0x38] sm:$0xff] %v1316
      %1327 = vst [vmem:[#allocation2 + $0x40] sm:$0xff] %v1317
      %1328 = vst [vmem:[#allocation2 + $0x48] sm:$0xff] %v1318
      %v1329 = vld [vmem:[%s165 + $0x4] sm:$0xc]
      %v1330 = vld [vmem:[%s165 + $0x8] sm:$0xf]
      %v1331 = vld [vmem:[%s165 + $0xc] sm:$0xf]
      %v1332 = vld [vmem:[%s165 + $0x10] sm:$0xf]
      %v1333 = vld [vmem:[%s165 + $0x14] sm:$0xf]
      %v1334 = vld [vmem:[%s165 + $0x18] sm:$0xf]
      %v1335 = vld [vmem:[%s165 + $0x1c] sm:$0xf]
      %v1336 = vld [vmem:[%s165 + $0x20] sm:$0xf]
      %v1337 = vld [vmem:[%s165 + $0x24] sm:$0xf]
      %v1338 = vld [vmem:[%s165 + $0x28] sm:$0xf]
      %v1339 = vld [vmem:[%s165 + $0x2c] sm:$0x3]
      %s1340 = scalar_lea.vmem %s1, 320
      %v1341 = vld [vmem:[%s1340] sm:$0xf]
      %v1342 = vld [vmem:[%s1340 + $0x4] sm:$0xf]
      %v1343 = vld [vmem:[%s1340 + $0x8] sm:$0xf]
      %v1344 = vld [vmem:[%s1340 + $0xc] sm:$0xf]
      %v1345 = vld [vmem:[%s1340 + $0x10] sm:$0xf]
      %v1346 = vld [vmem:[%s1340 + $0x14] sm:$0xf]
      %v1347 = vld [vmem:[%s1340 + $0x18] sm:$0xf]
      %v1348 = vld [vmem:[%s1340 + $0x1c] sm:$0xf]
      %v1349 = vld [vmem:[%s1340 + $0x20] sm:$0xf]
      %v1350 = vld [vmem:[%s1340 + $0x24] sm:$0xf]
      %v1351 = vld [vmem:[%s1340 + $0x28] sm:$0xf]
      %v1352 = vld [vmem:[%s1340 + $0x2c] sm:$0xf]
      %v1353 = vld [vmem:[%s1340 + $0x30] sm:$0xf]
      %v1354 = vld [vmem:[%s1340 + $0x34] sm:$0xf]
      %v1355 = vld [vmem:[%s1340 + $0x38] sm:$0xf]
      %v1356 = vld [vmem:[%s1340 + $0x3c] sm:$0xf]
      %v1368 = vunpack.c.l.b16 %v1329
      %v1369 = vunpack.c.l.b16 %v1330
      %v1370 = vunpack.c.l.b16 %v1331
      %v1371 = vunpack.c.l.b16 %v1332
      %v1372 = vunpack.c.l.b16 %v1333
      %v1373 = vunpack.c.l.b16 %v1334
      %v1374 = vunpack.c.l.b16 %v1335
      %v1375 = vunpack.c.l.b16 %v1336
      %v1376 = vunpack.c.l.b16 %v1337
      %v1377 = vunpack.c.l.b16 %v1338
      %v1378 = vunpack.c.l.b16 %v1339
      %v1379 = vpack.c.b16 %v1369, %v1368
      %v1380 = vpack.c.b16 %v1371, %v1370
      %v1381 = vpack.c.b16 %v1373, %v1372
      %v1382 = vpack.c.b16 %v1375, %v1374
      %v1383 = vpack.c.b16 %v1377, %v1376
      %v1384 = vpack.c.b16 %v1378, %v1378
      %vm1385 = vcmask 1045504
      %v1386 = vrot.slane %v1379, 2
      %v1387 = vrot.slane %v1380, 2
      %v1388 = vsel %vm1385, %v1386, %v1387
      %v1389 = vrot.slane %v1381, 2
      %v1390 = vsel %vm1385, %v1387, %v1389
      %v1391 = vrot.slane %v1382, 2
      %v1392 = vsel %vm1385, %v1389, %v1391
      %v1393 = vrot.slane %v1383, 2
      %v1394 = vsel %vm1385, %v1391, %v1393
      %v1395 = vrot.slane %v1384, 2
      %v1396 = vsel %vm1385, %v1393, %v1395
      %v1418 = vunpack.c.l.b16 %v1341
      %v1419 = vunpack.c.l.b16 %v1342
      %v1420 = vunpack.c.l.b16 %v1343
      %v1421 = vunpack.c.l.b16 %v1344
      %v1422 = vunpack.c.l.b16 %v1345
      %v1423 = vunpack.c.l.b16 %v1346
      %v1424 = vunpack.c.l.b16 %v1347
      %v1425 = vunpack.c.l.b16 %v1348
      %v1426 = vunpack.c.l.b16 %v1349
      %v1427 = vunpack.c.l.b16 %v1350
      %v1428 = vunpack.c.l.b16 %v1351
      %v1429 = vunpack.c.l.b16 %v1352
      %v1430 = vunpack.c.l.b16 %v1353
      %v1431 = vunpack.c.l.b16 %v1354
      %v1432 = vunpack.c.l.b16 %v1355
      %v1433 = vunpack.c.l.b16 %v1356
      %v1434 = vpack.c.b16 %v1419, %v1418
      %v1435 = vpack.c.b16 %v1421, %v1420
      %v1436 = vpack.c.b16 %v1423, %v1422
      %v1437 = vpack.c.b16 %v1425, %v1424
      %v1438 = vpack.c.b16 %v1427, %v1426
      %v1439 = vpack.c.b16 %v1429, %v1428
      %v1440 = vpack.c.b16 %v1431, %v1430
      %v1441 = vpack.c.b16 %v1433, %v1432
      %1450 = vmatprep.subr.bf16.mxu0 0
      %1451 = vmatpush1.bf16.msra.mxu0 %v1434
      %1452 = vmatprep.subr.bf16.mxu0 0
      %1453 = vmatpush1.bf16.msra.mxu0 %v1435
      %1454 = vmatprep.subr.bf16.mxu0 0
      %1455 = vmatpush1.bf16.msra.mxu0 %v1436
      %1456 = vmatprep.subr.bf16.mxu0 0
      %1457 = vmatpush1.bf16.msra.mxu0 %v1437
      %1458 = vmatprep.subr.bf16.mxu0 0
      %1459 = vmatpush1.bf16.msra.mxu0 %v1438
      %1460 = vmatprep.subr.bf16.mxu0 0
      %1461 = vmatpush1.bf16.msra.mxu0 %v1439
      %1462 = vmatprep.subr.bf16.mxu0 0
      %1463 = vmatpush1.bf16.msra.mxu0 %v1440
      %1464 = vmatprep.subr.bf16.mxu0 0
      %1465 = vmatpush1.bf16.msra.mxu0 %v1441
      %1466 = vmatprep.subr.bf16.mxu0 0
      %1467 = vmatpush1.bf16.msra.mxu0 0
      %1468 = vmatprep.subr.bf16.mxu0 0
      %1469 = vmatpush1.bf16.msra.mxu0 0
      %1470 = vmatprep.subr.bf16.mxu0 0
      %1471 = vmatpush1.bf16.msra.mxu0 0
      %1472 = vmatprep.subr.bf16.mxu0 0
      %1473 = vmatpush1.bf16.msra.mxu0 0
      %1474 = vmatprep.subr.bf16.mxu0 0
      %1475 = vmatpush1.bf16.msra.mxu0 0
      %1476 = vmatprep.subr.bf16.mxu0 0
      %1477 = vmatpush1.bf16.msra.mxu0 0
      %1478 = vmatprep.subr.bf16.mxu0 0
      %1479 = vmatpush1.bf16.msra.mxu0 0
      %1480 = vmatprep.subr.bf16.mxu0 0
      %1481 = vmatpush1.bf16.msra.mxu0 0
      %1482 = vmatprep.mubr.bf16.mxu0 0
      %1483 = vmatmul.mubr.bf16.gmra.mrb[0].mxu0 %v1388
      %v1484 = vpop.f32.mrb[0].mxu0
      %v1485 = vadd.f32 0.0, %v1484
      %v1486 = vpop.f32.mrb[0].mxu0
      %v1487 = vpop.f32.mrb[0].mxu0
      %v1488 = vadd.f32 0.0, %v1487
      %v1489 = vpop.f32.mrb[0].mxu0
      %1490 = vmatprep.mubr.bf16.mxu0 0
      %1491 = vmatmul.mubr.bf16.gmra.mrb[0].mxu0 %v1390
      %v1492 = vpop.f32.mrb[0].mxu0
      %v1493 = vadd.f32 0.0, %v1492
      %v1494 = vpop.f32.mrb[0].mxu0
      %v1495 = vpop.f32.mrb[0].mxu0
      %v1496 = vadd.f32 0.0, %v1495
      %v1497 = vpop.f32.mrb[0].mxu0
      %1498 = vmatprep.mubr.bf16.mxu0 0
      %1499 = vmatmul.mubr.bf16.gmra.mrb[0].mxu0 %v1392
      %v1500 = vpop.f32.mrb[0].mxu0
      %v1501 = vadd.f32 0.0, %v1500
      %v1502 = vpop.f32.mrb[0].mxu0
      %v1503 = vpop.f32.mrb[0].mxu0
      %v1504 = vadd.f32 0.0, %v1503
      %v1505 = vpop.f32.mrb[0].mxu0
      %1506 = vmatprep.mubr.bf16.mxu0 0
      %1507 = vmatmul.mubr.bf16.gmra.mrb[0].mxu0 %v1394
      %v1508 = vpop.f32.mrb[0].mxu0
      %v1509 = vadd.f32 0.0, %v1508
      %v1510 = vpop.f32.mrb[0].mxu0
      %v1511 = vpop.f32.mrb[0].mxu0
      %v1512 = vadd.f32 0.0, %v1511
      %v1513 = vpop.f32.mrb[0].mxu0
      %1514 = vmatprep.mubr.bf16.mxu0 0
      %1515 = vmatmul.mubr.bf16.gmra.mrb[0].mxu0 %v1396
      %v1516 = vpop.f32.mrb[0].mxu0
      %v1517 = vadd.f32 0.0, %v1516
      %v1518 = vpop.f32.mrb[0].mxu0
      %v1519 = vpop.f32.mrb[0].mxu0
      %v1520 = vadd.f32 0.0, %v1519
      %v1521 = vpop.f32.mrb[0].mxu0
      %1522 = vdwg.mxu0
      %v1523 = vld [vmem:[#allocation2] sm:$0xff]
      %v1524 = vld [vmem:[#allocation2 + $0x8] sm:$0xff]
      %v1525 = vld [vmem:[#allocation2 + $0x10] sm:$0xff]
      %v1526 = vld [vmem:[#allocation2 + $0x18] sm:$0xff]
      %v1527 = vld [vmem:[#allocation2 + $0x20] sm:$0xff]
      %v1528 = vld [vmem:[#allocation2 + $0x28] sm:$0xff]
      %v1529 = vld [vmem:[#allocation2 + $0x30] sm:$0xff]
      %v1530 = vld [vmem:[#allocation2 + $0x38] sm:$0xff]
      %v1531 = vld [vmem:[#allocation2 + $0x40] sm:$0xff]
      %v1532 = vld [vmem:[#allocation2 + $0x48] sm:$0xff]
      %v1533 = vadd.f32 %v1523, %v1485
      %v1534 = vadd.f32 %v1524, %v1488
      %v1535 = vadd.f32 %v1525, %v1493
      %v1536 = vadd.f32 %v1526, %v1496
      %v1537 = vadd.f32 %v1527, %v1501
      %v1538 = vadd.f32 %v1528, %v1504
      %v1539 = vadd.f32 %v1529, %v1509
      %v1540 = vadd.f32 %v1530, %v1512
      %v1541 = vadd.f32 %v1531, %v1517
      %v1542 = vadd.f32 %v1532, %v1520
      %1543 = vst [vmem:[#allocation2] sm:$0xff] %v1533
      %1544 = vst [vmem:[#allocation2 + $0x8] sm:$0xff] %v1534
      %1545 = vst [vmem:[#allocation2 + $0x10] sm:$0xff] %v1535
      %1546 = vst [vmem:[#allocation2 + $0x18] sm:$0xff] %v1536
      %1547 = vst [vmem:[#allocation2 + $0x20] sm:$0xff] %v1537
      %1548 = vst [vmem:[#allocation2 + $0x28] sm:$0xff] %v1538
      %1549 = vst [vmem:[#allocation2 + $0x30] sm:$0xff] %v1539
      %1550 = vst [vmem:[#allocation2 + $0x38] sm:$0xff] %v1540
      %1551 = vst [vmem:[#allocation2 + $0x40] sm:$0xff] %v1541
      %1552 = vst [vmem:[#allocation2 + $0x48] sm:$0xff] %v1542
      %v1553 = vld [vmem:[%s165 + $0x8] sm:$0xc]
      %v1554 = vld [vmem:[%s165 + $0xc] sm:$0xf]
      %v1555 = vld [vmem:[%s165 + $0x10] sm:$0xf]
      %v1556 = vld [vmem:[%s165 + $0x14] sm:$0xf]
      %v1557 = vld [vmem:[%s165 + $0x18] sm:$0xf]
      %v1558 = vld [vmem:[%s165 + $0x1c] sm:$0xf]
      %v1559 = vld [vmem:[%s165 + $0x20] sm:$0xf]
      %v1560 = vld [vmem:[%s165 + $0x24] sm:$0xf]
      %v1561 = vld [vmem:[%s165 + $0x28] sm:$0xf]
      %v1562 = vld [vmem:[%s165 + $0x2c] sm:$0xf]
      %v1563 = vld [vmem:[%s165 + $0x30] sm:$0x3]
      %s1564 = scalar_lea.vmem %s1, 384
      %v1565 = vld [vmem:[%s1564] sm:$0xf]
      %v1566 = vld [vmem:[%s1564 + $0x4] sm:$0xf]
      %v1567 = vld [vmem:[%s1564 + $0x8] sm:$0xf]
      %v1568 = vld [vmem:[%s1564 + $0xc] sm:$0xf]
      %v1569 = vld [vmem:[%s1564 + $0x10] sm:$0xf]
      %v1570 = vld [vmem:[%s1564 + $0x14] sm:$0xf]
      %v1571 = vld [vmem:[%s1564 + $0x18] sm:$0xf]
      %v1572 = vld [vmem:[%s1564 + $0x1c] sm:$0xf]
      %v1573 = vld [vmem:[%s1564 + $0x20] sm:$0xf]
      %v1574 = vld [vmem:[%s1564 + $0x24] sm:$0xf]
      %v1575 = vld [vmem:[%s1564 + $0x28] sm:$0xf]
      %v1576 = vld [vmem:[%s1564 + $0x2c] sm:$0xf]
      %v1577 = vld [vmem:[%s1564 + $0x30] sm:$0xf]
      %v1578 = vld [vmem:[%s1564 + $0x34] sm:$0xf]
      %v1579 = vld [vmem:[%s1564 + $0x38] sm:$0xf]
      %v1580 = vld [vmem:[%s1564 + $0x3c] sm:$0xf]
      %v1592 = vunpack.c.l.b16 %v1553
      %v1593 = vunpack.c.l.b16 %v1554
      %v1594 = vunpack.c.l.b16 %v1555
      %v1595 = vunpack.c.l.b16 %v1556
      %v1596 = vunpack.c.l.b16 %v1557
      %v1597 = vunpack.c.l.b16 %v1558
      %v1598 = vunpack.c.l.b16 %v1559
      %v1599 = vunpack.c.l.b16 %v1560
      %v1600 = vunpack.c.l.b16 %v1561
      %v1601 = vunpack.c.l.b16 %v1562
      %v1602 = vunpack.c.l.b16 %v1563
      %v1603 = vpack.c.b16 %v1593, %v1592
      %v1604 = vpack.c.b16 %v1595, %v1594
      %v1605 = vpack.c.b16 %v1597, %v1596
      %v1606 = vpack.c.b16 %v1599, %v1598
      %v1607 = vpack.c.b16 %v1601, %v1600
      %v1608 = vpack.c.b16 %v1602, %v1602
      %v1609 = vrot.slane %v1603, 2
      %v1610 = vrot.slane %v1604, 2
      %v1611 = vsel %vm1385, %v1609, %v1610
      %v1612 = vrot.slane %v1605, 2
      %v1613 = vsel %vm1385, %v1610, %v1612
      %v1614 = vrot.slane %v1606, 2
      %v1615 = vsel %vm1385, %v1612, %v1614
      %v1616 = vrot.slane %v1607, 2
      %v1617 = vsel %vm1385, %v1614, %v1616
      %v1618 = vrot.slane %v1608, 2
      %v1619 = vsel %vm1385, %v1616, %v1618
      %v1641 = vunpack.c.l.b16 %v1565
      %v1642 = vunpack.c.l.b16 %v1566
      %v1643 = vunpack.c.l.b16 %v1567
      %v1644 = vunpack.c.l.b16 %v1568
      %v1645 = vunpack.c.l.b16 %v1569
      %v1646 = vunpack.c.l.b16 %v1570
      %v1647 = vunpack.c.l.b16 %v1571
      %v1648 = vunpack.c.l.b16 %v1572
      %v1649 = vunpack.c.l.b16 %v1573
      %v1650 = vunpack.c.l.b16 %v1574
      %v1651 = vunpack.c.l.b16 %v1575
      %v1652 = vunpack.c.l.b16 %v1576
      %v1653 = vunpack.c.l.b16 %v1577
      %v1654 = vunpack.c.l.b16 %v1578
      %v1655 = vunpack.c.l.b16 %v1579
      %v1656 = vunpack.c.l.b16 %v1580
      %v1657 = vpack.c.b16 %v1642, %v1641
      %v1658 = vpack.c.b16 %v1644, %v1643
      %v1659 = vpack.c.b16 %v1646, %v1645
      %v1660 = vpack.c.b16 %v1648, %v1647
      %v1661 = vpack.c.b16 %v1650, %v1649
      %v1662 = vpack.c.b16 %v1652, %v1651
      %v1663 = vpack.c.b16 %v1654, %v1653
      %v1664 = vpack.c.b16 %v1656, %v1655
      %1673 = vmatprep.subr.bf16.mxu0 0
      %1674 = vmatpush1.bf16.msra.mxu0 %v1657
      %1675 = vmatprep.subr.bf16.mxu0 0
      %1676 = vmatpush1.bf16.msra.mxu0 %v1658
      %1677 = vmatprep.subr.bf16.mxu0 0
      %1678 = vmatpush1.bf16.msra.mxu0 %v1659
      %1679 = vmatprep.subr.bf16.mxu0 0
      %1680 = vmatpush1.bf16.msra.mxu0 %v1660
      %1681 = vmatprep.subr.bf16.mxu0 0
      %1682 = vmatpush1.bf16.msra.mxu0 %v1661
      %1683 = vmatprep.subr.bf16.mxu0 0
      %1684 = vmatpush1.bf16.msra.mxu0 %v1662
      %1685 = vmatprep.subr.bf16.mxu0 0
      %1686 = vmatpush1.bf16.msra.mxu0 %v1663
      %1687 = vmatprep.subr.bf16.mxu0 0
      %1688 = vmatpush1.bf16.msra.mxu0 %v1664
      %1689 = vmatprep.subr.bf16.mxu0 0
      %1690 = vmatpush1.bf16.msra.mxu0 0
      %1691 = vmatprep.subr.bf16.mxu0 0
      %1692 = vmatpush1.bf16.msra.mxu0 0
      %1693 = vmatprep.subr.bf16.mxu0 0
      %1694 = vmatpush1.bf16.msra.mxu0 0
      %1695 = vmatprep.subr.bf16.mxu0 0
      %1696 = vmatpush1.bf16.msra.mxu0 0
      %1697 = vmatprep.subr.bf16.mxu0 0
      %1698 = vmatpush1.bf16.msra.mxu0 0
      %1699 = vmatprep.subr.bf16.mxu0 0
      %1700 = vmatpush1.bf16.msra.mxu0 0
      %1701 = vmatprep.subr.bf16.mxu0 0
      %1702 = vmatpush1.bf16.msra.mxu0 0
      %1703 = vmatprep.subr.bf16.mxu0 0
      %1704 = vmatpush1.bf16.msra.mxu0 0
      %1705 = vmatprep.mubr.bf16.mxu0 0
      %1706 = vmatmul.mubr.bf16.gmra.mrb[0].mxu0 %v1611
      %v1707 = vpop.f32.mrb[0].mxu0
      %v1708 = vadd.f32 0.0, %v1707
      %v1709 = vpop.f32.mrb[0].mxu0
      %v1710 = vpop.f32.mrb[0].mxu0
      %v1711 = vadd.f32 0.0, %v1710
      %v1712 = vpop.f32.mrb[0].mxu0
      %1713 = vmatprep.mubr.bf16.mxu0 0
      %1714 = vmatmul.mubr.bf16.gmra.mrb[0].mxu0 %v1613
      %v1715 = vpop.f32.mrb[0].mxu0
      %v1716 = vadd.f32 0.0, %v1715
      %v1717 = vpop.f32.mrb[0].mxu0
      %v1718 = vpop.f32.mrb[0].mxu0
      %v1719 = vadd.f32 0.0, %v1718
      %v1720 = vpop.f32.mrb[0].mxu0
      %1721 = vmatprep.mubr.bf16.mxu0 0
      %1722 = vmatmul.mubr.bf16.gmra.mrb[0].mxu0 %v1615
      %v1723 = vpop.f32.mrb[0].mxu0
      %v1724 = vadd.f32 0.0, %v1723
      %v1725 = vpop.f32.mrb[0].mxu0
      %v1726 = vpop.f32.mrb[0].mxu0
      %v1727 = vadd.f32 0.0, %v1726
      %v1728 = vpop.f32.mrb[0].mxu0
      %1729 = vmatprep.mubr.bf16.mxu0 0
      %1730 = vmatmul.mubr.bf16.gmra.mrb[0].mxu0 %v1617
      %v1731 = vpop.f32.mrb[0].mxu0
      %v1732 = vadd.f32 0.0, %v1731
      %v1733 = vpop.f32.mrb[0].mxu0
      %v1734 = vpop.f32.mrb[0].mxu0
      %v1735 = vadd.f32 0.0, %v1734
      %v1736 = vpop.f32.mrb[0].mxu0
      %1737 = vmatprep.mubr.bf16.mxu0 0
      %1738 = vmatmul.mubr.bf16.gmra.mrb[0].mxu0 %v1619
      %v1739 = vpop.f32.mrb[0].mxu0
      %v1740 = vadd.f32 0.0, %v1739
      %v1741 = vpop.f32.mrb[0].mxu0
      %v1742 = vpop.f32.mrb[0].mxu0
      %v1743 = vadd.f32 0.0, %v1742
      %v1744 = vpop.f32.mrb[0].mxu0
      %1745 = vdwg.mxu0
      %v1746 = vld [vmem:[#allocation2] sm:$0xff]
      %v1747 = vld [vmem:[#allocation2 + $0x8] sm:$0xff]
      %v1748 = vld [vmem:[#allocation2 + $0x10] sm:$0xff]
      %v1749 = vld [vmem:[#allocation2 + $0x18] sm:$0xff]
      %v1750 = vld [vmem:[#allocation2 + $0x20] sm:$0xff]
      %v1751 = vld [vmem:[#allocation2 + $0x28] sm:$0xff]
      %v1752 = vld [vmem:[#allocation2 + $0x30] sm:$0xff]
      %v1753 = vld [vmem:[#allocation2 + $0x38] sm:$0xff]
      %v1754 = vld [vmem:[#allocation2 + $0x40] sm:$0xff]
      %v1755 = vld [vmem:[#allocation2 + $0x48] sm:$0xff]
      %v1756 = vadd.f32 %v1746, %v1708
      %v1757 = vadd.f32 %v1747, %v1711
      %v1758 = vadd.f32 %v1748, %v1716
      %v1759 = vadd.f32 %v1749, %v1719
      %v1760 = vadd.f32 %v1750, %v1724
      %v1761 = vadd.f32 %v1751, %v1727
      %v1762 = vadd.f32 %v1752, %v1732
      %v1763 = vadd.f32 %v1753, %v1735
      %v1764 = vadd.f32 %v1754, %v1740
      %v1765 = vadd.f32 %v1755, %v1743
      %1766 = vst [vmem:[#allocation2] sm:$0xff] %v1756
      %1767 = vst [vmem:[#allocation2 + $0x8] sm:$0xff] %v1757
      %1768 = vst [vmem:[#allocation2 + $0x10] sm:$0xff] %v1758
      %1769 = vst [vmem:[#allocation2 + $0x18] sm:$0xff] %v1759
      %1770 = vst [vmem:[#allocation2 + $0x20] sm:$0xff] %v1760
      %1771 = vst [vmem:[#allocation2 + $0x28] sm:$0xff] %v1761
      %1772 = vst [vmem:[#allocation2 + $0x30] sm:$0xff] %v1762
      %1773 = vst [vmem:[#allocation2 + $0x38] sm:$0xff] %v1763
      %1774 = vst [vmem:[#allocation2 + $0x40] sm:$0xff] %v1764
      %1775 = vst [vmem:[#allocation2 + $0x48] sm:$0xff] %v1765
      %v1776 = vld [vmem:[%s165 + $0x8] sm:$0xc]
      %v1777 = vld [vmem:[%s165 + $0xc] sm:$0xf]
      %v1778 = vld [vmem:[%s165 + $0x10] sm:$0xf]
      %v1779 = vld [vmem:[%s165 + $0x14] sm:$0xf]
      %v1780 = vld [vmem:[%s165 + $0x18] sm:$0xf]
      %v1781 = vld [vmem:[%s165 + $0x1c] sm:$0xf]
      %v1782 = vld [vmem:[%s165 + $0x20] sm:$0xf]
      %v1783 = vld [vmem:[%s165 + $0x24] sm:$0xf]
      %v1784 = vld [vmem:[%s165 + $0x28] sm:$0xf]
      %v1785 = vld [vmem:[%s165 + $0x2c] sm:$0xf]
      %v1786 = vld [vmem:[%s165 + $0x30] sm:$0x7]
      %s1787 = scalar_lea.vmem %s1, 448
      %v1788 = vld [vmem:[%s1787] sm:$0xf]
      %v1789 = vld [vmem:[%s1787 + $0x4] sm:$0xf]
      %v1790 = vld [vmem:[%s1787 + $0x8] sm:$0xf]
      %v1791 = vld [vmem:[%s1787 + $0xc] sm:$0xf]
      %v1792 = vld [vmem:[%s1787 + $0x10] sm:$0xf]
      %v1793 = vld [vmem:[%s1787 + $0x14] sm:$0xf]
      %v1794 = vld [vmem:[%s1787 + $0x18] sm:$0xf]
      %v1795 = vld [vmem:[%s1787 + $0x1c] sm:$0xf]
      %v1796 = vld [vmem:[%s1787 + $0x20] sm:$0xf]
      %v1797 = vld [vmem:[%s1787 + $0x24] sm:$0xf]
      %v1798 = vld [vmem:[%s1787 + $0x28] sm:$0xf]
      %v1799 = vld [vmem:[%s1787 + $0x2c] sm:$0xf]
      %v1800 = vld [vmem:[%s1787 + $0x30] sm:$0xf]
      %v1801 = vld [vmem:[%s1787 + $0x34] sm:$0xf]
      %v1802 = vld [vmem:[%s1787 + $0x38] sm:$0xf]
      %v1803 = vld [vmem:[%s1787 + $0x3c] sm:$0xf]
      %v1815 = vunpack.c.l.b16 %v1776
      %v1816 = vunpack.c.l.b16 %v1777
      %v1817 = vunpack.c.l.b16 %v1778
      %v1818 = vunpack.c.l.b16 %v1779
      %v1819 = vunpack.c.l.b16 %v1780
      %v1820 = vunpack.c.l.b16 %v1781
      %v1821 = vunpack.c.l.b16 %v1782
      %v1822 = vunpack.c.l.b16 %v1783
      %v1823 = vunpack.c.l.b16 %v1784
      %v1824 = vunpack.c.l.b16 %v1785
      %v1825 = vunpack.c.l.b16 %v1786
      %v1826 = vpack.c.b16 %v1816, %v1815
      %v1827 = vpack.c.b16 %v1818, %v1817
      %v1828 = vpack.c.b16 %v1820, %v1819
      %v1829 = vpack.c.b16 %v1822, %v1821
      %v1830 = vpack.c.b16 %v1824, %v1823
      %v1831 = vpack.c.b16 %v1825, %v1825
      %vm1832 = vsmask.f32 5376
      %v1834 = vshrl.u32 %v1826, 16
      %v1836 = vrot.slane %v1834, 2
      %v1837 = vshll.u32 %v1826, 16
      %v1839 = vrot.slane %v1837, 3
      %v1840 = vor.u32 %v1836, %v1839
      %v1842 = vshrl.u32 %v1827, 16
      %v1844 = vrot.slane %v1842, 2
      %v1845 = vshll.u32 %v1827, 16
      %v1847 = vrot.slane %v1845, 3
      %v1848 = vor.u32 %v1844, %v1847
      %v1849 = vsel %vm1832, %v1840, %v1848
      %v1851 = vshrl.u32 %v1828, 16
      %v1853 = vrot.slane %v1851, 2
      %v1854 = vshll.u32 %v1828, 16
      %v1856 = vrot.slane %v1854, 3
      %v1857 = vor.u32 %v1853, %v1856
      %v1858 = vsel %vm1832, %v1848, %v1857
      %v1860 = vshrl.u32 %v1829, 16
      %v1862 = vrot.slane %v1860, 2
      %v1863 = vshll.u32 %v1829, 16
      %v1865 = vrot.slane %v1863, 3
      %v1866 = vor.u32 %v1862, %v1865
      %v1867 = vsel %vm1832, %v1857, %v1866
      %v1869 = vshrl.u32 %v1830, 16
      %v1871 = vrot.slane %v1869, 2
      %v1872 = vshll.u32 %v1830, 16
      %v1874 = vrot.slane %v1872, 3
      %v1875 = vor.u32 %v1871, %v1874
      %v1876 = vsel %vm1832, %v1866, %v1875
      %v1878 = vshrl.u32 %v1831, 16
      %v1880 = vrot.slane %v1878, 2
      %v1881 = vshll.u32 %v1831, 16
      %v1883 = vrot.slane %v1881, 3
      %v1884 = vor.u32 %v1880, %v1883
      %v1885 = vsel %vm1832, %v1875, %v1884
      %v1907 = vunpack.c.l.b16 %v1788
      %v1908 = vunpack.c.l.b16 %v1789
      %v1909 = vunpack.c.l.b16 %v1790
      %v1910 = vunpack.c.l.b16 %v1791
      %v1911 = vunpack.c.l.b16 %v1792
      %v1912 = vunpack.c.l.b16 %v1793
      %v1913 = vunpack.c.l.b16 %v1794
      %v1914 = vunpack.c.l.b16 %v1795
      %v1915 = vunpack.c.l.b16 %v1796
      %v1916 = vunpack.c.l.b16 %v1797
      %v1917 = vunpack.c.l.b16 %v1798
      %v1918 = vunpack.c.l.b16 %v1799
      %v1919 = vunpack.c.l.b16 %v1800
      %v1920 = vunpack.c.l.b16 %v1801
      %v1921 = vunpack.c.l.b16 %v1802
      %v1922 = vunpack.c.l.b16 %v1803
      %v1923 = vpack.c.b16 %v1908, %v1907
      %v1924 = vpack.c.b16 %v1910, %v1909
      %v1925 = vpack.c.b16 %v1912, %v1911
      %v1926 = vpack.c.b16 %v1914, %v1913
      %v1927 = vpack.c.b16 %v1916, %v1915
      %v1928 = vpack.c.b16 %v1918, %v1917
      %v1929 = vpack.c.b16 %v1920, %v1919
      %v1930 = vpack.c.b16 %v1922, %v1921
      %1939 = vmatprep.subr.bf16.mxu0 0
      %1940 = vmatpush1.bf16.msra.mxu0 %v1923
      %1941 = vmatprep.subr.bf16.mxu0 0
      %1942 = vmatpush1.bf16.msra.mxu0 %v1924
      %1943 = vmatprep.subr.bf16.mxu0 0
      %1944 = vmatpush1.bf16.msra.mxu0 %v1925
      %1945 = vmatprep.subr.bf16.mxu0 0
      %1946 = vmatpush1.bf16.msra.mxu0 %v1926
      %1947 = vmatprep.subr.bf16.mxu0 0
      %1948 = vmatpush1.bf16.msra.mxu0 %v1927
      %1949 = vmatprep.subr.bf16.mxu0 0
      %1950 = vmatpush1.bf16.msra.mxu0 %v1928
      %1951 = vmatprep.subr.bf16.mxu0 0
      %1952 = vmatpush1.bf16.msra.mxu0 %v1929
      %1953 = vmatprep.subr.bf16.mxu0 0
      %1954 = vmatpush1.bf16.msra.mxu0 %v1930
      %1955 = vmatprep.subr.bf16.mxu0 0
      %1956 = vmatpush1.bf16.msra.mxu0 0
      %1957 = vmatprep.subr.bf16.mxu0 0
      %1958 = vmatpush1.bf16.msra.mxu0 0
      %1959 = vmatprep.subr.bf16.mxu0 0
      %1960 = vmatpush1.bf16.msra.mxu0 0
      %1961 = vmatprep.subr.bf16.mxu0 0
      %1962 = vmatpush1.bf16.msra.mxu0 0
      %1963 = vmatprep.subr.bf16.mxu0 0
      %1964 = vmatpush1.bf16.msra.mxu0 0
      %1965 = vmatprep.subr.bf16.mxu0 0
      %1966 = vmatpush1.bf16.msra.mxu0 0
      %1967 = vmatprep.subr.bf16.mxu0 0
      %1968 = vmatpush1.bf16.msra.mxu0 0
      %1969 = vmatprep.subr.bf16.mxu0 0
      %1970 = vmatpush1.bf16.msra.mxu0 0
      %1971 = vmatprep.mubr.bf16.mxu0 0
      %1972 = vmatmul.mubr.bf16.gmra.mrb[0].mxu0 %v1849
      %v1973 = vpop.f32.mrb[0].mxu0
      %v1974 = vadd.f32 0.0, %v1973
      %v1975 = vpop.f32.mrb[0].mxu0
      %v1976 = vpop.f32.mrb[0].mxu0
      %v1977 = vadd.f32 0.0, %v1976
      %v1978 = vpop.f32.mrb[0].mxu0
      %1979 = vmatprep.mubr.bf16.mxu0 0
      %1980 = vmatmul.mubr.bf16.gmra.mrb[0].mxu0 %v1858
      %v1981 = vpop.f32.mrb[0].mxu0
      %v1982 = vadd.f32 0.0, %v1981
      %v1983 = vpop.f32.mrb[0].mxu0
      %v1984 = vpop.f32.mrb[0].mxu0
      %v1985 = vadd.f32 0.0, %v1984
      %v1986 = vpop.f32.mrb[0].mxu0
      %1987 = vmatprep.mubr.bf16.mxu0 0
      %1988 = vmatmul.mubr.bf16.gmra.mrb[0].mxu0 %v1867
      %v1989 = vpop.f32.mrb[0].mxu0
      %v1990 = vadd.f32 0.0, %v1989
      %v1991 = vpop.f32.mrb[0].mxu0
      %v1992 = vpop.f32.mrb[0].mxu0
      %v1993 = vadd.f32 0.0, %v1992
      %v1994 = vpop.f32.mrb[0].mxu0
      %1995 = vmatprep.mubr.bf16.mxu0 0
      %1996 = vmatmul.mubr.bf16.gmra.mrb[0].mxu0 %v1876
      %v1997 = vpop.f32.mrb[0].mxu0
      %v1998 = vadd.f32 0.0, %v1997
      %v1999 = vpop.f32.mrb[0].mxu0
      %v2000 = vpop.f32.mrb[0].mxu0
      %v2001 = vadd.f32 0.0, %v2000
      %v2002 = vpop.f32.mrb[0].mxu0
      %2003 = vmatprep.mubr.bf16.mxu0 0
      %2004 = vmatmul.mubr.bf16.gmra.mrb[0].mxu0 %v1885
      %v2005 = vpop.f32.mrb[0].mxu0
      %v2006 = vadd.f32 0.0, %v2005
      %v2007 = vpop.f32.mrb[0].mxu0
      %v2008 = vpop.f32.mrb[0].mxu0
      %v2009 = vadd.f32 0.0, %v2008
      %v2010 = vpop.f32.mrb[0].mxu0
      %2011 = vdwg.mxu0
      %v2012 = vld [vmem:[#allocation2] sm:$0xff]
      %v2013 = vld [vmem:[#allocation2 + $0x8] sm:$0xff]
      %v2014 = vld [vmem:[#allocation2 + $0x10] sm:$0xff]
      %v2015 = vld [vmem:[#allocation2 + $0x18] sm:$0xff]
      %v2016 = vld [vmem:[#allocation2 + $0x20] sm:$0xff]
      %v2017 = vld [vmem:[#allocation2 + $0x28] sm:$0xff]
      %v2018 = vld [vmem:[#allocation2 + $0x30] sm:$0xff]
      %v2019 = vld [vmem:[#allocation2 + $0x38] sm:$0xff]
      %v2020 = vld [vmem:[#allocation2 + $0x40] sm:$0xff]
      %v2021 = vld [vmem:[#allocation2 + $0x48] sm:$0xff]
      %v2022 = vadd.f32 %v2012, %v1974
      %v2023 = vadd.f32 %v2013, %v1977
      %v2024 = vadd.f32 %v2014, %v1982
      %v2025 = vadd.f32 %v2015, %v1985
      %v2026 = vadd.f32 %v2016, %v1990
      %v2027 = vadd.f32 %v2017, %v1993
      %v2028 = vadd.f32 %v2018, %v1998
      %v2029 = vadd.f32 %v2019, %v2001
      %v2030 = vadd.f32 %v2020, %v2006
      %v2031 = vadd.f32 %v2021, %v2009
      %2032 = vst [vmem:[#allocation2] sm:$0xff] %v2022
      %2033 = vst [vmem:[#allocation2 + $0x8] sm:$0xff] %v2023
      %2034 = vst [vmem:[#allocation2 + $0x10] sm:$0xff] %v2024
      %2035 = vst [vmem:[#allocation2 + $0x18] sm:$0xff] %v2025
      %2036 = vst [vmem:[#allocation2 + $0x20] sm:$0xff] %v2026
      %2037 = vst [vmem:[#allocation2 + $0x28] sm:$0xff] %v2027
      %2038 = vst [vmem:[#allocation2 + $0x30] sm:$0xff] %v2028
      %2039 = vst [vmem:[#allocation2 + $0x38] sm:$0xff] %v2029
      %2040 = vst [vmem:[#allocation2 + $0x40] sm:$0xff] %v2030
      %2041 = vst [vmem:[#allocation2 + $0x48] sm:$0xff] %v2031
      %v2042 = vld [vmem:[%s165 + $0x8] sm:$0x8]
      %v2043 = vld [vmem:[%s165 + $0xc] sm:$0xf]
      %v2044 = vld [vmem:[%s165 + $0x10] sm:$0xf]
      %v2045 = vld [vmem:[%s165 + $0x14] sm:$0xf]
      %v2046 = vld [vmem:[%s165 + $0x18] sm:$0xf]
      %v2047 = vld [vmem:[%s165 + $0x1c] sm:$0xf]
      %v2048 = vld [vmem:[%s165 + $0x20] sm:$0xf]
      %v2049 = vld [vmem:[%s165 + $0x24] sm:$0xf]
      %v2050 = vld [vmem:[%s165 + $0x28] sm:$0xf]
      %v2051 = vld [vmem:[%s165 + $0x2c] sm:$0xf]
      %v2052 = vld [vmem:[%s165 + $0x30] sm:$0x7]
      %s2053 = scalar_lea.vmem %s1, 512
      %v2054 = vld [vmem:[%s2053] sm:$0xf]
      %v2055 = vld [vmem:[%s2053 + $0x4] sm:$0xf]
      %v2056 = vld [vmem:[%s2053 + $0x8] sm:$0xf]
      %v2057 = vld [vmem:[%s2053 + $0xc] sm:$0xf]
      %v2058 = vld [vmem:[%s2053 + $0x10] sm:$0xf]
      %v2059 = vld [vmem:[%s2053 + $0x14] sm:$0xf]
      %v2060 = vld [vmem:[%s2053 + $0x18] sm:$0xf]
      %v2061 = vld [vmem:[%s2053 + $0x1c] sm:$0xf]
      %v2062 = vld [vmem:[%s2053 + $0x20] sm:$0xf]
      %v2063 = vld [vmem:[%s2053 + $0x24] sm:$0xf]
      %v2064 = vld [vmem:[%s2053 + $0x28] sm:$0xf]
      %v2065 = vld [vmem:[%s2053 + $0x2c] sm:$0xf]
      %v2066 = vld [vmem:[%s2053 + $0x30] sm:$0xf]
      %v2067 = vld [vmem:[%s2053 + $0x34] sm:$0xf]
      %v2068 = vld [vmem:[%s2053 + $0x38] sm:$0xf]
      %v2069 = vld [vmem:[%s2053 + $0x3c] sm:$0xf]
      %v2081 = vunpack.c.l.b16 %v2042
      %v2082 = vunpack.c.l.b16 %v2043
      %v2083 = vunpack.c.l.b16 %v2044
      %v2084 = vunpack.c.l.b16 %v2045
      %v2085 = vunpack.c.l.b16 %v2046
      %v2086 = vunpack.c.l.b16 %v2047
      %v2087 = vunpack.c.l.b16 %v2048
      %v2088 = vunpack.c.l.b16 %v2049
      %v2089 = vunpack.c.l.b16 %v2050
      %v2090 = vunpack.c.l.b16 %v2051
      %v2091 = vunpack.c.l.b16 %v2052
      %v2092 = vpack.c.b16 %v2082, %v2081
      %v2093 = vpack.c.b16 %v2084, %v2083
      %v2094 = vpack.c.b16 %v2086, %v2085
      %v2095 = vpack.c.b16 %v2088, %v2087
      %v2096 = vpack.c.b16 %v2090, %v2089
      %v2097 = vpack.c.b16 %v2091, %v2091
      %vm2098 = vcmask 1044480
      %v2099 = vrot.slane %v2092, 3
      %v2100 = vrot.slane %v2093, 3
      %v2101 = vsel %vm2098, %v2099, %v2100
      %v2102 = vrot.slane %v2094, 3
      %v2103 = vsel %vm2098, %v2100, %v2102
      %v2104 = vrot.slane %v2095, 3
      %v2105 = vsel %vm2098, %v2102, %v2104
      %v2106 = vrot.slane %v2096, 3
      %v2107 = vsel %vm2098, %v2104, %v2106
      %v2108 = vrot.slane %v2097, 3
      %v2109 = vsel %vm2098, %v2106, %v2108
      %v2131 = vunpack.c.l.b16 %v2054
      %v2132 = vunpack.c.l.b16 %v2055
      %v2133 = vunpack.c.l.b16 %v2056
      %v2134 = vunpack.c.l.b16 %v2057
      %v2135 = vunpack.c.l.b16 %v2058
      %v2136 = vunpack.c.l.b16 %v2059
      %v2137 = vunpack.c.l.b16 %v2060
      %v2138 = vunpack.c.l.b16 %v2061
      %v2139 = vunpack.c.l.b16 %v2062
      %v2140 = vunpack.c.l.b16 %v2063
      %v2141 = vunpack.c.l.b16 %v2064
      %v2142 = vunpack.c.l.b16 %v2065
      %v2143 = vunpack.c.l.b16 %v2066
      %v2144 = vunpack.c.l.b16 %v2067
      %v2145 = vunpack.c.l.b16 %v2068
      %v2146 = vunpack.c.l.b16 %v2069
      %v2147 = vpack.c.b16 %v2132, %v2131
      %v2148 = vpack.c.b16 %v2134, %v2133
      %v2149 = vpack.c.b16 %v2136, %v2135
      %v2150 = vpack.c.b16 %v2138, %v2137
      %v2151 = vpack.c.b16 %v2140, %v2139
      %v2152 = vpack.c.b16 %v2142, %v2141
      %v2153 = vpack.c.b16 %v2144, %v2143
      %v2154 = vpack.c.b16 %v2146, %v2145
      %2163 = vmatprep.subr.bf16.mxu0 0
      %2164 = vmatpush1.bf16.msra.mxu0 %v2147
      %2165 = vmatprep.subr.bf16.mxu0 0
      %2166 = vmatpush1.bf16.msra.mxu0 %v2148
      %2167 = vmatprep.subr.bf16.mxu0 0
      %2168 = vmatpush1.bf16.msra.mxu0 %v2149
      %2169 = vmatprep.subr.bf16.mxu0 0
      %2170 = vmatpush1.bf16.msra.mxu0 %v2150
      %2171 = vmatprep.subr.bf16.mxu0 0
      %2172 = vmatpush1.bf16.msra.mxu0 %v2151
      %2173 = vmatprep.subr.bf16.mxu0 0
      %2174 = vmatpush1.bf16.msra.mxu0 %v2152
      %2175 = vmatprep.subr.bf16.mxu0 0
      %2176 = vmatpush1.bf16.msra.mxu0 %v2153
      %2177 = vmatprep.subr.bf16.mxu0 0
      %2178 = vmatpush1.bf16.msra.mxu0 %v2154
      %2179 = vmatprep.subr.bf16.mxu0 0
      %2180 = vmatpush1.bf16.msra.mxu0 0
      %2181 = vmatprep.subr.bf16.mxu0 0
      %2182 = vmatpush1.bf16.msra.mxu0 0
      %2183 = vmatprep.subr.bf16.mxu0 0
      %2184 = vmatpush1.bf16.msra.mxu0 0
      %2185 = vmatprep.subr.bf16.mxu0 0
      %2186 = vmatpush1.bf16.msra.mxu0 0
      %2187 = vmatprep.subr.bf16.mxu0 0
      %2188 = vmatpush1.bf16.msra.mxu0 0
      %2189 = vmatprep.subr.bf16.mxu0 0
      %2190 = vmatpush1.bf16.msra.mxu0 0
      %2191 = vmatprep.subr.bf16.mxu0 0
      %2192 = vmatpush1.bf16.msra.mxu0 0
      %2193 = vmatprep.subr.bf16.mxu0 0
      %2194 = vmatpush1.bf16.msra.mxu0 0
      %2195 = vmatprep.mubr.bf16.mxu0 0
      %2196 = vmatmul.mubr.bf16.gmra.mrb[0].mxu0 %v2101
      %v2197 = vpop.f32.mrb[0].mxu0
      %v2198 = vadd.f32 0.0, %v2197
      %v2199 = vpop.f32.mrb[0].mxu0
      %v2200 = vpop.f32.mrb[0].mxu0
      %v2201 = vadd.f32 0.0, %v2200
      %v2202 = vpop.f32.mrb[0].mxu0
      %2203 = vmatprep.mubr.bf16.mxu0 0
      %2204 = vmatmul.mubr.bf16.gmra.mrb[0].mxu0 %v2103
      %v2205 = vpop.f32.mrb[0].mxu0
      %v2206 = vadd.f32 0.0, %v2205
      %v2207 = vpop.f32.mrb[0].mxu0
      %v2208 = vpop.f32.mrb[0].mxu0
      %v2209 = vadd.f32 0.0, %v2208
      %v2210 = vpop.f32.mrb[0].mxu0
      %2211 = vmatprep.mubr.bf16.mxu0 0
      %2212 = vmatmul.mubr.bf16.gmra.mrb[0].mxu0 %v2105
      %v2213 = vpop.f32.mrb[0].mxu0
      %v2214 = vadd.f32 0.0, %v2213
      %v2215 = vpop.f32.mrb[0].mxu0
      %v2216 = vpop.f32.mrb[0].mxu0
      %v2217 = vadd.f32 0.0, %v2216
      %v2218 = vpop.f32.mrb[0].mxu0
      %2219 = vmatprep.mubr.bf16.mxu0 0
      %2220 = vmatmul.mubr.bf16.gmra.mrb[0].mxu0 %v2107
      %v2221 = vpop.f32.mrb[0].mxu0
      %v2222 = vadd.f32 0.0, %v2221
      %v2223 = vpop.f32.mrb[0].mxu0
      %v2224 = vpop.f32.mrb[0].mxu0
      %v2225 = vadd.f32 0.0, %v2224
      %v2226 = vpop.f32.mrb[0].mxu0
      %2227 = vmatprep.mubr.bf16.mxu0 0
      %2228 = vmatmul.mubr.bf16.gmra.mrb[0].mxu0 %v2109
      %v2229 = vpop.f32.mrb[0].mxu0
      %v2230 = vadd.f32 0.0, %v2229
      %v2231 = vpop.f32.mrb[0].mxu0
      %v2232 = vpop.f32.mrb[0].mxu0
      %v2233 = vadd.f32 0.0, %v2232
      %v2234 = vpop.f32.mrb[0].mxu0
      %2235 = vdwg.mxu0
      %v2236 = vld [vmem:[#allocation2] sm:$0xff]
      %v2237 = vld [vmem:[#allocation2 + $0x8] sm:$0xff]
      %v2238 = vld [vmem:[#allocation2 + $0x10] sm:$0xff]
      %v2239 = vld [vmem:[#allocation2 + $0x18] sm:$0xff]
      %v2240 = vld [vmem:[#allocation2 + $0x20] sm:$0xff]
      %v2241 = vld [vmem:[#allocation2 + $0x28] sm:$0xff]
      %v2242 = vld [vmem:[#allocation2 + $0x30] sm:$0xff]
      %v2243 = vld [vmem:[#allocation2 + $0x38] sm:$0xff]
      %v2244 = vld [vmem:[#allocation2 + $0x40] sm:$0xff]
      %v2245 = vld [vmem:[#allocation2 + $0x48] sm:$0xff]
      %v2246 = vadd.f32 %v2236, %v2198
      %v2247 = vadd.f32 %v2237, %v2201
      %v2248 = vadd.f32 %v2238, %v2206
      %v2249 = vadd.f32 %v2239, %v2209
      %v2250 = vadd.f32 %v2240, %v2214
      %v2251 = vadd.f32 %v2241, %v2217
      %v2252 = vadd.f32 %v2242, %v2222
      %v2253 = vadd.f32 %v2243, %v2225
      %v2254 = vadd.f32 %v2244, %v2230
      %v2255 = vadd.f32 %v2245, %v2233
      %2256 = vst [vmem:[#allocation2] sm:$0xff] %v2246
      %2257 = vst [vmem:[#allocation2 + $0x8] sm:$0xff] %v2247
      %2258 = vst [vmem:[#allocation2 + $0x10] sm:$0xff] %v2248
      %2259 = vst [vmem:[#allocation2 + $0x18] sm:$0xff] %v2249
      %2260 = vst [vmem:[#allocation2 + $0x20] sm:$0xff] %v2250
      %2261 = vst [vmem:[#allocation2 + $0x28] sm:$0xff] %v2251
      %2262 = vst [vmem:[#allocation2 + $0x30] sm:$0xff] %v2252
      %2263 = vst [vmem:[#allocation2 + $0x38] sm:$0xff] %v2253
      %2264 = vst [vmem:[#allocation2 + $0x40] sm:$0xff] %v2254
      %2265 = vst [vmem:[#allocation2 + $0x48] sm:$0xff] %v2255
      %v2266 = vld [vmem:[#allocation2] sm:$0xff]
      %v2267 = vld [vmem:[#allocation2 + $0x8] sm:$0xff]
      %v2268 = vld [vmem:[#allocation2 + $0x10] sm:$0xff]
      %v2269 = vld [vmem:[#allocation2 + $0x18] sm:$0xff]
      %v2270 = vld [vmem:[#allocation2 + $0x20] sm:$0xff]
      %v2271 = vld [vmem:[#allocation2 + $0x28] sm:$0xff]
      %v2272 = vld [vmem:[#allocation2 + $0x30] sm:$0xff]
      %v2273 = vld [vmem:[#allocation2 + $0x38] sm:$0xff]
      %v2274 = vld [vmem:[#allocation2 + $0x40] sm:$0xff]
      %v2275 = vld [vmem:[#allocation2 + $0x48] sm:$0xff]
      %v2276 = vld [vmem:[%s2] sm:$0x1]
      %v2278 = vlaneseq
      %v2279 = vshrl.u32 %v2278, 7
      %v2280 = vsub.s32 0, %v2279
      %v2281 = vrot.slane %v2276, %v2280
      %v2283 = vadd.f32 %v2266, %v2281
      %v2284 = vadd.f32 %v2267, %v2281
      %v2285 = vadd.f32 %v2268, %v2281
      %v2286 = vadd.f32 %v2269, %v2281
      %v2287 = vadd.f32 %v2270, %v2281
      %v2288 = vadd.f32 %v2271, %v2281
      %v2289 = vadd.f32 %v2272, %v2281
      %v2290 = vadd.f32 %v2273, %v2281
      %v2291 = vadd.f32 %v2274, %v2281
      %v2292 = vadd.f32 %v2275, %v2281
      %v2293 = vmax.f32 %v2283, 0.0
      %v2294 = vmax.f32 %v2284, 0.0
      %v2295 = vmax.f32 %v2285, 0.0
      %v2296 = vmax.f32 %v2286, 0.0
      %v2297 = vmax.f32 %v2287, 0.0
      %v2298 = vmax.f32 %v2288, 0.0
      %v2299 = vmax.f32 %v2289, 0.0
      %v2300 = vmax.f32 %v2290, 0.0
      %v2301 = vmax.f32 %v2291, 0.0
      %v2302 = vmax.f32 %v2292, 0.0
      %v2303 = vpack.c.bf16 %v2294, %v2293
      %v2304 = vpack.c.bf16 %v2296, %v2295
      %v2305 = vpack.c.bf16 %v2298, %v2297
      %v2306 = vpack.c.bf16 %v2300, %v2299
      %v2307 = vpack.c.bf16 %v2302, %v2301
      %2308 = vst [vmem:[%s170] sm:$0xf] %v2303
      %v2311 = vunpack.c.h.b16 %v2303
      %v2312 = vunpack.c.l.b16 %v2304
      %v2313 = vpack.c.b16 %v2311, %v2311
      %v2314 = vpack.c.b16 %v2312, %v2312
      %vm2315 = vcmask 1042432
      %vm2316 = vcmask 1046532
      %vm2317 = vmor %vm2315, %vm2316
      %v2318 = vrot.slane %v2313, 5
      %v2319 = vrot.slane %v2318, 4
      %v2320 = vrot.slane %v2314, 5
      %v2321 = vsel %vm2317, %v2319, %v2320
      %s2323 = scalar_lea.vmem %s170, 4
      %2324 = vst [vmem:[%s2323] sm:$0xf] %v2321
      %v2325 = vunpack.c.h.b16 %v2304
      %v2326 = vpack.c.b16 %v2325, %v2325
      %vm2327 = vcmask 1041408
      %vm2328 = vcmask 1045508
      %vm2329 = vmor %vm2327, %vm2328
      %v2330 = vrot.slane %v2314, 6
      %v2331 = vrot.slane %v2330, 4
      %v2332 = vrot.slane %v2326, 6
      %v2333 = vsel %vm2329, %v2331, %v2332
      %s2335 = scalar_lea.vmem %s170, 8
      %2336 = vst [vmem:[%s2335] sm:$0xf] %v2333
      %v2338 = vunpack.c.l.b16 %v2305
      %v2339 = vpack.c.b16 %v2338, %v2338
      %vm2340 = vcmask 1040384
      %vm2341 = vcmask 1044484
      %vm2342 = vmor %vm2340, %vm2341
      %v2343 = vrot.slane %v2326, 7
      %v2344 = vrot.slane %v2343, 4
      %v2345 = vrot.slane %v2339, 7
      %v2346 = vsel %vm2342, %v2344, %v2345
      %s2348 = scalar_lea.vmem %s170, 12
      %2349 = vst [vmem:[%s2348] sm:$0xf] %v2346
      %v2350 = vunpack.c.h.b16 %v2305
      %v2351 = vpack.c.b16 %v2350, %v2350
      %s2353 = scalar_lea.vmem %s170, 16
      %2354 = vst [vmem:[%s2353] sm:$0xf] %v2351
      %v2356 = vunpack.c.l.b16 %v2306
      %v2357 = vunpack.c.h.b16 %v2306
      %v2358 = vpack.c.b16 %v2356, %v2356
      %v2359 = vpack.c.b16 %v2357, %v2357
      %v2360 = vrot.slane %v2358, 5
      %v2361 = vrot.slane %v2360, 4
      %v2362 = vrot.slane %v2359, 5
      %v2363 = vsel %vm2317, %v2361, %v2362
      %s2365 = scalar_lea.vmem %s170, 20
      %2366 = vst [vmem:[%s2365] sm:$0xf] %v2363
      %v2368 = vunpack.c.l.b16 %v2307
      %v2369 = vpack.c.b16 %v2368, %v2368
      %v2370 = vrot.slane %v2359, 6
      %v2371 = vrot.slane %v2370, 4
      %v2372 = vrot.slane %v2369, 6
      %v2373 = vsel %vm2329, %v2371, %v2372
      %s2375 = scalar_lea.vmem %s170, 24
      %2376 = vst [vmem:[%s2375] sm:$0xf] %v2373
      %v2377 = vunpack.c.h.b16 %v2307
      %v2378 = vpack.c.b16 %v2377, %v2377
      %v2379 = vrot.slane %v2369, 7
      %v2380 = vrot.slane %v2379, 4
      %v2381 = vrot.slane %v2378, 7
      %v2382 = vsel %vm2342, %v2380, %v2381
      %s2384 = scalar_lea.vmem %s170, 28
      %2385 = vst [vmem:[%s2384] sm:$0xf] %v2382
      %p2386 = scmp.lt.s32.totalorder %s14, 1
      %s2387 = scalar_select %p2386, %s14, 1
      %s2388 = smul.addr %s2387, 8
      %s2389 = smul.addr %s2388, 4
      %s2390 = scalar_lea.vmem %s3, %s2389
      // Predicated region
      $region33: #{_lambda_.11} parent=31 // pred_check
        %p2391 = pneg %p100
      $region34: #{_lambda_.11} parent=31 // pred_check_branch
        %2393 = sbr.rel (%p2391) target = $region36
      $region35: #{_lambda_.11} parent=31 // pred_region
        _
      $region36: #{_lambda_.11} parent=31 // pred_fallthru
        _
    $region32: #{_lambda_.11} parent=5 // pred_fallthru
      _
    %p2394 = scmp.le.s32.totalorder 2, %s9
    // Predicated region
    $region37: #{_lambda_.11} parent=5 // pred_check
      %p2395 = pneg %p2394
    $region38: #{_lambda_.11} parent=5 // pred_check_branch
      %2397 = sbr.rel (%p2395) target = $region40
    $region39: #{_lambda_.11} parent=5 // pred_region
      %s2398 = ssub.s32 %s9, 2
      // Predicated region
      $region41: #{_lambda_.11} parent=39 // pred_check
        %p2399 = pneg %p106
      $region42: #{_lambda_.11} parent=39 // pred_check_branch
        %2401 = sbr.rel (%p2399) target = $region44
      $region43: #{_lambda_.11} parent=39 // pred_region
        %p2402 = scmp.lt.s32.totalorder %s15, 1
        %s2403 = scalar_select %p2402, %s15, 1
        %s2404 = smul.addr %s2403, 8
        %s2405 = smul.addr %s2404, 4
        %s2406 = scalar_lea.vmem %s3, %s2405
      $region44: #{_lambda_.11} parent=39 // pred_fallthru
        _
    $region40: #{_lambda_.11} parent=5 // pred_fallthru
      _
  $region6: #{_lambda_.11} parent=0 // loop_footer
    %s13 = sadd.s32 1, %s9
  $region7: #{_lambda_.11} parent=0 // loop_footer_branch
    %8 = sbr.rel target = $region3
  $region8: #{_lambda_.11} parent=0 // loop_exit
    _

// kernel: _lambda_.13
$region0: #{_lambda_.13}
  #allocation0 [shape = 'u32[]', space=smem, size = 0x4, offset = 0x4, fixed_abs, tag = 'smem constant byte address 0x4 - core index']
  #allocation1 [shape = 'u32[144,128]{1,0:T(1,128)}', space=vmem, size = 0x12000, scoped, tag = 'internal scratch']
  #allocation2 [shape = 'f32[24,128]{1,0:T(8,128)}', space=vmem, size = 0x3000, scoped, tag = 'scratch operand']
  %s0 = inlined_call_operand.vmem [shape: bf16[2,42,128], index: 0, kind: input, shape index: {}]
  %s1 = inlined_call_operand.vmem [shape: bf16[9,128,128], index: 1, kind: input, shape index: {}]
  %s2 = inlined_call_operand.vmem [shape: f32[1,128], index: 2, kind: input, shape index: {}]
  %s3 = inlined_call_operand.vmem [shape: bf16[2,4,4,128], index: 3, kind: output, shape index: {}]
  %s4 = sld [smem:[#allocation0]]
  $region45: #{_lambda_.13} parent=0
    _
  %s6 = ssub.s32 1, %s4
  %s7 = scalar_select 0, %s6, %s4
  loop: start=0, step=1, limit=4
  $region2: #{_lambda_.13} parent=0 // loop_pre_header
    _
  $region3: #{_lambda_.13} parent=0 // loop_header
    %s9 = sphi 0, %s13
    %p10 = scmp.ge.s32.totalorder %s9, 4
    %s19 = sphi 0, %s21
    %s22 = sphi 0, %s19
    %s23 = sphi 0, %s22
    %s39 = sphi 0, %s23
    %s43 = sphi 0, %s43
    %s45 = sphi 0, %s43
    %s46 = sphi 0, %s45
    %s60 = sphi 0, %s46
    %s64 = sphi 0, %s64
    %s66 = sphi 0, %s64
    %s67 = sphi 0, %s66
    %s81 = sphi 0, %s67
    %s87 = sphi 0, %s89
    %s90 = sphi 0, %s87
    %s91 = sphi 0, %s90
    %s107 = sphi 0, %s91
  $region4: #{_lambda_.13} parent=0 // loop_header_branch
    %12 = sbr.rel (%p10) target = $region8
  $region5: #{_lambda_.13} parent=0 // loop_body
    %s14 = ssub.s32 %s9, 1
    %s15 = ssub.s32 %s9, 2
    %s16 = sadd.s32 %s9, 1
    %s17 = ssub.s32 %s9, %s16
    %p18 = scmp.eq.s32.totalorder %s17, 0
    %s20 = sadd.s32 %s19, 1
    %s21 = scalar_select %p18, %s19, %s20
    %p24 = pneg %p18
    %p25 = scmp.eq.s32.totalorder %s9, 1
    %p26 = por %p24, %p25
    %p27 = scmp.ne.s32.totalorder %s19, %s22
    %p28 = scmp.eq.s32.totalorder %s9, 0
    %p29 = por %p27, %p28
    %p30 = scmp.ne.s32.totalorder %s19, %s22
    %p31 = scmp.eq.s32.totalorder %s14, 1
    %p32 = por %p30, %p31
    %p33 = scmp.ne.s32.totalorder %s22, %s23
    %p34 = scmp.eq.s32.totalorder %s14, 0
    %p35 = por %p33, %p34
    %p36 = scmp.ne.s32.totalorder %s22, %s23
    %p37 = scmp.eq.s32.totalorder %s15, 1
    %p38 = por %p36, %p37
    %p40 = scmp.ne.s32.totalorder %s23, %s39
    %p41 = scmp.eq.s32.totalorder %s15, 0
    %p42 = por %p40, %p41
    %s44 = sadd.s32 %s43, 1
    %p47 = scmp.eq.s32.totalorder %s9, 1
    %p48 = scmp.ne.s32.totalorder %s43, %s45
    %p49 = scmp.eq.s32.totalorder %s9, 0
    %p50 = por %p48, %p49
    %p51 = scmp.ne.s32.totalorder %s43, %s45
    %p52 = scmp.eq.s32.totalorder %s14, 1
    %p53 = por %p51, %p52
    %p54 = scmp.ne.s32.totalorder %s45, %s46
    %p55 = scmp.eq.s32.totalorder %s14, 0
    %p56 = por %p54, %p55
    %p57 = scmp.ne.s32.totalorder %s45, %s46
    %p58 = scmp.eq.s32.totalorder %s15, 1
    %p59 = por %p57, %p58
    %p61 = scmp.ne.s32.totalorder %s46, %s60
    %p62 = scmp.eq.s32.totalorder %s15, 0
    %p63 = por %p61, %p62
    %s65 = sadd.s32 %s64, 1
    %p68 = scmp.eq.s32.totalorder %s9, 1
    %p69 = scmp.ne.s32.totalorder %s64, %s66
    %p70 = scmp.eq.s32.totalorder %s9, 0
    %p71 = por %p69, %p70
    %p72 = scmp.ne.s32.totalorder %s64, %s66
    %p73 = scmp.eq.s32.totalorder %s14, 1
    %p74 = por %p72, %p73
    %p75 = scmp.ne.s32.totalorder %s66, %s67
    %p76 = scmp.eq.s32.totalorder %s14, 0
    %p77 = por %p75, %p76
    %p78 = scmp.ne.s32.totalorder %s66, %s67
    %p79 = scmp.eq.s32.totalorder %s15, 1
    %p80 = por %p78, %p79
    %p82 = scmp.ne.s32.totalorder %s67, %s81
    %p83 = scmp.eq.s32.totalorder %s15, 0
    %p84 = por %p82, %p83
    %s85 = ssub.s32 %s9, %s16
    %p86 = scmp.eq.s32.totalorder %s85, 0
    %s88 = sadd.s32 %s87, 1
    %s89 = scalar_select %p86, %s87, %s88
    %p92 = pneg %p86
    %p93 = scmp.eq.s32.totalorder %s9, 1
    %p94 = por %p92, %p93
    %p95 = scmp.ne.s32.totalorder %s87, %s90
    %p96 = scmp.eq.s32.totalorder %s9, 0
    %p97 = por %p95, %p96
    %p98 = scmp.ne.s32.totalorder %s87, %s90
    %p99 = scmp.eq.s32.totalorder %s14, 1
    %p100 = por %p98, %p99
    %p101 = scmp.ne.s32.totalorder %s90, %s91
    %p102 = scmp.eq.s32.totalorder %s14, 0
    %p103 = por %p101, %p102
    %p104 = scmp.ne.s32.totalorder %s90, %s91
    %p105 = scmp.eq.s32.totalorder %s15, 1
    %p106 = por %p104, %p105
    %p108 = scmp.ne.s32.totalorder %s91, %s107
    %p109 = scmp.eq.s32.totalorder %s15, 0
    %p110 = por %p108, %p109
    %p111 = scmp.le.s32.totalorder 1, %s9
    %p112 = scmp.lt.s32.totalorder %s9, 3
    %p113 = pnand %p111, %p112
    %p114 = pneg %p113
    // Predicated region
    $region9: #{_lambda_.13} parent=5 // pred_check
      _
    $region10: #{_lambda_.13} parent=5 // pred_check_branch
      %116 = sbr.rel (%p113) target = $region12
    $region11: #{_lambda_.13} parent=5 // pred_region
      %s117 = ssub.s32 %s9, 1
      // Predicated region
      $region13: #{_lambda_.13} parent=11 // pred_check
        %p118 = pneg %p56
      $region14: #{_lambda_.13} parent=11 // pred_check_branch
        %120 = sbr.rel (%p118) target = $region16
      $region15: #{_lambda_.13} parent=11 // pred_region
        _
      $region16: #{_lambda_.13} parent=11 // pred_fallthru
        _
      // Predicated region
      $region17: #{_lambda_.13} parent=11 // pred_check
        %p121 = pneg %p77
      $region18: #{_lambda_.13} parent=11 // pred_check_branch
        %123 = sbr.rel (%p121) target = $region20
      $region19: #{_lambda_.13} parent=11 // pred_region
        _
      $region20: #{_lambda_.13} parent=11 // pred_fallthru
        _
    $region12: #{_lambda_.13} parent=5 // pred_fallthru
      _
    %p124 = scmp.lt.s32.totalorder %s9, 2
    // Predicated region
    $region21: #{_lambda_.13} parent=5 // pred_check
      %p125 = pneg %p124
    $region22: #{_lambda_.13} parent=5 // pred_check_branch
      %127 = sbr.rel (%p125) target = $region24
    $region23: #{_lambda_.13} parent=5 // pred_region
      // Predicated region
      $region25: #{_lambda_.13} parent=23 // pred_check
        %p128 = pneg %p29
      $region26: #{_lambda_.13} parent=23 // pred_check_branch
        %130 = sbr.rel (%p128) target = $region28
      $region27: #{_lambda_.13} parent=23 // pred_region
        %p131 = scmp.lt.s32.totalorder %s9, 1
        %s132 = scalar_select %p131, %s9, 1
        %s133 = smul.addr %s132, 6
        %s134 = smul.addr %s133, 4
        %s135 = scalar_lea.vmem %s0, %s134
      $region28: #{_lambda_.13} parent=23 // pred_fallthru
        _
    $region24: #{_lambda_.13} parent=5 // pred_fallthru
      _
    %p136 = scmp.le.s32.totalorder 1, %s9
    %p137 = scmp.lt.s32.totalorder %s9, 3
    %p138 = pnand %p136, %p137
    %p139 = pneg %p138
    // Predicated region
    $region29: #{_lambda_.13} parent=5 // pred_check
      _
    $region30: #{_lambda_.13} parent=5 // pred_check_branch
      %141 = sbr.rel (%p138) target = $region32
    $region31: #{_lambda_.13} parent=5 // pred_region
      %s142 = ssub.s32 %s9, 1
      %p143 = scmp.lt.s32.totalorder %s14, 1
      %s144 = scalar_select %p143, %s14, 1
      %s145 = smul.addr %s144, 6
      %s146 = smul.addr %s145, 4
      %s147 = scalar_lea.vmem %s0, %s146
      %p148 = pneg %p35
      %p149 = pneg %p32
      %p150 = pneg %p56
      %p151 = pneg %p53
      %p152 = pneg %p77
      %p153 = pneg %p74
      %p154 = pneg %p103
      %p155 = pneg %p100
      %p156 = scmp.lt.s32.totalorder %s14, 1
      %s157 = scalar_select %p156, %s14, 1
      %s158 = smul.addr %s157, 4
      %s159 = smul.addr %s158, 2
      %s160 = scalar_lea.vmem %s3, %s159
      %p161 = scmp.lt.s32.totalorder %s14, 1
      %s162 = scalar_select %p161, %s14, 1
      %s163 = smul.addr %s162, 6
      %s164 = smul.addr %s163, 4
      %s165 = scalar_lea.vmem %s0, %s164
      %p166 = scmp.lt.s32.totalorder %s14, 1
      %s167 = scalar_select %p166, %s14, 1
      %s168 = smul.addr %s167, 4
      %s169 = smul.addr %s168, 2
      %s170 = scalar_lea.vmem %s3, %s169
      %v172 = vld [vmem:[%s165] sm:$0xf]
      %v173 = vld [vmem:[%s165 + $0x4] sm:$0xf]
      %v174 = vld [vmem:[%s165 + $0x8] sm:$0xf]
      %v175 = vld [vmem:[%s1] sm:$0xf]
      %v176 = vld [vmem:[%s1 + $0x4] sm:$0xf]
      %v177 = vld [vmem:[%s1 + $0x8] sm:$0xf]
      %v178 = vld [vmem:[%s1 + $0xc] sm:$0xf]
      %v179 = vld [vmem:[%s1 + $0x10] sm:$0xf]
      %v180 = vld [vmem:[%s1 + $0x14] sm:$0xf]
      %v181 = vld [vmem:[%s1 + $0x18] sm:$0xf]
      %v182 = vld [vmem:[%s1 + $0x1c] sm:$0xf]
      %v183 = vld [vmem:[%s1 + $0x20] sm:$0xf]
      %v184 = vld [vmem:[%s1 + $0x24] sm:$0xf]
      %v185 = vld [vmem:[%s1 + $0x28] sm:$0xf]
      %v186 = vld [vmem:[%s1 + $0x2c] sm:$0xf]
      %v187 = vld [vmem:[%s1 + $0x30] sm:$0xf]
      %v188 = vld [vmem:[%s1 + $0x34] sm:$0xf]
      %v189 = vld [vmem:[%s1 + $0x38] sm:$0xf]
      %v190 = vld [vmem:[%s1 + $0x3c] sm:$0xf]
      %v194 = vunpack.c.l.b16 %v172
      %v195 = vunpack.c.l.b16 %v173
      %v196 = vunpack.c.l.b16 %v174
      %v197 = vpack.c.b16 %v195, %v194
      %v198 = vpack.c.b16 %v196, %v196
      %v217 = vunpack.c.l.b16 %v175
      %v218 = vunpack.c.l.b16 %v176
      %v219 = vunpack.c.l.b16 %v177
      %v220 = vunpack.c.l.b16 %v178
      %v221 = vunpack.c.l.b16 %v179
      %v222 = vunpack.c.l.b16 %v180
      %v223 = vunpack.c.l.b16 %v181
      %v224 = vunpack.c.l.b16 %v182
      %v225 = vunpack.c.l.b16 %v183
      %v226 = vunpack.c.l.b16 %v184
      %v227 = vunpack.c.l.b16 %v185
      %v228 = vunpack.c.l.b16 %v186
      %v229 = vunpack.c.l.b16 %v187
      %v230 = vunpack.c.l.b16 %v188
      %v231 = vunpack.c.l.b16 %v189
      %v232 = vunpack.c.l.b16 %v190
      %v233 = vpack.c.b16 %v218, %v217
      %v234 = vpack.c.b16 %v220, %v219
      %v235 = vpack.c.b16 %v222, %v221
      %v236 = vpack.c.b16 %v224, %v223
      %v237 = vpack.c.b16 %v226, %v225
      %v238 = vpack.c.b16 %v228, %v227
      %v239 = vpack.c.b16 %v230, %v229
      %v240 = vpack.c.b16 %v232, %v231
      %249 = vmatprep.subr.bf16.mxu0 0
      %250 = vmatpush1.bf16.msra.mxu0 %v233
      %251 = vmatprep.subr.bf16.mxu0 0
      %252 = vmatpush1.bf16.msra.mxu0 %v234
      %253 = vmatprep.subr.bf16.mxu0 0
      %254 = vmatpush1.bf16.msra.mxu0 %v235
      %255 = vmatprep.subr.bf16.mxu0 0
      %256 = vmatpush1.bf16.msra.mxu0 %v236
      %257 = vmatprep.subr.bf16.mxu0 0
      %258 = vmatpush1.bf16.msra.mxu0 %v237
      %259 = vmatprep.subr.bf16.mxu0 0
      %260 = vmatpush1.bf16.msra.mxu0 %v238
      %261 = vmatprep.subr.bf16.mxu0 0
      %262 = vmatpush1.bf16.msra.mxu0 %v239
      %263 = vmatprep.subr.bf16.mxu0 0
      %264 = vmatpush1.bf16.msra.mxu0 %v240
      %265 = vmatprep.subr.bf16.mxu0 0
      %266 = vmatpush1.bf16.msra.mxu0 0
      %267 = vmatprep.subr.bf16.mxu0 0
      %268 = vmatpush1.bf16.msra.mxu0 0
      %269 = vmatprep.subr.bf16.mxu0 0
      %270 = vmatpush1.bf16.msra.mxu0 0
      %271 = vmatprep.subr.bf16.mxu0 0
      %272 = vmatpush1.bf16.msra.mxu0 0
      %273 = vmatprep.subr.bf16.mxu0 0
      %274 = vmatpush1.bf16.msra.mxu0 0
      %275 = vmatprep.subr.bf16.mxu0 0
      %276 = vmatpush1.bf16.msra.mxu0 0
      %277 = vmatprep.subr.bf16.mxu0 0
      %278 = vmatpush1.bf16.msra.mxu0 0
      %279 = vmatprep.subr.bf16.mxu0 0
      %280 = vmatpush1.bf16.msra.mxu0 0
      %281 = vmatprep.mubr.bf16.mxu0 0
      %282 = vmatmul.mubr.bf16.gmra.mrb[0].mxu0 %v197
      %v283 = vpop.f32.mrb[0].mxu0
      %v284 = vadd.f32 0.0, %v283
      %v285 = vpop.f32.mrb[0].mxu0
      %v286 = vpop.f32.mrb[0].mxu0
      %v287 = vadd.f32 0.0, %v286
      %v288 = vpop.f32.mrb[0].mxu0
      %289 = vmatprep.mubr.bf16.mxu0 0
      %290 = vmatmul.mubr.bf16.gmra.mrb[0].mxu0 %v198
      %v291 = vpop.f32.mrb[0].mxu0
      %v292 = vadd.f32 0.0, %v291
      %v293 = vpop.f32.mrb[0].mxu0
      %v294 = vpop.f32.mrb[0].mxu0
      %v295 = vpop.f32.mrb[0].mxu0
      %296 = vdwg.mxu0
      %297 = vst [vmem:[#allocation2] sm:$0xff] %v284
      %298 = vst [vmem:[#allocation2 + $0x8] sm:$0xff] %v287
      %299 = vst [vmem:[#allocation2 + $0x10] sm:$0xff] %v292
      %v300 = vld [vmem:[%s165] sm:$0xf]
      %v301 = vld [vmem:[%s165 + $0x4] sm:$0xf]
      %v302 = vld [vmem:[%s165 + $0x8] sm:$0xf]
      %v303 = vld [vmem:[%s165 + $0xc] sm:$0x1]
      %s304 = scalar_lea.vmem %s1, 64
      %v305 = vld [vmem:[%s304] sm:$0xf]
      %v306 = vld [vmem:[%s304 + $0x4] sm:$0xf]
      %v307 = vld [vmem:[%s304 + $0x8] sm:$0xf]
      %v308 = vld [vmem:[%s304 + $0xc] sm:$0xf]
      %v309 = vld [vmem:[%s304 + $0x10] sm:$0xf]
      %v310 = vld [vmem:[%s304 + $0x14] sm:$0xf]
      %v311 = vld [vmem:[%s304 + $0x18] sm:$0xf]
      %v312 = vld [vmem:[%s304 + $0x1c] sm:$0xf]
      %v313 = vld [vmem:[%s304 + $0x20] sm:$0xf]
      %v314 = vld [vmem:[%s304 + $0x24] sm:$0xf]
      %v315 = vld [vmem:[%s304 + $0x28] sm:$0xf]
      %v316 = vld [vmem:[%s304 + $0x2c] sm:$0xf]
      %v317 = vld [vmem:[%s304 + $0x30] sm:$0xf]
      %v318 = vld [vmem:[%s304 + $0x34] sm:$0xf]
      %v319 = vld [vmem:[%s304 + $0x38] sm:$0xf]
      %v320 = vld [vmem:[%s304 + $0x3c] sm:$0xf]
      %v325 = vunpack.c.l.b16 %v300
      %v326 = vunpack.c.l.b16 %v301
      %v327 = vunpack.c.l.b16 %v302
      %v328 = vunpack.c.l.b16 %v303
      %v329 = vpack.c.b16 %v326, %v325
      %v330 = vpack.c.b16 %v328, %v327
      %vm331 = vsmask.f32 7424
      %v333 = vshrl.u32 %v329, 16
      %v335 = vshll.u32 %v329, 16
      %v337 = vrot.slane %v335, 1
      %v338 = vor.u32 %v333, %v337
      %v340 = vshll.u32 %v330, 16
      %v342 = vrot.slane %v340, 1
      %v343 = vsel %vm331, %v338, %v342
      %v344 = vshrl.u32 %v330, 16
      %v346 = vor.u32 %v344, %v342
      %v365 = vunpack.c.l.b16 %v305
      %v366 = vunpack.c.l.b16 %v306
      %v367 = vunpack.c.l.b16 %v307
      %v368 = vunpack.c.l.b16 %v308
      %v369 = vunpack.c.l.b16 %v309
      %v370 = vunpack.c.l.b16 %v310
      %v371 = vunpack.c.l.b16 %v311
      %v372 = vunpack.c.l.b16 %v312
      %v373 = vunpack.c.l.b16 %v313
      %v374 = vunpack.c.l.b16 %v314
      %v375 = vunpack.c.l.b16 %v315
      %v376 = vunpack.c.l.b16 %v316
      %v377 = vunpack.c.l.b16 %v317
      %v378 = vunpack.c.l.b16 %v318
      %v379 = vunpack.c.l.b16 %v319
      %v380 = vunpack.c.l.b16 %v320
      %v381 = vpack.c.b16 %v366, %v365
      %v382 = vpack.c.b16 %v368, %v367
      %v383 = vpack.c.b16 %v370, %v369
      %v384 = vpack.c.b16 %v372, %v371
      %v385 = vpack.c.b16 %v374, %v373
      %v386 = vpack.c.b16 %v376, %v375
      %v387 = vpack.c.b16 %v378, %v377
      %v388 = vpack.c.b16 %v380, %v379
      %397 = vmatprep.subr.bf16.mxu0 0
      %398 = vmatpush1.bf16.msra.mxu0 %v381
      %399 = vmatprep.subr.bf16.mxu0 0
      %400 = vmatpush1.bf16.msra.mxu0 %v382
      %401 = vmatprep.subr.bf16.mxu0 0
      %402 = vmatpush1.bf16.msra.mxu0 %v383
      %403 = vmatprep.subr.bf16.mxu0 0
      %404 = vmatpush1.bf16.msra.mxu0 %v384
      %405 = vmatprep.subr.bf16.mxu0 0
      %406 = vmatpush1.bf16.msra.mxu0 %v385
      %407 = vmatprep.subr.bf16.mxu0 0
      %408 = vmatpush1.bf16.msra.mxu0 %v386
      %409 = vmatprep.subr.bf16.mxu0 0
      %410 = vmatpush1.bf16.msra.mxu0 %v387
      %411 = vmatprep.subr.bf16.mxu0 0
      %412 = vmatpush1.bf16.msra.mxu0 %v388
      %413 = vmatprep.subr.bf16.mxu0 0
      %414 = vmatpush1.bf16.msra.mxu0 0
      %415 = vmatprep.subr.bf16.mxu0 0
      %416 = vmatpush1.bf16.msra.mxu0 0
      %417 = vmatprep.subr.bf16.mxu0 0
      %418 = vmatpush1.bf16.msra.mxu0 0
      %419 = vmatprep.subr.bf16.mxu0 0
      %420 = vmatpush1.bf16.msra.mxu0 0
      %421 = vmatprep.subr.bf16.mxu0 0
      %422 = vmatpush1.bf16.msra.mxu0 0
      %423 = vmatprep.subr.bf16.mxu0 0
      %424 = vmatpush1.bf16.msra.mxu0 0
      %425 = vmatprep.subr.bf16.mxu0 0
      %426 = vmatpush1.bf16.msra.mxu0 0
      %427 = vmatprep.subr.bf16.mxu0 0
      %428 = vmatpush1.bf16.msra.mxu0 0
      %429 = vmatprep.mubr.bf16.mxu0 0
      %430 = vmatmul.mubr.bf16.gmra.mrb[0].mxu0 %v343
      %v431 = vpop.f32.mrb[0].mxu0
      %v432 = vadd.f32 0.0, %v431
      %v433 = vpop.f32.mrb[0].mxu0
      %v434 = vpop.f32.mrb[0].mxu0
      %v435 = vadd.f32 0.0, %v434
      %v436 = vpop.f32.mrb[0].mxu0
      %437 = vmatprep.mubr.bf16.mxu0 0
      %438 = vmatmul.mubr.bf16.gmra.mrb[0].mxu0 %v346
      %v439 = vpop.f32.mrb[0].mxu0
      %v440 = vadd.f32 0.0, %v439
      %v441 = vpop.f32.mrb[0].mxu0
      %v442 = vpop.f32.mrb[0].mxu0
      %v443 = vpop.f32.mrb[0].mxu0
      %444 = vdwg.mxu0
      %v445 = vld [vmem:[#allocation2] sm:$0xff]
      %v446 = vld [vmem:[#allocation2 + $0x8] sm:$0xff]
      %v447 = vld [vmem:[#allocation2 + $0x10] sm:$0xff]
      %v448 = vadd.f32 %v445, %v432
      %v449 = vadd.f32 %v446, %v435
      %v450 = vadd.f32 %v447, %v440
      %451 = vst [vmem:[#allocation2] sm:$0xff] %v448
      %452 = vst [vmem:[#allocation2 + $0x8] sm:$0xff] %v449
      %453 = vst [vmem:[#allocation2 + $0x10] sm:$0xff] %v450
      %v454 = vld [vmem:[%s165] sm:$0xe]
      %v455 = vld [vmem:[%s165 + $0x4] sm:$0xf]
      %v456 = vld [vmem:[%s165 + $0x8] sm:$0xf]
      %v457 = vld [vmem:[%s165 + $0xc] sm:$0x1]
      %s458 = scalar_lea.vmem %s1, 128
      %v459 = vld [vmem:[%s458] sm:$0xf]
      %v460 = vld [vmem:[%s458 + $0x4] sm:$0xf]
      %v461 = vld [vmem:[%s458 + $0x8] sm:$0xf]
      %v462 = vld [vmem:[%s458 + $0xc] sm:$0xf]
      %v463 = vld [vmem:[%s458 + $0x10] sm:$0xf]
      %v464 = vld [vmem:[%s458 + $0x14] sm:$0xf]
      %v465 = vld [vmem:[%s458 + $0x18] sm:$0xf]
      %v466 = vld [vmem:[%s458 + $0x1c] sm:$0xf]
      %v467 = vld [vmem:[%s458 + $0x20] sm:$0xf]
      %v468 = vld [vmem:[%s458 + $0x24] sm:$0xf]
      %v469 = vld [vmem:[%s458 + $0x28] sm:$0xf]
      %v470 = vld [vmem:[%s458 + $0x2c] sm:$0xf]
      %v471 = vld [vmem:[%s458 + $0x30] sm:$0xf]
      %v472 = vld [vmem:[%s458 + $0x34] sm:$0xf]
      %v473 = vld [vmem:[%s458 + $0x38] sm:$0xf]
      %v474 = vld [vmem:[%s458 + $0x3c] sm:$0xf]
      %v479 = vunpack.c.l.b16 %v454
      %v480 = vunpack.c.l.b16 %v455
      %v481 = vunpack.c.l.b16 %v456
      %v482 = vunpack.c.l.b16 %v457
      %v483 = vpack.c.b16 %v480, %v479
      %v484 = vpack.c.b16 %v482, %v481
      %vm485 = vcmask 1046528
      %v486 = vrot.slane %v483, 1
      %v487 = vrot.slane %v484, 1
      %v488 = vsel %vm485, %v486, %v487
      %v507 = vunpack.c.l.b16 %v459
      %v508 = vunpack.c.l.b16 %v460
      %v509 = vunpack.c.l.b16 %v461
      %v510 = vunpack.c.l.b16 %v462
      %v511 = vunpack.c.l.b16 %v463
      %v512 = vunpack.c.l.b16 %v464
      %v513 = vunpack.c.l.b16 %v465
      %v514 = vunpack.c.l.b16 %v466
      %v515 = vunpack.c.l.b16 %v467
      %v516 = vunpack.c.l.b16 %v468
      %v517 = vunpack.c.l.b16 %v469
      %v518 = vunpack.c.l.b16 %v470
      %v519 = vunpack.c.l.b16 %v471
      %v520 = vunpack.c.l.b16 %v472
      %v521 = vunpack.c.l.b16 %v473
      %v522 = vunpack.c.l.b16 %v474
      %v523 = vpack.c.b16 %v508, %v507
      %v524 = vpack.c.b16 %v510, %v509
      %v525 = vpack.c.b16 %v512, %v511
      %v526 = vpack.c.b16 %v514, %v513
      %v527 = vpack.c.b16 %v516, %v515
      %v528 = vpack.c.b16 %v518, %v517
      %v529 = vpack.c.b16 %v520, %v519
      %v530 = vpack.c.b16 %v522, %v521
      %539 = vmatprep.subr.bf16.mxu0 0
      %540 = vmatpush1.bf16.msra.mxu0 %v523
      %541 = vmatprep.subr.bf16.mxu0 0
      %542 = vmatpush1.bf16.msra.mxu0 %v524
      %543 = vmatprep.subr.bf16.mxu0 0
      %544 = vmatpush1.bf16.msra.mxu0 %v525
      %545 = vmatprep.subr.bf16.mxu0 0
      %546 = vmatpush1.bf16.msra.mxu0 %v526
      %547 = vmatprep.subr.bf16.mxu0 0
      %548 = vmatpush1.bf16.msra.mxu0 %v527
      %549 = vmatprep.subr.bf16.mxu0 0
      %550 = vmatpush1.bf16.msra.mxu0 %v528
      %551 = vmatprep.subr.bf16.mxu0 0
      %552 = vmatpush1.bf16.msra.mxu0 %v529
      %553 = vmatprep.subr.bf16.mxu0 0
      %554 = vmatpush1.bf16.msra.mxu0 %v530
      %555 = vmatprep.subr.bf16.mxu0 0
      %556 = vmatpush1.bf16.msra.mxu0 0
      %557 = vmatprep.subr.bf16.mxu0 0
      %558 = vmatpush1.bf16.msra.mxu0 0
      %559 = vmatprep.subr.bf16.mxu0 0
      %560 = vmatpush1.bf16.msra.mxu0 0
      %561 = vmatprep.subr.bf16.mxu0 0
      %562 = vmatpush1.bf16.msra.mxu0 0
      %563 = vmatprep.subr.bf16.mxu0 0
      %564 = vmatpush1.bf16.msra.mxu0 0
      %565 = vmatprep.subr.bf16.mxu0 0
      %566 = vmatpush1.bf16.msra.mxu0 0
      %567 = vmatprep.subr.bf16.mxu0 0
      %568 = vmatpush1.bf16.msra.mxu0 0
      %569 = vmatprep.subr.bf16.mxu0 0
      %570 = vmatpush1.bf16.msra.mxu0 0
      %571 = vmatprep.mubr.bf16.mxu0 0
      %572 = vmatmul.mubr.bf16.gmra.mrb[0].mxu0 %v488
      %v573 = vpop.f32.mrb[0].mxu0
      %v574 = vadd.f32 0.0, %v573
      %v575 = vpop.f32.mrb[0].mxu0
      %v576 = vpop.f32.mrb[0].mxu0
      %v577 = vadd.f32 0.0, %v576
      %v578 = vpop.f32.mrb[0].mxu0
      %579 = vmatprep.mubr.bf16.mxu0 0
      %580 = vmatmul.mubr.bf16.gmra.mrb[0].mxu0 %v487
      %v581 = vpop.f32.mrb[0].mxu0
      %v582 = vadd.f32 0.0, %v581
      %v583 = vpop.f32.mrb[0].mxu0
      %v584 = vpop.f32.mrb[0].mxu0
      %v585 = vpop.f32.mrb[0].mxu0
      %586 = vdwg.mxu0
      %v587 = vld [vmem:[#allocation2] sm:$0xff]
      %v588 = vld [vmem:[#allocation2 + $0x8] sm:$0xff]
      %v589 = vld [vmem:[#allocation2 + $0x10] sm:$0xff]
      %v590 = vadd.f32 %v587, %v574
      %v591 = vadd.f32 %v588, %v577
      %v592 = vadd.f32 %v589, %v582
      %593 = vst [vmem:[#allocation2] sm:$0xff] %v590
      %594 = vst [vmem:[#allocation2 + $0x8] sm:$0xff] %v591
      %595 = vst [vmem:[#allocation2 + $0x10] sm:$0xff] %v592
      %v596 = vld [vmem:[%s165] sm:$0x8]
      %v597 = vld [vmem:[%s165 + $0x4] sm:$0xf]
      %v598 = vld [vmem:[%s165 + $0x8] sm:$0xf]
      %v599 = vld [vmem:[%s165 + $0xc] sm:$0x7]
      %s600 = scalar_lea.vmem %s1, 192
      %v601 = vld [vmem:[%s600] sm:$0xf]
      %v602 = vld [vmem:[%s600 + $0x4] sm:$0xf]
      %v603 = vld [vmem:[%s600 + $0x8] sm:$0xf]
      %v604 = vld [vmem:[%s600 + $0xc] sm:$0xf]
      %v605 = vld [vmem:[%s600 + $0x10] sm:$0xf]
      %v606 = vld [vmem:[%s600 + $0x14] sm:$0xf]
      %v607 = vld [vmem:[%s600 + $0x18] sm:$0xf]
      %v608 = vld [vmem:[%s600 + $0x1c] sm:$0xf]
      %v609 = vld [vmem:[%s600 + $0x20] sm:$0xf]
      %v610 = vld [vmem:[%s600 + $0x24] sm:$0xf]
      %v611 = vld [vmem:[%s600 + $0x28] sm:$0xf]
      %v612 = vld [vmem:[%s600 + $0x2c] sm:$0xf]
      %v613 = vld [vmem:[%s600 + $0x30] sm:$0xf]
      %v614 = vld [vmem:[%s600 + $0x34] sm:$0xf]
      %v615 = vld [vmem:[%s600 + $0x38] sm:$0xf]
      %v616 = vld [vmem:[%s600 + $0x3c] sm:$0xf]
      %v621 = vunpack.c.l.b16 %v596
      %v622 = vunpack.c.l.b16 %v597
      %v623 = vunpack.c.l.b16 %v598
      %v624 = vunpack.c.l.b16 %v599
      %v625 = vpack.c.b16 %v622, %v621
      %v626 = vpack.c.b16 %v624, %v623
      %vm627 = vcmask 1044480
      %v628 = vrot.slane %v625, 3
      %v629 = vrot.slane %v626, 3
      %v630 = vsel %vm627, %v628, %v629
      %v649 = vunpack.c.l.b16 %v601
      %v650 = vunpack.c.l.b16 %v602
      %v651 = vunpack.c.l.b16 %v603
      %v652 = vunpack.c.l.b16 %v604
      %v653 = vunpack.c.l.b16 %v605
      %v654 = vunpack.c.l.b16 %v606
      %v655 = vunpack.c.l.b16 %v607
      %v656 = vunpack.c.l.b16 %v608
      %v657 = vunpack.c.l.b16 %v609
      %v658 = vunpack.c.l.b16 %v610
      %v659 = vunpack.c.l.b16 %v611
      %v660 = vunpack.c.l.b16 %v612
      %v661 = vunpack.c.l.b16 %v613
      %v662 = vunpack.c.l.b16 %v614
      %v663 = vunpack.c.l.b16 %v615
      %v664 = vunpack.c.l.b16 %v616
      %v665 = vpack.c.b16 %v650, %v649
      %v666 = vpack.c.b16 %v652, %v651
      %v667 = vpack.c.b16 %v654, %v653
      %v668 = vpack.c.b16 %v656, %v655
      %v669 = vpack.c.b16 %v658, %v657
      %v670 = vpack.c.b16 %v660, %v659
      %v671 = vpack.c.b16 %v662, %v661
      %v672 = vpack.c.b16 %v664, %v663
      %681 = vmatprep.subr.bf16.mxu0 0
      %682 = vmatpush1.bf16.msra.mxu0 %v665
      %683 = vmatprep.subr.bf16.mxu0 0
      %684 = vmatpush1.bf16.msra.mxu0 %v666
      %685 = vmatprep.subr.bf16.mxu0 0
      %686 = vmatpush1.bf16.msra.mxu0 %v667
      %687 = vmatprep.subr.bf16.mxu0 0
      %688 = vmatpush1.bf16.msra.mxu0 %v668
      %689 = vmatprep.subr.bf16.mxu0 0
      %690 = vmatpush1.bf16.msra.mxu0 %v669
      %691 = vmatprep.subr.bf16.mxu0 0
      %692 = vmatpush1.bf16.msra.mxu0 %v670
      %693 = vmatprep.subr.bf16.mxu0 0
      %694 = vmatpush1.bf16.msra.mxu0 %v671
      %695 = vmatprep.subr.bf16.mxu0 0
      %696 = vmatpush1.bf16.msra.mxu0 %v672
      %697 = vmatprep.subr.bf16.mxu0 0
      %698 = vmatpush1.bf16.msra.mxu0 0
      %699 = vmatprep.subr.bf16.mxu0 0
      %700 = vmatpush1.bf16.msra.mxu0 0
      %701 = vmatprep.subr.bf16.mxu0 0
      %702 = vmatpush1.bf16.msra.mxu0 0
      %703 = vmatprep.subr.bf16.mxu0 0
      %704 = vmatpush1.bf16.msra.mxu0 0
      %705 = vmatprep.subr.bf16.mxu0 0
      %706 = vmatpush1.bf16.msra.mxu0 0
      %707 = vmatprep.subr.bf16.mxu0 0
      %708 = vmatpush1.bf16.msra.mxu0 0
      %709 = vmatprep.subr.bf16.mxu0 0
      %710 = vmatpush1.bf16.msra.mxu0 0
      %711 = vmatprep.subr.bf16.mxu0 0
      %712 = vmatpush1.bf16.msra.mxu0 0
      %713 = vmatprep.mubr.bf16.mxu0 0
      %714 = vmatmul.mubr.bf16.gmra.mrb[0].mxu0 %v630
      %v715 = vpop.f32.mrb[0].mxu0
      %v716 = vadd.f32 0.0, %v715
      %v717 = vpop.f32.mrb[0].mxu0
      %v718 = vpop.f32.mrb[0].mxu0
      %v719 = vadd.f32 0.0, %v718
      %v720 = vpop.f32.mrb[0].mxu0
      %721 = vmatprep.mubr.bf16.mxu0 0
      %722 = vmatmul.mubr.bf16.gmra.mrb[0].mxu0 %v629
      %v723 = vpop.f32.mrb[0].mxu0
      %v724 = vadd.f32 0.0, %v723
      %v725 = vpop.f32.mrb[0].mxu0
      %v726 = vpop.f32.mrb[0].mxu0
      %v727 = vpop.f32.mrb[0].mxu0
      %728 = vdwg.mxu0
      %v729 = vld [vmem:[#allocation2] sm:$0xff]
      %v730 = vld [vmem:[#allocation2 + $0x8] sm:$0xff]
      %v731 = vld [vmem:[#allocation2 + $0x10] sm:$0xff]
      %v732 = vadd.f32 %v729, %v716
      %v733 = vadd.f32 %v730, %v719
      %v734 = vadd.f32 %v731, %v724
      %735 = vst [vmem:[#allocation2] sm:$0xff] %v732
      %736 = vst [vmem:[#allocation2 + $0x8] sm:$0xff] %v733
      %737 = vst [vmem:[#allocation2 + $0x10] sm:$0xff] %v734
      %v738 = vld [vmem:[%s165] sm:$0x8]
      %v739 = vld [vmem:[%s165 + $0x4] sm:$0xf]
      %v740 = vld [vmem:[%s165 + $0x8] sm:$0xf]
      %v741 = vld [vmem:[%s165 + $0xc] sm:$0xf]
      %s742 = scalar_lea.vmem %s1, 256
      %v743 = vld [vmem:[%s742] sm:$0xf]
      %v744 = vld [vmem:[%s742 + $0x4] sm:$0xf]
      %v745 = vld [vmem:[%s742 + $0x8] sm:$0xf]
      %v746 = vld [vmem:[%s742 + $0xc] sm:$0xf]
      %v747 = vld [vmem:[%s742 + $0x10] sm:$0xf]
      %v748 = vld [vmem:[%s742 + $0x14] sm:$0xf]
      %v749 = vld [vmem:[%s742 + $0x18] sm:$0xf]
      %v750 = vld [vmem:[%s742 + $0x1c] sm:$0xf]
      %v751 = vld [vmem:[%s742 + $0x20] sm:$0xf]
      %v752 = vld [vmem:[%s742 + $0x24] sm:$0xf]
      %v753 = vld [vmem:[%s742 + $0x28] sm:$0xf]
      %v754 = vld [vmem:[%s742 + $0x2c] sm:$0xf]
      %v755 = vld [vmem:[%s742 + $0x30] sm:$0xf]
      %v756 = vld [vmem:[%s742 + $0x34] sm:$0xf]
      %v757 = vld [vmem:[%s742 + $0x38] sm:$0xf]
      %v758 = vld [vmem:[%s742 + $0x3c] sm:$0xf]
      %v763 = vunpack.c.l.b16 %v738
      %v764 = vunpack.c.l.b16 %v739
      %v765 = vunpack.c.l.b16 %v740
      %v766 = vunpack.c.l.b16 %v741
      %v767 = vpack.c.b16 %v764, %v763
      %v768 = vpack.c.b16 %v766, %v765
      %vm769 = vsmask.f32 4352
      %v771 = vshrl.u32 %v767, 16
      %v773 = vrot.slane %v771, 3
      %v774 = vshll.u32 %v767, 16
      %v776 = vrot.slane %v774, 4
      %v777 = vor.u32 %v773, %v776
      %v779 = vshrl.u32 %v768, 16
      %v781 = vrot.slane %v779, 3
      %v782 = vshll.u32 %v768, 16
      %v784 = vrot.slane %v782, 4
      %v785 = vor.u32 %v781, %v784
      %v786 = vsel %vm769, %v777, %v785
      %v805 = vunpack.c.l.b16 %v743
      %v806 = vunpack.c.l.b16 %v744
      %v807 = vunpack.c.l.b16 %v745
      %v808 = vunpack.c.l.b16 %v746
      %v809 = vunpack.c.l.b16 %v747
      %v810 = vunpack.c.l.b16 %v748
      %v811 = vunpack.c.l.b16 %v749
      %v812 = vunpack.c.l.b16 %v750
      %v813 = vunpack.c.l.b16 %v751
      %v814 = vunpack.c.l.b16 %v752
      %v815 = vunpack.c.l.b16 %v753
      %v816 = vunpack.c.l.b16 %v754
      %v817 = vunpack.c.l.b16 %v755
      %v818 = vunpack.c.l.b16 %v756
      %v819 = vunpack.c.l.b16 %v757
      %v820 = vunpack.c.l.b16 %v758
      %v821 = vpack.c.b16 %v806, %v805
      %v822 = vpack.c.b16 %v808, %v807
      %v823 = vpack.c.b16 %v810, %v809
      %v824 = vpack.c.b16 %v812, %v811
      %v825 = vpack.c.b16 %v814, %v813
      %v826 = vpack.c.b16 %v816, %v815
      %v827 = vpack.c.b16 %v818, %v817
      %v828 = vpack.c.b16 %v820, %v819
      %837 = vmatprep.subr.bf16.mxu0 0
      %838 = vmatpush1.bf16.msra.mxu0 %v821
      %839 = vmatprep.subr.bf16.mxu0 0
      %840 = vmatpush1.bf16.msra.mxu0 %v822
      %841 = vmatprep.subr.bf16.mxu0 0
      %842 = vmatpush1.bf16.msra.mxu0 %v823
      %843 = vmatprep.subr.bf16.mxu0 0
      %844 = vmatpush1.bf16.msra.mxu0 %v824
      %845 = vmatprep.subr.bf16.mxu0 0
      %846 = vmatpush1.bf16.msra.mxu0 %v825
      %847 = vmatprep.subr.bf16.mxu0 0
      %848 = vmatpush1.bf16.msra.mxu0 %v826
      %849 = vmatprep.subr.bf16.mxu0 0
      %850 = vmatpush1.bf16.msra.mxu0 %v827
      %851 = vmatprep.subr.bf16.mxu0 0
      %852 = vmatpush1.bf16.msra.mxu0 %v828
      %853 = vmatprep.subr.bf16.mxu0 0
      %854 = vmatpush1.bf16.msra.mxu0 0
      %855 = vmatprep.subr.bf16.mxu0 0
      %856 = vmatpush1.bf16.msra.mxu0 0
      %857 = vmatprep.subr.bf16.mxu0 0
      %858 = vmatpush1.bf16.msra.mxu0 0
      %859 = vmatprep.subr.bf16.mxu0 0
      %860 = vmatpush1.bf16.msra.mxu0 0
      %861 = vmatprep.subr.bf16.mxu0 0
      %862 = vmatpush1.bf16.msra.mxu0 0
      %863 = vmatprep.subr.bf16.mxu0 0
      %864 = vmatpush1.bf16.msra.mxu0 0
      %865 = vmatprep.subr.bf16.mxu0 0
      %866 = vmatpush1.bf16.msra.mxu0 0
      %867 = vmatprep.subr.bf16.mxu0 0
      %868 = vmatpush1.bf16.msra.mxu0 0
      %869 = vmatprep.mubr.bf16.mxu0 0
      %870 = vmatmul.mubr.bf16.gmra.mrb[0].mxu0 %v786
      %v871 = vpop.f32.mrb[0].mxu0
      %v872 = vadd.f32 0.0, %v871
      %v873 = vpop.f32.mrb[0].mxu0
      %v874 = vpop.f32.mrb[0].mxu0
      %v875 = vadd.f32 0.0, %v874
      %v876 = vpop.f32.mrb[0].mxu0
      %877 = vmatprep.mubr.bf16.mxu0 0
      %878 = vmatmul.mubr.bf16.gmra.mrb[0].mxu0 %v785
      %v879 = vpop.f32.mrb[0].mxu0
      %v880 = vadd.f32 0.0, %v879
      %v881 = vpop.f32.mrb[0].mxu0
      %v882 = vpop.f32.mrb[0].mxu0
      %v883 = vpop.f32.mrb[0].mxu0
      %884 = vdwg.mxu0
      %v885 = vld [vmem:[#allocation2] sm:$0xff]
      %v886 = vld [vmem:[#allocation2 + $0x8] sm:$0xff]
      %v887 = vld [vmem:[#allocation2 + $0x10] sm:$0xff]
      %v888 = vadd.f32 %v885, %v872
      %v889 = vadd.f32 %v886, %v875
      %v890 = vadd.f32 %v887, %v880
      %891 = vst [vmem:[#allocation2] sm:$0xff] %v888
      %892 = vst [vmem:[#allocation2 + $0x8] sm:$0xff] %v889
      %893 = vst [vmem:[#allocation2 + $0x10] sm:$0xff] %v890
      %v894 = vld [vmem:[%s165 + $0x4] sm:$0xf]
      %v895 = vld [vmem:[%s165 + $0x8] sm:$0xf]
      %v896 = vld [vmem:[%s165 + $0xc] sm:$0xf]
      %s897 = scalar_lea.vmem %s1, 320
      %v898 = vld [vmem:[%s897] sm:$0xf]
      %v899 = vld [vmem:[%s897 + $0x4] sm:$0xf]
      %v900 = vld [vmem:[%s897 + $0x8] sm:$0xf]
      %v901 = vld [vmem:[%s897 + $0xc] sm:$0xf]
      %v902 = vld [vmem:[%s897 + $0x10] sm:$0xf]
      %v903 = vld [vmem:[%s897 + $0x14] sm:$0xf]
      %v904 = vld [vmem:[%s897 + $0x18] sm:$0xf]
      %v905 = vld [vmem:[%s897 + $0x1c] sm:$0xf]
      %v906 = vld [vmem:[%s897 + $0x20] sm:$0xf]
      %v907 = vld [vmem:[%s897 + $0x24] sm:$0xf]
      %v908 = vld [vmem:[%s897 + $0x28] sm:$0xf]
      %v909 = vld [vmem:[%s897 + $0x2c] sm:$0xf]
      %v910 = vld [vmem:[%s897 + $0x30] sm:$0xf]
      %v911 = vld [vmem:[%s897 + $0x34] sm:$0xf]
      %v912 = vld [vmem:[%s897 + $0x38] sm:$0xf]
      %v913 = vld [vmem:[%s897 + $0x3c] sm:$0xf]
      %v917 = vunpack.c.l.b16 %v894
      %v918 = vunpack.c.l.b16 %v895
      %v919 = vunpack.c.l.b16 %v896
      %v920 = vpack.c.b16 %v918, %v917
      %v921 = vpack.c.b16 %v919, %v919
      %v940 = vunpack.c.l.b16 %v898
      %v941 = vunpack.c.l.b16 %v899
      %v942 = vunpack.c.l.b16 %v900
      %v943 = vunpack.c.l.b16 %v901
      %v944 = vunpack.c.l.b16 %v902
      %v945 = vunpack.c.l.b16 %v903
      %v946 = vunpack.c.l.b16 %v904
      %v947 = vunpack.c.l.b16 %v905
      %v948 = vunpack.c.l.b16 %v906
      %v949 = vunpack.c.l.b16 %v907
      %v950 = vunpack.c.l.b16 %v908
      %v951 = vunpack.c.l.b16 %v909
      %v952 = vunpack.c.l.b16 %v910
      %v953 = vunpack.c.l.b16 %v911
      %v954 = vunpack.c.l.b16 %v912
      %v955 = vunpack.c.l.b16 %v913
      %v956 = vpack.c.b16 %v941, %v940
      %v957 = vpack.c.b16 %v943, %v942
      %v958 = vpack.c.b16 %v945, %v944
      %v959 = vpack.c.b16 %v947, %v946
      %v960 = vpack.c.b16 %v949, %v948
      %v961 = vpack.c.b16 %v951, %v950
      %v962 = vpack.c.b16 %v953, %v952
      %v963 = vpack.c.b16 %v955, %v954
      %972 = vmatprep.subr.bf16.mxu0 0
      %973 = vmatpush1.bf16.msra.mxu0 %v956
      %974 = vmatprep.subr.bf16.mxu0 0
      %975 = vmatpush1.bf16.msra.mxu0 %v957
      %976 = vmatprep.subr.bf16.mxu0 0
      %977 = vmatpush1.bf16.msra.mxu0 %v958
      %978 = vmatprep.subr.bf16.mxu0 0
      %979 = vmatpush1.bf16.msra.mxu0 %v959
      %980 = vmatprep.subr.bf16.mxu0 0
      %981 = vmatpush1.bf16.msra.mxu0 %v960
      %982 = vmatprep.subr.bf16.mxu0 0
      %983 = vmatpush1.bf16.msra.mxu0 %v961
      %984 = vmatprep.subr.bf16.mxu0 0
      %985 = vmatpush1.bf16.msra.mxu0 %v962
      %986 = vmatprep.subr.bf16.mxu0 0
      %987 = vmatpush1.bf16.msra.mxu0 %v963
      %988 = vmatprep.subr.bf16.mxu0 0
      %989 = vmatpush1.bf16.msra.mxu0 0
      %990 = vmatprep.subr.bf16.mxu0 0
      %991 = vmatpush1.bf16.msra.mxu0 0
      %992 = vmatprep.subr.bf16.mxu0 0
      %993 = vmatpush1.bf16.msra.mxu0 0
      %994 = vmatprep.subr.bf16.mxu0 0
      %995 = vmatpush1.bf16.msra.mxu0 0
      %996 = vmatprep.subr.bf16.mxu0 0
      %997 = vmatpush1.bf16.msra.mxu0 0
      %998 = vmatprep.subr.bf16.mxu0 0
      %999 = vmatpush1.bf16.msra.mxu0 0
      %1000 = vmatprep.subr.bf16.mxu0 0
      %1001 = vmatpush1.bf16.msra.mxu0 0
      %1002 = vmatprep.subr.bf16.mxu0 0
      %1003 = vmatpush1.bf16.msra.mxu0 0
      %1004 = vmatprep.mubr.bf16.mxu0 0
      %1005 = vmatmul.mubr.bf16.gmra.mrb[0].mxu0 %v920
      %v1006 = vpop.f32.mrb[0].mxu0
      %v1007 = vadd.f32 0.0, %v1006
      %v1008 = vpop.f32.mrb[0].mxu0
      %v1009 = vpop.f32.mrb[0].mxu0
      %v1010 = vadd.f32 0.0, %v1009
      %v1011 = vpop.f32.mrb[0].mxu0
      %1012 = vmatprep.mubr.bf16.mxu0 0
      %1013 = vmatmul.mubr.bf16.gmra.mrb[0].mxu0 %v921
      %v1014 = vpop.f32.mrb[0].mxu0
      %v1015 = vadd.f32 0.0, %v1014
      %v1016 = vpop.f32.mrb[0].mxu0
      %v1017 = vpop.f32.mrb[0].mxu0
      %v1018 = vpop.f32.mrb[0].mxu0
      %1019 = vdwg.mxu0
      %v1020 = vld [vmem:[#allocation2] sm:$0xff]
      %v1021 = vld [vmem:[#allocation2 + $0x8] sm:$0xff]
      %v1022 = vld [vmem:[#allocation2 + $0x10] sm:$0xff]
      %v1023 = vadd.f32 %v1020, %v1007
      %v1024 = vadd.f32 %v1021, %v1010
      %v1025 = vadd.f32 %v1022, %v1015
      %1026 = vst [vmem:[#allocation2] sm:$0xff] %v1023
      %1027 = vst [vmem:[#allocation2 + $0x8] sm:$0xff] %v1024
      %1028 = vst [vmem:[#allocation2 + $0x10] sm:$0xff] %v1025
      %v1029 = vld [vmem:[%s165 + $0x4] sm:$0xc]
      %v1030 = vld [vmem:[%s165 + $0x8] sm:$0xf]
      %v1031 = vld [vmem:[%s165 + $0xc] sm:$0xf]
      %v1032 = vld [vmem:[%s165 + $0x10] sm:$0x3]
      %s1033 = scalar_lea.vmem %s1, 384
      %v1034 = vld [vmem:[%s1033] sm:$0xf]
      %v1035 = vld [vmem:[%s1033 + $0x4] sm:$0xf]
      %v1036 = vld [vmem:[%s1033 + $0x8] sm:$0xf]
      %v1037 = vld [vmem:[%s1033 + $0xc] sm:$0xf]
      %v1038 = vld [vmem:[%s1033 + $0x10] sm:$0xf]
      %v1039 = vld [vmem:[%s1033 + $0x14] sm:$0xf]
      %v1040 = vld [vmem:[%s1033 + $0x18] sm:$0xf]
      %v1041 = vld [vmem:[%s1033 + $0x1c] sm:$0xf]
      %v1042 = vld [vmem:[%s1033 + $0x20] sm:$0xf]
      %v1043 = vld [vmem:[%s1033 + $0x24] sm:$0xf]
      %v1044 = vld [vmem:[%s1033 + $0x28] sm:$0xf]
      %v1045 = vld [vmem:[%s1033 + $0x2c] sm:$0xf]
      %v1046 = vld [vmem:[%s1033 + $0x30] sm:$0xf]
      %v1047 = vld [vmem:[%s1033 + $0x34] sm:$0xf]
      %v1048 = vld [vmem:[%s1033 + $0x38] sm:$0xf]
      %v1049 = vld [vmem:[%s1033 + $0x3c] sm:$0xf]
      %v1054 = vunpack.c.l.b16 %v1029
      %v1055 = vunpack.c.l.b16 %v1030
      %v1056 = vunpack.c.l.b16 %v1031
      %v1057 = vunpack.c.l.b16 %v1032
      %v1058 = vpack.c.b16 %v1055, %v1054
      %v1059 = vpack.c.b16 %v1057, %v1056
      %vm1060 = vcmask 1045504
      %v1061 = vrot.slane %v1058, 2
      %v1062 = vrot.slane %v1059, 2
      %v1063 = vsel %vm1060, %v1061, %v1062
      %v1082 = vunpack.c.l.b16 %v1034
      %v1083 = vunpack.c.l.b16 %v1035
      %v1084 = vunpack.c.l.b16 %v1036
      %v1085 = vunpack.c.l.b16 %v1037
      %v1086 = vunpack.c.l.b16 %v1038
      %v1087 = vunpack.c.l.b16 %v1039
      %v1088 = vunpack.c.l.b16 %v1040
      %v1089 = vunpack.c.l.b16 %v1041
      %v1090 = vunpack.c.l.b16 %v1042
      %v1091 = vunpack.c.l.b16 %v1043
      %v1092 = vunpack.c.l.b16 %v1044
      %v1093 = vunpack.c.l.b16 %v1045
      %v1094 = vunpack.c.l.b16 %v1046
      %v1095 = vunpack.c.l.b16 %v1047
      %v1096 = vunpack.c.l.b16 %v1048
      %v1097 = vunpack.c.l.b16 %v1049
      %v1098 = vpack.c.b16 %v1083, %v1082
      %v1099 = vpack.c.b16 %v1085, %v1084
      %v1100 = vpack.c.b16 %v1087, %v1086
      %v1101 = vpack.c.b16 %v1089, %v1088
      %v1102 = vpack.c.b16 %v1091, %v1090
      %v1103 = vpack.c.b16 %v1093, %v1092
      %v1104 = vpack.c.b16 %v1095, %v1094
      %v1105 = vpack.c.b16 %v1097, %v1096
      %1114 = vmatprep.subr.bf16.mxu0 0
      %1115 = vmatpush1.bf16.msra.mxu0 %v1098
      %1116 = vmatprep.subr.bf16.mxu0 0
      %1117 = vmatpush1.bf16.msra.mxu0 %v1099
      %1118 = vmatprep.subr.bf16.mxu0 0
      %1119 = vmatpush1.bf16.msra.mxu0 %v1100
      %1120 = vmatprep.subr.bf16.mxu0 0
      %1121 = vmatpush1.bf16.msra.mxu0 %v1101
      %1122 = vmatprep.subr.bf16.mxu0 0
      %1123 = vmatpush1.bf16.msra.mxu0 %v1102
      %1124 = vmatprep.subr.bf16.mxu0 0
      %1125 = vmatpush1.bf16.msra.mxu0 %v1103
      %1126 = vmatprep.subr.bf16.mxu0 0
      %1127 = vmatpush1.bf16.msra.mxu0 %v1104
      %1128 = vmatprep.subr.bf16.mxu0 0
      %1129 = vmatpush1.bf16.msra.mxu0 %v1105
      %1130 = vmatprep.subr.bf16.mxu0 0
      %1131 = vmatpush1.bf16.msra.mxu0 0
      %1132 = vmatprep.subr.bf16.mxu0 0
      %1133 = vmatpush1.bf16.msra.mxu0 0
      %1134 = vmatprep.subr.bf16.mxu0 0
      %1135 = vmatpush1.bf16.msra.mxu0 0
      %1136 = vmatprep.subr.bf16.mxu0 0
      %1137 = vmatpush1.bf16.msra.mxu0 0
      %1138 = vmatprep.subr.bf16.mxu0 0
      %1139 = vmatpush1.bf16.msra.mxu0 0
      %1140 = vmatprep.subr.bf16.mxu0 0
      %1141 = vmatpush1.bf16.msra.mxu0 0
      %1142 = vmatprep.subr.bf16.mxu0 0
      %1143 = vmatpush1.bf16.msra.mxu0 0
      %1144 = vmatprep.subr.bf16.mxu0 0
      %1145 = vmatpush1.bf16.msra.mxu0 0
      %1146 = vmatprep.mubr.bf16.mxu0 0
      %1147 = vmatmul.mubr.bf16.gmra.mrb[0].mxu0 %v1063
      %v1148 = vpop.f32.mrb[0].mxu0
      %v1149 = vadd.f32 0.0, %v1148
      %v1150 = vpop.f32.mrb[0].mxu0
      %v1151 = vpop.f32.mrb[0].mxu0
      %v1152 = vadd.f32 0.0, %v1151
      %v1153 = vpop.f32.mrb[0].mxu0
      %1154 = vmatprep.mubr.bf16.mxu0 0
      %1155 = vmatmul.mubr.bf16.gmra.mrb[0].mxu0 %v1062
      %v1156 = vpop.f32.mrb[0].mxu0
      %v1157 = vadd.f32 0.0, %v1156
      %v1158 = vpop.f32.mrb[0].mxu0
      %v1159 = vpop.f32.mrb[0].mxu0
      %v1160 = vpop.f32.mrb[0].mxu0
      %1161 = vdwg.mxu0
      %v1162 = vld [vmem:[#allocation2] sm:$0xff]
      %v1163 = vld [vmem:[#allocation2 + $0x8] sm:$0xff]
      %v1164 = vld [vmem:[#allocation2 + $0x10] sm:$0xff]
      %v1165 = vadd.f32 %v1162, %v1149
      %v1166 = vadd.f32 %v1163, %v1152
      %v1167 = vadd.f32 %v1164, %v1157
      %1168 = vst [vmem:[#allocation2] sm:$0xff] %v1165
      %1169 = vst [vmem:[#allocation2 + $0x8] sm:$0xff] %v1166
      %1170 = vst [vmem:[#allocation2 + $0x10] sm:$0xff] %v1167
      %v1171 = vld [vmem:[%s165 + $0x4] sm:$0xc]
      %v1172 = vld [vmem:[%s165 + $0x8] sm:$0xf]
      %v1173 = vld [vmem:[%s165 + $0xc] sm:$0xf]
      %v1174 = vld [vmem:[%s165 + $0x10] sm:$0x7]
      %s1175 = scalar_lea.vmem %s1, 448
      %v1176 = vld [vmem:[%s1175] sm:$0xf]
      %v1177 = vld [vmem:[%s1175 + $0x4] sm:$0xf]
      %v1178 = vld [vmem:[%s1175 + $0x8] sm:$0xf]
      %v1179 = vld [vmem:[%s1175 + $0xc] sm:$0xf]
      %v1180 = vld [vmem:[%s1175 + $0x10] sm:$0xf]
      %v1181 = vld [vmem:[%s1175 + $0x14] sm:$0xf]
      %v1182 = vld [vmem:[%s1175 + $0x18] sm:$0xf]
      %v1183 = vld [vmem:[%s1175 + $0x1c] sm:$0xf]
      %v1184 = vld [vmem:[%s1175 + $0x20] sm:$0xf]
      %v1185 = vld [vmem:[%s1175 + $0x24] sm:$0xf]
      %v1186 = vld [vmem:[%s1175 + $0x28] sm:$0xf]
      %v1187 = vld [vmem:[%s1175 + $0x2c] sm:$0xf]
      %v1188 = vld [vmem:[%s1175 + $0x30] sm:$0xf]
      %v1189 = vld [vmem:[%s1175 + $0x34] sm:$0xf]
      %v1190 = vld [vmem:[%s1175 + $0x38] sm:$0xf]
      %v1191 = vld [vmem:[%s1175 + $0x3c] sm:$0xf]
      %v1196 = vunpack.c.l.b16 %v1171
      %v1197 = vunpack.c.l.b16 %v1172
      %v1198 = vunpack.c.l.b16 %v1173
      %v1199 = vunpack.c.l.b16 %v1174
      %v1200 = vpack.c.b16 %v1197, %v1196
      %v1201 = vpack.c.b16 %v1199, %v1198
      %vm1202 = vsmask.f32 5376
      %v1204 = vshrl.u32 %v1200, 16
      %v1206 = vrot.slane %v1204, 2
      %v1207 = vshll.u32 %v1200, 16
      %v1209 = vrot.slane %v1207, 3
      %v1210 = vor.u32 %v1206, %v1209
      %v1212 = vshrl.u32 %v1201, 16
      %v1214 = vrot.slane %v1212, 2
      %v1215 = vshll.u32 %v1201, 16
      %v1217 = vrot.slane %v1215, 3
      %v1218 = vor.u32 %v1214, %v1217
      %v1219 = vsel %vm1202, %v1210, %v1218
      %v1238 = vunpack.c.l.b16 %v1176
      %v1239 = vunpack.c.l.b16 %v1177
      %v1240 = vunpack.c.l.b16 %v1178
      %v1241 = vunpack.c.l.b16 %v1179
      %v1242 = vunpack.c.l.b16 %v1180
      %v1243 = vunpack.c.l.b16 %v1181
      %v1244 = vunpack.c.l.b16 %v1182
      %v1245 = vunpack.c.l.b16 %v1183
      %v1246 = vunpack.c.l.b16 %v1184
      %v1247 = vunpack.c.l.b16 %v1185
      %v1248 = vunpack.c.l.b16 %v1186
      %v1249 = vunpack.c.l.b16 %v1187
      %v1250 = vunpack.c.l.b16 %v1188
      %v1251 = vunpack.c.l.b16 %v1189
      %v1252 = vunpack.c.l.b16 %v1190
      %v1253 = vunpack.c.l.b16 %v1191
      %v1254 = vpack.c.b16 %v1239, %v1238
      %v1255 = vpack.c.b16 %v1241, %v1240
      %v1256 = vpack.c.b16 %v1243, %v1242
      %v1257 = vpack.c.b16 %v1245, %v1244
      %v1258 = vpack.c.b16 %v1247, %v1246
      %v1259 = vpack.c.b16 %v1249, %v1248
      %v1260 = vpack.c.b16 %v1251, %v1250
      %v1261 = vpack.c.b16 %v1253, %v1252
      %1270 = vmatprep.subr.bf16.mxu0 0
      %1271 = vmatpush1.bf16.msra.mxu0 %v1254
      %1272 = vmatprep.subr.bf16.mxu0 0
      %1273 = vmatpush1.bf16.msra.mxu0 %v1255
      %1274 = vmatprep.subr.bf16.mxu0 0
      %1275 = vmatpush1.bf16.msra.mxu0 %v1256
      %1276 = vmatprep.subr.bf16.mxu0 0
      %1277 = vmatpush1.bf16.msra.mxu0 %v1257
      %1278 = vmatprep.subr.bf16.mxu0 0
      %1279 = vmatpush1.bf16.msra.mxu0 %v1258
      %1280 = vmatprep.subr.bf16.mxu0 0
      %1281 = vmatpush1.bf16.msra.mxu0 %v1259
      %1282 = vmatprep.subr.bf16.mxu0 0
      %1283 = vmatpush1.bf16.msra.mxu0 %v1260
      %1284 = vmatprep.subr.bf16.mxu0 0
      %1285 = vmatpush1.bf16.msra.mxu0 %v1261
      %1286 = vmatprep.subr.bf16.mxu0 0
      %1287 = vmatpush1.bf16.msra.mxu0 0
      %1288 = vmatprep.subr.bf16.mxu0 0
      %1289 = vmatpush1.bf16.msra.mxu0 0
      %1290 = vmatprep.subr.bf16.mxu0 0
      %1291 = vmatpush1.bf16.msra.mxu0 0
      %1292 = vmatprep.subr.bf16.mxu0 0
      %1293 = vmatpush1.bf16.msra.mxu0 0
      %1294 = vmatprep.subr.bf16.mxu0 0
      %1295 = vmatpush1.bf16.msra.mxu0 0
      %1296 = vmatprep.subr.bf16.mxu0 0
      %1297 = vmatpush1.bf16.msra.mxu0 0
      %1298 = vmatprep.subr.bf16.mxu0 0
      %1299 = vmatpush1.bf16.msra.mxu0 0
      %1300 = vmatprep.subr.bf16.mxu0 0
      %1301 = vmatpush1.bf16.msra.mxu0 0
      %1302 = vmatprep.mubr.bf16.mxu0 0
      %1303 = vmatmul.mubr.bf16.gmra.mrb[0].mxu0 %v1219
      %v1304 = vpop.f32.mrb[0].mxu0
      %v1305 = vadd.f32 0.0, %v1304
      %v1306 = vpop.f32.mrb[0].mxu0
      %v1307 = vpop.f32.mrb[0].mxu0
      %v1308 = vadd.f32 0.0, %v1307
      %v1309 = vpop.f32.mrb[0].mxu0
      %1310 = vmatprep.mubr.bf16.mxu0 0
      %1311 = vmatmul.mubr.bf16.gmra.mrb[0].mxu0 %v1218
      %v1312 = vpop.f32.mrb[0].mxu0
      %v1313 = vadd.f32 0.0, %v1312
      %v1314 = vpop.f32.mrb[0].mxu0
      %v1315 = vpop.f32.mrb[0].mxu0
      %v1316 = vpop.f32.mrb[0].mxu0
      %1317 = vdwg.mxu0
      %v1318 = vld [vmem:[#allocation2] sm:$0xff]
      %v1319 = vld [vmem:[#allocation2 + $0x8] sm:$0xff]
      %v1320 = vld [vmem:[#allocation2 + $0x10] sm:$0xff]
      %v1321 = vadd.f32 %v1318, %v1305
      %v1322 = vadd.f32 %v1319, %v1308
      %v1323 = vadd.f32 %v1320, %v1313
      %1324 = vst [vmem:[#allocation2] sm:$0xff] %v1321
      %1325 = vst [vmem:[#allocation2 + $0x8] sm:$0xff] %v1322
      %1326 = vst [vmem:[#allocation2 + $0x10] sm:$0xff] %v1323
      %v1327 = vld [vmem:[%s165 + $0x4] sm:$0x8]
      %v1328 = vld [vmem:[%s165 + $0x8] sm:$0xf]
      %v1329 = vld [vmem:[%s165 + $0xc] sm:$0xf]
      %v1330 = vld [vmem:[%s165 + $0x10] sm:$0x7]
      %s1331 = scalar_lea.vmem %s1, 512
      %v1332 = vld [vmem:[%s1331] sm:$0xf]
      %v1333 = vld [vmem:[%s1331 + $0x4] sm:$0xf]
      %v1334 = vld [vmem:[%s1331 + $0x8] sm:$0xf]
      %v1335 = vld [vmem:[%s1331 + $0xc] sm:$0xf]
      %v1336 = vld [vmem:[%s1331 + $0x10] sm:$0xf]
      %v1337 = vld [vmem:[%s1331 + $0x14] sm:$0xf]
      %v1338 = vld [vmem:[%s1331 + $0x18] sm:$0xf]
      %v1339 = vld [vmem:[%s1331 + $0x1c] sm:$0xf]
      %v1340 = vld [vmem:[%s1331 + $0x20] sm:$0xf]
      %v1341 = vld [vmem:[%s1331 + $0x24] sm:$0xf]
      %v1342 = vld [vmem:[%s1331 + $0x28] sm:$0xf]
      %v1343 = vld [vmem:[%s1331 + $0x2c] sm:$0xf]
      %v1344 = vld [vmem:[%s1331 + $0x30] sm:$0xf]
      %v1345 = vld [vmem:[%s1331 + $0x34] sm:$0xf]
      %v1346 = vld [vmem:[%s1331 + $0x38] sm:$0xf]
      %v1347 = vld [vmem:[%s1331 + $0x3c] sm:$0xf]
      %v1352 = vunpack.c.l.b16 %v1327
      %v1353 = vunpack.c.l.b16 %v1328
      %v1354 = vunpack.c.l.b16 %v1329
      %v1355 = vunpack.c.l.b16 %v1330
      %v1356 = vpack.c.b16 %v1353, %v1352
      %v1357 = vpack.c.b16 %v1355, %v1354
      %v1358 = vrot.slane %v1356, 3
      %v1359 = vrot.slane %v1357, 3
      %v1360 = vsel %vm627, %v1358, %v1359
      %v1379 = vunpack.c.l.b16 %v1332
      %v1380 = vunpack.c.l.b16 %v1333
      %v1381 = vunpack.c.l.b16 %v1334
      %v1382 = vunpack.c.l.b16 %v1335
      %v1383 = vunpack.c.l.b16 %v1336
      %v1384 = vunpack.c.l.b16 %v1337
      %v1385 = vunpack.c.l.b16 %v1338
      %v1386 = vunpack.c.l.b16 %v1339
      %v1387 = vunpack.c.l.b16 %v1340
      %v1388 = vunpack.c.l.b16 %v1341
      %v1389 = vunpack.c.l.b16 %v1342
      %v1390 = vunpack.c.l.b16 %v1343
      %v1391 = vunpack.c.l.b16 %v1344
      %v1392 = vunpack.c.l.b16 %v1345
      %v1393 = vunpack.c.l.b16 %v1346
      %v1394 = vunpack.c.l.b16 %v1347
      %v1395 = vpack.c.b16 %v1380, %v1379
      %v1396 = vpack.c.b16 %v1382, %v1381
      %v1397 = vpack.c.b16 %v1384, %v1383
      %v1398 = vpack.c.b16 %v1386, %v1385
      %v1399 = vpack.c.b16 %v1388, %v1387
      %v1400 = vpack.c.b16 %v1390, %v1389
      %v1401 = vpack.c.b16 %v1392, %v1391
      %v1402 = vpack.c.b16 %v1394, %v1393
      %1411 = vmatprep.subr.bf16.mxu0 0
      %1412 = vmatpush1.bf16.msra.mxu0 %v1395
      %1413 = vmatprep.subr.bf16.mxu0 0
      %1414 = vmatpush1.bf16.msra.mxu0 %v1396
      %1415 = vmatprep.subr.bf16.mxu0 0
      %1416 = vmatpush1.bf16.msra.mxu0 %v1397
      %1417 = vmatprep.subr.bf16.mxu0 0
      %1418 = vmatpush1.bf16.msra.mxu0 %v1398
      %1419 = vmatprep.subr.bf16.mxu0 0
      %1420 = vmatpush1.bf16.msra.mxu0 %v1399
      %1421 = vmatprep.subr.bf16.mxu0 0
      %1422 = vmatpush1.bf16.msra.mxu0 %v1400
      %1423 = vmatprep.subr.bf16.mxu0 0
      %1424 = vmatpush1.bf16.msra.mxu0 %v1401
      %1425 = vmatprep.subr.bf16.mxu0 0
      %1426 = vmatpush1.bf16.msra.mxu0 %v1402
      %1427 = vmatprep.subr.bf16.mxu0 0
      %1428 = vmatpush1.bf16.msra.mxu0 0
      %1429 = vmatprep.subr.bf16.mxu0 0
      %1430 = vmatpush1.bf16.msra.mxu0 0
      %1431 = vmatprep.subr.bf16.mxu0 0
      %1432 = vmatpush1.bf16.msra.mxu0 0
      %1433 = vmatprep.subr.bf16.mxu0 0
      %1434 = vmatpush1.bf16.msra.mxu0 0
      %1435 = vmatprep.subr.bf16.mxu0 0
      %1436 = vmatpush1.bf16.msra.mxu0 0
      %1437 = vmatprep.subr.bf16.mxu0 0
      %1438 = vmatpush1.bf16.msra.mxu0 0
      %1439 = vmatprep.subr.bf16.mxu0 0
      %1440 = vmatpush1.bf16.msra.mxu0 0
      %1441 = vmatprep.subr.bf16.mxu0 0
      %1442 = vmatpush1.bf16.msra.mxu0 0
      %1443 = vmatprep.mubr.bf16.mxu0 0
      %1444 = vmatmul.mubr.bf16.gmra.mrb[0].mxu0 %v1360
      %v1445 = vpop.f32.mrb[0].mxu0
      %v1446 = vadd.f32 0.0, %v1445
      %v1447 = vpop.f32.mrb[0].mxu0
      %v1448 = vpop.f32.mrb[0].mxu0
      %v1449 = vadd.f32 0.0, %v1448
      %v1450 = vpop.f32.mrb[0].mxu0
      %1451 = vmatprep.mubr.bf16.mxu0 0
      %1452 = vmatmul.mubr.bf16.gmra.mrb[0].mxu0 %v1359
      %v1453 = vpop.f32.mrb[0].mxu0
      %v1454 = vadd.f32 0.0, %v1453
      %v1455 = vpop.f32.mrb[0].mxu0
      %v1456 = vpop.f32.mrb[0].mxu0
      %v1457 = vpop.f32.mrb[0].mxu0
      %1458 = vdwg.mxu0
      %v1459 = vld [vmem:[#allocation2] sm:$0xff]
      %v1460 = vld [vmem:[#allocation2 + $0x8] sm:$0xff]
      %v1461 = vld [vmem:[#allocation2 + $0x10] sm:$0xff]
      %v1462 = vadd.f32 %v1459, %v1446
      %v1463 = vadd.f32 %v1460, %v1449
      %v1464 = vadd.f32 %v1461, %v1454
      %1465 = vst [vmem:[#allocation2] sm:$0xff] %v1462
      %1466 = vst [vmem:[#allocation2 + $0x8] sm:$0xff] %v1463
      %1467 = vst [vmem:[#allocation2 + $0x10] sm:$0xff] %v1464
      %v1468 = vld [vmem:[#allocation2] sm:$0xff]
      %v1469 = vld [vmem:[#allocation2 + $0x8] sm:$0xff]
      %v1470 = vld [vmem:[#allocation2 + $0x10] sm:$0xff]
      %v1471 = vld [vmem:[%s2] sm:$0x1]
      %v1473 = vlaneseq
      %v1474 = vshrl.u32 %v1473, 7
      %v1475 = vsub.s32 0, %v1474
      %v1476 = vrot.slane %v1471, %v1475
      %v1478 = vadd.f32 %v1468, %v1476
      %v1479 = vadd.f32 %v1469, %v1476
      %v1480 = vadd.f32 %v1470, %v1476
      %v1481 = vmax.f32 %v1478, 0.0
      %v1482 = vmax.f32 %v1479, 0.0
      %v1483 = vmax.f32 %v1480, 0.0
      %v1484 = vpack.c.bf16 %v1482, %v1481
      %v1485 = vpack.c.bf16 %v1483, %v1483
      %1486 = vst [vmem:[%s170] sm:$0x3] %v1484
      %v1488 = vcombine.high %v1484, %v1484
      %v1490 = vunpack.c.l.s4 1983009808
      %v1491 = vunpack.c.0.s8 %v1490
      %v1492 = vlaneseq
      %v1493 = vshrl.u32 %v1492, 7
      %v1494 = vsub.s32 %v1491, %v1493
      %v1495 = vrot.slane %v1484, %v1494
      %v1497 = vunpack.c.l.s4 1983009808
      %v1498 = vunpack.c.0.s8 %v1497
      %v1499 = vlaneseq
      %v1500 = vshrl.u32 %v1499, 7
      %v1501 = vsub.s32 %v1498, %v1500
      %v1502 = vrot.slane %v1488, %v1501
      %v1503 = vcombine.high %v1495, %v1495
      %vm1504 = vcmask 1040384
      %vm1505 = vcmask 1042434
      %vm1506 = vmor %vm1504, %vm1505
      %vm1507 = vcmask 1044484
      %vm1508 = vmor %vm1506, %vm1507
      %vm1509 = vcmask 1046534
      %vm1510 = vmor %vm1508, %vm1509
      %v1511 = vrot.slane %v1503, 7
      %v1512 = vrot.slane %v1511, 2
      %v1513 = vrot.slane %v1502, 7
      %v1514 = vsel %vm1510, %v1512, %v1513
      %s1516 = scalar_lea.vmem %s170, 2
      %1517 = vst [vmem:[%s1516] sm:$0x3] %v1514
      %v1518 = vcombine.high %v1502, %v1502
      %s1520 = scalar_lea.vmem %s170, 4
      %1521 = vst [vmem:[%s1520] sm:$0x3] %v1518
      %v1524 = vunpack.c.l.s4 1983009808
      %v1525 = vunpack.c.0.s8 %v1524
      %v1526 = vlaneseq
      %v1527 = vshrl.u32 %v1526, 7
      %v1528 = vsub.s32 %v1525, %v1527
      %v1529 = vrot.slane %v1485, %v1528
      %v1530 = vcombine.high %v1529, %v1529
      %v1531 = vrot.slane %v1529, 7
      %v1532 = vrot.slane %v1531, 2
      %v1533 = vrot.slane %v1530, 7
      %v1534 = vsel %vm1510, %v1532, %v1533
      %s1536 = scalar_lea.vmem %s170, 6
      %1537 = vst [vmem:[%s1536] sm:$0x3] %v1534
      %p1538 = scmp.lt.s32.totalorder %s14, 1
      %s1539 = scalar_select %p1538, %s14, 1
      %s1540 = smul.addr %s1539, 4
      %s1541 = smul.addr %s1540, 2
      %s1542 = scalar_lea.vmem %s3, %s1541
      // Predicated region
      $region33: #{_lambda_.13} parent=31 // pred_check
        %p1543 = pneg %p100
      $region34: #{_lambda_.13} parent=31 // pred_check_branch
        %1545 = sbr.rel (%p1543) target = $region36
      $region35: #{_lambda_.13} parent=31 // pred_region
        _
      $region36: #{_lambda_.13} parent=31 // pred_fallthru
        _
    $region32: #{_lambda_.13} parent=5 // pred_fallthru
      _
    %p1546 = scmp.le.s32.totalorder 2, %s9
    // Predicated region
    $region37: #{_lambda_.13} parent=5 // pred_check
      %p1547 = pneg %p1546
    $region38: #{_lambda_.13} parent=5 // pred_check_branch
      %1549 = sbr.rel (%p1547) target = $region40
    $region39: #{_lambda_.13} parent=5 // pred_region
      %s1550 = ssub.s32 %s9, 2
      // Predicated region
      $region41: #{_lambda_.13} parent=39 // pred_check
        %p1551 = pneg %p106
      $region42: #{_lambda_.13} parent=39 // pred_check_branch
        %1553 = sbr.rel (%p1551) target = $region44
      $region43: #{_lambda_.13} parent=39 // pred_region
        %p1554 = scmp.lt.s32.totalorder %s15, 1
        %s1555 = scalar_select %p1554, %s15, 1
        %s1556 = smul.addr %s1555, 4
        %s1557 = smul.addr %s1556, 2
        %s1558 = scalar_lea.vmem %s3, %s1557
      $region44: #{_lambda_.13} parent=39 // pred_fallthru
        _
    $region40: #{_lambda_.13} parent=5 // pred_fallthru
      _
  $region6: #{_lambda_.13} parent=0 // loop_footer
    %s13 = sadd.s32 1, %s9
  $region7: #{_lambda_.13} parent=0 // loop_footer_branch
    %8 = sbr.rel target = $region3
  $region8: #{_lambda_.13} parent=0 // loop_exit
    _

// kernel: _lambda_.15
$region0: #{_lambda_.15}
  #allocation0 [shape = 'u32[]', space=smem, size = 0x4, offset = 0x4, fixed_abs, tag = 'smem constant byte address 0x4 - core index']
  #allocation1 [shape = 'u32[144,128]{1,0:T(1,128)}', space=vmem, size = 0x12000, scoped, tag = 'internal scratch']
  %s0 = inlined_call_operand.vmem [shape: bf16[2,512], index: 0, kind: input, shape index: {}]
  %s1 = inlined_call_operand.vmem [shape: bf16[512,128], index: 1, kind: input, shape index: {}]
  %s2 = inlined_call_operand.vmem [shape: f32[1,128], index: 2, kind: input, shape index: {}]
  %s3 = inlined_call_operand.vmem [shape: bf16[2,128], index: 3, kind: output, shape index: {}]
  %s4 = sld [smem:[#allocation0]]
  $region22: #{_lambda_.15} parent=0
    _
  %s6 = ssub.s32 1, %s4
  %s7 = scalar_select 0, %s6, %s4
  // Predicated region
  $region2: #{_lambda_.15} parent=0 // pred_check
    _
  $region3: #{_lambda_.15} parent=0 // pred_check_branch
    %9 = sbr.rel (0) target = $region5
  $region4: #{_lambda_.15} parent=0 // pred_region
    _
  $region5: #{_lambda_.15} parent=0 // pred_fallthru
    _
  // Predicated region
  $region6: #{_lambda_.15} parent=0 // pred_check
    _
  $region7: #{_lambda_.15} parent=0 // pred_check_branch
    %11 = sbr.rel (0) target = $region9
  $region8: #{_lambda_.15} parent=0 // pred_region
    _
  $region9: #{_lambda_.15} parent=0 // pred_fallthru
    _
  // Predicated region
  $region10: #{_lambda_.15} parent=0 // pred_check
    _
  $region11: #{_lambda_.15} parent=0 // pred_check_branch
    %13 = sbr.rel (0) target = $region13
  $region12: #{_lambda_.15} parent=0 // pred_region
    _
  $region13: #{_lambda_.15} parent=0 // pred_fallthru
    _
  %v15 = vld [vmem:[%s0] sm:$0xf]
  %v16 = vld [vmem:[%s1] sm:$0xf]
  %v17 = vld [vmem:[%s1 + $0x4] sm:$0xf]
  %v18 = vld [vmem:[%s1 + $0x8] sm:$0xf]
  %v19 = vld [vmem:[%s1 + $0xc] sm:$0xf]
  %v20 = vld [vmem:[%s1 + $0x10] sm:$0xf]
  %v21 = vld [vmem:[%s1 + $0x14] sm:$0xf]
  %v22 = vld [vmem:[%s1 + $0x18] sm:$0xf]
  %v23 = vld [vmem:[%s1 + $0x1c] sm:$0xf]
  %v24 = vld [vmem:[%s1 + $0x20] sm:$0xf]
  %v25 = vld [vmem:[%s1 + $0x24] sm:$0xf]
  %v26 = vld [vmem:[%s1 + $0x28] sm:$0xf]
  %v27 = vld [vmem:[%s1 + $0x2c] sm:$0xf]
  %v28 = vld [vmem:[%s1 + $0x30] sm:$0xf]
  %v29 = vld [vmem:[%s1 + $0x34] sm:$0xf]
  %v30 = vld [vmem:[%s1 + $0x38] sm:$0xf]
  %v31 = vld [vmem:[%s1 + $0x3c] sm:$0xf]
  %v32 = vld [vmem:[%s1 + $0x40] sm:$0xf]
  %v33 = vld [vmem:[%s1 + $0x44] sm:$0xf]
  %v34 = vld [vmem:[%s1 + $0x48] sm:$0xf]
  %v35 = vld [vmem:[%s1 + $0x4c] sm:$0xf]
  %v36 = vld [vmem:[%s1 + $0x50] sm:$0xf]
  %v37 = vld [vmem:[%s1 + $0x54] sm:$0xf]
  %v38 = vld [vmem:[%s1 + $0x58] sm:$0xf]
  %v39 = vld [vmem:[%s1 + $0x5c] sm:$0xf]
  %v40 = vld [vmem:[%s1 + $0x60] sm:$0xf]
  %v41 = vld [vmem:[%s1 + $0x64] sm:$0xf]
  %v42 = vld [vmem:[%s1 + $0x68] sm:$0xf]
  %v43 = vld [vmem:[%s1 + $0x6c] sm:$0xf]
  %v44 = vld [vmem:[%s1 + $0x70] sm:$0xf]
  %v45 = vld [vmem:[%s1 + $0x74] sm:$0xf]
  %v46 = vld [vmem:[%s1 + $0x78] sm:$0xf]
  %v47 = vld [vmem:[%s1 + $0x7c] sm:$0xf]
  %v48 = vld [vmem:[%s1 + $0x80] sm:$0xf]
  %v49 = vld [vmem:[%s1 + $0x84] sm:$0xf]
  %v50 = vld [vmem:[%s1 + $0x88] sm:$0xf]
  %v51 = vld [vmem:[%s1 + $0x8c] sm:$0xf]
  %v52 = vld [vmem:[%s1 + $0x90] sm:$0xf]
  %v53 = vld [vmem:[%s1 + $0x94] sm:$0xf]
  %v54 = vld [vmem:[%s1 + $0x98] sm:$0xf]
  %v55 = vld [vmem:[%s1 + $0x9c] sm:$0xf]
  %v56 = vld [vmem:[%s1 + $0xa0] sm:$0xf]
  %v57 = vld [vmem:[%s1 + $0xa4] sm:$0xf]
  %v58 = vld [vmem:[%s1 + $0xa8] sm:$0xf]
  %v59 = vld [vmem:[%s1 + $0xac] sm:$0xf]
  %v60 = vld [vmem:[%s1 + $0xb0] sm:$0xf]
  %v61 = vld [vmem:[%s1 + $0xb4] sm:$0xf]
  %v62 = vld [vmem:[%s1 + $0xb8] sm:$0xf]
  %v63 = vld [vmem:[%s1 + $0xbc] sm:$0xf]
  %v64 = vld [vmem:[%s1 + $0xc0] sm:$0xf]
  %v65 = vld [vmem:[%s1 + $0xc4] sm:$0xf]
  %v66 = vld [vmem:[%s1 + $0xc8] sm:$0xf]
  %v67 = vld [vmem:[%s1 + $0xcc] sm:$0xf]
  %v68 = vld [vmem:[%s1 + $0xd0] sm:$0xf]
  %v69 = vld [vmem:[%s1 + $0xd4] sm:$0xf]
  %v70 = vld [vmem:[%s1 + $0xd8] sm:$0xf]
  %v71 = vld [vmem:[%s1 + $0xdc] sm:$0xf]
  %v72 = vld [vmem:[%s1 + $0xe0] sm:$0xf]
  %v73 = vld [vmem:[%s1 + $0xe4] sm:$0xf]
  %v74 = vld [vmem:[%s1 + $0xe8] sm:$0xf]
  %v75 = vld [vmem:[%s1 + $0xec] sm:$0xf]
  %v76 = vld [vmem:[%s1 + $0xf0] sm:$0xf]
  %v77 = vld [vmem:[%s1 + $0xf4] sm:$0xf]
  %v78 = vld [vmem:[%s1 + $0xf8] sm:$0xf]
  %v79 = vld [vmem:[%s1 + $0xfc] sm:$0xf]
  %v80 = vld [vmem:[%s2] sm:$0x1]
  %v82 = vlaneseq
  %v83 = vshrl.u32 %v82, 7
  %v84 = vsub.s32 0, %v83
  %v85 = vrot.slane %v80, %v84
  %v89 = vunpack.c.l.s4 1966171168
  %v90 = vunpack.c.0.s8 %v89
  %v91 = vlaneseq
  %v92 = vshrl.u32 %v91, 7
  %v93 = vsub.s32 %v90, %v92
  %v94 = vrot.slane %v15, %v93
  %v95 = vcombine.high %v94, %v94
  %v97 = vunpack.c.l.s4 1966171168
  %v98 = vunpack.c.0.s8 %v97
  %v99 = vlaneseq
  %v100 = vshrl.u32 %v99, 7
  %v101 = vsub.s32 %v98, %v100
  %v102 = vrot.slane %v94, %v101
  %v104 = vunpack.c.l.s4 1966171168
  %v105 = vunpack.c.0.s8 %v104
  %v106 = vlaneseq
  %v107 = vshrl.u32 %v106, 7
  %v108 = vsub.s32 %v105, %v107
  %v109 = vrot.slane %v95, %v108
  %v110 = vcombine.high %v102, %v102
  %v111 = vcombine.high %v109, %v109
  %v180 = vunpack.c.l.b16 %v16
  %v181 = vunpack.c.l.b16 %v17
  %v182 = vunpack.c.l.b16 %v18
  %v183 = vunpack.c.l.b16 %v19
  %v184 = vunpack.c.l.b16 %v20
  %v185 = vunpack.c.l.b16 %v21
  %v186 = vunpack.c.l.b16 %v22
  %v187 = vunpack.c.l.b16 %v23
  %v188 = vunpack.c.l.b16 %v24
  %v189 = vunpack.c.l.b16 %v25
  %v190 = vunpack.c.l.b16 %v26
  %v191 = vunpack.c.l.b16 %v27
  %v192 = vunpack.c.l.b16 %v28
  %v193 = vunpack.c.l.b16 %v29
  %v194 = vunpack.c.l.b16 %v30
  %v195 = vunpack.c.l.b16 %v31
  %v196 = vunpack.c.l.b16 %v32
  %v197 = vunpack.c.l.b16 %v33
  %v198 = vunpack.c.l.b16 %v34
  %v199 = vunpack.c.l.b16 %v35
  %v200 = vunpack.c.l.b16 %v36
  %v201 = vunpack.c.l.b16 %v37
  %v202 = vunpack.c.l.b16 %v38
  %v203 = vunpack.c.l.b16 %v39
  %v204 = vunpack.c.l.b16 %v40
  %v205 = vunpack.c.l.b16 %v41
  %v206 = vunpack.c.l.b16 %v42
  %v207 = vunpack.c.l.b16 %v43
  %v208 = vunpack.c.l.b16 %v44
  %v209 = vunpack.c.l.b16 %v45
  %v210 = vunpack.c.l.b16 %v46
  %v211 = vunpack.c.l.b16 %v47
  %v212 = vunpack.c.l.b16 %v48
  %v213 = vunpack.c.l.b16 %v49
  %v214 = vunpack.c.l.b16 %v50
  %v215 = vunpack.c.l.b16 %v51
  %v216 = vunpack.c.l.b16 %v52
  %v217 = vunpack.c.l.b16 %v53
  %v218 = vunpack.c.l.b16 %v54
  %v219 = vunpack.c.l.b16 %v55
  %v220 = vunpack.c.l.b16 %v56
  %v221 = vunpack.c.l.b16 %v57
  %v222 = vunpack.c.l.b16 %v58
  %v223 = vunpack.c.l.b16 %v59
  %v224 = vunpack.c.l.b16 %v60
  %v225 = vunpack.c.l.b16 %v61
  %v226 = vunpack.c.l.b16 %v62
  %v227 = vunpack.c.l.b16 %v63
  %v228 = vunpack.c.l.b16 %v64
  %v229 = vunpack.c.l.b16 %v65
  %v230 = vunpack.c.l.b16 %v66
  %v231 = vunpack.c.l.b16 %v67
  %v232 = vunpack.c.l.b16 %v68
  %v233 = vunpack.c.l.b16 %v69
  %v234 = vunpack.c.l.b16 %v70
  %v235 = vunpack.c.l.b16 %v71
  %v236 = vunpack.c.l.b16 %v72
  %v237 = vunpack.c.l.b16 %v73
  %v238 = vunpack.c.l.b16 %v74
  %v239 = vunpack.c.l.b16 %v75
  %v240 = vunpack.c.l.b16 %v76
  %v241 = vunpack.c.l.b16 %v77
  %v242 = vunpack.c.l.b16 %v78
  %v243 = vunpack.c.l.b16 %v79
  %v244 = vpack.c.b16 %v181, %v180
  %v245 = vpack.c.b16 %v183, %v182
  %v246 = vpack.c.b16 %v185, %v184
  %v247 = vpack.c.b16 %v187, %v186
  %v248 = vpack.c.b16 %v189, %v188
  %v249 = vpack.c.b16 %v191, %v190
  %v250 = vpack.c.b16 %v193, %v192
  %v251 = vpack.c.b16 %v195, %v194
  %v252 = vpack.c.b16 %v197, %v196
  %v253 = vpack.c.b16 %v199, %v198
  %v254 = vpack.c.b16 %v201, %v200
  %v255 = vpack.c.b16 %v203, %v202
  %v256 = vpack.c.b16 %v205, %v204
  %v257 = vpack.c.b16 %v207, %v206
  %v258 = vpack.c.b16 %v209, %v208
  %v259 = vpack.c.b16 %v211, %v210
  %v260 = vpack.c.b16 %v213, %v212
  %v261 = vpack.c.b16 %v215, %v214
  %v262 = vpack.c.b16 %v217, %v216
  %v263 = vpack.c.b16 %v219, %v218
  %v264 = vpack.c.b16 %v221, %v220
  %v265 = vpack.c.b16 %v223, %v222
  %v266 = vpack.c.b16 %v225, %v224
  %v267 = vpack.c.b16 %v227, %v226
  %v268 = vpack.c.b16 %v229, %v228
  %v269 = vpack.c.b16 %v231, %v230
  %v270 = vpack.c.b16 %v233, %v232
  %v271 = vpack.c.b16 %v235, %v234
  %v272 = vpack.c.b16 %v237, %v236
  %v273 = vpack.c.b16 %v239, %v238
  %v274 = vpack.c.b16 %v241, %v240
  %v275 = vpack.c.b16 %v243, %v242
  %308 = vmatprep.subr.bf16.mxu0 0
  %309 = vmatpush1.bf16.msra.mxu0 %v244
  %310 = vmatprep.subr.bf16.mxu0 0
  %311 = vmatpush1.bf16.msra.mxu0 %v245
  %312 = vmatprep.subr.bf16.mxu0 0
  %313 = vmatpush1.bf16.msra.mxu0 %v246
  %314 = vmatprep.subr.bf16.mxu0 0
  %315 = vmatpush1.bf16.msra.mxu0 %v247
  %316 = vmatprep.subr.bf16.mxu0 0
  %317 = vmatpush1.bf16.msra.mxu0 %v248
  %318 = vmatprep.subr.bf16.mxu0 0
  %319 = vmatpush1.bf16.msra.mxu0 %v249
  %320 = vmatprep.subr.bf16.mxu0 0
  %321 = vmatpush1.bf16.msra.mxu0 %v250
  %322 = vmatprep.subr.bf16.mxu0 0
  %323 = vmatpush1.bf16.msra.mxu0 %v251
  %324 = vmatprep.subr.bf16.mxu0 0
  %325 = vmatpush1.bf16.msra.mxu0 %v252
  %326 = vmatprep.subr.bf16.mxu0 0
  %327 = vmatpush1.bf16.msra.mxu0 %v253
  %328 = vmatprep.subr.bf16.mxu0 0
  %329 = vmatpush1.bf16.msra.mxu0 %v254
  %330 = vmatprep.subr.bf16.mxu0 0
  %331 = vmatpush1.bf16.msra.mxu0 %v255
  %332 = vmatprep.subr.bf16.mxu0 0
  %333 = vmatpush1.bf16.msra.mxu0 %v256
  %334 = vmatprep.subr.bf16.mxu0 0
  %335 = vmatpush1.bf16.msra.mxu0 %v257
  %336 = vmatprep.subr.bf16.mxu0 0
  %337 = vmatpush1.bf16.msra.mxu0 %v258
  %338 = vmatprep.subr.bf16.mxu0 0
  %339 = vmatpush1.bf16.msra.mxu0 %v259
  %340 = vmatprep.mubr.bf16.mxu0 %v109
  %341 = vmatmul.mubr.bf16.gmra.mrb[0].mxu0 %v102
  %v342 = vpop.f32.mrb[0].mxu0
  %v343 = vadd.f32 %v85, %v342
  %v344 = vpop.f32.mrb[0].mxu0
  %v345 = vpop.f32.mrb[0].mxu0
  %v346 = vpop.f32.mrb[0].mxu0
  %347 = vdwg.mxu0
  %348 = vmatprep.subr.bf16.mxu0 0
  %349 = vmatpush1.bf16.msra.mxu0 %v260
  %350 = vmatprep.subr.bf16.mxu0 0
  %351 = vmatpush1.bf16.msra.mxu0 %v261
  %352 = vmatprep.subr.bf16.mxu0 0
  %353 = vmatpush1.bf16.msra.mxu0 %v262
  %354 = vmatprep.subr.bf16.mxu0 0
  %355 = vmatpush1.bf16.msra.mxu0 %v263
  %356 = vmatprep.subr.bf16.mxu0 0
  %357 = vmatpush1.bf16.msra.mxu0 %v264
  %358 = vmatprep.subr.bf16.mxu0 0
  %359 = vmatpush1.bf16.msra.mxu0 %v265
  %360 = vmatprep.subr.bf16.mxu0 0
  %361 = vmatpush1.bf16.msra.mxu0 %v266
  %362 = vmatprep.subr.bf16.mxu0 0
  %363 = vmatpush1.bf16.msra.mxu0 %v267
  %364 = vmatprep.subr.bf16.mxu0 0
  %365 = vmatpush1.bf16.msra.mxu0 %v268
  %366 = vmatprep.subr.bf16.mxu0 0
  %367 = vmatpush1.bf16.msra.mxu0 %v269
  %368 = vmatprep.subr.bf16.mxu0 0
  %369 = vmatpush1.bf16.msra.mxu0 %v270
  %370 = vmatprep.subr.bf16.mxu0 0
  %371 = vmatpush1.bf16.msra.mxu0 %v271
  %372 = vmatprep.subr.bf16.mxu0 0
  %373 = vmatpush1.bf16.msra.mxu0 %v272
  %374 = vmatprep.subr.bf16.mxu0 0
  %375 = vmatpush1.bf16.msra.mxu0 %v273
  %376 = vmatprep.subr.bf16.mxu0 0
  %377 = vmatpush1.bf16.msra.mxu0 %v274
  %378 = vmatprep.subr.bf16.mxu0 0
  %379 = vmatpush1.bf16.msra.mxu0 %v275
  %380 = vmatprep.mubr.bf16.mxu0 %v111
  %381 = vmatmul.mubr.bf16.gmra.mrb[0].mxu0 %v110
  %v382 = vpop.f32.mrb[0].mxu0
  %v383 = vadd.f32 %v343, %v382
  %v384 = vpop.f32.mrb[0].mxu0
  %v385 = vpop.f32.mrb[0].mxu0
  %v386 = vpop.f32.mrb[0].mxu0
  %387 = vdwg.mxu0
  %v388 = vmax.f32 %v383, 0.0
  %v389 = vpack.c.bf16 %v388, %v388
  %390 = vst [vmem:[%s3] sm:$0x1] %v389
  // Predicated region
  $region14: #{_lambda_.15} parent=0 // pred_check
    _
  $region15: #{_lambda_.15} parent=0 // pred_check_branch
    %392 = sbr.rel (0) target = $region17
  $region16: #{_lambda_.15} parent=0 // pred_region
    _
  $region17: #{_lambda_.15} parent=0 // pred_fallthru
    _
  // Predicated region
  $region18: #{_lambda_.15} parent=0 // pred_check
    _
  $region19: #{_lambda_.15} parent=0 // pred_check_branch
    %394 = sbr.rel (0) target = $region21
  $region20: #{_lambda_.15} parent=0 // pred_region
    _
  $region21: #{_lambda_.15} parent=0 // pred_fallthru
    _

// kernel: _lambda_.16
$region0: #{_lambda_.16}
  #allocation0 [shape = 'u32[]', space=smem, size = 0x4, offset = 0x4, fixed_abs, tag = 'smem constant byte address 0x4 - core index']
  #allocation1 [shape = 'u32[144,128]{1,0:T(1,128)}', space=vmem, size = 0x12000, scoped, tag = 'internal scratch']
  %s0 = inlined_call_operand.vmem [shape: bf16[2,128], index: 0, kind: input, shape index: {}]
  %s1 = inlined_call_operand.vmem [shape: bf16[128,128], index: 1, kind: input, shape index: {}]
  %s2 = inlined_call_operand.vmem [shape: f32[1,128], index: 2, kind: input, shape index: {}]
  %s3 = inlined_call_operand.vmem [shape: bf16[2,128], index: 3, kind: output, shape index: {}]
  %s4 = sld [smem:[#allocation0]]
  $region22: #{_lambda_.16} parent=0
    _
  %s6 = ssub.s32 1, %s4
  %s7 = scalar_select 0, %s6, %s4
  // Predicated region
  $region2: #{_lambda_.16} parent=0 // pred_check
    _
  $region3: #{_lambda_.16} parent=0 // pred_check_branch
    %9 = sbr.rel (0) target = $region5
  $region4: #{_lambda_.16} parent=0 // pred_region
    _
  $region5: #{_lambda_.16} parent=0 // pred_fallthru
    _
  // Predicated region
  $region6: #{_lambda_.16} parent=0 // pred_check
    _
  $region7: #{_lambda_.16} parent=0 // pred_check_branch
    %11 = sbr.rel (0) target = $region9
  $region8: #{_lambda_.16} parent=0 // pred_region
    _
  $region9: #{_lambda_.16} parent=0 // pred_fallthru
    _
  // Predicated region
  $region10: #{_lambda_.16} parent=0 // pred_check
    _
  $region11: #{_lambda_.16} parent=0 // pred_check_branch
    %13 = sbr.rel (0) target = $region13
  $region12: #{_lambda_.16} parent=0 // pred_region
    _
  $region13: #{_lambda_.16} parent=0 // pred_fallthru
    _
  %v15 = vld [vmem:[%s0] sm:$0x1]
  %v16 = vld [vmem:[%s1] sm:$0xf]
  %v17 = vld [vmem:[%s1 + $0x4] sm:$0xf]
  %v18 = vld [vmem:[%s1 + $0x8] sm:$0xf]
  %v19 = vld [vmem:[%s1 + $0xc] sm:$0xf]
  %v20 = vld [vmem:[%s1 + $0x10] sm:$0xf]
  %v21 = vld [vmem:[%s1 + $0x14] sm:$0xf]
  %v22 = vld [vmem:[%s1 + $0x18] sm:$0xf]
  %v23 = vld [vmem:[%s1 + $0x1c] sm:$0xf]
  %v24 = vld [vmem:[%s1 + $0x20] sm:$0xf]
  %v25 = vld [vmem:[%s1 + $0x24] sm:$0xf]
  %v26 = vld [vmem:[%s1 + $0x28] sm:$0xf]
  %v27 = vld [vmem:[%s1 + $0x2c] sm:$0xf]
  %v28 = vld [vmem:[%s1 + $0x30] sm:$0xf]
  %v29 = vld [vmem:[%s1 + $0x34] sm:$0xf]
  %v30 = vld [vmem:[%s1 + $0x38] sm:$0xf]
  %v31 = vld [vmem:[%s1 + $0x3c] sm:$0xf]
  %v32 = vld [vmem:[%s2] sm:$0x1]
  %v34 = vlaneseq
  %v35 = vshrl.u32 %v34, 7
  %v36 = vsub.s32 0, %v35
  %v37 = vrot.slane %v32, %v36
  %v55 = vunpack.c.l.b16 %v16
  %v56 = vunpack.c.l.b16 %v17
  %v57 = vunpack.c.l.b16 %v18
  %v58 = vunpack.c.l.b16 %v19
  %v59 = vunpack.c.l.b16 %v20
  %v60 = vunpack.c.l.b16 %v21
  %v61 = vunpack.c.l.b16 %v22
  %v62 = vunpack.c.l.b16 %v23
  %v63 = vunpack.c.l.b16 %v24
  %v64 = vunpack.c.l.b16 %v25
  %v65 = vunpack.c.l.b16 %v26
  %v66 = vunpack.c.l.b16 %v27
  %v67 = vunpack.c.l.b16 %v28
  %v68 = vunpack.c.l.b16 %v29
  %v69 = vunpack.c.l.b16 %v30
  %v70 = vunpack.c.l.b16 %v31
  %v71 = vpack.c.b16 %v56, %v55
  %v72 = vpack.c.b16 %v58, %v57
  %v73 = vpack.c.b16 %v60, %v59
  %v74 = vpack.c.b16 %v62, %v61
  %v75 = vpack.c.b16 %v64, %v63
  %v76 = vpack.c.b16 %v66, %v65
  %v77 = vpack.c.b16 %v68, %v67
  %v78 = vpack.c.b16 %v70, %v69
  %87 = vmatprep.subr.bf16.mxu0 0
  %88 = vmatpush1.bf16.msra.mxu0 %v71
  %89 = vmatprep.subr.bf16.mxu0 0
  %90 = vmatpush1.bf16.msra.mxu0 %v72
  %91 = vmatprep.subr.bf16.mxu0 0
  %92 = vmatpush1.bf16.msra.mxu0 %v73
  %93 = vmatprep.subr.bf16.mxu0 0
  %94 = vmatpush1.bf16.msra.mxu0 %v74
  %95 = vmatprep.subr.bf16.mxu0 0
  %96 = vmatpush1.bf16.msra.mxu0 %v75
  %97 = vmatprep.subr.bf16.mxu0 0
  %98 = vmatpush1.bf16.msra.mxu0 %v76
  %99 = vmatprep.subr.bf16.mxu0 0
  %100 = vmatpush1.bf16.msra.mxu0 %v77
  %101 = vmatprep.subr.bf16.mxu0 0
  %102 = vmatpush1.bf16.msra.mxu0 %v78
  %103 = vmatprep.subr.bf16.mxu0 0
  %104 = vmatpush1.bf16.msra.mxu0 0
  %105 = vmatprep.subr.bf16.mxu0 0
  %106 = vmatpush1.bf16.msra.mxu0 0
  %107 = vmatprep.subr.bf16.mxu0 0
  %108 = vmatpush1.bf16.msra.mxu0 0
  %109 = vmatprep.subr.bf16.mxu0 0
  %110 = vmatpush1.bf16.msra.mxu0 0
  %111 = vmatprep.subr.bf16.mxu0 0
  %112 = vmatpush1.bf16.msra.mxu0 0
  %113 = vmatprep.subr.bf16.mxu0 0
  %114 = vmatpush1.bf16.msra.mxu0 0
  %115 = vmatprep.subr.bf16.mxu0 0
  %116 = vmatpush1.bf16.msra.mxu0 0
  %117 = vmatprep.subr.bf16.mxu0 0
  %118 = vmatpush1.bf16.msra.mxu0 0
  %119 = vmatprep.mubr.bf16.mxu0 0
  %120 = vmatmul.mubr.bf16.gmra.mrb[0].mxu0 %v15
  %v121 = vpop.f32.mrb[0].mxu0
  %v122 = vadd.f32 %v37, %v121
  %v123 = vpop.f32.mrb[0].mxu0
  %v124 = vpop.f32.mrb[0].mxu0
  %v125 = vpop.f32.mrb[0].mxu0
  %126 = vdwg.mxu0
  %v127 = vmax.f32 %v122, 0.0
  %v128 = vpack.c.bf16 %v127, %v127
  %129 = vst [vmem:[%s3] sm:$0x1] %v128
  // Predicated region
  $region14: #{_lambda_.16} parent=0 // pred_check
    _
  $region15: #{_lambda_.16} parent=0 // pred_check_branch
    %131 = sbr.rel (0) target = $region17
  $region16: #{_lambda_.16} parent=0 // pred_region
    _
  $region17: #{_lambda_.16} parent=0 // pred_fallthru
    _
  // Predicated region
  $region18: #{_lambda_.16} parent=0 // pred_check
    _
  $region19: #{_lambda_.16} parent=0 // pred_check_branch
    %133 = sbr.rel (0) target = $region21
  $region20: #{_lambda_.16} parent=0 // pred_region
    _
  $region21: #{_lambda_.16} parent=0 // pred_fallthru
    _

// kernel: _lambda_.17
$region0: #{_lambda_.17}
  #allocation0 [shape = 'u32[]', space=smem, size = 0x4, offset = 0x4, fixed_abs, tag = 'smem constant byte address 0x4 - core index']
  #allocation1 [shape = 'u32[144,128]{1,0:T(1,128)}', space=vmem, size = 0x12000, scoped, tag = 'internal scratch']
  %s0 = inlined_call_operand.vmem [shape: bf16[2,128], index: 0, kind: input, shape index: {}]
  %s1 = inlined_call_operand.vmem [shape: bf16[128,128], index: 1, kind: input, shape index: {}]
  %s2 = inlined_call_operand.vmem [shape: f32[1,128], index: 2, kind: input, shape index: {}]
  %s3 = inlined_call_operand.hbm [shape: f32[2,128], index: 3, kind: output, shape index: {}]
  %s4 = sld [smem:[#allocation0]]
  $region22: #{_lambda_.17} parent=0
    _
  %s6 = ssub.s32 1, %s4
  %s7 = scalar_select 0, %s6, %s4
  $region1: #{_lambda_.17} parent=0
    #allocation2 [shape = 'u8[1024]{0}', space=vmem, size = 0x400, scoped, tag = 'output window, operand 0, single buffered']
    #allocation3 [shape = 's32[1]{0}', space=sflag, size = 0x4, scoped, tag = 'scoped memory for _lambda_.17']
    %8 = vsyncpa [#allocation3], 0
    // Predicated region
    $region2: #{_lambda_.17} parent=1 // pred_check
      _
    $region3: #{_lambda_.17} parent=1 // pred_check_branch
      %10 = sbr.rel (0) target = $region5
    $region4: #{_lambda_.17} parent=1 // pred_region
      _
    $region5: #{_lambda_.17} parent=1 // pred_fallthru
      _
    // Predicated region
    $region6: #{_lambda_.17} parent=1 // pred_check
      _
    $region7: #{_lambda_.17} parent=1 // pred_check_branch
      %12 = sbr.rel (0) target = $region9
    $region8: #{_lambda_.17} parent=1 // pred_region
      _
    $region9: #{_lambda_.17} parent=1 // pred_fallthru
      _
    // Predicated region
    $region10: #{_lambda_.17} parent=1 // pred_check
      _
    $region11: #{_lambda_.17} parent=1 // pred_check_branch
      %14 = sbr.rel (0) target = $region13
    $region12: #{_lambda_.17} parent=1 // pred_region
      _
    $region13: #{_lambda_.17} parent=1 // pred_fallthru
      _
    %v16 = vld [vmem:[%s0] sm:$0x1]
    %v17 = vld [vmem:[%s1] sm:$0xf]
    %v18 = vld [vmem:[%s1 + $0x4] sm:$0xf]
    %v19 = vld [vmem:[%s1 + $0x8] sm:$0xf]
    %v20 = vld [vmem:[%s1 + $0xc] sm:$0xf]
    %v21 = vld [vmem:[%s1 + $0x10] sm:$0xf]
    %v22 = vld [vmem:[%s1 + $0x14] sm:$0xf]
    %v23 = vld [vmem:[%s1 + $0x18] sm:$0xf]
    %v24 = vld [vmem:[%s1 + $0x1c] sm:$0xf]
    %v25 = vld [vmem:[%s1 + $0x20] sm:$0xf]
    %v26 = vld [vmem:[%s1 + $0x24] sm:$0xf]
    %v27 = vld [vmem:[%s1 + $0x28] sm:$0xf]
    %v28 = vld [vmem:[%s1 + $0x2c] sm:$0xf]
    %v29 = vld [vmem:[%s1 + $0x30] sm:$0xf]
    %v30 = vld [vmem:[%s1 + $0x34] sm:$0xf]
    %v31 = vld [vmem:[%s1 + $0x38] sm:$0xf]
    %v32 = vld [vmem:[%s1 + $0x3c] sm:$0xf]
    %v33 = vld [vmem:[%s2] sm:$0x1]
    %v35 = vlaneseq
    %v36 = vshrl.u32 %v35, 7
    %v37 = vsub.s32 0, %v36
    %v38 = vrot.slane %v33, %v37
    %v56 = vunpack.c.l.b16 %v17
    %v57 = vunpack.c.l.b16 %v18
    %v58 = vunpack.c.l.b16 %v19
    %v59 = vunpack.c.l.b16 %v20
    %v60 = vunpack.c.l.b16 %v21
    %v61 = vunpack.c.l.b16 %v22
    %v62 = vunpack.c.l.b16 %v23
    %v63 = vunpack.c.l.b16 %v24
    %v64 = vunpack.c.l.b16 %v25
    %v65 = vunpack.c.l.b16 %v26
    %v66 = vunpack.c.l.b16 %v27
    %v67 = vunpack.c.l.b16 %v28
    %v68 = vunpack.c.l.b16 %v29
    %v69 = vunpack.c.l.b16 %v30
    %v70 = vunpack.c.l.b16 %v31
    %v71 = vunpack.c.l.b16 %v32
    %v72 = vpack.c.b16 %v57, %v56
    %v73 = vpack.c.b16 %v59, %v58
    %v74 = vpack.c.b16 %v61, %v60
    %v75 = vpack.c.b16 %v63, %v62
    %v76 = vpack.c.b16 %v65, %v64
    %v77 = vpack.c.b16 %v67, %v66
    %v78 = vpack.c.b16 %v69, %v68
    %v79 = vpack.c.b16 %v71, %v70
    %88 = vmatprep.subr.bf16.mxu0 0
    %89 = vmatpush1.bf16.msra.mxu0 %v72
    %90 = vmatprep.subr.bf16.mxu0 0
    %91 = vmatpush1.bf16.msra.mxu0 %v73
    %92 = vmatprep.subr.bf16.mxu0 0
    %93 = vmatpush1.bf16.msra.mxu0 %v74
    %94 = vmatprep.subr.bf16.mxu0 0
    %95 = vmatpush1.bf16.msra.mxu0 %v75
    %96 = vmatprep.subr.bf16.mxu0 0
    %97 = vmatpush1.bf16.msra.mxu0 %v76
    %98 = vmatprep.subr.bf16.mxu0 0
    %99 = vmatpush1.bf16.msra.mxu0 %v77
    %100 = vmatprep.subr.bf16.mxu0 0
    %101 = vmatpush1.bf16.msra.mxu0 %v78
    %102 = vmatprep.subr.bf16.mxu0 0
    %103 = vmatpush1.bf16.msra.mxu0 %v79
    %104 = vmatprep.subr.bf16.mxu0 0
    %105 = vmatpush1.bf16.msra.mxu0 0
    %106 = vmatprep.subr.bf16.mxu0 0
    %107 = vmatpush1.bf16.msra.mxu0 0
    %108 = vmatprep.subr.bf16.mxu0 0
    %109 = vmatpush1.bf16.msra.mxu0 0
    %110 = vmatprep.subr.bf16.mxu0 0
    %111 = vmatpush1.bf16.msra.mxu0 0
    %112 = vmatprep.subr.bf16.mxu0 0
    %113 = vmatpush1.bf16.msra.mxu0 0
    %114 = vmatprep.subr.bf16.mxu0 0
    %115 = vmatpush1.bf16.msra.mxu0 0
    %116 = vmatprep.subr.bf16.mxu0 0
    %117 = vmatpush1.bf16.msra.mxu0 0
    %118 = vmatprep.subr.bf16.mxu0 0
    %119 = vmatpush1.bf16.msra.mxu0 0
    %120 = vmatprep.mubr.bf16.mxu0 0
    %121 = vmatmul.mubr.bf16.gmra.mrb[0].mxu0 %v16
    %v122 = vpop.f32.mrb[0].mxu0
    %v123 = vadd.f32 %v38, %v122
    %v124 = vpop.f32.mrb[0].mxu0
    %v125 = vpop.f32.mrb[0].mxu0
    %v126 = vpop.f32.mrb[0].mxu0
    %127 = vdwg.mxu0
    %128 = vst [vmem:[#allocation2] sm:$0x3] %v123
    // Predicated region
    $region14: #{_lambda_.17} parent=1 // pred_check
      _
    $region15: #{_lambda_.17} parent=1 // pred_check_branch
      %130 = sbr.rel (0) target = $region17
    $region16: #{_lambda_.17} parent=1 // pred_region
      %s132 = ssub.s32 32, 32
      %133 = vsyncadd [#allocation3], %s132
      %s135 = sshll.u32 [#allocation2], 4
      %s136 = int_to_ptr.vmem [resolvable:$true] %s135
      %138 = dma.vmem_to_hbm [thread:$0]  %s136, 32, %s3, [#allocation3]
    $region17: #{_lambda_.17} parent=1 // pred_fallthru
      _
    // Predicated region
    $region18: #{_lambda_.17} parent=1 // pred_check
      _
    $region19: #{_lambda_.17} parent=1 // pred_check_branch
      %140 = sbr.rel (0) target = $region21
    $region20: #{_lambda_.17} parent=1 // pred_region
      %141 = dma.done [#allocation3], 32
    $region21: #{_lambda_.17} parent=1 // pred_fallthru
      _
    %142 = vsyncpa [#allocation3], 1

// kernel: _lambda_.9
$region0: #{_lambda_.9}
  #allocation0 [shape = 'u32[]', space=smem, size = 0x4, offset = 0x4, fixed_abs, tag = 'smem constant byte address 0x4 - core index']
  #allocation1 [shape = 'u32[144,128]{1,0:T(1,128)}', space=vmem, size = 0x12000, scoped, tag = 'internal scratch']
  #allocation2 [shape = 'f32[288,128]{1,0:T(8,128)}', space=vmem, size = 0x24000, scoped, tag = 'scratch operand']
  %s0 = inlined_call_operand.vmem [shape: bf16[2,342,128], index: 0, kind: input, shape index: {}]
  %s1 = inlined_call_operand.vmem [shape: bf16[9,128,128], index: 1, kind: input, shape index: {}]
  %s2 = inlined_call_operand.vmem [shape: f32[1,128], index: 2, kind: input, shape index: {}]
  %s3 = inlined_call_operand.vmem [shape: bf16[2,16,16,128], index: 3, kind: output, shape index: {}]
  %s4 = sld [smem:[#allocation0]]
  $region45: #{_lambda_.9} parent=0
    _
  %s6 = ssub.s32 1, %s4
  %s7 = scalar_select 0, %s6, %s4
  loop: start=0, step=1, limit=4
  $region2: #{_lambda_.9} parent=0 // loop_pre_header
    _
  $region3: #{_lambda_.9} parent=0 // loop_header
    %s9 = sphi 0, %s13
    %p10 = scmp.ge.s32.totalorder %s9, 4
    %s19 = sphi 0, %s21
    %s22 = sphi 0, %s19
    %s23 = sphi 0, %s22
    %s39 = sphi 0, %s23
    %s43 = sphi 0, %s43
    %s45 = sphi 0, %s43
    %s46 = sphi 0, %s45
    %s60 = sphi 0, %s46
    %s64 = sphi 0, %s64
    %s66 = sphi 0, %s64
    %s67 = sphi 0, %s66
    %s81 = sphi 0, %s67
    %s87 = sphi 0, %s89
    %s90 = sphi 0, %s87
    %s91 = sphi 0, %s90
    %s107 = sphi 0, %s91
  $region4: #{_lambda_.9} parent=0 // loop_header_branch
    %12 = sbr.rel (%p10) target = $region8
  $region5: #{_lambda_.9} parent=0 // loop_body
    %s14 = ssub.s32 %s9, 1
    %s15 = ssub.s32 %s9, 2
    %s16 = sadd.s32 %s9, 1
    %s17 = ssub.s32 %s9, %s16
    %p18 = scmp.eq.s32.totalorder %s17, 0
    %s20 = sadd.s32 %s19, 1
    %s21 = scalar_select %p18, %s19, %s20
    %p24 = pneg %p18
    %p25 = scmp.eq.s32.totalorder %s9, 1
    %p26 = por %p24, %p25
    %p27 = scmp.ne.s32.totalorder %s19, %s22
    %p28 = scmp.eq.s32.totalorder %s9, 0
    %p29 = por %p27, %p28
    %p30 = scmp.ne.s32.totalorder %s19, %s22
    %p31 = scmp.eq.s32.totalorder %s14, 1
    %p32 = por %p30, %p31
    %p33 = scmp.ne.s32.totalorder %s22, %s23
    %p34 = scmp.eq.s32.totalorder %s14, 0
    %p35 = por %p33, %p34
    %p36 = scmp.ne.s32.totalorder %s22, %s23
    %p37 = scmp.eq.s32.totalorder %s15, 1
    %p38 = por %p36, %p37
    %p40 = scmp.ne.s32.totalorder %s23, %s39
    %p41 = scmp.eq.s32.totalorder %s15, 0
    %p42 = por %p40, %p41
    %s44 = sadd.s32 %s43, 1
    %p47 = scmp.eq.s32.totalorder %s9, 1
    %p48 = scmp.ne.s32.totalorder %s43, %s45
    %p49 = scmp.eq.s32.totalorder %s9, 0
    %p50 = por %p48, %p49
    %p51 = scmp.ne.s32.totalorder %s43, %s45
    %p52 = scmp.eq.s32.totalorder %s14, 1
    %p53 = por %p51, %p52
    %p54 = scmp.ne.s32.totalorder %s45, %s46
    %p55 = scmp.eq.s32.totalorder %s14, 0
    %p56 = por %p54, %p55
    %p57 = scmp.ne.s32.totalorder %s45, %s46
    %p58 = scmp.eq.s32.totalorder %s15, 1
    %p59 = por %p57, %p58
    %p61 = scmp.ne.s32.totalorder %s46, %s60
    %p62 = scmp.eq.s32.totalorder %s15, 0
    %p63 = por %p61, %p62
    %s65 = sadd.s32 %s64, 1
    %p68 = scmp.eq.s32.totalorder %s9, 1
    %p69 = scmp.ne.s32.totalorder %s64, %s66
    %p70 = scmp.eq.s32.totalorder %s9, 0
    %p71 = por %p69, %p70
    %p72 = scmp.ne.s32.totalorder %s64, %s66
    %p73 = scmp.eq.s32.totalorder %s14, 1
    %p74 = por %p72, %p73
    %p75 = scmp.ne.s32.totalorder %s66, %s67
    %p76 = scmp.eq.s32.totalorder %s14, 0
    %p77 = por %p75, %p76
    %p78 = scmp.ne.s32.totalorder %s66, %s67
    %p79 = scmp.eq.s32.totalorder %s15, 1
    %p80 = por %p78, %p79
    %p82 = scmp.ne.s32.totalorder %s67, %s81
    %p83 = scmp.eq.s32.totalorder %s15, 0
    %p84 = por %p82, %p83
    %s85 = ssub.s32 %s9, %s16
    %p86 = scmp.eq.s32.totalorder %s85, 0
    %s88 = sadd.s32 %s87, 1
    %s89 = scalar_select %p86, %s87, %s88
    %p92 = pneg %p86
    %p93 = scmp.eq.s32.totalorder %s9, 1
    %p94 = por %p92, %p93
    %p95 = scmp.ne.s32.totalorder %s87, %s90
    %p96 = scmp.eq.s32.totalorder %s9, 0
    %p97 = por %p95, %p96
    %p98 = scmp.ne.s32.totalorder %s87, %s90
    %p99 = scmp.eq.s32.totalorder %s14, 1
    %p100 = por %p98, %p99
    %p101 = scmp.ne.s32.totalorder %s90, %s91
    %p102 = scmp.eq.s32.totalorder %s14, 0
    %p103 = por %p101, %p102
    %p104 = scmp.ne.s32.totalorder %s90, %s91
    %p105 = scmp.eq.s32.totalorder %s15, 1
    %p106 = por %p104, %p105
    %p108 = scmp.ne.s32.totalorder %s91, %s107
    %p109 = scmp.eq.s32.totalorder %s15, 0
    %p110 = por %p108, %p109
    %p111 = scmp.le.s32.totalorder 1, %s9
    %p112 = scmp.lt.s32.totalorder %s9, 3
    %p113 = pnand %p111, %p112
    %p114 = pneg %p113
    // Predicated region
    $region9: #{_lambda_.9} parent=5 // pred_check
      _
    $region10: #{_lambda_.9} parent=5 // pred_check_branch
      %116 = sbr.rel (%p113) target = $region12
    $region11: #{_lambda_.9} parent=5 // pred_region
      %s117 = ssub.s32 %s9, 1
      // Predicated region
      $region13: #{_lambda_.9} parent=11 // pred_check
        %p118 = pneg %p56
      $region14: #{_lambda_.9} parent=11 // pred_check_branch
        %120 = sbr.rel (%p118) target = $region16
      $region15: #{_lambda_.9} parent=11 // pred_region
        _
      $region16: #{_lambda_.9} parent=11 // pred_fallthru
        _
      // Predicated region
      $region17: #{_lambda_.9} parent=11 // pred_check
        %p121 = pneg %p77
      $region18: #{_lambda_.9} parent=11 // pred_check_branch
        %123 = sbr.rel (%p121) target = $region20
      $region19: #{_lambda_.9} parent=11 // pred_region
        _
      $region20: #{_lambda_.9} parent=11 // pred_fallthru
        _
    $region12: #{_lambda_.9} parent=5 // pred_fallthru
      _
    %p124 = scmp.lt.s32.totalorder %s9, 2
    // Predicated region
    $region21: #{_lambda_.9} parent=5 // pred_check
      %p125 = pneg %p124
    $region22: #{_lambda_.9} parent=5 // pred_check_branch
      %127 = sbr.rel (%p125) target = $region24
    $region23: #{_lambda_.9} parent=5 // pred_region
      // Predicated region
      $region25: #{_lambda_.9} parent=23 // pred_check
        %p128 = pneg %p29
      $region26: #{_lambda_.9} parent=23 // pred_check_branch
        %130 = sbr.rel (%p128) target = $region28
      $region27: #{_lambda_.9} parent=23 // pred_region
        %p131 = scmp.lt.s32.totalorder %s9, 1
        %s132 = scalar_select %p131, %s9, 1
        %s133 = smul.addr %s132, 43
        %s134 = smul.addr %s133, 4
        %s135 = scalar_lea.vmem %s0, %s134
      $region28: #{_lambda_.9} parent=23 // pred_fallthru
        _
    $region24: #{_lambda_.9} parent=5 // pred_fallthru
      _
    %p136 = scmp.le.s32.totalorder 1, %s9
    %p137 = scmp.lt.s32.totalorder %s9, 3
    %p138 = pnand %p136, %p137
    %p139 = pneg %p138
    // Predicated region
    $region29: #{_lambda_.9} parent=5 // pred_check
      _
    $region30: #{_lambda_.9} parent=5 // pred_check_branch
      %141 = sbr.rel (%p138) target = $region32
    $region31: #{_lambda_.9} parent=5 // pred_region
      %s142 = ssub.s32 %s9, 1
      %p143 = scmp.lt.s32.totalorder %s14, 1
      %s144 = scalar_select %p143, %s14, 1
      %s145 = smul.addr %s144, 43
      %s146 = smul.addr %s145, 4
      %s147 = scalar_lea.vmem %s0, %s146
      %p148 = pneg %p35
      %p149 = pneg %p32
      %p150 = pneg %p56
      %p151 = pneg %p53
      %p152 = pneg %p77
      %p153 = pneg %p74
      %p154 = pneg %p103
      %p155 = pneg %p100
      %p156 = scmp.lt.s32.totalorder %s14, 1
      %s157 = scalar_select %p156, %s14, 1
      %s158 = smul.addr %s157, 32
      %s159 = smul.addr %s158, 4
      %s160 = scalar_lea.vmem %s3, %s159
      %p161 = scmp.lt.s32.totalorder %s14, 1
      %s162 = scalar_select %p161, %s14, 1
      %s163 = smul.addr %s162, 43
      %s164 = smul.addr %s163, 4
      %s165 = scalar_lea.vmem %s0, %s164
      %p166 = scmp.lt.s32.totalorder %s14, 1
      %s167 = scalar_select %p166, %s14, 1
      %s168 = smul.addr %s167, 32
      %s169 = smul.addr %s168, 4
      %s170 = scalar_lea.vmem %s3, %s169
      %v172 = vld [vmem:[%s165] sm:$0xf]
      %v173 = vld [vmem:[%s165 + $0x4] sm:$0xf]
      %v174 = vld [vmem:[%s165 + $0x8] sm:$0xf]
      %v175 = vld [vmem:[%s165 + $0xc] sm:$0xf]
      %v176 = vld [vmem:[%s165 + $0x10] sm:$0xf]
      %v177 = vld [vmem:[%s165 + $0x14] sm:$0xf]
      %v178 = vld [vmem:[%s165 + $0x18] sm:$0xf]
      %v179 = vld [vmem:[%s165 + $0x1c] sm:$0xf]
      %v180 = vld [vmem:[%s165 + $0x20] sm:$0xf]
      %v181 = vld [vmem:[%s165 + $0x24] sm:$0xf]
      %v182 = vld [vmem:[%s165 + $0x28] sm:$0xf]
      %v183 = vld [vmem:[%s165 + $0x2c] sm:$0xf]
      %v184 = vld [vmem:[%s165 + $0x30] sm:$0xf]
      %v185 = vld [vmem:[%s165 + $0x34] sm:$0xf]
      %v186 = vld [vmem:[%s165 + $0x38] sm:$0xf]
      %v187 = vld [vmem:[%s165 + $0x3c] sm:$0xf]
      %v188 = vld [vmem:[%s165 + $0x40] sm:$0xf]
      %v189 = vld [vmem:[%s165 + $0x44] sm:$0xf]
      %v190 = vld [vmem:[%s165 + $0x48] sm:$0xf]
      %v191 = vld [vmem:[%s165 + $0x4c] sm:$0xf]
      %v192 = vld [vmem:[%s165 + $0x50] sm:$0xf]
      %v193 = vld [vmem:[%s165 + $0x54] sm:$0xf]
      %v194 = vld [vmem:[%s165 + $0x58] sm:$0xf]
      %v195 = vld [vmem:[%s165 + $0x5c] sm:$0xf]
      %v196 = vld [vmem:[%s165 + $0x60] sm:$0xf]
      %v197 = vld [vmem:[%s165 + $0x64] sm:$0xf]
      %v198 = vld [vmem:[%s165 + $0x68] sm:$0xf]
      %v199 = vld [vmem:[%s165 + $0x6c] sm:$0xf]
      %v200 = vld [vmem:[%s165 + $0x70] sm:$0xf]
      %v201 = vld [vmem:[%s165 + $0x74] sm:$0xf]
      %v202 = vld [vmem:[%s165 + $0x78] sm:$0xf]
      %v203 = vld [vmem:[%s165 + $0x7c] sm:$0xf]
      %v204 = vld [vmem:[%s165 + $0x80] sm:$0xf]
      %v205 = vld [vmem:[%s165 + $0x84] sm:$0xf]
      %v206 = vld [vmem:[%s165 + $0x88] sm:$0xf]
      %v207 = vld [vmem:[%s165 + $0x8c] sm:$0xf]
      %v208 = vld [vmem:[%s1] sm:$0xf]
      %v209 = vld [vmem:[%s1 + $0x4] sm:$0xf]
      %v210 = vld [vmem:[%s1 + $0x8] sm:$0xf]
      %v211 = vld [vmem:[%s1 + $0xc] sm:$0xf]
      %v212 = vld [vmem:[%s1 + $0x10] sm:$0xf]
      %v213 = vld [vmem:[%s1 + $0x14] sm:$0xf]
      %v214 = vld [vmem:[%s1 + $0x18] sm:$0xf]
      %v215 = vld [vmem:[%s1 + $0x1c] sm:$0xf]
      %v216 = vld [vmem:[%s1 + $0x20] sm:$0xf]
      %v217 = vld [vmem:[%s1 + $0x24] sm:$0xf]
      %v218 = vld [vmem:[%s1 + $0x28] sm:$0xf]
      %v219 = vld [vmem:[%s1 + $0x2c] sm:$0xf]
      %v220 = vld [vmem:[%s1 + $0x30] sm:$0xf]
      %v221 = vld [vmem:[%s1 + $0x34] sm:$0xf]
      %v222 = vld [vmem:[%s1 + $0x38] sm:$0xf]
      %v223 = vld [vmem:[%s1 + $0x3c] sm:$0xf]
      %v260 = vunpack.c.l.b16 %v172
      %v261 = vunpack.c.l.b16 %v173
      %v262 = vunpack.c.l.b16 %v174
      %v263 = vunpack.c.l.b16 %v175
      %v264 = vunpack.c.l.b16 %v176
      %v265 = vunpack.c.l.b16 %v177
      %v266 = vunpack.c.l.b16 %v178
      %v267 = vunpack.c.l.b16 %v179
      %v268 = vunpack.c.l.b16 %v180
      %v269 = vunpack.c.l.b16 %v181
      %v270 = vunpack.c.l.b16 %v182
      %v271 = vunpack.c.l.b16 %v183
      %v272 = vunpack.c.l.b16 %v184
      %v273 = vunpack.c.l.b16 %v185
      %v274 = vunpack.c.l.b16 %v186
      %v275 = vunpack.c.l.b16 %v187
      %v276 = vunpack.c.l.b16 %v188
      %v277 = vunpack.c.l.b16 %v189
      %v278 = vunpack.c.l.b16 %v190
      %v279 = vunpack.c.l.b16 %v191
      %v280 = vunpack.c.l.b16 %v192
      %v281 = vunpack.c.l.b16 %v193
      %v282 = vunpack.c.l.b16 %v194
      %v283 = vunpack.c.l.b16 %v195
      %v284 = vunpack.c.l.b16 %v196
      %v285 = vunpack.c.l.b16 %v197
      %v286 = vunpack.c.l.b16 %v198
      %v287 = vunpack.c.l.b16 %v199
      %v288 = vunpack.c.l.b16 %v200
      %v289 = vunpack.c.l.b16 %v201
      %v290 = vunpack.c.l.b16 %v202
      %v291 = vunpack.c.l.b16 %v203
      %v292 = vunpack.c.l.b16 %v204
      %v293 = vunpack.c.l.b16 %v205
      %v294 = vunpack.c.l.b16 %v206
      %v295 = vunpack.c.l.b16 %v207
      %v296 = vpack.c.b16 %v261, %v260
      %v297 = vpack.c.b16 %v263, %v262
      %v298 = vpack.c.b16 %v265, %v264
      %v299 = vpack.c.b16 %v267, %v266
      %v300 = vpack.c.b16 %v269, %v268
      %v301 = vpack.c.b16 %v271, %v270
      %v302 = vpack.c.b16 %v273, %v272
      %v303 = vpack.c.b16 %v275, %v274
      %v304 = vpack.c.b16 %v277, %v276
      %v305 = vpack.c.b16 %v279, %v278
      %v306 = vpack.c.b16 %v281, %v280
      %v307 = vpack.c.b16 %v283, %v282
      %v308 = vpack.c.b16 %v285, %v284
      %v309 = vpack.c.b16 %v287, %v286
      %v310 = vpack.c.b16 %v289, %v288
      %v311 = vpack.c.b16 %v291, %v290
      %v312 = vpack.c.b16 %v293, %v292
      %v313 = vpack.c.b16 %v295, %v294
      %v348 = vunpack.c.l.b16 %v208
      %v349 = vunpack.c.l.b16 %v209
      %v350 = vunpack.c.l.b16 %v210
      %v351 = vunpack.c.l.b16 %v211
      %v352 = vunpack.c.l.b16 %v212
      %v353 = vunpack.c.l.b16 %v213
      %v354 = vunpack.c.l.b16 %v214
      %v355 = vunpack.c.l.b16 %v215
      %v356 = vunpack.c.l.b16 %v216
      %v357 = vunpack.c.l.b16 %v217
      %v358 = vunpack.c.l.b16 %v218
      %v359 = vunpack.c.l.b16 %v219
      %v360 = vunpack.c.l.b16 %v220
      %v361 = vunpack.c.l.b16 %v221
      %v362 = vunpack.c.l.b16 %v222
      %v363 = vunpack.c.l.b16 %v223
      %v364 = vpack.c.b16 %v349, %v348
      %v365 = vpack.c.b16 %v351, %v350
      %v366 = vpack.c.b16 %v353, %v352
      %v367 = vpack.c.b16 %v355, %v354
      %v368 = vpack.c.b16 %v357, %v356
      %v369 = vpack.c.b16 %v359, %v358
      %v370 = vpack.c.b16 %v361, %v360
      %v371 = vpack.c.b16 %v363, %v362
      %380 = vmatprep.subr.bf16.mxu0 0
      %381 = vmatpush1.bf16.msra.mxu0 %v364
      %382 = vmatprep.subr.bf16.mxu0 0
      %383 = vmatpush1.bf16.msra.mxu0 %v365
      %384 = vmatprep.subr.bf16.mxu0 0
      %385 = vmatpush1.bf16.msra.mxu0 %v366
      %386 = vmatprep.subr.bf16.mxu0 0
      %387 = vmatpush1.bf16.msra.mxu0 %v367
      %388 = vmatprep.subr.bf16.mxu0 0
      %389 = vmatpush1.bf16.msra.mxu0 %v368
      %390 = vmatprep.subr.bf16.mxu0 0
      %391 = vmatpush1.bf16.msra.mxu0 %v369
      %392 = vmatprep.subr.bf16.mxu0 0
      %393 = vmatpush1.bf16.msra.mxu0 %v370
      %394 = vmatprep.subr.bf16.mxu0 0
      %395 = vmatpush1.bf16.msra.mxu0 %v371
      %396 = vmatprep.subr.bf16.mxu0 0
      %397 = vmatpush1.bf16.msra.mxu0 0
      %398 = vmatprep.subr.bf16.mxu0 0
      %399 = vmatpush1.bf16.msra.mxu0 0
      %400 = vmatprep.subr.bf16.mxu0 0
      %401 = vmatpush1.bf16.msra.mxu0 0
      %402 = vmatprep.subr.bf16.mxu0 0
      %403 = vmatpush1.bf16.msra.mxu0 0
      %404 = vmatprep.subr.bf16.mxu0 0
      %405 = vmatpush1.bf16.msra.mxu0 0
      %406 = vmatprep.subr.bf16.mxu0 0
      %407 = vmatpush1.bf16.msra.mxu0 0
      %408 = vmatprep.subr.bf16.mxu0 0
      %409 = vmatpush1.bf16.msra.mxu0 0
      %410 = vmatprep.subr.bf16.mxu0 0
      %411 = vmatpush1.bf16.msra.mxu0 0
      %412 = vmatprep.mubr.bf16.mxu0 0
      %413 = vmatmul.mubr.bf16.gmra.mrb[0].mxu0 %v296
      %v414 = vpop.f32.mrb[0].mxu0
      %v415 = vadd.f32 0.0, %v414
      %v416 = vpop.f32.mrb[0].mxu0
      %v417 = vpop.f32.mrb[0].mxu0
      %v418 = vadd.f32 0.0, %v417
      %v419 = vpop.f32.mrb[0].mxu0
      %420 = vmatprep.mubr.bf16.mxu0 0
      %421 = vmatmul.mubr.bf16.gmra.mrb[0].mxu0 %v297
      %v422 = vpop.f32.mrb[0].mxu0
      %v423 = vadd.f32 0.0, %v422
      %v424 = vpop.f32.mrb[0].mxu0
      %v425 = vpop.f32.mrb[0].mxu0
      %v426 = vadd.f32 0.0, %v425
      %v427 = vpop.f32.mrb[0].mxu0
      %428 = vmatprep.mubr.bf16.mxu0 0
      %429 = vmatmul.mubr.bf16.gmra.mrb[0].mxu0 %v298
      %v430 = vpop.f32.mrb[0].mxu0
      %v431 = vadd.f32 0.0, %v430
      %v432 = vpop.f32.mrb[0].mxu0
      %v433 = vpop.f32.mrb[0].mxu0
      %v434 = vadd.f32 0.0, %v433
      %v435 = vpop.f32.mrb[0].mxu0
      %436 = vmatprep.mubr.bf16.mxu0 0
      %437 = vmatmul.mubr.bf16.gmra.mrb[0].mxu0 %v299
      %v438 = vpop.f32.mrb[0].mxu0
      %v439 = vadd.f32 0.0, %v438
      %v440 = vpop.f32.mrb[0].mxu0
      %v441 = vpop.f32.mrb[0].mxu0
      %v442 = vadd.f32 0.0, %v441
      %v443 = vpop.f32.mrb[0].mxu0
      %444 = vmatprep.mubr.bf16.mxu0 0
      %445 = vmatmul.mubr.bf16.gmra.mrb[0].mxu0 %v300
      %v446 = vpop.f32.mrb[0].mxu0
      %v447 = vadd.f32 0.0, %v446
      %v448 = vpop.f32.mrb[0].mxu0
      %v449 = vpop.f32.mrb[0].mxu0
      %v450 = vadd.f32 0.0, %v449
      %v451 = vpop.f32.mrb[0].mxu0
      %452 = vmatprep.mubr.bf16.mxu0 0
      %453 = vmatmul.mubr.bf16.gmra.mrb[0].mxu0 %v301
      %v454 = vpop.f32.mrb[0].mxu0
      %v455 = vadd.f32 0.0, %v454
      %v456 = vpop.f32.mrb[0].mxu0
      %v457 = vpop.f32.mrb[0].mxu0
      %v458 = vadd.f32 0.0, %v457
      %v459 = vpop.f32.mrb[0].mxu0
      %460 = vmatprep.mubr.bf16.mxu0 0
      %461 = vmatmul.mubr.bf16.gmra.mrb[0].mxu0 %v302
      %v462 = vpop.f32.mrb[0].mxu0
      %v463 = vadd.f32 0.0, %v462
      %v464 = vpop.f32.mrb[0].mxu0
      %v465 = vpop.f32.mrb[0].mxu0
      %v466 = vadd.f32 0.0, %v465
      %v467 = vpop.f32.mrb[0].mxu0
      %468 = vmatprep.mubr.bf16.mxu0 0
      %469 = vmatmul.mubr.bf16.gmra.mrb[0].mxu0 %v303
      %v470 = vpop.f32.mrb[0].mxu0
      %v471 = vadd.f32 0.0, %v470
      %v472 = vpop.f32.mrb[0].mxu0
      %v473 = vpop.f32.mrb[0].mxu0
      %v474 = vadd.f32 0.0, %v473
      %v475 = vpop.f32.mrb[0].mxu0
      %476 = vmatprep.mubr.bf16.mxu0 0
      %477 = vmatmul.mubr.bf16.gmra.mrb[0].mxu0 %v304
      %v478 = vpop.f32.mrb[0].mxu0
      %v479 = vadd.f32 0.0, %v478
      %v480 = vpop.f32.mrb[0].mxu0
      %v481 = vpop.f32.mrb[0].mxu0
      %v482 = vadd.f32 0.0, %v481
      %v483 = vpop.f32.mrb[0].mxu0
      %484 = vmatprep.mubr.bf16.mxu0 0
      %485 = vmatmul.mubr.bf16.gmra.mrb[0].mxu0 %v305
      %v486 = vpop.f32.mrb[0].mxu0
      %v487 = vadd.f32 0.0, %v486
      %v488 = vpop.f32.mrb[0].mxu0
      %v489 = vpop.f32.mrb[0].mxu0
      %v490 = vadd.f32 0.0, %v489
      %v491 = vpop.f32.mrb[0].mxu0
      %492 = vmatprep.mubr.bf16.mxu0 0
      %493 = vmatmul.mubr.bf16.gmra.mrb[0].mxu0 %v306
      %v494 = vpop.f32.mrb[0].mxu0
      %v495 = vadd.f32 0.0, %v494
      %v496 = vpop.f32.mrb[0].mxu0
      %v497 = vpop.f32.mrb[0].mxu0
      %v498 = vadd.f32 0.0, %v497
      %v499 = vpop.f32.mrb[0].mxu0
      %500 = vmatprep.mubr.bf16.mxu0 0
      %501 = vmatmul.mubr.bf16.gmra.mrb[0].mxu0 %v307
      %v502 = vpop.f32.mrb[0].mxu0
      %v503 = vadd.f32 0.0, %v502
      %v504 = vpop.f32.mrb[0].mxu0
      %v505 = vpop.f32.mrb[0].mxu0
      %v506 = vadd.f32 0.0, %v505
      %v507 = vpop.f32.mrb[0].mxu0
      %508 = vmatprep.mubr.bf16.mxu0 0
      %509 = vmatmul.mubr.bf16.gmra.mrb[0].mxu0 %v308
      %v510 = vpop.f32.mrb[0].mxu0
      %v511 = vadd.f32 0.0, %v510
      %v512 = vpop.f32.mrb[0].mxu0
      %v513 = vpop.f32.mrb[0].mxu0
      %v514 = vadd.f32 0.0, %v513
      %v515 = vpop.f32.mrb[0].mxu0
      %516 = vmatprep.mubr.bf16.mxu0 0
      %517 = vmatmul.mubr.bf16.gmra.mrb[0].mxu0 %v309
      %v518 = vpop.f32.mrb[0].mxu0
      %v519 = vadd.f32 0.0, %v518
      %v520 = vpop.f32.mrb[0].mxu0
      %v521 = vpop.f32.mrb[0].mxu0
      %v522 = vadd.f32 0.0, %v521
      %v523 = vpop.f32.mrb[0].mxu0
      %524 = vmatprep.mubr.bf16.mxu0 0
      %525 = vmatmul.mubr.bf16.gmra.mrb[0].mxu0 %v310
      %v526 = vpop.f32.mrb[0].mxu0
      %v527 = vadd.f32 0.0, %v526
      %v528 = vpop.f32.mrb[0].mxu0
      %v529 = vpop.f32.mrb[0].mxu0
      %v530 = vadd.f32 0.0, %v529
      %v531 = vpop.f32.mrb[0].mxu0
      %532 = vmatprep.mubr.bf16.mxu0 0
      %533 = vmatmul.mubr.bf16.gmra.mrb[0].mxu0 %v311
      %v534 = vpop.f32.mrb[0].mxu0
      %v535 = vadd.f32 0.0, %v534
      %v536 = vpop.f32.mrb[0].mxu0
      %v537 = vpop.f32.mrb[0].mxu0
      %v538 = vadd.f32 0.0, %v537
      %v539 = vpop.f32.mrb[0].mxu0
      %540 = vmatprep.mubr.bf16.mxu0 0
      %541 = vmatmul.mubr.bf16.gmra.mrb[0].mxu0 %v312
      %v542 = vpop.f32.mrb[0].mxu0
      %v543 = vadd.f32 0.0, %v542
      %v544 = vpop.f32.mrb[0].mxu0
      %v545 = vpop.f32.mrb[0].mxu0
      %v546 = vadd.f32 0.0, %v545
      %v547 = vpop.f32.mrb[0].mxu0
      %548 = vmatprep.mubr.bf16.mxu0 0
      %549 = vmatmul.mubr.bf16.gmra.mrb[0].mxu0 %v313
      %v550 = vpop.f32.mrb[0].mxu0
      %v551 = vadd.f32 0.0, %v550
      %v552 = vpop.f32.mrb[0].mxu0
      %v553 = vpop.f32.mrb[0].mxu0
      %v554 = vadd.f32 0.0, %v553
      %v555 = vpop.f32.mrb[0].mxu0
      %556 = vdwg.mxu0
      %557 = vst [vmem:[#allocation2] sm:$0xff] %v415
      %558 = vst [vmem:[#allocation2 + $0x8] sm:$0xff] %v418
      %559 = vst [vmem:[#allocation2 + $0x10] sm:$0xff] %v423
      %560 = vst [vmem:[#allocation2 + $0x18] sm:$0xff] %v426
      %561 = vst [vmem:[#allocation2 + $0x20] sm:$0xff] %v431
      %562 = vst [vmem:[#allocation2 + $0x28] sm:$0xff] %v434
      %563 = vst [vmem:[#allocation2 + $0x30] sm:$0xff] %v439
      %564 = vst [vmem:[#allocation2 + $0x38] sm:$0xff] %v442
      %565 = vst [vmem:[#allocation2 + $0x40] sm:$0xff] %v447
      %566 = vst [vmem:[#allocation2 + $0x48] sm:$0xff] %v450
      %567 = vst [vmem:[#allocation2 + $0x50] sm:$0xff] %v455
      %568 = vst [vmem:[#allocation2 + $0x58] sm:$0xff] %v458
      %569 = vst [vmem:[#allocation2 + $0x60] sm:$0xff] %v463
      %570 = vst [vmem:[#allocation2 + $0x68] sm:$0xff] %v466
      %571 = vst [vmem:[#allocation2 + $0x70] sm:$0xff] %v471
      %572 = vst [vmem:[#allocation2 + $0x78] sm:$0xff] %v474
      %573 = vst [vmem:[#allocation2 + $0x80] sm:$0xff] %v479
      %574 = vst [vmem:[#allocation2 + $0x88] sm:$0xff] %v482
      %575 = vst [vmem:[#allocation2 + $0x90] sm:$0xff] %v487
      %576 = vst [vmem:[#allocation2 + $0x98] sm:$0xff] %v490
      %577 = vst [vmem:[#allocation2 + $0xa0] sm:$0xff] %v495
      %578 = vst [vmem:[#allocation2 + $0xa8] sm:$0xff] %v498
      %579 = vst [vmem:[#allocation2 + $0xb0] sm:$0xff] %v503
      %580 = vst [vmem:[#allocation2 + $0xb8] sm:$0xff] %v506
      %581 = vst [vmem:[#allocation2 + $0xc0] sm:$0xff] %v511
      %582 = vst [vmem:[#allocation2 + $0xc8] sm:$0xff] %v514
      %583 = vst [vmem:[#allocation2 + $0xd0] sm:$0xff] %v519
      %584 = vst [vmem:[#allocation2 + $0xd8] sm:$0xff] %v522
      %585 = vst [vmem:[#allocation2 + $0xe0] sm:$0xff] %v527
      %586 = vst [vmem:[#allocation2 + $0xe8] sm:$0xff] %v530
      %587 = vst [vmem:[#allocation2 + $0xf0] sm:$0xff] %v535
      %588 = vst [vmem:[#allocation2 + $0xf8] sm:$0xff] %v538
      %589 = vst [vmem:[#allocation2 + $0x100] sm:$0xff] %v543
      %590 = vst [vmem:[#allocation2 + $0x108] sm:$0xff] %v546
      %591 = vst [vmem:[#allocation2 + $0x110] sm:$0xff] %v551
      %592 = vst [vmem:[#allocation2 + $0x118] sm:$0xff] %v554
      %v593 = vld [vmem:[%s165] sm:$0xf]
      %v594 = vld [vmem:[%s165 + $0x4] sm:$0xf]
      %v595 = vld [vmem:[%s165 + $0x8] sm:$0xf]
      %v596 = vld [vmem:[%s165 + $0xc] sm:$0xf]
      %v597 = vld [vmem:[%s165 + $0x10] sm:$0xf]
      %v598 = vld [vmem:[%s165 + $0x14] sm:$0xf]
      %v599 = vld [vmem:[%s165 + $0x18] sm:$0xf]
      %v600 = vld [vmem:[%s165 + $0x1c] sm:$0xf]
      %v601 = vld [vmem:[%s165 + $0x20] sm:$0xf]
      %v602 = vld [vmem:[%s165 + $0x24] sm:$0xf]
      %v603 = vld [vmem:[%s165 + $0x28] sm:$0xf]
      %v604 = vld [vmem:[%s165 + $0x2c] sm:$0xf]
      %v605 = vld [vmem:[%s165 + $0x30] sm:$0xf]
      %v606 = vld [vmem:[%s165 + $0x34] sm:$0xf]
      %v607 = vld [vmem:[%s165 + $0x38] sm:$0xf]
      %v608 = vld [vmem:[%s165 + $0x3c] sm:$0xf]
      %v609 = vld [vmem:[%s165 + $0x40] sm:$0xf]
      %v610 = vld [vmem:[%s165 + $0x44] sm:$0xf]
      %v611 = vld [vmem:[%s165 + $0x48] sm:$0xf]
      %v612 = vld [vmem:[%s165 + $0x4c] sm:$0xf]
      %v613 = vld [vmem:[%s165 + $0x50] sm:$0xf]
      %v614 = vld [vmem:[%s165 + $0x54] sm:$0xf]
      %v615 = vld [vmem:[%s165 + $0x58] sm:$0xf]
      %v616 = vld [vmem:[%s165 + $0x5c] sm:$0xf]
      %v617 = vld [vmem:[%s165 + $0x60] sm:$0xf]
      %v618 = vld [vmem:[%s165 + $0x64] sm:$0xf]
      %v619 = vld [vmem:[%s165 + $0x68] sm:$0xf]
      %v620 = vld [vmem:[%s165 + $0x6c] sm:$0xf]
      %v621 = vld [vmem:[%s165 + $0x70] sm:$0xf]
      %v622 = vld [vmem:[%s165 + $0x74] sm:$0xf]
      %v623 = vld [vmem:[%s165 + $0x78] sm:$0xf]
      %v624 = vld [vmem:[%s165 + $0x7c] sm:$0xf]
      %v625 = vld [vmem:[%s165 + $0x80] sm:$0xf]
      %v626 = vld [vmem:[%s165 + $0x84] sm:$0xf]
      %v627 = vld [vmem:[%s165 + $0x88] sm:$0xf]
      %v628 = vld [vmem:[%s165 + $0x8c] sm:$0xf]
      %v629 = vld [vmem:[%s165 + $0x90] sm:$0x1]
      %s630 = scalar_lea.vmem %s1, 64
      %v631 = vld [vmem:[%s630] sm:$0xf]
      %v632 = vld [vmem:[%s630 + $0x4] sm:$0xf]
      %v633 = vld [vmem:[%s630 + $0x8] sm:$0xf]
      %v634 = vld [vmem:[%s630 + $0xc] sm:$0xf]
      %v635 = vld [vmem:[%s630 + $0x10] sm:$0xf]
      %v636 = vld [vmem:[%s630 + $0x14] sm:$0xf]
      %v637 = vld [vmem:[%s630 + $0x18] sm:$0xf]
      %v638 = vld [vmem:[%s630 + $0x1c] sm:$0xf]
      %v639 = vld [vmem:[%s630 + $0x20] sm:$0xf]
      %v640 = vld [vmem:[%s630 + $0x24] sm:$0xf]
      %v641 = vld [vmem:[%s630 + $0x28] sm:$0xf]
      %v642 = vld [vmem:[%s630 + $0x2c] sm:$0xf]
      %v643 = vld [vmem:[%s630 + $0x30] sm:$0xf]
      %v644 = vld [vmem:[%s630 + $0x34] sm:$0xf]
      %v645 = vld [vmem:[%s630 + $0x38] sm:$0xf]
      %v646 = vld [vmem:[%s630 + $0x3c] sm:$0xf]
      %v684 = vunpack.c.l.b16 %v593
      %v685 = vunpack.c.l.b16 %v594
      %v686 = vunpack.c.l.b16 %v595
      %v687 = vunpack.c.l.b16 %v596
      %v688 = vunpack.c.l.b16 %v597
      %v689 = vunpack.c.l.b16 %v598
      %v690 = vunpack.c.l.b16 %v599
      %v691 = vunpack.c.l.b16 %v600
      %v692 = vunpack.c.l.b16 %v601
      %v693 = vunpack.c.l.b16 %v602
      %v694 = vunpack.c.l.b16 %v603
      %v695 = vunpack.c.l.b16 %v604
      %v696 = vunpack.c.l.b16 %v605
      %v697 = vunpack.c.l.b16 %v606
      %v698 = vunpack.c.l.b16 %v607
      %v699 = vunpack.c.l.b16 %v608
      %v700 = vunpack.c.l.b16 %v609
      %v701 = vunpack.c.l.b16 %v610
      %v702 = vunpack.c.l.b16 %v611
      %v703 = vunpack.c.l.b16 %v612
      %v704 = vunpack.c.l.b16 %v613
      %v705 = vunpack.c.l.b16 %v614
      %v706 = vunpack.c.l.b16 %v615
      %v707 = vunpack.c.l.b16 %v616
      %v708 = vunpack.c.l.b16 %v617
      %v709 = vunpack.c.l.b16 %v618
      %v710 = vunpack.c.l.b16 %v619
      %v711 = vunpack.c.l.b16 %v620
      %v712 = vunpack.c.l.b16 %v621
      %v713 = vunpack.c.l.b16 %v622
      %v714 = vunpack.c.l.b16 %v623
      %v715 = vunpack.c.l.b16 %v624
      %v716 = vunpack.c.l.b16 %v625
      %v717 = vunpack.c.l.b16 %v626
      %v718 = vunpack.c.l.b16 %v627
      %v719 = vunpack.c.l.b16 %v628
      %v720 = vunpack.c.l.b16 %v629
      %v721 = vpack.c.b16 %v685, %v684
      %v722 = vpack.c.b16 %v687, %v686
      %v723 = vpack.c.b16 %v689, %v688
      %v724 = vpack.c.b16 %v691, %v690
      %v725 = vpack.c.b16 %v693, %v692
      %v726 = vpack.c.b16 %v695, %v694
      %v727 = vpack.c.b16 %v697, %v696
      %v728 = vpack.c.b16 %v699, %v698
      %v729 = vpack.c.b16 %v701, %v700
      %v730 = vpack.c.b16 %v703, %v702
      %v731 = vpack.c.b16 %v705, %v704
      %v732 = vpack.c.b16 %v707, %v706
      %v733 = vpack.c.b16 %v709, %v708
      %v734 = vpack.c.b16 %v711, %v710
      %v735 = vpack.c.b16 %v713, %v712
      %v736 = vpack.c.b16 %v715, %v714
      %v737 = vpack.c.b16 %v717, %v716
      %v738 = vpack.c.b16 %v719, %v718
      %v739 = vpack.c.b16 %v720, %v720
      %vm740 = vsmask.f32 7424
      %v742 = vshrl.u32 %v721, 16
      %v744 = vshll.u32 %v721, 16
      %v746 = vrot.slane %v744, 1
      %v747 = vor.u32 %v742, %v746
      %v749 = vshll.u32 %v722, 16
      %v751 = vrot.slane %v749, 1
      %v752 = vsel %vm740, %v747, %v751
      %v753 = vshrl.u32 %v722, 16
      %v755 = vor.u32 %v753, %v751
      %v757 = vshll.u32 %v723, 16
      %v759 = vrot.slane %v757, 1
      %v760 = vsel %vm740, %v755, %v759
      %v761 = vshrl.u32 %v723, 16
      %v763 = vor.u32 %v761, %v759
      %v765 = vshll.u32 %v724, 16
      %v767 = vrot.slane %v765, 1
      %v768 = vsel %vm740, %v763, %v767
      %v769 = vshrl.u32 %v724, 16
      %v771 = vor.u32 %v769, %v767
      %v773 = vshll.u32 %v725, 16
      %v775 = vrot.slane %v773, 1
      %v776 = vsel %vm740, %v771, %v775
      %v777 = vshrl.u32 %v725, 16
      %v779 = vor.u32 %v777, %v775
      %v781 = vshll.u32 %v726, 16
      %v783 = vrot.slane %v781, 1
      %v784 = vsel %vm740, %v779, %v783
      %v785 = vshrl.u32 %v726, 16
      %v787 = vor.u32 %v785, %v783
      %v789 = vshll.u32 %v727, 16
      %v791 = vrot.slane %v789, 1
      %v792 = vsel %vm740, %v787, %v791
      %v793 = vshrl.u32 %v727, 16
      %v795 = vor.u32 %v793, %v791
      %v797 = vshll.u32 %v728, 16
      %v799 = vrot.slane %v797, 1
      %v800 = vsel %vm740, %v795, %v799
      %v801 = vshrl.u32 %v728, 16
      %v803 = vor.u32 %v801, %v799
      %v805 = vshll.u32 %v729, 16
      %v807 = vrot.slane %v805, 1
      %v808 = vsel %vm740, %v803, %v807
      %v809 = vshrl.u32 %v729, 16
      %v811 = vor.u32 %v809, %v807
      %v813 = vshll.u32 %v730, 16
      %v815 = vrot.slane %v813, 1
      %v816 = vsel %vm740, %v811, %v815
      %v817 = vshrl.u32 %v730, 16
      %v819 = vor.u32 %v817, %v815
      %v821 = vshll.u32 %v731, 16
      %v823 = vrot.slane %v821, 1
      %v824 = vsel %vm740, %v819, %v823
      %v825 = vshrl.u32 %v731, 16
      %v827 = vor.u32 %v825, %v823
      %v829 = vshll.u32 %v732, 16
      %v831 = vrot.slane %v829, 1
      %v832 = vsel %vm740, %v827, %v831
      %v833 = vshrl.u32 %v732, 16
      %v835 = vor.u32 %v833, %v831
      %v837 = vshll.u32 %v733, 16
      %v839 = vrot.slane %v837, 1
      %v840 = vsel %vm740, %v835, %v839
      %v841 = vshrl.u32 %v733, 16
      %v843 = vor.u32 %v841, %v839
      %v845 = vshll.u32 %v734, 16
      %v847 = vrot.slane %v845, 1
      %v848 = vsel %vm740, %v843, %v847
      %v849 = vshrl.u32 %v734, 16
      %v851 = vor.u32 %v849, %v847
      %v853 = vshll.u32 %v735, 16
      %v855 = vrot.slane %v853, 1
      %v856 = vsel %vm740, %v851, %v855
      %v857 = vshrl.u32 %v735, 16
      %v859 = vor.u32 %v857, %v855
      %v861 = vshll.u32 %v736, 16
      %v863 = vrot.slane %v861, 1
      %v864 = vsel %vm740, %v859, %v863
      %v865 = vshrl.u32 %v736, 16
      %v867 = vor.u32 %v865, %v863
      %v869 = vshll.u32 %v737, 16
      %v871 = vrot.slane %v869, 1
      %v872 = vsel %vm740, %v867, %v871
      %v873 = vshrl.u32 %v737, 16
      %v875 = vor.u32 %v873, %v871
      %v877 = vshll.u32 %v738, 16
      %v879 = vrot.slane %v877, 1
      %v880 = vsel %vm740, %v875, %v879
      %v881 = vshrl.u32 %v738, 16
      %v883 = vor.u32 %v881, %v879
      %v885 = vshll.u32 %v739, 16
      %v887 = vrot.slane %v885, 1
      %v888 = vsel %vm740, %v883, %v887
      %v923 = vunpack.c.l.b16 %v631
      %v924 = vunpack.c.l.b16 %v632
      %v925 = vunpack.c.l.b16 %v633
      %v926 = vunpack.c.l.b16 %v634
      %v927 = vunpack.c.l.b16 %v635
      %v928 = vunpack.c.l.b16 %v636
      %v929 = vunpack.c.l.b16 %v637
      %v930 = vunpack.c.l.b16 %v638
      %v931 = vunpack.c.l.b16 %v639
      %v932 = vunpack.c.l.b16 %v640
      %v933 = vunpack.c.l.b16 %v641
      %v934 = vunpack.c.l.b16 %v642
      %v935 = vunpack.c.l.b16 %v643
      %v936 = vunpack.c.l.b16 %v644
      %v937 = vunpack.c.l.b16 %v645
      %v938 = vunpack.c.l.b16 %v646
      %v939 = vpack.c.b16 %v924, %v923
      %v940 = vpack.c.b16 %v926, %v925
      %v941 = vpack.c.b16 %v928, %v927
      %v942 = vpack.c.b16 %v930, %v929
      %v943 = vpack.c.b16 %v932, %v931
      %v944 = vpack.c.b16 %v934, %v933
      %v945 = vpack.c.b16 %v936, %v935
      %v946 = vpack.c.b16 %v938, %v937
      %955 = vmatprep.subr.bf16.mxu0 0
      %956 = vmatpush1.bf16.msra.mxu0 %v939
      %957 = vmatprep.subr.bf16.mxu0 0
      %958 = vmatpush1.bf16.msra.mxu0 %v940
      %959 = vmatprep.subr.bf16.mxu0 0
      %960 = vmatpush1.bf16.msra.mxu0 %v941
      %961 = vmatprep.subr.bf16.mxu0 0
      %962 = vmatpush1.bf16.msra.mxu0 %v942
      %963 = vmatprep.subr.bf16.mxu0 0
      %964 = vmatpush1.bf16.msra.mxu0 %v943
      %965 = vmatprep.subr.bf16.mxu0 0
      %966 = vmatpush1.bf16.msra.mxu0 %v944
      %967 = vmatprep.subr.bf16.mxu0 0
      %968 = vmatpush1.bf16.msra.mxu0 %v945
      %969 = vmatprep.subr.bf16.mxu0 0
      %970 = vmatpush1.bf16.msra.mxu0 %v946
      %971 = vmatprep.subr.bf16.mxu0 0
      %972 = vmatpush1.bf16.msra.mxu0 0
      %973 = vmatprep.subr.bf16.mxu0 0
      %974 = vmatpush1.bf16.msra.mxu0 0
      %975 = vmatprep.subr.bf16.mxu0 0
      %976 = vmatpush1.bf16.msra.mxu0 0
      %977 = vmatprep.subr.bf16.mxu0 0
      %978 = vmatpush1.bf16.msra.mxu0 0
      %979 = vmatprep.subr.bf16.mxu0 0
      %980 = vmatpush1.bf16.msra.mxu0 0
      %981 = vmatprep.subr.bf16.mxu0 0
      %982 = vmatpush1.bf16.msra.mxu0 0
      %983 = vmatprep.subr.bf16.mxu0 0
      %984 = vmatpush1.bf16.msra.mxu0 0
      %985 = vmatprep.subr.bf16.mxu0 0
      %986 = vmatpush1.bf16.msra.mxu0 0
      %987 = vmatprep.mubr.bf16.mxu0 0
      %988 = vmatmul.mubr.bf16.gmra.mrb[0].mxu0 %v752
      %v989 = vpop.f32.mrb[0].mxu0
      %v990 = vadd.f32 0.0, %v989
      %v991 = vpop.f32.mrb[0].mxu0
      %v992 = vpop.f32.mrb[0].mxu0
      %v993 = vadd.f32 0.0, %v992
      %v994 = vpop.f32.mrb[0].mxu0
      %995 = vmatprep.mubr.bf16.mxu0 0
      %996 = vmatmul.mubr.bf16.gmra.mrb[0].mxu0 %v760
      %v997 = vpop.f32.mrb[0].mxu0
      %v998 = vadd.f32 0.0, %v997
      %v999 = vpop.f32.mrb[0].mxu0
      %v1000 = vpop.f32.mrb[0].mxu0
      %v1001 = vadd.f32 0.0, %v1000
      %v1002 = vpop.f32.mrb[0].mxu0
      %1003 = vmatprep.mubr.bf16.mxu0 0
      %1004 = vmatmul.mubr.bf16.gmra.mrb[0].mxu0 %v768
      %v1005 = vpop.f32.mrb[0].mxu0
      %v1006 = vadd.f32 0.0, %v1005
      %v1007 = vpop.f32.mrb[0].mxu0
      %v1008 = vpop.f32.mrb[0].mxu0
      %v1009 = vadd.f32 0.0, %v1008
      %v1010 = vpop.f32.mrb[0].mxu0
      %1011 = vmatprep.mubr.bf16.mxu0 0
      %1012 = vmatmul.mubr.bf16.gmra.mrb[0].mxu0 %v776
      %v1013 = vpop.f32.mrb[0].mxu0
      %v1014 = vadd.f32 0.0, %v1013
      %v1015 = vpop.f32.mrb[0].mxu0
      %v1016 = vpop.f32.mrb[0].mxu0
      %v1017 = vadd.f32 0.0, %v1016
      %v1018 = vpop.f32.mrb[0].mxu0
      %1019 = vmatprep.mubr.bf16.mxu0 0
      %1020 = vmatmul.mubr.bf16.gmra.mrb[0].mxu0 %v784
      %v1021 = vpop.f32.mrb[0].mxu0
      %v1022 = vadd.f32 0.0, %v1021
      %v1023 = vpop.f32.mrb[0].mxu0
      %v1024 = vpop.f32.mrb[0].mxu0
      %v1025 = vadd.f32 0.0, %v1024
      %v1026 = vpop.f32.mrb[0].mxu0
      %1027 = vmatprep.mubr.bf16.mxu0 0
      %1028 = vmatmul.mubr.bf16.gmra.mrb[0].mxu0 %v792
      %v1029 = vpop.f32.mrb[0].mxu0
      %v1030 = vadd.f32 0.0, %v1029
      %v1031 = vpop.f32.mrb[0].mxu0
      %v1032 = vpop.f32.mrb[0].mxu0
      %v1033 = vadd.f32 0.0, %v1032
      %v1034 = vpop.f32.mrb[0].mxu0
      %1035 = vmatprep.mubr.bf16.mxu0 0
      %1036 = vmatmul.mubr.bf16.gmra.mrb[0].mxu0 %v800
      %v1037 = vpop.f32.mrb[0].mxu0
      %v1038 = vadd.f32 0.0, %v1037
      %v1039 = vpop.f32.mrb[0].mxu0
      %v1040 = vpop.f32.mrb[0].mxu0
      %v1041 = vadd.f32 0.0, %v1040
      %v1042 = vpop.f32.mrb[0].mxu0
      %1043 = vmatprep.mubr.bf16.mxu0 0
      %1044 = vmatmul.mubr.bf16.gmra.mrb[0].mxu0 %v808
      %v1045 = vpop.f32.mrb[0].mxu0
      %v1046 = vadd.f32 0.0, %v1045
      %v1047 = vpop.f32.mrb[0].mxu0
      %v1048 = vpop.f32.mrb[0].mxu0
      %v1049 = vadd.f32 0.0, %v1048
      %v1050 = vpop.f32.mrb[0].mxu0
      %1051 = vmatprep.mubr.bf16.mxu0 0
      %1052 = vmatmul.mubr.bf16.gmra.mrb[0].mxu0 %v816
      %v1053 = vpop.f32.mrb[0].mxu0
      %v1054 = vadd.f32 0.0, %v1053
      %v1055 = vpop.f32.mrb[0].mxu0
      %v1056 = vpop.f32.mrb[0].mxu0
      %v1057 = vadd.f32 0.0, %v1056
      %v1058 = vpop.f32.mrb[0].mxu0
      %1059 = vmatprep.mubr.bf16.mxu0 0
      %1060 = vmatmul.mubr.bf16.gmra.mrb[0].mxu0 %v824
      %v1061 = vpop.f32.mrb[0].mxu0
      %v1062 = vadd.f32 0.0, %v1061
      %v1063 = vpop.f32.mrb[0].mxu0
      %v1064 = vpop.f32.mrb[0].mxu0
      %v1065 = vadd.f32 0.0, %v1064
      %v1066 = vpop.f32.mrb[0].mxu0
      %1067 = vmatprep.mubr.bf16.mxu0 0
      %1068 = vmatmul.mubr.bf16.gmra.mrb[0].mxu0 %v832
      %v1069 = vpop.f32.mrb[0].mxu0
      %v1070 = vadd.f32 0.0, %v1069
      %v1071 = vpop.f32.mrb[0].mxu0
      %v1072 = vpop.f32.mrb[0].mxu0
      %v1073 = vadd.f32 0.0, %v1072
      %v1074 = vpop.f32.mrb[0].mxu0
      %1075 = vmatprep.mubr.bf16.mxu0 0
      %1076 = vmatmul.mubr.bf16.gmra.mrb[0].mxu0 %v840
      %v1077 = vpop.f32.mrb[0].mxu0
      %v1078 = vadd.f32 0.0, %v1077
      %v1079 = vpop.f32.mrb[0].mxu0
      %v1080 = vpop.f32.mrb[0].mxu0
      %v1081 = vadd.f32 0.0, %v1080
      %v1082 = vpop.f32.mrb[0].mxu0
      %1083 = vmatprep.mubr.bf16.mxu0 0
      %1084 = vmatmul.mubr.bf16.gmra.mrb[0].mxu0 %v848
      %v1085 = vpop.f32.mrb[0].mxu0
      %v1086 = vadd.f32 0.0, %v1085
      %v1087 = vpop.f32.mrb[0].mxu0
      %v1088 = vpop.f32.mrb[0].mxu0
      %v1089 = vadd.f32 0.0, %v1088
      %v1090 = vpop.f32.mrb[0].mxu0
      %1091 = vmatprep.mubr.bf16.mxu0 0
      %1092 = vmatmul.mubr.bf16.gmra.mrb[0].mxu0 %v856
      %v1093 = vpop.f32.mrb[0].mxu0
      %v1094 = vadd.f32 0.0, %v1093
      %v1095 = vpop.f32.mrb[0].mxu0
      %v1096 = vpop.f32.mrb[0].mxu0
      %v1097 = vadd.f32 0.0, %v1096
      %v1098 = vpop.f32.mrb[0].mxu0
      %1099 = vmatprep.mubr.bf16.mxu0 0
      %1100 = vmatmul.mubr.bf16.gmra.mrb[0].mxu0 %v864
      %v1101 = vpop.f32.mrb[0].mxu0
      %v1102 = vadd.f32 0.0, %v1101
      %v1103 = vpop.f32.mrb[0].mxu0
      %v1104 = vpop.f32.mrb[0].mxu0
      %v1105 = vadd.f32 0.0, %v1104
      %v1106 = vpop.f32.mrb[0].mxu0
      %1107 = vmatprep.mubr.bf16.mxu0 0
      %1108 = vmatmul.mubr.bf16.gmra.mrb[0].mxu0 %v872
      %v1109 = vpop.f32.mrb[0].mxu0
      %v1110 = vadd.f32 0.0, %v1109
      %v1111 = vpop.f32.mrb[0].mxu0
      %v1112 = vpop.f32.mrb[0].mxu0
      %v1113 = vadd.f32 0.0, %v1112
      %v1114 = vpop.f32.mrb[0].mxu0
      %1115 = vmatprep.mubr.bf16.mxu0 0
      %1116 = vmatmul.mubr.bf16.gmra.mrb[0].mxu0 %v880
      %v1117 = vpop.f32.mrb[0].mxu0
      %v1118 = vadd.f32 0.0, %v1117
      %v1119 = vpop.f32.mrb[0].mxu0
      %v1120 = vpop.f32.mrb[0].mxu0
      %v1121 = vadd.f32 0.0, %v1120
      %v1122 = vpop.f32.mrb[0].mxu0
      %1123 = vmatprep.mubr.bf16.mxu0 0
      %1124 = vmatmul.mubr.bf16.gmra.mrb[0].mxu0 %v888
      %v1125 = vpop.f32.mrb[0].mxu0
      %v1126 = vadd.f32 0.0, %v1125
      %v1127 = vpop.f32.mrb[0].mxu0
      %v1128 = vpop.f32.mrb[0].mxu0
      %v1129 = vadd.f32 0.0, %v1128
      %v1130 = vpop.f32.mrb[0].mxu0
      %1131 = vdwg.mxu0
      %v1132 = vld [vmem:[#allocation2] sm:$0xff]
      %v1133 = vld [vmem:[#allocation2 + $0x8] sm:$0xff]
      %v1134 = vld [vmem:[#allocation2 + $0x10] sm:$0xff]
      %v1135 = vld [vmem:[#allocation2 + $0x18] sm:$0xff]
      %v1136 = vld [vmem:[#allocation2 + $0x20] sm:$0xff]
      %v1137 = vld [vmem:[#allocation2 + $0x28] sm:$0xff]
      %v1138 = vld [vmem:[#allocation2 + $0x30] sm:$0xff]
      %v1139 = vld [vmem:[#allocation2 + $0x38] sm:$0xff]
      %v1140 = vld [vmem:[#allocation2 + $0x40] sm:$0xff]
      %v1141 = vld [vmem:[#allocation2 + $0x48] sm:$0xff]
      %v1142 = vld [vmem:[#allocation2 + $0x50] sm:$0xff]
      %v1143 = vld [vmem:[#allocation2 + $0x58] sm:$0xff]
      %v1144 = vld [vmem:[#allocation2 + $0x60] sm:$0xff]
      %v1145 = vld [vmem:[#allocation2 + $0x68] sm:$0xff]
      %v1146 = vld [vmem:[#allocation2 + $0x70] sm:$0xff]
      %v1147 = vld [vmem:[#allocation2 + $0x78] sm:$0xff]
      %v1148 = vld [vmem:[#allocation2 + $0x80] sm:$0xff]
      %v1149 = vld [vmem:[#allocation2 + $0x88] sm:$0xff]
      %v1150 = vld [vmem:[#allocation2 + $0x90] sm:$0xff]
      %v1151 = vld [vmem:[#allocation2 + $0x98] sm:$0xff]
      %v1152 = vld [vmem:[#allocation2 + $0xa0] sm:$0xff]
      %v1153 = vld [vmem:[#allocation2 + $0xa8] sm:$0xff]
      %v1154 = vld [vmem:[#allocation2 + $0xb0] sm:$0xff]
      %v1155 = vld [vmem:[#allocation2 + $0xb8] sm:$0xff]
      %v1156 = vld [vmem:[#allocation2 + $0xc0] sm:$0xff]
      %v1157 = vld [vmem:[#allocation2 + $0xc8] sm:$0xff]
      %v1158 = vld [vmem:[#allocation2 + $0xd0] sm:$0xff]
      %v1159 = vld [vmem:[#allocation2 + $0xd8] sm:$0xff]
      %v1160 = vld [vmem:[#allocation2 + $0xe0] sm:$0xff]
      %v1161 = vld [vmem:[#allocation2 + $0xe8] sm:$0xff]
      %v1162 = vld [vmem:[#allocation2 + $0xf0] sm:$0xff]
      %v1163 = vld [vmem:[#allocation2 + $0xf8] sm:$0xff]
      %v1164 = vld [vmem:[#allocation2 + $0x100] sm:$0xff]
      %v1165 = vld [vmem:[#allocation2 + $0x108] sm:$0xff]
      %v1166 = vld [vmem:[#allocation2 + $0x110] sm:$0xff]
      %v1167 = vld [vmem:[#allocation2 + $0x118] sm:$0xff]
      %v1168 = vadd.f32 %v1132, %v990
      %v1169 = vadd.f32 %v1133, %v993
      %v1170 = vadd.f32 %v1134, %v998
      %v1171 = vadd.f32 %v1135, %v1001
      %v1172 = vadd.f32 %v1136, %v1006
      %v1173 = vadd.f32 %v1137, %v1009
      %v1174 = vadd.f32 %v1138, %v1014
      %v1175 = vadd.f32 %v1139, %v1017
      %v1176 = vadd.f32 %v1140, %v1022
      %v1177 = vadd.f32 %v1141, %v1025
      %v1178 = vadd.f32 %v1142, %v1030
      %v1179 = vadd.f32 %v1143, %v1033
      %v1180 = vadd.f32 %v1144, %v1038
      %v1181 = vadd.f32 %v1145, %v1041
      %v1182 = vadd.f32 %v1146, %v1046
      %v1183 = vadd.f32 %v1147, %v1049
      %v1184 = vadd.f32 %v1148, %v1054
      %v1185 = vadd.f32 %v1149, %v1057
      %v1186 = vadd.f32 %v1150, %v1062
      %v1187 = vadd.f32 %v1151, %v1065
      %v1188 = vadd.f32 %v1152, %v1070
      %v1189 = vadd.f32 %v1153, %v1073
      %v1190 = vadd.f32 %v1154, %v1078
      %v1191 = vadd.f32 %v1155, %v1081
      %v1192 = vadd.f32 %v1156, %v1086
      %v1193 = vadd.f32 %v1157, %v1089
      %v1194 = vadd.f32 %v1158, %v1094
      %v1195 = vadd.f32 %v1159, %v1097
      %v1196 = vadd.f32 %v1160, %v1102
      %v1197 = vadd.f32 %v1161, %v1105
      %v1198 = vadd.f32 %v1162, %v1110
      %v1199 = vadd.f32 %v1163, %v1113
      %v1200 = vadd.f32 %v1164, %v1118
      %v1201 = vadd.f32 %v1165, %v1121
      %v1202 = vadd.f32 %v1166, %v1126
      %v1203 = vadd.f32 %v1167, %v1129
      %1204 = vst [vmem:[#allocation2] sm:$0xff] %v1168
      %1205 = vst [vmem:[#allocation2 + $0x8] sm:$0xff] %v1169
      %1206 = vst [vmem:[#allocation2 + $0x10] sm:$0xff] %v1170
      %1207 = vst [vmem:[#allocation2 + $0x18] sm:$0xff] %v1171
      %1208 = vst [vmem:[#allocation2 + $0x20] sm:$0xff] %v1172
      %1209 = vst [vmem:[#allocation2 + $0x28] sm:$0xff] %v1173
      %1210 = vst [vmem:[#allocation2 + $0x30] sm:$0xff] %v1174
      %1211 = vst [vmem:[#allocation2 + $0x38] sm:$0xff] %v1175
      %1212 = vst [vmem:[#allocation2 + $0x40] sm:$0xff] %v1176
      %1213 = vst [vmem:[#allocation2 + $0x48] sm:$0xff] %v1177
      %1214 = vst [vmem:[#allocation2 + $0x50] sm:$0xff] %v1178
      %1215 = vst [vmem:[#allocation2 + $0x58] sm:$0xff] %v1179
      %1216 = vst [vmem:[#allocation2 + $0x60] sm:$0xff] %v1180
      %1217 = vst [vmem:[#allocation2 + $0x68] sm:$0xff] %v1181
      %1218 = vst [vmem:[#allocation2 + $0x70] sm:$0xff] %v1182
      %1219 = vst [vmem:[#allocation2 + $0x78] sm:$0xff] %v1183
      %1220 = vst [vmem:[#allocation2 + $0x80] sm:$0xff] %v1184
      %1221 = vst [vmem:[#allocation2 + $0x88] sm:$0xff] %v1185
      %1222 = vst [vmem:[#allocation2 + $0x90] sm:$0xff] %v1186
      %1223 = vst [vmem:[#allocation2 + $0x98] sm:$0xff] %v1187
      %1224 = vst [vmem:[#allocation2 + $0xa0] sm:$0xff] %v1188
      %1225 = vst [vmem:[#allocation2 + $0xa8] sm:$0xff] %v1189
      %1226 = vst [vmem:[#allocation2 + $0xb0] sm:$0xff] %v1190
      %1227 = vst [vmem:[#allocation2 + $0xb8] sm:$0xff] %v1191
      %1228 = vst [vmem:[#allocation2 + $0xc0] sm:$0xff] %v1192
      %1229 = vst [vmem:[#allocation2 + $0xc8] sm:$0xff] %v1193
      %1230 = vst [vmem:[#allocation2 + $0xd0] sm:$0xff] %v1194
      %1231 = vst [vmem:[#allocation2 + $0xd8] sm:$0xff] %v1195
      %1232 = vst [vmem:[#allocation2 + $0xe0] sm:$0xff] %v1196
      %1233 = vst [vmem:[#allocation2 + $0xe8] sm:$0xff] %v1197
      %1234 = vst [vmem:[#allocation2 + $0xf0] sm:$0xff] %v1198
      %1235 = vst [vmem:[#allocation2 + $0xf8] sm:$0xff] %v1199
      %1236 = vst [vmem:[#allocation2 + $0x100] sm:$0xff] %v1200
      %1237 = vst [vmem:[#allocation2 + $0x108] sm:$0xff] %v1201
      %1238 = vst [vmem:[#allocation2 + $0x110] sm:$0xff] %v1202
      %1239 = vst [vmem:[#allocation2 + $0x118] sm:$0xff] %v1203
      %v1240 = vld [vmem:[%s165] sm:$0xe]
      %v1241 = vld [vmem:[%s165 + $0x4] sm:$0xf]
      %v1242 = vld [vmem:[%s165 + $0x8] sm:$0xf]
      %v1243 = vld [vmem:[%s165 + $0xc] sm:$0xf]
      %v1244 = vld [vmem:[%s165 + $0x10] sm:$0xf]
      %v1245 = vld [vmem:[%s165 + $0x14] sm:$0xf]
      %v1246 = vld [vmem:[%s165 + $0x18] sm:$0xf]
      %v1247 = vld [vmem:[%s165 + $0x1c] sm:$0xf]
      %v1248 = vld [vmem:[%s165 + $0x20] sm:$0xf]
      %v1249 = vld [vmem:[%s165 + $0x24] sm:$0xf]
      %v1250 = vld [vmem:[%s165 + $0x28] sm:$0xf]
      %v1251 = vld [vmem:[%s165 + $0x2c] sm:$0xf]
      %v1252 = vld [vmem:[%s165 + $0x30] sm:$0xf]
      %v1253 = vld [vmem:[%s165 + $0x34] sm:$0xf]
      %v1254 = vld [vmem:[%s165 + $0x38] sm:$0xf]
      %v1255 = vld [vmem:[%s165 + $0x3c] sm:$0xf]
      %v1256 = vld [vmem:[%s165 + $0x40] sm:$0xf]
      %v1257 = vld [vmem:[%s165 + $0x44] sm:$0xf]
      %v1258 = vld [vmem:[%s165 + $0x48] sm:$0xf]
      %v1259 = vld [vmem:[%s165 + $0x4c] sm:$0xf]
      %v1260 = vld [vmem:[%s165 + $0x50] sm:$0xf]
      %v1261 = vld [vmem:[%s165 + $0x54] sm:$0xf]
      %v1262 = vld [vmem:[%s165 + $0x58] sm:$0xf]
      %v1263 = vld [vmem:[%s165 + $0x5c] sm:$0xf]
      %v1264 = vld [vmem:[%s165 + $0x60] sm:$0xf]
      %v1265 = vld [vmem:[%s165 + $0x64] sm:$0xf]
      %v1266 = vld [vmem:[%s165 + $0x68] sm:$0xf]
      %v1267 = vld [vmem:[%s165 + $0x6c] sm:$0xf]
      %v1268 = vld [vmem:[%s165 + $0x70] sm:$0xf]
      %v1269 = vld [vmem:[%s165 + $0x74] sm:$0xf]
      %v1270 = vld [vmem:[%s165 + $0x78] sm:$0xf]
      %v1271 = vld [vmem:[%s165 + $0x7c] sm:$0xf]
      %v1272 = vld [vmem:[%s165 + $0x80] sm:$0xf]
      %v1273 = vld [vmem:[%s165 + $0x84] sm:$0xf]
      %v1274 = vld [vmem:[%s165 + $0x88] sm:$0xf]
      %v1275 = vld [vmem:[%s165 + $0x8c] sm:$0xf]
      %v1276 = vld [vmem:[%s165 + $0x90] sm:$0x1]
      %s1277 = scalar_lea.vmem %s1, 128
      %v1278 = vld [vmem:[%s1277] sm:$0xf]
      %v1279 = vld [vmem:[%s1277 + $0x4] sm:$0xf]
      %v1280 = vld [vmem:[%s1277 + $0x8] sm:$0xf]
      %v1281 = vld [vmem:[%s1277 + $0xc] sm:$0xf]
      %v1282 = vld [vmem:[%s1277 + $0x10] sm:$0xf]
      %v1283 = vld [vmem:[%s1277 + $0x14] sm:$0xf]
      %v1284 = vld [vmem:[%s1277 + $0x18] sm:$0xf]
      %v1285 = vld [vmem:[%s1277 + $0x1c] sm:$0xf]
      %v1286 = vld [vmem:[%s1277 + $0x20] sm:$0xf]
      %v1287 = vld [vmem:[%s1277 + $0x24] sm:$0xf]
      %v1288 = vld [vmem:[%s1277 + $0x28] sm:$0xf]
      %v1289 = vld [vmem:[%s1277 + $0x2c] sm:$0xf]
      %v1290 = vld [vmem:[%s1277 + $0x30] sm:$0xf]
      %v1291 = vld [vmem:[%s1277 + $0x34] sm:$0xf]
      %v1292 = vld [vmem:[%s1277 + $0x38] sm:$0xf]
      %v1293 = vld [vmem:[%s1277 + $0x3c] sm:$0xf]
      %v1331 = vunpack.c.l.b16 %v1240
      %v1332 = vunpack.c.l.b16 %v1241
      %v1333 = vunpack.c.l.b16 %v1242
      %v1334 = vunpack.c.l.b16 %v1243
      %v1335 = vunpack.c.l.b16 %v1244
      %v1336 = vunpack.c.l.b16 %v1245
      %v1337 = vunpack.c.l.b16 %v1246
      %v1338 = vunpack.c.l.b16 %v1247
      %v1339 = vunpack.c.l.b16 %v1248
      %v1340 = vunpack.c.l.b16 %v1249
      %v1341 = vunpack.c.l.b16 %v1250
      %v1342 = vunpack.c.l.b16 %v1251
      %v1343 = vunpack.c.l.b16 %v1252
      %v1344 = vunpack.c.l.b16 %v1253
      %v1345 = vunpack.c.l.b16 %v1254
      %v1346 = vunpack.c.l.b16 %v1255
      %v1347 = vunpack.c.l.b16 %v1256
      %v1348 = vunpack.c.l.b16 %v1257
      %v1349 = vunpack.c.l.b16 %v1258
      %v1350 = vunpack.c.l.b16 %v1259
      %v1351 = vunpack.c.l.b16 %v1260
      %v1352 = vunpack.c.l.b16 %v1261
      %v1353 = vunpack.c.l.b16 %v1262
      %v1354 = vunpack.c.l.b16 %v1263
      %v1355 = vunpack.c.l.b16 %v1264
      %v1356 = vunpack.c.l.b16 %v1265
      %v1357 = vunpack.c.l.b16 %v1266
      %v1358 = vunpack.c.l.b16 %v1267
      %v1359 = vunpack.c.l.b16 %v1268
      %v1360 = vunpack.c.l.b16 %v1269
      %v1361 = vunpack.c.l.b16 %v1270
      %v1362 = vunpack.c.l.b16 %v1271
      %v1363 = vunpack.c.l.b16 %v1272
      %v1364 = vunpack.c.l.b16 %v1273
      %v1365 = vunpack.c.l.b16 %v1274
      %v1366 = vunpack.c.l.b16 %v1275
      %v1367 = vunpack.c.l.b16 %v1276
      %v1368 = vpack.c.b16 %v1332, %v1331
      %v1369 = vpack.c.b16 %v1334, %v1333
      %v1370 = vpack.c.b16 %v1336, %v1335
      %v1371 = vpack.c.b16 %v1338, %v1337
      %v1372 = vpack.c.b16 %v1340, %v1339
      %v1373 = vpack.c.b16 %v1342, %v1341
      %v1374 = vpack.c.b16 %v1344, %v1343
      %v1375 = vpack.c.b16 %v1346, %v1345
      %v1376 = vpack.c.b16 %v1348, %v1347
      %v1377 = vpack.c.b16 %v1350, %v1349
      %v1378 = vpack.c.b16 %v1352, %v1351
      %v1379 = vpack.c.b16 %v1354, %v1353
      %v1380 = vpack.c.b16 %v1356, %v1355
      %v1381 = vpack.c.b16 %v1358, %v1357
      %v1382 = vpack.c.b16 %v1360, %v1359
      %v1383 = vpack.c.b16 %v1362, %v1361
      %v1384 = vpack.c.b16 %v1364, %v1363
      %v1385 = vpack.c.b16 %v1366, %v1365
      %v1386 = vpack.c.b16 %v1367, %v1367
      %vm1387 = vcmask 1046528
      %v1388 = vrot.slane %v1368, 1
      %v1389 = vrot.slane %v1369, 1
      %v1390 = vsel %vm1387, %v1388, %v1389
      %v1391 = vrot.slane %v1370, 1
      %v1392 = vsel %vm1387, %v1389, %v1391
      %v1393 = vrot.slane %v1371, 1
      %v1394 = vsel %vm1387, %v1391, %v1393
      %v1395 = vrot.slane %v1372, 1
      %v1396 = vsel %vm1387, %v1393, %v1395
      %v1397 = vrot.slane %v1373, 1
      %v1398 = vsel %vm1387, %v1395, %v1397
      %v1399 = vrot.slane %v1374, 1
      %v1400 = vsel %vm1387, %v1397, %v1399
      %v1401 = vrot.slane %v1375, 1
      %v1402 = vsel %vm1387, %v1399, %v1401
      %v1403 = vrot.slane %v1376, 1
      %v1404 = vsel %vm1387, %v1401, %v1403
      %v1405 = vrot.slane %v1377, 1
      %v1406 = vsel %vm1387, %v1403, %v1405
      %v1407 = vrot.slane %v1378, 1
      %v1408 = vsel %vm1387, %v1405, %v1407
      %v1409 = vrot.slane %v1379, 1
      %v1410 = vsel %vm1387, %v1407, %v1409
      %v1411 = vrot.slane %v1380, 1
      %v1412 = vsel %vm1387, %v1409, %v1411
      %v1413 = vrot.slane %v1381, 1
      %v1414 = vsel %vm1387, %v1411, %v1413
      %v1415 = vrot.slane %v1382, 1
      %v1416 = vsel %vm1387, %v1413, %v1415
      %v1417 = vrot.slane %v1383, 1
      %v1418 = vsel %vm1387, %v1415, %v1417
      %v1419 = vrot.slane %v1384, 1
      %v1420 = vsel %vm1387, %v1417, %v1419
      %v1421 = vrot.slane %v1385, 1
      %v1422 = vsel %vm1387, %v1419, %v1421
      %v1423 = vrot.slane %v1386, 1
      %v1424 = vsel %vm1387, %v1421, %v1423
      %v1459 = vunpack.c.l.b16 %v1278
      %v1460 = vunpack.c.l.b16 %v1279
      %v1461 = vunpack.c.l.b16 %v1280
      %v1462 = vunpack.c.l.b16 %v1281
      %v1463 = vunpack.c.l.b16 %v1282
      %v1464 = vunpack.c.l.b16 %v1283
      %v1465 = vunpack.c.l.b16 %v1284
      %v1466 = vunpack.c.l.b16 %v1285
      %v1467 = vunpack.c.l.b16 %v1286
      %v1468 = vunpack.c.l.b16 %v1287
      %v1469 = vunpack.c.l.b16 %v1288
      %v1470 = vunpack.c.l.b16 %v1289
      %v1471 = vunpack.c.l.b16 %v1290
      %v1472 = vunpack.c.l.b16 %v1291
      %v1473 = vunpack.c.l.b16 %v1292
      %v1474 = vunpack.c.l.b16 %v1293
      %v1475 = vpack.c.b16 %v1460, %v1459
      %v1476 = vpack.c.b16 %v1462, %v1461
      %v1477 = vpack.c.b16 %v1464, %v1463
      %v1478 = vpack.c.b16 %v1466, %v1465
      %v1479 = vpack.c.b16 %v1468, %v1467
      %v1480 = vpack.c.b16 %v1470, %v1469
      %v1481 = vpack.c.b16 %v1472, %v1471
      %v1482 = vpack.c.b16 %v1474, %v1473
      %1491 = vmatprep.subr.bf16.mxu0 0
      %1492 = vmatpush1.bf16.msra.mxu0 %v1475
      %1493 = vmatprep.subr.bf16.mxu0 0
      %1494 = vmatpush1.bf16.msra.mxu0 %v1476
      %1495 = vmatprep.subr.bf16.mxu0 0
      %1496 = vmatpush1.bf16.msra.mxu0 %v1477
      %1497 = vmatprep.subr.bf16.mxu0 0
      %1498 = vmatpush1.bf16.msra.mxu0 %v1478
      %1499 = vmatprep.subr.bf16.mxu0 0
      %1500 = vmatpush1.bf16.msra.mxu0 %v1479
      %1501 = vmatprep.subr.bf16.mxu0 0
      %1502 = vmatpush1.bf16.msra.mxu0 %v1480
      %1503 = vmatprep.subr.bf16.mxu0 0
      %1504 = vmatpush1.bf16.msra.mxu0 %v1481
      %1505 = vmatprep.subr.bf16.mxu0 0
      %1506 = vmatpush1.bf16.msra.mxu0 %v1482
      %1507 = vmatprep.subr.bf16.mxu0 0
      %1508 = vmatpush1.bf16.msra.mxu0 0
      %1509 = vmatprep.subr.bf16.mxu0 0
      %1510 = vmatpush1.bf16.msra.mxu0 0
      %1511 = vmatprep.subr.bf16.mxu0 0
      %1512 = vmatpush1.bf16.msra.mxu0 0
      %1513 = vmatprep.subr.bf16.mxu0 0
      %1514 = vmatpush1.bf16.msra.mxu0 0
      %1515 = vmatprep.subr.bf16.mxu0 0
      %1516 = vmatpush1.bf16.msra.mxu0 0
      %1517 = vmatprep.subr.bf16.mxu0 0
      %1518 = vmatpush1.bf16.msra.mxu0 0
      %1519 = vmatprep.subr.bf16.mxu0 0
      %1520 = vmatpush1.bf16.msra.mxu0 0
      %1521 = vmatprep.subr.bf16.mxu0 0
      %1522 = vmatpush1.bf16.msra.mxu0 0
      %1523 = vmatprep.mubr.bf16.mxu0 0
      %1524 = vmatmul.mubr.bf16.gmra.mrb[0].mxu0 %v1390
      %v1525 = vpop.f32.mrb[0].mxu0
      %v1526 = vadd.f32 0.0, %v1525
      %v1527 = vpop.f32.mrb[0].mxu0
      %v1528 = vpop.f32.mrb[0].mxu0
      %v1529 = vadd.f32 0.0, %v1528
      %v1530 = vpop.f32.mrb[0].mxu0
      %1531 = vmatprep.mubr.bf16.mxu0 0
      %1532 = vmatmul.mubr.bf16.gmra.mrb[0].mxu0 %v1392
      %v1533 = vpop.f32.mrb[0].mxu0
      %v1534 = vadd.f32 0.0, %v1533
      %v1535 = vpop.f32.mrb[0].mxu0
      %v1536 = vpop.f32.mrb[0].mxu0
      %v1537 = vadd.f32 0.0, %v1536
      %v1538 = vpop.f32.mrb[0].mxu0
      %1539 = vmatprep.mubr.bf16.mxu0 0
      %1540 = vmatmul.mubr.bf16.gmra.mrb[0].mxu0 %v1394
      %v1541 = vpop.f32.mrb[0].mxu0
      %v1542 = vadd.f32 0.0, %v1541
      %v1543 = vpop.f32.mrb[0].mxu0
      %v1544 = vpop.f32.mrb[0].mxu0
      %v1545 = vadd.f32 0.0, %v1544
      %v1546 = vpop.f32.mrb[0].mxu0
      %1547 = vmatprep.mubr.bf16.mxu0 0
      %1548 = vmatmul.mubr.bf16.gmra.mrb[0].mxu0 %v1396
      %v1549 = vpop.f32.mrb[0].mxu0
      %v1550 = vadd.f32 0.0, %v1549
      %v1551 = vpop.f32.mrb[0].mxu0
      %v1552 = vpop.f32.mrb[0].mxu0
      %v1553 = vadd.f32 0.0, %v1552
      %v1554 = vpop.f32.mrb[0].mxu0
      %1555 = vmatprep.mubr.bf16.mxu0 0
      %1556 = vmatmul.mubr.bf16.gmra.mrb[0].mxu0 %v1398
      %v1557 = vpop.f32.mrb[0].mxu0
      %v1558 = vadd.f32 0.0, %v1557
      %v1559 = vpop.f32.mrb[0].mxu0
      %v1560 = vpop.f32.mrb[0].mxu0
      %v1561 = vadd.f32 0.0, %v1560
      %v1562 = vpop.f32.mrb[0].mxu0
      %1563 = vmatprep.mubr.bf16.mxu0 0
      %1564 = vmatmul.mubr.bf16.gmra.mrb[0].mxu0 %v1400
      %v1565 = vpop.f32.mrb[0].mxu0
      %v1566 = vadd.f32 0.0, %v1565
      %v1567 = vpop.f32.mrb[0].mxu0
      %v1568 = vpop.f32.mrb[0].mxu0
      %v1569 = vadd.f32 0.0, %v1568
      %v1570 = vpop.f32.mrb[0].mxu0
      %1571 = vmatprep.mubr.bf16.mxu0 0
      %1572 = vmatmul.mubr.bf16.gmra.mrb[0].mxu0 %v1402
      %v1573 = vpop.f32.mrb[0].mxu0
      %v1574 = vadd.f32 0.0, %v1573
      %v1575 = vpop.f32.mrb[0].mxu0
      %v1576 = vpop.f32.mrb[0].mxu0
      %v1577 = vadd.f32 0.0, %v1576
      %v1578 = vpop.f32.mrb[0].mxu0
      %1579 = vmatprep.mubr.bf16.mxu0 0
      %1580 = vmatmul.mubr.bf16.gmra.mrb[0].mxu0 %v1404
      %v1581 = vpop.f32.mrb[0].mxu0
      %v1582 = vadd.f32 0.0, %v1581
      %v1583 = vpop.f32.mrb[0].mxu0
      %v1584 = vpop.f32.mrb[0].mxu0
      %v1585 = vadd.f32 0.0, %v1584
      %v1586 = vpop.f32.mrb[0].mxu0
      %1587 = vmatprep.mubr.bf16.mxu0 0
      %1588 = vmatmul.mubr.bf16.gmra.mrb[0].mxu0 %v1406
      %v1589 = vpop.f32.mrb[0].mxu0
      %v1590 = vadd.f32 0.0, %v1589
      %v1591 = vpop.f32.mrb[0].mxu0
      %v1592 = vpop.f32.mrb[0].mxu0
      %v1593 = vadd.f32 0.0, %v1592
      %v1594 = vpop.f32.mrb[0].mxu0
      %1595 = vmatprep.mubr.bf16.mxu0 0
      %1596 = vmatmul.mubr.bf16.gmra.mrb[0].mxu0 %v1408
      %v1597 = vpop.f32.mrb[0].mxu0
      %v1598 = vadd.f32 0.0, %v1597
      %v1599 = vpop.f32.mrb[0].mxu0
      %v1600 = vpop.f32.mrb[0].mxu0
      %v1601 = vadd.f32 0.0, %v1600
      %v1602 = vpop.f32.mrb[0].mxu0
      %1603 = vmatprep.mubr.bf16.mxu0 0
      %1604 = vmatmul.mubr.bf16.gmra.mrb[0].mxu0 %v1410
      %v1605 = vpop.f32.mrb[0].mxu0
      %v1606 = vadd.f32 0.0, %v1605
      %v1607 = vpop.f32.mrb[0].mxu0
      %v1608 = vpop.f32.mrb[0].mxu0
      %v1609 = vadd.f32 0.0, %v1608
      %v1610 = vpop.f32.mrb[0].mxu0
      %1611 = vmatprep.mubr.bf16.mxu0 0
      %1612 = vmatmul.mubr.bf16.gmra.mrb[0].mxu0 %v1412
      %v1613 = vpop.f32.mrb[0].mxu0
      %v1614 = vadd.f32 0.0, %v1613
      %v1615 = vpop.f32.mrb[0].mxu0
      %v1616 = vpop.f32.mrb[0].mxu0
      %v1617 = vadd.f32 0.0, %v1616
      %v1618 = vpop.f32.mrb[0].mxu0
      %1619 = vmatprep.mubr.bf16.mxu0 0
      %1620 = vmatmul.mubr.bf16.gmra.mrb[0].mxu0 %v1414
      %v1621 = vpop.f32.mrb[0].mxu0
      %v1622 = vadd.f32 0.0, %v1621
      %v1623 = vpop.f32.mrb[0].mxu0
      %v1624 = vpop.f32.mrb[0].mxu0
      %v1625 = vadd.f32 0.0, %v1624
      %v1626 = vpop.f32.mrb[0].mxu0
      %1627 = vmatprep.mubr.bf16.mxu0 0
      %1628 = vmatmul.mubr.bf16.gmra.mrb[0].mxu0 %v1416
      %v1629 = vpop.f32.mrb[0].mxu0
      %v1630 = vadd.f32 0.0, %v1629
      %v1631 = vpop.f32.mrb[0].mxu0
      %v1632 = vpop.f32.mrb[0].mxu0
      %v1633 = vadd.f32 0.0, %v1632
      %v1634 = vpop.f32.mrb[0].mxu0
      %1635 = vmatprep.mubr.bf16.mxu0 0
      %1636 = vmatmul.mubr.bf16.gmra.mrb[0].mxu0 %v1418
      %v1637 = vpop.f32.mrb[0].mxu0
      %v1638 = vadd.f32 0.0, %v1637
      %v1639 = vpop.f32.mrb[0].mxu0
      %v1640 = vpop.f32.mrb[0].mxu0
      %v1641 = vadd.f32 0.0, %v1640
      %v1642 = vpop.f32.mrb[0].mxu0
      %1643 = vmatprep.mubr.bf16.mxu0 0
      %1644 = vmatmul.mubr.bf16.gmra.mrb[0].mxu0 %v1420
      %v1645 = vpop.f32.mrb[0].mxu0
      %v1646 = vadd.f32 0.0, %v1645
      %v1647 = vpop.f32.mrb[0].mxu0
      %v1648 = vpop.f32.mrb[0].mxu0
      %v1649 = vadd.f32 0.0, %v1648
      %v1650 = vpop.f32.mrb[0].mxu0
      %1651 = vmatprep.mubr.bf16.mxu0 0
      %1652 = vmatmul.mubr.bf16.gmra.mrb[0].mxu0 %v1422
      %v1653 = vpop.f32.mrb[0].mxu0
      %v1654 = vadd.f32 0.0, %v1653
      %v1655 = vpop.f32.mrb[0].mxu0
      %v1656 = vpop.f32.mrb[0].mxu0
      %v1657 = vadd.f32 0.0, %v1656
      %v1658 = vpop.f32.mrb[0].mxu0
      %1659 = vmatprep.mubr.bf16.mxu0 0
      %1660 = vmatmul.mubr.bf16.gmra.mrb[0].mxu0 %v1424
      %v1661 = vpop.f32.mrb[0].mxu0
      %v1662 = vadd.f32 0.0, %v1661
      %v1663 = vpop.f32.mrb[0].mxu0
      %v1664 = vpop.f32.mrb[0].mxu0
      %v1665 = vadd.f32 0.0, %v1664
      %v1666 = vpop.f32.mrb[0].mxu0
      %1667 = vdwg.mxu0
      %v1668 = vld [vmem:[#allocation2] sm:$0xff]
      %v1669 = vld [vmem:[#allocation2 + $0x8] sm:$0xff]
      %v1670 = vld [vmem:[#allocation2 + $0x10] sm:$0xff]
      %v1671 = vld [vmem:[#allocation2 + $0x18] sm:$0xff]
      %v1672 = vld [vmem:[#allocation2 + $0x20] sm:$0xff]
      %v1673 = vld [vmem:[#allocation2 + $0x28] sm:$0xff]
      %v1674 = vld [vmem:[#allocation2 + $0x30] sm:$0xff]
      %v1675 = vld [vmem:[#allocation2 + $0x38] sm:$0xff]
      %v1676 = vld [vmem:[#allocation2 + $0x40] sm:$0xff]
      %v1677 = vld [vmem:[#allocation2 + $0x48] sm:$0xff]
      %v1678 = vld [vmem:[#allocation2 + $0x50] sm:$0xff]
      %v1679 = vld [vmem:[#allocation2 + $0x58] sm:$0xff]
      %v1680 = vld [vmem:[#allocation2 + $0x60] sm:$0xff]
      %v1681 = vld [vmem:[#allocation2 + $0x68] sm:$0xff]
      %v1682 = vld [vmem:[#allocation2 + $0x70] sm:$0xff]
      %v1683 = vld [vmem:[#allocation2 + $0x78] sm:$0xff]
      %v1684 = vld [vmem:[#allocation2 + $0x80] sm:$0xff]
      %v1685 = vld [vmem:[#allocation2 + $0x88] sm:$0xff]
      %v1686 = vld [vmem:[#allocation2 + $0x90] sm:$0xff]
      %v1687 = vld [vmem:[#allocation2 + $0x98] sm:$0xff]
      %v1688 = vld [vmem:[#allocation2 + $0xa0] sm:$0xff]
      %v1689 = vld [vmem:[#allocation2 + $0xa8] sm:$0xff]
      %v1690 = vld [vmem:[#allocation2 + $0xb0] sm:$0xff]
      %v1691 = vld [vmem:[#allocation2 + $0xb8] sm:$0xff]
      %v1692 = vld [vmem:[#allocation2 + $0xc0] sm:$0xff]
      %v1693 = vld [vmem:[#allocation2 + $0xc8] sm:$0xff]
      %v1694 = vld [vmem:[#allocation2 + $0xd0] sm:$0xff]
      %v1695 = vld [vmem:[#allocation2 + $0xd8] sm:$0xff]
      %v1696 = vld [vmem:[#allocation2 + $0xe0] sm:$0xff]
      %v1697 = vld [vmem:[#allocation2 + $0xe8] sm:$0xff]
      %v1698 = vld [vmem:[#allocation2 + $0xf0] sm:$0xff]
      %v1699 = vld [vmem:[#allocation2 + $0xf8] sm:$0xff]
      %v1700 = vld [vmem:[#allocation2 + $0x100] sm:$0xff]
      %v1701 = vld [vmem:[#allocation2 + $0x108] sm:$0xff]
      %v1702 = vld [vmem:[#allocation2 + $0x110] sm:$0xff]
      %v1703 = vld [vmem:[#allocation2 + $0x118] sm:$0xff]
      %v1704 = vadd.f32 %v1668, %v1526
      %v1705 = vadd.f32 %v1669, %v1529
      %v1706 = vadd.f32 %v1670, %v1534
      %v1707 = vadd.f32 %v1671, %v1537
      %v1708 = vadd.f32 %v1672, %v1542
      %v1709 = vadd.f32 %v1673, %v1545
      %v1710 = vadd.f32 %v1674, %v1550
      %v1711 = vadd.f32 %v1675, %v1553
      %v1712 = vadd.f32 %v1676, %v1558
      %v1713 = vadd.f32 %v1677, %v1561
      %v1714 = vadd.f32 %v1678, %v1566
      %v1715 = vadd.f32 %v1679, %v1569
      %v1716 = vadd.f32 %v1680, %v1574
      %v1717 = vadd.f32 %v1681, %v1577
      %v1718 = vadd.f32 %v1682, %v1582
      %v1719 = vadd.f32 %v1683, %v1585
      %v1720 = vadd.f32 %v1684, %v1590
      %v1721 = vadd.f32 %v1685, %v1593
      %v1722 = vadd.f32 %v1686, %v1598
      %v1723 = vadd.f32 %v1687, %v1601
      %v1724 = vadd.f32 %v1688, %v1606
      %v1725 = vadd.f32 %v1689, %v1609
      %v1726 = vadd.f32 %v1690, %v1614
      %v1727 = vadd.f32 %v1691, %v1617
      %v1728 = vadd.f32 %v1692, %v1622
      %v1729 = vadd.f32 %v1693, %v1625
      %v1730 = vadd.f32 %v1694, %v1630
      %v1731 = vadd.f32 %v1695, %v1633
      %v1732 = vadd.f32 %v1696, %v1638
      %v1733 = vadd.f32 %v1697, %v1641
      %v1734 = vadd.f32 %v1698, %v1646
      %v1735 = vadd.f32 %v1699, %v1649
      %v1736 = vadd.f32 %v1700, %v1654
      %v1737 = vadd.f32 %v1701, %v1657
      %v1738 = vadd.f32 %v1702, %v1662
      %v1739 = vadd.f32 %v1703, %v1665
      %1740 = vst [vmem:[#allocation2] sm:$0xff] %v1704
      %1741 = vst [vmem:[#allocation2 + $0x8] sm:$0xff] %v1705
      %1742 = vst [vmem:[#allocation2 + $0x10] sm:$0xff] %v1706
      %1743 = vst [vmem:[#allocation2 + $0x18] sm:$0xff] %v1707
      %1744 = vst [vmem:[#allocation2 + $0x20] sm:$0xff] %v1708
      %1745 = vst [vmem:[#allocation2 + $0x28] sm:$0xff] %v1709
      %1746 = vst [vmem:[#allocation2 + $0x30] sm:$0xff] %v1710
      %1747 = vst [vmem:[#allocation2 + $0x38] sm:$0xff] %v1711
      %1748 = vst [vmem:[#allocation2 + $0x40] sm:$0xff] %v1712
      %1749 = vst [vmem:[#allocation2 + $0x48] sm:$0xff] %v1713
      %1750 = vst [vmem:[#allocation2 + $0x50] sm:$0xff] %v1714
      %1751 = vst [vmem:[#allocation2 + $0x58] sm:$0xff] %v1715
      %1752 = vst [vmem:[#allocation2 + $0x60] sm:$0xff] %v1716
      %1753 = vst [vmem:[#allocation2 + $0x68] sm:$0xff] %v1717
      %1754 = vst [vmem:[#allocation2 + $0x70] sm:$0xff] %v1718
      %1755 = vst [vmem:[#allocation2 + $0x78] sm:$0xff] %v1719
      %1756 = vst [vmem:[#allocation2 + $0x80] sm:$0xff] %v1720
      %1757 = vst [vmem:[#allocation2 + $0x88] sm:$0xff] %v1721
      %1758 = vst [vmem:[#allocation2 + $0x90] sm:$0xff] %v1722
      %1759 = vst [vmem:[#allocation2 + $0x98] sm:$0xff] %v1723
      %1760 = vst [vmem:[#allocation2 + $0xa0] sm:$0xff] %v1724
      %1761 = vst [vmem:[#allocation2 + $0xa8] sm:$0xff] %v1725
      %1762 = vst [vmem:[#allocation2 + $0xb0] sm:$0xff] %v1726
      %1763 = vst [vmem:[#allocation2 + $0xb8] sm:$0xff] %v1727
      %1764 = vst [vmem:[#allocation2 + $0xc0] sm:$0xff] %v1728
      %1765 = vst [vmem:[#allocation2 + $0xc8] sm:$0xff] %v1729
      %1766 = vst [vmem:[#allocation2 + $0xd0] sm:$0xff] %v1730
      %1767 = vst [vmem:[#allocation2 + $0xd8] sm:$0xff] %v1731
      %1768 = vst [vmem:[#allocation2 + $0xe0] sm:$0xff] %v1732
      %1769 = vst [vmem:[#allocation2 + $0xe8] sm:$0xff] %v1733
      %1770 = vst [vmem:[#allocation2 + $0xf0] sm:$0xff] %v1734
      %1771 = vst [vmem:[#allocation2 + $0xf8] sm:$0xff] %v1735
      %1772 = vst [vmem:[#allocation2 + $0x100] sm:$0xff] %v1736
      %1773 = vst [vmem:[#allocation2 + $0x108] sm:$0xff] %v1737
      %1774 = vst [vmem:[#allocation2 + $0x110] sm:$0xff] %v1738
      %1775 = vst [vmem:[#allocation2 + $0x118] sm:$0xff] %v1739
      %v1776 = vld [vmem:[%s165 + $0x8] sm:$0xe]
      %v1777 = vld [vmem:[%s165 + $0xc] sm:$0xf]
      %v1778 = vld [vmem:[%s165 + $0x10] sm:$0xf]
      %v1779 = vld [vmem:[%s165 + $0x14] sm:$0xf]
      %v1780 = vld [vmem:[%s165 + $0x18] sm:$0xf]
      %v1781 = vld [vmem:[%s165 + $0x1c] sm:$0xf]
      %v1782 = vld [vmem:[%s165 + $0x20] sm:$0xf]
      %v1783 = vld [vmem:[%s165 + $0x24] sm:$0xf]
      %v1784 = vld [vmem:[%s165 + $0x28] sm:$0xf]
      %v1785 = vld [vmem:[%s165 + $0x2c] sm:$0xf]
      %v1786 = vld [vmem:[%s165 + $0x30] sm:$0xf]
      %v1787 = vld [vmem:[%s165 + $0x34] sm:$0xf]
      %v1788 = vld [vmem:[%s165 + $0x38] sm:$0xf]
      %v1789 = vld [vmem:[%s165 + $0x3c] sm:$0xf]
      %v1790 = vld [vmem:[%s165 + $0x40] sm:$0xf]
      %v1791 = vld [vmem:[%s165 + $0x44] sm:$0xf]
      %v1792 = vld [vmem:[%s165 + $0x48] sm:$0xf]
      %v1793 = vld [vmem:[%s165 + $0x4c] sm:$0xf]
      %v1794 = vld [vmem:[%s165 + $0x50] sm:$0xf]
      %v1795 = vld [vmem:[%s165 + $0x54] sm:$0xf]
      %v1796 = vld [vmem:[%s165 + $0x58] sm:$0xf]
      %v1797 = vld [vmem:[%s165 + $0x5c] sm:$0xf]
      %v1798 = vld [vmem:[%s165 + $0x60] sm:$0xf]
      %v1799 = vld [vmem:[%s165 + $0x64] sm:$0xf]
      %v1800 = vld [vmem:[%s165 + $0x68] sm:$0xf]
      %v1801 = vld [vmem:[%s165 + $0x6c] sm:$0xf]
      %v1802 = vld [vmem:[%s165 + $0x70] sm:$0xf]
      %v1803 = vld [vmem:[%s165 + $0x74] sm:$0xf]
      %v1804 = vld [vmem:[%s165 + $0x78] sm:$0xf]
      %v1805 = vld [vmem:[%s165 + $0x7c] sm:$0xf]
      %v1806 = vld [vmem:[%s165 + $0x80] sm:$0xf]
      %v1807 = vld [vmem:[%s165 + $0x84] sm:$0xf]
      %v1808 = vld [vmem:[%s165 + $0x88] sm:$0xf]
      %v1809 = vld [vmem:[%s165 + $0x8c] sm:$0xf]
      %v1810 = vld [vmem:[%s165 + $0x90] sm:$0xf]
      %v1811 = vld [vmem:[%s165 + $0x94] sm:$0xf]
      %v1812 = vld [vmem:[%s165 + $0x98] sm:$0x1]
      %s1813 = scalar_lea.vmem %s1, 192
      %v1814 = vld [vmem:[%s1813] sm:$0xf]
      %v1815 = vld [vmem:[%s1813 + $0x4] sm:$0xf]
      %v1816 = vld [vmem:[%s1813 + $0x8] sm:$0xf]
      %v1817 = vld [vmem:[%s1813 + $0xc] sm:$0xf]
      %v1818 = vld [vmem:[%s1813 + $0x10] sm:$0xf]
      %v1819 = vld [vmem:[%s1813 + $0x14] sm:$0xf]
      %v1820 = vld [vmem:[%s1813 + $0x18] sm:$0xf]
      %v1821 = vld [vmem:[%s1813 + $0x1c] sm:$0xf]
      %v1822 = vld [vmem:[%s1813 + $0x20] sm:$0xf]
      %v1823 = vld [vmem:[%s1813 + $0x24] sm:$0xf]
      %v1824 = vld [vmem:[%s1813 + $0x28] sm:$0xf]
      %v1825 = vld [vmem:[%s1813 + $0x2c] sm:$0xf]
      %v1826 = vld [vmem:[%s1813 + $0x30] sm:$0xf]
      %v1827 = vld [vmem:[%s1813 + $0x34] sm:$0xf]
      %v1828 = vld [vmem:[%s1813 + $0x38] sm:$0xf]
      %v1829 = vld [vmem:[%s1813 + $0x3c] sm:$0xf]
      %v1867 = vunpack.c.l.b16 %v1776
      %v1868 = vunpack.c.l.b16 %v1777
      %v1869 = vunpack.c.l.b16 %v1778
      %v1870 = vunpack.c.l.b16 %v1779
      %v1871 = vunpack.c.l.b16 %v1780
      %v1872 = vunpack.c.l.b16 %v1781
      %v1873 = vunpack.c.l.b16 %v1782
      %v1874 = vunpack.c.l.b16 %v1783
      %v1875 = vunpack.c.l.b16 %v1784
      %v1876 = vunpack.c.l.b16 %v1785
      %v1877 = vunpack.c.l.b16 %v1786
      %v1878 = vunpack.c.l.b16 %v1787
      %v1879 = vunpack.c.l.b16 %v1788
      %v1880 = vunpack.c.l.b16 %v1789
      %v1881 = vunpack.c.l.b16 %v1790
      %v1882 = vunpack.c.l.b16 %v1791
      %v1883 = vunpack.c.l.b16 %v1792
      %v1884 = vunpack.c.l.b16 %v1793
      %v1885 = vunpack.c.l.b16 %v1794
      %v1886 = vunpack.c.l.b16 %v1795
      %v1887 = vunpack.c.l.b16 %v1796
      %v1888 = vunpack.c.l.b16 %v1797
      %v1889 = vunpack.c.l.b16 %v1798
      %v1890 = vunpack.c.l.b16 %v1799
      %v1891 = vunpack.c.l.b16 %v1800
      %v1892 = vunpack.c.l.b16 %v1801
      %v1893 = vunpack.c.l.b16 %v1802
      %v1894 = vunpack.c.l.b16 %v1803
      %v1895 = vunpack.c.l.b16 %v1804
      %v1896 = vunpack.c.l.b16 %v1805
      %v1897 = vunpack.c.l.b16 %v1806
      %v1898 = vunpack.c.l.b16 %v1807
      %v1899 = vunpack.c.l.b16 %v1808
      %v1900 = vunpack.c.l.b16 %v1809
      %v1901 = vunpack.c.l.b16 %v1810
      %v1902 = vunpack.c.l.b16 %v1811
      %v1903 = vunpack.c.l.b16 %v1812
      %v1904 = vpack.c.b16 %v1868, %v1867
      %v1905 = vpack.c.b16 %v1870, %v1869
      %v1906 = vpack.c.b16 %v1872, %v1871
      %v1907 = vpack.c.b16 %v1874, %v1873
      %v1908 = vpack.c.b16 %v1876, %v1875
      %v1909 = vpack.c.b16 %v1878, %v1877
      %v1910 = vpack.c.b16 %v1880, %v1879
      %v1911 = vpack.c.b16 %v1882, %v1881
      %v1912 = vpack.c.b16 %v1884, %v1883
      %v1913 = vpack.c.b16 %v1886, %v1885
      %v1914 = vpack.c.b16 %v1888, %v1887
      %v1915 = vpack.c.b16 %v1890, %v1889
      %v1916 = vpack.c.b16 %v1892, %v1891
      %v1917 = vpack.c.b16 %v1894, %v1893
      %v1918 = vpack.c.b16 %v1896, %v1895
      %v1919 = vpack.c.b16 %v1898, %v1897
      %v1920 = vpack.c.b16 %v1900, %v1899
      %v1921 = vpack.c.b16 %v1902, %v1901
      %v1922 = vpack.c.b16 %v1903, %v1903
      %v1923 = vrot.slane %v1904, 1
      %v1924 = vrot.slane %v1905, 1
      %v1925 = vsel %vm1387, %v1923, %v1924
      %v1926 = vrot.slane %v1906, 1
      %v1927 = vsel %vm1387, %v1924, %v1926
      %v1928 = vrot.slane %v1907, 1
      %v1929 = vsel %vm1387, %v1926, %v1928
      %v1930 = vrot.slane %v1908, 1
      %v1931 = vsel %vm1387, %v1928, %v1930
      %v1932 = vrot.slane %v1909, 1
      %v1933 = vsel %vm1387, %v1930, %v1932
      %v1934 = vrot.slane %v1910, 1
      %v1935 = vsel %vm1387, %v1932, %v1934
      %v1936 = vrot.slane %v1911, 1
      %v1937 = vsel %vm1387, %v1934, %v1936
      %v1938 = vrot.slane %v1912, 1
      %v1939 = vsel %vm1387, %v1936, %v1938
      %v1940 = vrot.slane %v1913, 1
      %v1941 = vsel %vm1387, %v1938, %v1940
      %v1942 = vrot.slane %v1914, 1
      %v1943 = vsel %vm1387, %v1940, %v1942
      %v1944 = vrot.slane %v1915, 1
      %v1945 = vsel %vm1387, %v1942, %v1944
      %v1946 = vrot.slane %v1916, 1
      %v1947 = vsel %vm1387, %v1944, %v1946
      %v1948 = vrot.slane %v1917, 1
      %v1949 = vsel %vm1387, %v1946, %v1948
      %v1950 = vrot.slane %v1918, 1
      %v1951 = vsel %vm1387, %v1948, %v1950
      %v1952 = vrot.slane %v1919, 1
      %v1953 = vsel %vm1387, %v1950, %v1952
      %v1954 = vrot.slane %v1920, 1
      %v1955 = vsel %vm1387, %v1952, %v1954
      %v1956 = vrot.slane %v1921, 1
      %v1957 = vsel %vm1387, %v1954, %v1956
      %v1958 = vrot.slane %v1922, 1
      %v1959 = vsel %vm1387, %v1956, %v1958
      %v1994 = vunpack.c.l.b16 %v1814
      %v1995 = vunpack.c.l.b16 %v1815
      %v1996 = vunpack.c.l.b16 %v1816
      %v1997 = vunpack.c.l.b16 %v1817
      %v1998 = vunpack.c.l.b16 %v1818
      %v1999 = vunpack.c.l.b16 %v1819
      %v2000 = vunpack.c.l.b16 %v1820
      %v2001 = vunpack.c.l.b16 %v1821
      %v2002 = vunpack.c.l.b16 %v1822
      %v2003 = vunpack.c.l.b16 %v1823
      %v2004 = vunpack.c.l.b16 %v1824
      %v2005 = vunpack.c.l.b16 %v1825
      %v2006 = vunpack.c.l.b16 %v1826
      %v2007 = vunpack.c.l.b16 %v1827
      %v2008 = vunpack.c.l.b16 %v1828
      %v2009 = vunpack.c.l.b16 %v1829
      %v2010 = vpack.c.b16 %v1995, %v1994
      %v2011 = vpack.c.b16 %v1997, %v1996
      %v2012 = vpack.c.b16 %v1999, %v1998
      %v2013 = vpack.c.b16 %v2001, %v2000
      %v2014 = vpack.c.b16 %v2003, %v2002
      %v2015 = vpack.c.b16 %v2005, %v2004
      %v2016 = vpack.c.b16 %v2007, %v2006
      %v2017 = vpack.c.b16 %v2009, %v2008
      %2026 = vmatprep.subr.bf16.mxu0 0
      %2027 = vmatpush1.bf16.msra.mxu0 %v2010
      %2028 = vmatprep.subr.bf16.mxu0 0
      %2029 = vmatpush1.bf16.msra.mxu0 %v2011
      %2030 = vmatprep.subr.bf16.mxu0 0
      %2031 = vmatpush1.bf16.msra.mxu0 %v2012
      %2032 = vmatprep.subr.bf16.mxu0 0
      %2033 = vmatpush1.bf16.msra.mxu0 %v2013
      %2034 = vmatprep.subr.bf16.mxu0 0
      %2035 = vmatpush1.bf16.msra.mxu0 %v2014
      %2036 = vmatprep.subr.bf16.mxu0 0
      %2037 = vmatpush1.bf16.msra.mxu0 %v2015
      %2038 = vmatprep.subr.bf16.mxu0 0
      %2039 = vmatpush1.bf16.msra.mxu0 %v2016
      %2040 = vmatprep.subr.bf16.mxu0 0
      %2041 = vmatpush1.bf16.msra.mxu0 %v2017
      %2042 = vmatprep.subr.bf16.mxu0 0
      %2043 = vmatpush1.bf16.msra.mxu0 0
      %2044 = vmatprep.subr.bf16.mxu0 0
      %2045 = vmatpush1.bf16.msra.mxu0 0
      %2046 = vmatprep.subr.bf16.mxu0 0
      %2047 = vmatpush1.bf16.msra.mxu0 0
      %2048 = vmatprep.subr.bf16.mxu0 0
      %2049 = vmatpush1.bf16.msra.mxu0 0
      %2050 = vmatprep.subr.bf16.mxu0 0
      %2051 = vmatpush1.bf16.msra.mxu0 0
      %2052 = vmatprep.subr.bf16.mxu0 0
      %2053 = vmatpush1.bf16.msra.mxu0 0
      %2054 = vmatprep.subr.bf16.mxu0 0
      %2055 = vmatpush1.bf16.msra.mxu0 0
      %2056 = vmatprep.subr.bf16.mxu0 0
      %2057 = vmatpush1.bf16.msra.mxu0 0
      %2058 = vmatprep.mubr.bf16.mxu0 0
      %2059 = vmatmul.mubr.bf16.gmra.mrb[0].mxu0 %v1925
      %v2060 = vpop.f32.mrb[0].mxu0
      %v2061 = vadd.f32 0.0, %v2060
      %v2062 = vpop.f32.mrb[0].mxu0
      %v2063 = vpop.f32.mrb[0].mxu0
      %v2064 = vadd.f32 0.0, %v2063
      %v2065 = vpop.f32.mrb[0].mxu0
      %2066 = vmatprep.mubr.bf16.mxu0 0
      %2067 = vmatmul.mubr.bf16.gmra.mrb[0].mxu0 %v1927
      %v2068 = vpop.f32.mrb[0].mxu0
      %v2069 = vadd.f32 0.0, %v2068
      %v2070 = vpop.f32.mrb[0].mxu0
      %v2071 = vpop.f32.mrb[0].mxu0
      %v2072 = vadd.f32 0.0, %v2071
      %v2073 = vpop.f32.mrb[0].mxu0
      %2074 = vmatprep.mubr.bf16.mxu0 0
      %2075 = vmatmul.mubr.bf16.gmra.mrb[0].mxu0 %v1929
      %v2076 = vpop.f32.mrb[0].mxu0
      %v2077 = vadd.f32 0.0, %v2076
      %v2078 = vpop.f32.mrb[0].mxu0
      %v2079 = vpop.f32.mrb[0].mxu0
      %v2080 = vadd.f32 0.0, %v2079
      %v2081 = vpop.f32.mrb[0].mxu0
      %2082 = vmatprep.mubr.bf16.mxu0 0
      %2083 = vmatmul.mubr.bf16.gmra.mrb[0].mxu0 %v1931
      %v2084 = vpop.f32.mrb[0].mxu0
      %v2085 = vadd.f32 0.0, %v2084
      %v2086 = vpop.f32.mrb[0].mxu0
      %v2087 = vpop.f32.mrb[0].mxu0
      %v2088 = vadd.f32 0.0, %v2087
      %v2089 = vpop.f32.mrb[0].mxu0
      %2090 = vmatprep.mubr.bf16.mxu0 0
      %2091 = vmatmul.mubr.bf16.gmra.mrb[0].mxu0 %v1933
      %v2092 = vpop.f32.mrb[0].mxu0
      %v2093 = vadd.f32 0.0, %v2092
      %v2094 = vpop.f32.mrb[0].mxu0
      %v2095 = vpop.f32.mrb[0].mxu0
      %v2096 = vadd.f32 0.0, %v2095
      %v2097 = vpop.f32.mrb[0].mxu0
      %2098 = vmatprep.mubr.bf16.mxu0 0
      %2099 = vmatmul.mubr.bf16.gmra.mrb[0].mxu0 %v1935
      %v2100 = vpop.f32.mrb[0].mxu0
      %v2101 = vadd.f32 0.0, %v2100
      %v2102 = vpop.f32.mrb[0].mxu0
      %v2103 = vpop.f32.mrb[0].mxu0
      %v2104 = vadd.f32 0.0, %v2103
      %v2105 = vpop.f32.mrb[0].mxu0
      %2106 = vmatprep.mubr.bf16.mxu0 0
      %2107 = vmatmul.mubr.bf16.gmra.mrb[0].mxu0 %v1937
      %v2108 = vpop.f32.mrb[0].mxu0
      %v2109 = vadd.f32 0.0, %v2108
      %v2110 = vpop.f32.mrb[0].mxu0
      %v2111 = vpop.f32.mrb[0].mxu0
      %v2112 = vadd.f32 0.0, %v2111
      %v2113 = vpop.f32.mrb[0].mxu0
      %2114 = vmatprep.mubr.bf16.mxu0 0
      %2115 = vmatmul.mubr.bf16.gmra.mrb[0].mxu0 %v1939
      %v2116 = vpop.f32.mrb[0].mxu0
      %v2117 = vadd.f32 0.0, %v2116
      %v2118 = vpop.f32.mrb[0].mxu0
      %v2119 = vpop.f32.mrb[0].mxu0
      %v2120 = vadd.f32 0.0, %v2119
      %v2121 = vpop.f32.mrb[0].mxu0
      %2122 = vmatprep.mubr.bf16.mxu0 0
      %2123 = vmatmul.mubr.bf16.gmra.mrb[0].mxu0 %v1941
      %v2124 = vpop.f32.mrb[0].mxu0
      %v2125 = vadd.f32 0.0, %v2124
      %v2126 = vpop.f32.mrb[0].mxu0
      %v2127 = vpop.f32.mrb[0].mxu0
      %v2128 = vadd.f32 0.0, %v2127
      %v2129 = vpop.f32.mrb[0].mxu0
      %2130 = vmatprep.mubr.bf16.mxu0 0
      %2131 = vmatmul.mubr.bf16.gmra.mrb[0].mxu0 %v1943
      %v2132 = vpop.f32.mrb[0].mxu0
      %v2133 = vadd.f32 0.0, %v2132
      %v2134 = vpop.f32.mrb[0].mxu0
      %v2135 = vpop.f32.mrb[0].mxu0
      %v2136 = vadd.f32 0.0, %v2135
      %v2137 = vpop.f32.mrb[0].mxu0
      %2138 = vmatprep.mubr.bf16.mxu0 0
      %2139 = vmatmul.mubr.bf16.gmra.mrb[0].mxu0 %v1945
      %v2140 = vpop.f32.mrb[0].mxu0
      %v2141 = vadd.f32 0.0, %v2140
      %v2142 = vpop.f32.mrb[0].mxu0
      %v2143 = vpop.f32.mrb[0].mxu0
      %v2144 = vadd.f32 0.0, %v2143
      %v2145 = vpop.f32.mrb[0].mxu0
      %2146 = vmatprep.mubr.bf16.mxu0 0
      %2147 = vmatmul.mubr.bf16.gmra.mrb[0].mxu0 %v1947
      %v2148 = vpop.f32.mrb[0].mxu0
      %v2149 = vadd.f32 0.0, %v2148
      %v2150 = vpop.f32.mrb[0].mxu0
      %v2151 = vpop.f32.mrb[0].mxu0
      %v2152 = vadd.f32 0.0, %v2151
      %v2153 = vpop.f32.mrb[0].mxu0
      %2154 = vmatprep.mubr.bf16.mxu0 0
      %2155 = vmatmul.mubr.bf16.gmra.mrb[0].mxu0 %v1949
      %v2156 = vpop.f32.mrb[0].mxu0
      %v2157 = vadd.f32 0.0, %v2156
      %v2158 = vpop.f32.mrb[0].mxu0
      %v2159 = vpop.f32.mrb[0].mxu0
      %v2160 = vadd.f32 0.0, %v2159
      %v2161 = vpop.f32.mrb[0].mxu0
      %2162 = vmatprep.mubr.bf16.mxu0 0
      %2163 = vmatmul.mubr.bf16.gmra.mrb[0].mxu0 %v1951
      %v2164 = vpop.f32.mrb[0].mxu0
      %v2165 = vadd.f32 0.0, %v2164
      %v2166 = vpop.f32.mrb[0].mxu0
      %v2167 = vpop.f32.mrb[0].mxu0
      %v2168 = vadd.f32 0.0, %v2167
      %v2169 = vpop.f32.mrb[0].mxu0
      %2170 = vmatprep.mubr.bf16.mxu0 0
      %2171 = vmatmul.mubr.bf16.gmra.mrb[0].mxu0 %v1953
      %v2172 = vpop.f32.mrb[0].mxu0
      %v2173 = vadd.f32 0.0, %v2172
      %v2174 = vpop.f32.mrb[0].mxu0
      %v2175 = vpop.f32.mrb[0].mxu0
      %v2176 = vadd.f32 0.0, %v2175
      %v2177 = vpop.f32.mrb[0].mxu0
      %2178 = vmatprep.mubr.bf16.mxu0 0
      %2179 = vmatmul.mubr.bf16.gmra.mrb[0].mxu0 %v1955
      %v2180 = vpop.f32.mrb[0].mxu0
      %v2181 = vadd.f32 0.0, %v2180
      %v2182 = vpop.f32.mrb[0].mxu0
      %v2183 = vpop.f32.mrb[0].mxu0
      %v2184 = vadd.f32 0.0, %v2183
      %v2185 = vpop.f32.mrb[0].mxu0
      %2186 = vmatprep.mubr.bf16.mxu0 0
      %2187 = vmatmul.mubr.bf16.gmra.mrb[0].mxu0 %v1957
      %v2188 = vpop.f32.mrb[0].mxu0
      %v2189 = vadd.f32 0.0, %v2188
      %v2190 = vpop.f32.mrb[0].mxu0
      %v2191 = vpop.f32.mrb[0].mxu0
      %v2192 = vadd.f32 0.0, %v2191
      %v2193 = vpop.f32.mrb[0].mxu0
      %2194 = vmatprep.mubr.bf16.mxu0 0
      %2195 = vmatmul.mubr.bf16.gmra.mrb[0].mxu0 %v1959
      %v2196 = vpop.f32.mrb[0].mxu0
      %v2197 = vadd.f32 0.0, %v2196
      %v2198 = vpop.f32.mrb[0].mxu0
      %v2199 = vpop.f32.mrb[0].mxu0
      %v2200 = vadd.f32 0.0, %v2199
      %v2201 = vpop.f32.mrb[0].mxu0
      %2202 = vdwg.mxu0
      %v2203 = vld [vmem:[#allocation2] sm:$0xff]
      %v2204 = vld [vmem:[#allocation2 + $0x8] sm:$0xff]
      %v2205 = vld [vmem:[#allocation2 + $0x10] sm:$0xff]
      %v2206 = vld [vmem:[#allocation2 + $0x18] sm:$0xff]
      %v2207 = vld [vmem:[#allocation2 + $0x20] sm:$0xff]
      %v2208 = vld [vmem:[#allocation2 + $0x28] sm:$0xff]
      %v2209 = vld [vmem:[#allocation2 + $0x30] sm:$0xff]
      %v2210 = vld [vmem:[#allocation2 + $0x38] sm:$0xff]
      %v2211 = vld [vmem:[#allocation2 + $0x40] sm:$0xff]
      %v2212 = vld [vmem:[#allocation2 + $0x48] sm:$0xff]
      %v2213 = vld [vmem:[#allocation2 + $0x50] sm:$0xff]
      %v2214 = vld [vmem:[#allocation2 + $0x58] sm:$0xff]
      %v2215 = vld [vmem:[#allocation2 + $0x60] sm:$0xff]
      %v2216 = vld [vmem:[#allocation2 + $0x68] sm:$0xff]
      %v2217 = vld [vmem:[#allocation2 + $0x70] sm:$0xff]
      %v2218 = vld [vmem:[#allocation2 + $0x78] sm:$0xff]
      %v2219 = vld [vmem:[#allocation2 + $0x80] sm:$0xff]
      %v2220 = vld [vmem:[#allocation2 + $0x88] sm:$0xff]
      %v2221 = vld [vmem:[#allocation2 + $0x90] sm:$0xff]
      %v2222 = vld [vmem:[#allocation2 + $0x98] sm:$0xff]
      %v2223 = vld [vmem:[#allocation2 + $0xa0] sm:$0xff]
      %v2224 = vld [vmem:[#allocation2 + $0xa8] sm:$0xff]
      %v2225 = vld [vmem:[#allocation2 + $0xb0] sm:$0xff]
      %v2226 = vld [vmem:[#allocation2 + $0xb8] sm:$0xff]
      %v2227 = vld [vmem:[#allocation2 + $0xc0] sm:$0xff]
      %v2228 = vld [vmem:[#allocation2 + $0xc8] sm:$0xff]
      %v2229 = vld [vmem:[#allocation2 + $0xd0] sm:$0xff]
      %v2230 = vld [vmem:[#allocation2 + $0xd8] sm:$0xff]
      %v2231 = vld [vmem:[#allocation2 + $0xe0] sm:$0xff]
      %v2232 = vld [vmem:[#allocation2 + $0xe8] sm:$0xff]
      %v2233 = vld [vmem:[#allocation2 + $0xf0] sm:$0xff]
      %v2234 = vld [vmem:[#allocation2 + $0xf8] sm:$0xff]
      %v2235 = vld [vmem:[#allocation2 + $0x100] sm:$0xff]
      %v2236 = vld [vmem:[#allocation2 + $0x108] sm:$0xff]
      %v2237 = vld [vmem:[#allocation2 + $0x110] sm:$0xff]
      %v2238 = vld [vmem:[#allocation2 + $0x118] sm:$0xff]
      %v2239 = vadd.f32 %v2203, %v2061
      %v2240 = vadd.f32 %v2204, %v2064
      %v2241 = vadd.f32 %v2205, %v2069
      %v2242 = vadd.f32 %v2206, %v2072
      %v2243 = vadd.f32 %v2207, %v2077
      %v2244 = vadd.f32 %v2208, %v2080
      %v2245 = vadd.f32 %v2209, %v2085
      %v2246 = vadd.f32 %v2210, %v2088
      %v2247 = vadd.f32 %v2211, %v2093
      %v2248 = vadd.f32 %v2212, %v2096
      %v2249 = vadd.f32 %v2213, %v2101
      %v2250 = vadd.f32 %v2214, %v2104
      %v2251 = vadd.f32 %v2215, %v2109
      %v2252 = vadd.f32 %v2216, %v2112
      %v2253 = vadd.f32 %v2217, %v2117
      %v2254 = vadd.f32 %v2218, %v2120
      %v2255 = vadd.f32 %v2219, %v2125
      %v2256 = vadd.f32 %v2220, %v2128
      %v2257 = vadd.f32 %v2221, %v2133
      %v2258 = vadd.f32 %v2222, %v2136
      %v2259 = vadd.f32 %v2223, %v2141
      %v2260 = vadd.f32 %v2224, %v2144
      %v2261 = vadd.f32 %v2225, %v2149
      %v2262 = vadd.f32 %v2226, %v2152
      %v2263 = vadd.f32 %v2227, %v2157
      %v2264 = vadd.f32 %v2228, %v2160
      %v2265 = vadd.f32 %v2229, %v2165
      %v2266 = vadd.f32 %v2230, %v2168
      %v2267 = vadd.f32 %v2231, %v2173
      %v2268 = vadd.f32 %v2232, %v2176
      %v2269 = vadd.f32 %v2233, %v2181
      %v2270 = vadd.f32 %v2234, %v2184
      %v2271 = vadd.f32 %v2235, %v2189
      %v2272 = vadd.f32 %v2236, %v2192
      %v2273 = vadd.f32 %v2237, %v2197
      %v2274 = vadd.f32 %v2238, %v2200
      %2275 = vst [vmem:[#allocation2] sm:$0xff] %v2239
      %2276 = vst [vmem:[#allocation2 + $0x8] sm:$0xff] %v2240
      %2277 = vst [vmem:[#allocation2 + $0x10] sm:$0xff] %v2241
      %2278 = vst [vmem:[#allocation2 + $0x18] sm:$0xff] %v2242
      %2279 = vst [vmem:[#allocation2 + $0x20] sm:$0xff] %v2243
      %2280 = vst [vmem:[#allocation2 + $0x28] sm:$0xff] %v2244
      %2281 = vst [vmem:[#allocation2 + $0x30] sm:$0xff] %v2245
      %2282 = vst [vmem:[#allocation2 + $0x38] sm:$0xff] %v2246
      %2283 = vst [vmem:[#allocation2 + $0x40] sm:$0xff] %v2247
      %2284 = vst [vmem:[#allocation2 + $0x48] sm:$0xff] %v2248
      %2285 = vst [vmem:[#allocation2 + $0x50] sm:$0xff] %v2249
      %2286 = vst [vmem:[#allocation2 + $0x58] sm:$0xff] %v2250
      %2287 = vst [vmem:[#allocation2 + $0x60] sm:$0xff] %v2251
      %2288 = vst [vmem:[#allocation2 + $0x68] sm:$0xff] %v2252
      %2289 = vst [vmem:[#allocation2 + $0x70] sm:$0xff] %v2253
      %2290 = vst [vmem:[#allocation2 + $0x78] sm:$0xff] %v2254
      %2291 = vst [vmem:[#allocation2 + $0x80] sm:$0xff] %v2255
      %2292 = vst [vmem:[#allocation2 + $0x88] sm:$0xff] %v2256
      %2293 = vst [vmem:[#allocation2 + $0x90] sm:$0xff] %v2257
      %2294 = vst [vmem:[#allocation2 + $0x98] sm:$0xff] %v2258
      %2295 = vst [vmem:[#allocation2 + $0xa0] sm:$0xff] %v2259
      %2296 = vst [vmem:[#allocation2 + $0xa8] sm:$0xff] %v2260
      %2297 = vst [vmem:[#allocation2 + $0xb0] sm:$0xff] %v2261
      %2298 = vst [vmem:[#allocation2 + $0xb8] sm:$0xff] %v2262
      %2299 = vst [vmem:[#allocation2 + $0xc0] sm:$0xff] %v2263
      %2300 = vst [vmem:[#allocation2 + $0xc8] sm:$0xff] %v2264
      %2301 = vst [vmem:[#allocation2 + $0xd0] sm:$0xff] %v2265
      %2302 = vst [vmem:[#allocation2 + $0xd8] sm:$0xff] %v2266
      %2303 = vst [vmem:[#allocation2 + $0xe0] sm:$0xff] %v2267
      %2304 = vst [vmem:[#allocation2 + $0xe8] sm:$0xff] %v2268
      %2305 = vst [vmem:[#allocation2 + $0xf0] sm:$0xff] %v2269
      %2306 = vst [vmem:[#allocation2 + $0xf8] sm:$0xff] %v2270
      %2307 = vst [vmem:[#allocation2 + $0x100] sm:$0xff] %v2271
      %2308 = vst [vmem:[#allocation2 + $0x108] sm:$0xff] %v2272
      %2309 = vst [vmem:[#allocation2 + $0x110] sm:$0xff] %v2273
      %2310 = vst [vmem:[#allocation2 + $0x118] sm:$0xff] %v2274
      %v2311 = vld [vmem:[%s165 + $0x8] sm:$0xe]
      %v2312 = vld [vmem:[%s165 + $0xc] sm:$0xf]
      %v2313 = vld [vmem:[%s165 + $0x10] sm:$0xf]
      %v2314 = vld [vmem:[%s165 + $0x14] sm:$0xf]
      %v2315 = vld [vmem:[%s165 + $0x18] sm:$0xf]
      %v2316 = vld [vmem:[%s165 + $0x1c] sm:$0xf]
      %v2317 = vld [vmem:[%s165 + $0x20] sm:$0xf]
      %v2318 = vld [vmem:[%s165 + $0x24] sm:$0xf]
      %v2319 = vld [vmem:[%s165 + $0x28] sm:$0xf]
      %v2320 = vld [vmem:[%s165 + $0x2c] sm:$0xf]
      %v2321 = vld [vmem:[%s165 + $0x30] sm:$0xf]
      %v2322 = vld [vmem:[%s165 + $0x34] sm:$0xf]
      %v2323 = vld [vmem:[%s165 + $0x38] sm:$0xf]
      %v2324 = vld [vmem:[%s165 + $0x3c] sm:$0xf]
      %v2325 = vld [vmem:[%s165 + $0x40] sm:$0xf]
      %v2326 = vld [vmem:[%s165 + $0x44] sm:$0xf]
      %v2327 = vld [vmem:[%s165 + $0x48] sm:$0xf]
      %v2328 = vld [vmem:[%s165 + $0x4c] sm:$0xf]
      %v2329 = vld [vmem:[%s165 + $0x50] sm:$0xf]
      %v2330 = vld [vmem:[%s165 + $0x54] sm:$0xf]
      %v2331 = vld [vmem:[%s165 + $0x58] sm:$0xf]
      %v2332 = vld [vmem:[%s165 + $0x5c] sm:$0xf]
      %v2333 = vld [vmem:[%s165 + $0x60] sm:$0xf]
      %v2334 = vld [vmem:[%s165 + $0x64] sm:$0xf]
      %v2335 = vld [vmem:[%s165 + $0x68] sm:$0xf]
      %v2336 = vld [vmem:[%s165 + $0x6c] sm:$0xf]
      %v2337 = vld [vmem:[%s165 + $0x70] sm:$0xf]
      %v2338 = vld [vmem:[%s165 + $0x74] sm:$0xf]
      %v2339 = vld [vmem:[%s165 + $0x78] sm:$0xf]
      %v2340 = vld [vmem:[%s165 + $0x7c] sm:$0xf]
      %v2341 = vld [vmem:[%s165 + $0x80] sm:$0xf]
      %v2342 = vld [vmem:[%s165 + $0x84] sm:$0xf]
      %v2343 = vld [vmem:[%s165 + $0x88] sm:$0xf]
      %v2344 = vld [vmem:[%s165 + $0x8c] sm:$0xf]
      %v2345 = vld [vmem:[%s165 + $0x90] sm:$0xf]
      %v2346 = vld [vmem:[%s165 + $0x94] sm:$0xf]
      %v2347 = vld [vmem:[%s165 + $0x98] sm:$0x3]
      %s2348 = scalar_lea.vmem %s1, 256
      %v2349 = vld [vmem:[%s2348] sm:$0xf]
      %v2350 = vld [vmem:[%s2348 + $0x4] sm:$0xf]
      %v2351 = vld [vmem:[%s2348 + $0x8] sm:$0xf]
      %v2352 = vld [vmem:[%s2348 + $0xc] sm:$0xf]
      %v2353 = vld [vmem:[%s2348 + $0x10] sm:$0xf]
      %v2354 = vld [vmem:[%s2348 + $0x14] sm:$0xf]
      %v2355 = vld [vmem:[%s2348 + $0x18] sm:$0xf]
      %v2356 = vld [vmem:[%s2348 + $0x1c] sm:$0xf]
      %v2357 = vld [vmem:[%s2348 + $0x20] sm:$0xf]
      %v2358 = vld [vmem:[%s2348 + $0x24] sm:$0xf]
      %v2359 = vld [vmem:[%s2348 + $0x28] sm:$0xf]
      %v2360 = vld [vmem:[%s2348 + $0x2c] sm:$0xf]
      %v2361 = vld [vmem:[%s2348 + $0x30] sm:$0xf]
      %v2362 = vld [vmem:[%s2348 + $0x34] sm:$0xf]
      %v2363 = vld [vmem:[%s2348 + $0x38] sm:$0xf]
      %v2364 = vld [vmem:[%s2348 + $0x3c] sm:$0xf]
      %v2402 = vunpack.c.l.b16 %v2311
      %v2403 = vunpack.c.l.b16 %v2312
      %v2404 = vunpack.c.l.b16 %v2313
      %v2405 = vunpack.c.l.b16 %v2314
      %v2406 = vunpack.c.l.b16 %v2315
      %v2407 = vunpack.c.l.b16 %v2316
      %v2408 = vunpack.c.l.b16 %v2317
      %v2409 = vunpack.c.l.b16 %v2318
      %v2410 = vunpack.c.l.b16 %v2319
      %v2411 = vunpack.c.l.b16 %v2320
      %v2412 = vunpack.c.l.b16 %v2321
      %v2413 = vunpack.c.l.b16 %v2322
      %v2414 = vunpack.c.l.b16 %v2323
      %v2415 = vunpack.c.l.b16 %v2324
      %v2416 = vunpack.c.l.b16 %v2325
      %v2417 = vunpack.c.l.b16 %v2326
      %v2418 = vunpack.c.l.b16 %v2327
      %v2419 = vunpack.c.l.b16 %v2328
      %v2420 = vunpack.c.l.b16 %v2329
      %v2421 = vunpack.c.l.b16 %v2330
      %v2422 = vunpack.c.l.b16 %v2331
      %v2423 = vunpack.c.l.b16 %v2332
      %v2424 = vunpack.c.l.b16 %v2333
      %v2425 = vunpack.c.l.b16 %v2334
      %v2426 = vunpack.c.l.b16 %v2335
      %v2427 = vunpack.c.l.b16 %v2336
      %v2428 = vunpack.c.l.b16 %v2337
      %v2429 = vunpack.c.l.b16 %v2338
      %v2430 = vunpack.c.l.b16 %v2339
      %v2431 = vunpack.c.l.b16 %v2340
      %v2432 = vunpack.c.l.b16 %v2341
      %v2433 = vunpack.c.l.b16 %v2342
      %v2434 = vunpack.c.l.b16 %v2343
      %v2435 = vunpack.c.l.b16 %v2344
      %v2436 = vunpack.c.l.b16 %v2345
      %v2437 = vunpack.c.l.b16 %v2346
      %v2438 = vunpack.c.l.b16 %v2347
      %v2439 = vpack.c.b16 %v2403, %v2402
      %v2440 = vpack.c.b16 %v2405, %v2404
      %v2441 = vpack.c.b16 %v2407, %v2406
      %v2442 = vpack.c.b16 %v2409, %v2408
      %v2443 = vpack.c.b16 %v2411, %v2410
      %v2444 = vpack.c.b16 %v2413, %v2412
      %v2445 = vpack.c.b16 %v2415, %v2414
      %v2446 = vpack.c.b16 %v2417, %v2416
      %v2447 = vpack.c.b16 %v2419, %v2418
      %v2448 = vpack.c.b16 %v2421, %v2420
      %v2449 = vpack.c.b16 %v2423, %v2422
      %v2450 = vpack.c.b16 %v2425, %v2424
      %v2451 = vpack.c.b16 %v2427, %v2426
      %v2452 = vpack.c.b16 %v2429, %v2428
      %v2453 = vpack.c.b16 %v2431, %v2430
      %v2454 = vpack.c.b16 %v2433, %v2432
      %v2455 = vpack.c.b16 %v2435, %v2434
      %v2456 = vpack.c.b16 %v2437, %v2436
      %v2457 = vpack.c.b16 %v2438, %v2438
      %vm2458 = vsmask.f32 6400
      %v2460 = vshrl.u32 %v2439, 16
      %v2462 = vrot.slane %v2460, 1
      %v2463 = vshll.u32 %v2439, 16
      %v2465 = vrot.slane %v2463, 2
      %v2466 = vor.u32 %v2462, %v2465
      %v2468 = vshrl.u32 %v2440, 16
      %v2470 = vrot.slane %v2468, 1
      %v2471 = vshll.u32 %v2440, 16
      %v2473 = vrot.slane %v2471, 2
      %v2474 = vor.u32 %v2470, %v2473
      %v2475 = vsel %vm2458, %v2466, %v2474
      %v2477 = vshrl.u32 %v2441, 16
      %v2479 = vrot.slane %v2477, 1
      %v2480 = vshll.u32 %v2441, 16
      %v2482 = vrot.slane %v2480, 2
      %v2483 = vor.u32 %v2479, %v2482
      %v2484 = vsel %vm2458, %v2474, %v2483
      %v2486 = vshrl.u32 %v2442, 16
      %v2488 = vrot.slane %v2486, 1
      %v2489 = vshll.u32 %v2442, 16
      %v2491 = vrot.slane %v2489, 2
      %v2492 = vor.u32 %v2488, %v2491
      %v2493 = vsel %vm2458, %v2483, %v2492
      %v2495 = vshrl.u32 %v2443, 16
      %v2497 = vrot.slane %v2495, 1
      %v2498 = vshll.u32 %v2443, 16
      %v2500 = vrot.slane %v2498, 2
      %v2501 = vor.u32 %v2497, %v2500
      %v2502 = vsel %vm2458, %v2492, %v2501
      %v2504 = vshrl.u32 %v2444, 16
      %v2506 = vrot.slane %v2504, 1
      %v2507 = vshll.u32 %v2444, 16
      %v2509 = vrot.slane %v2507, 2
      %v2510 = vor.u32 %v2506, %v2509
      %v2511 = vsel %vm2458, %v2501, %v2510
      %v2513 = vshrl.u32 %v2445, 16
      %v2515 = vrot.slane %v2513, 1
      %v2516 = vshll.u32 %v2445, 16
      %v2518 = vrot.slane %v2516, 2
      %v2519 = vor.u32 %v2515, %v2518
      %v2520 = vsel %vm2458, %v2510, %v2519
      %v2522 = vshrl.u32 %v2446, 16
      %v2524 = vrot.slane %v2522, 1
      %v2525 = vshll.u32 %v2446, 16
      %v2527 = vrot.slane %v2525, 2
      %v2528 = vor.u32 %v2524, %v2527
      %v2529 = vsel %vm2458, %v2519, %v2528
      %v2531 = vshrl.u32 %v2447, 16
      %v2533 = vrot.slane %v2531, 1
      %v2534 = vshll.u32 %v2447, 16
      %v2536 = vrot.slane %v2534, 2
      %v2537 = vor.u32 %v2533, %v2536
      %v2538 = vsel %vm2458, %v2528, %v2537
      %v2540 = vshrl.u32 %v2448, 16
      %v2542 = vrot.slane %v2540, 1
      %v2543 = vshll.u32 %v2448, 16
      %v2545 = vrot.slane %v2543, 2
      %v2546 = vor.u32 %v2542, %v2545
      %v2547 = vsel %vm2458, %v2537, %v2546
      %v2549 = vshrl.u32 %v2449, 16
      %v2551 = vrot.slane %v2549, 1
      %v2552 = vshll.u32 %v2449, 16
      %v2554 = vrot.slane %v2552, 2
      %v2555 = vor.u32 %v2551, %v2554
      %v2556 = vsel %vm2458, %v2546, %v2555
      %v2558 = vshrl.u32 %v2450, 16
      %v2560 = vrot.slane %v2558, 1
      %v2561 = vshll.u32 %v2450, 16
      %v2563 = vrot.slane %v2561, 2
      %v2564 = vor.u32 %v2560, %v2563
      %v2565 = vsel %vm2458, %v2555, %v2564
      %v2567 = vshrl.u32 %v2451, 16
      %v2569 = vrot.slane %v2567, 1
      %v2570 = vshll.u32 %v2451, 16
      %v2572 = vrot.slane %v2570, 2
      %v2573 = vor.u32 %v2569, %v2572
      %v2574 = vsel %vm2458, %v2564, %v2573
      %v2576 = vshrl.u32 %v2452, 16
      %v2578 = vrot.slane %v2576, 1
      %v2579 = vshll.u32 %v2452, 16
      %v2581 = vrot.slane %v2579, 2
      %v2582 = vor.u32 %v2578, %v2581
      %v2583 = vsel %vm2458, %v2573, %v2582
      %v2585 = vshrl.u32 %v2453, 16
      %v2587 = vrot.slane %v2585, 1
      %v2588 = vshll.u32 %v2453, 16
      %v2590 = vrot.slane %v2588, 2
      %v2591 = vor.u32 %v2587, %v2590
      %v2592 = vsel %vm2458, %v2582, %v2591
      %v2594 = vshrl.u32 %v2454, 16
      %v2596 = vrot.slane %v2594, 1
      %v2597 = vshll.u32 %v2454, 16
      %v2599 = vrot.slane %v2597, 2
      %v2600 = vor.u32 %v2596, %v2599
      %v2601 = vsel %vm2458, %v2591, %v2600
      %v2603 = vshrl.u32 %v2455, 16
      %v2605 = vrot.slane %v2603, 1
      %v2606 = vshll.u32 %v2455, 16
      %v2608 = vrot.slane %v2606, 2
      %v2609 = vor.u32 %v2605, %v2608
      %v2610 = vsel %vm2458, %v2600, %v2609
      %v2612 = vshrl.u32 %v2456, 16
      %v2614 = vrot.slane %v2612, 1
      %v2615 = vshll.u32 %v2456, 16
      %v2617 = vrot.slane %v2615, 2
      %v2618 = vor.u32 %v2614, %v2617
      %v2619 = vsel %vm2458, %v2609, %v2618
      %v2621 = vshrl.u32 %v2457, 16
      %v2623 = vrot.slane %v2621, 1
      %v2624 = vshll.u32 %v2457, 16
      %v2626 = vrot.slane %v2624, 2
      %v2627 = vor.u32 %v2623, %v2626
      %v2628 = vsel %vm2458, %v2618, %v2627
      %v2663 = vunpack.c.l.b16 %v2349
      %v2664 = vunpack.c.l.b16 %v2350
      %v2665 = vunpack.c.l.b16 %v2351
      %v2666 = vunpack.c.l.b16 %v2352
      %v2667 = vunpack.c.l.b16 %v2353
      %v2668 = vunpack.c.l.b16 %v2354
      %v2669 = vunpack.c.l.b16 %v2355
      %v2670 = vunpack.c.l.b16 %v2356
      %v2671 = vunpack.c.l.b16 %v2357
      %v2672 = vunpack.c.l.b16 %v2358
      %v2673 = vunpack.c.l.b16 %v2359
      %v2674 = vunpack.c.l.b16 %v2360
      %v2675 = vunpack.c.l.b16 %v2361
      %v2676 = vunpack.c.l.b16 %v2362
      %v2677 = vunpack.c.l.b16 %v2363
      %v2678 = vunpack.c.l.b16 %v2364
      %v2679 = vpack.c.b16 %v2664, %v2663
      %v2680 = vpack.c.b16 %v2666, %v2665
      %v2681 = vpack.c.b16 %v2668, %v2667
      %v2682 = vpack.c.b16 %v2670, %v2669
      %v2683 = vpack.c.b16 %v2672, %v2671
      %v2684 = vpack.c.b16 %v2674, %v2673
      %v2685 = vpack.c.b16 %v2676, %v2675
      %v2686 = vpack.c.b16 %v2678, %v2677
      %2695 = vmatprep.subr.bf16.mxu0 0
      %2696 = vmatpush1.bf16.msra.mxu0 %v2679
      %2697 = vmatprep.subr.bf16.mxu0 0
      %2698 = vmatpush1.bf16.msra.mxu0 %v2680
      %2699 = vmatprep.subr.bf16.mxu0 0
      %2700 = vmatpush1.bf16.msra.mxu0 %v2681
      %2701 = vmatprep.subr.bf16.mxu0 0
      %2702 = vmatpush1.bf16.msra.mxu0 %v2682
      %2703 = vmatprep.subr.bf16.mxu0 0
      %2704 = vmatpush1.bf16.msra.mxu0 %v2683
      %2705 = vmatprep.subr.bf16.mxu0 0
      %2706 = vmatpush1.bf16.msra.mxu0 %v2684
      %2707 = vmatprep.subr.bf16.mxu0 0
      %2708 = vmatpush1.bf16.msra.mxu0 %v2685
      %2709 = vmatprep.subr.bf16.mxu0 0
      %2710 = vmatpush1.bf16.msra.mxu0 %v2686
      %2711 = vmatprep.subr.bf16.mxu0 0
      %2712 = vmatpush1.bf16.msra.mxu0 0
      %2713 = vmatprep.subr.bf16.mxu0 0
      %2714 = vmatpush1.bf16.msra.mxu0 0
      %2715 = vmatprep.subr.bf16.mxu0 0
      %2716 = vmatpush1.bf16.msra.mxu0 0
      %2717 = vmatprep.subr.bf16.mxu0 0
      %2718 = vmatpush1.bf16.msra.mxu0 0
      %2719 = vmatprep.subr.bf16.mxu0 0
      %2720 = vmatpush1.bf16.msra.mxu0 0
      %2721 = vmatprep.subr.bf16.mxu0 0
      %2722 = vmatpush1.bf16.msra.mxu0 0
      %2723 = vmatprep.subr.bf16.mxu0 0
      %2724 = vmatpush1.bf16.msra.mxu0 0
      %2725 = vmatprep.subr.bf16.mxu0 0
      %2726 = vmatpush1.bf16.msra.mxu0 0
      %2727 = vmatprep.mubr.bf16.mxu0 0
      %2728 = vmatmul.mubr.bf16.gmra.mrb[0].mxu0 %v2475
      %v2729 = vpop.f32.mrb[0].mxu0
      %v2730 = vadd.f32 0.0, %v2729
      %v2731 = vpop.f32.mrb[0].mxu0
      %v2732 = vpop.f32.mrb[0].mxu0
      %v2733 = vadd.f32 0.0, %v2732
      %v2734 = vpop.f32.mrb[0].mxu0
      %2735 = vmatprep.mubr.bf16.mxu0 0
      %2736 = vmatmul.mubr.bf16.gmra.mrb[0].mxu0 %v2484
      %v2737 = vpop.f32.mrb[0].mxu0
      %v2738 = vadd.f32 0.0, %v2737
      %v2739 = vpop.f32.mrb[0].mxu0
      %v2740 = vpop.f32.mrb[0].mxu0
      %v2741 = vadd.f32 0.0, %v2740
      %v2742 = vpop.f32.mrb[0].mxu0
      %2743 = vmatprep.mubr.bf16.mxu0 0
      %2744 = vmatmul.mubr.bf16.gmra.mrb[0].mxu0 %v2493
      %v2745 = vpop.f32.mrb[0].mxu0
      %v2746 = vadd.f32 0.0, %v2745
      %v2747 = vpop.f32.mrb[0].mxu0
      %v2748 = vpop.f32.mrb[0].mxu0
      %v2749 = vadd.f32 0.0, %v2748
      %v2750 = vpop.f32.mrb[0].mxu0
      %2751 = vmatprep.mubr.bf16.mxu0 0
      %2752 = vmatmul.mubr.bf16.gmra.mrb[0].mxu0 %v2502
      %v2753 = vpop.f32.mrb[0].mxu0
      %v2754 = vadd.f32 0.0, %v2753
      %v2755 = vpop.f32.mrb[0].mxu0
      %v2756 = vpop.f32.mrb[0].mxu0
      %v2757 = vadd.f32 0.0, %v2756
      %v2758 = vpop.f32.mrb[0].mxu0
      %2759 = vmatprep.mubr.bf16.mxu0 0
      %2760 = vmatmul.mubr.bf16.gmra.mrb[0].mxu0 %v2511
      %v2761 = vpop.f32.mrb[0].mxu0
      %v2762 = vadd.f32 0.0, %v2761
      %v2763 = vpop.f32.mrb[0].mxu0
      %v2764 = vpop.f32.mrb[0].mxu0
      %v2765 = vadd.f32 0.0, %v2764
      %v2766 = vpop.f32.mrb[0].mxu0
      %2767 = vmatprep.mubr.bf16.mxu0 0
      %2768 = vmatmul.mubr.bf16.gmra.mrb[0].mxu0 %v2520
      %v2769 = vpop.f32.mrb[0].mxu0
      %v2770 = vadd.f32 0.0, %v2769
      %v2771 = vpop.f32.mrb[0].mxu0
      %v2772 = vpop.f32.mrb[0].mxu0
      %v2773 = vadd.f32 0.0, %v2772
      %v2774 = vpop.f32.mrb[0].mxu0
      %2775 = vmatprep.mubr.bf16.mxu0 0
      %2776 = vmatmul.mubr.bf16.gmra.mrb[0].mxu0 %v2529
      %v2777 = vpop.f32.mrb[0].mxu0
      %v2778 = vadd.f32 0.0, %v2777
      %v2779 = vpop.f32.mrb[0].mxu0
      %v2780 = vpop.f32.mrb[0].mxu0
      %v2781 = vadd.f32 0.0, %v2780
      %v2782 = vpop.f32.mrb[0].mxu0
      %2783 = vmatprep.mubr.bf16.mxu0 0
      %2784 = vmatmul.mubr.bf16.gmra.mrb[0].mxu0 %v2538
      %v2785 = vpop.f32.mrb[0].mxu0
      %v2786 = vadd.f32 0.0, %v2785
      %v2787 = vpop.f32.mrb[0].mxu0
      %v2788 = vpop.f32.mrb[0].mxu0
      %v2789 = vadd.f32 0.0, %v2788
      %v2790 = vpop.f32.mrb[0].mxu0
      %2791 = vmatprep.mubr.bf16.mxu0 0
      %2792 = vmatmul.mubr.bf16.gmra.mrb[0].mxu0 %v2547
      %v2793 = vpop.f32.mrb[0].mxu0
      %v2794 = vadd.f32 0.0, %v2793
      %v2795 = vpop.f32.mrb[0].mxu0
      %v2796 = vpop.f32.mrb[0].mxu0
      %v2797 = vadd.f32 0.0, %v2796
      %v2798 = vpop.f32.mrb[0].mxu0
      %2799 = vmatprep.mubr.bf16.mxu0 0
      %2800 = vmatmul.mubr.bf16.gmra.mrb[0].mxu0 %v2556
      %v2801 = vpop.f32.mrb[0].mxu0
      %v2802 = vadd.f32 0.0, %v2801
      %v2803 = vpop.f32.mrb[0].mxu0
      %v2804 = vpop.f32.mrb[0].mxu0
      %v2805 = vadd.f32 0.0, %v2804
      %v2806 = vpop.f32.mrb[0].mxu0
      %2807 = vmatprep.mubr.bf16.mxu0 0
      %2808 = vmatmul.mubr.bf16.gmra.mrb[0].mxu0 %v2565
      %v2809 = vpop.f32.mrb[0].mxu0
      %v2810 = vadd.f32 0.0, %v2809
      %v2811 = vpop.f32.mrb[0].mxu0
      %v2812 = vpop.f32.mrb[0].mxu0
      %v2813 = vadd.f32 0.0, %v2812
      %v2814 = vpop.f32.mrb[0].mxu0
      %2815 = vmatprep.mubr.bf16.mxu0 0
      %2816 = vmatmul.mubr.bf16.gmra.mrb[0].mxu0 %v2574
      %v2817 = vpop.f32.mrb[0].mxu0
      %v2818 = vadd.f32 0.0, %v2817
      %v2819 = vpop.f32.mrb[0].mxu0
      %v2820 = vpop.f32.mrb[0].mxu0
      %v2821 = vadd.f32 0.0, %v2820
      %v2822 = vpop.f32.mrb[0].mxu0
      %2823 = vmatprep.mubr.bf16.mxu0 0
      %2824 = vmatmul.mubr.bf16.gmra.mrb[0].mxu0 %v2583
      %v2825 = vpop.f32.mrb[0].mxu0
      %v2826 = vadd.f32 0.0, %v2825
      %v2827 = vpop.f32.mrb[0].mxu0
      %v2828 = vpop.f32.mrb[0].mxu0
      %v2829 = vadd.f32 0.0, %v2828
      %v2830 = vpop.f32.mrb[0].mxu0
      %2831 = vmatprep.mubr.bf16.mxu0 0
      %2832 = vmatmul.mubr.bf16.gmra.mrb[0].mxu0 %v2592
      %v2833 = vpop.f32.mrb[0].mxu0
      %v2834 = vadd.f32 0.0, %v2833
      %v2835 = vpop.f32.mrb[0].mxu0
      %v2836 = vpop.f32.mrb[0].mxu0
      %v2837 = vadd.f32 0.0, %v2836
      %v2838 = vpop.f32.mrb[0].mxu0
      %2839 = vmatprep.mubr.bf16.mxu0 0
      %2840 = vmatmul.mubr.bf16.gmra.mrb[0].mxu0 %v2601
      %v2841 = vpop.f32.mrb[0].mxu0
      %v2842 = vadd.f32 0.0, %v2841
      %v2843 = vpop.f32.mrb[0].mxu0
      %v2844 = vpop.f32.mrb[0].mxu0
      %v2845 = vadd.f32 0.0, %v2844
      %v2846 = vpop.f32.mrb[0].mxu0
      %2847 = vmatprep.mubr.bf16.mxu0 0
      %2848 = vmatmul.mubr.bf16.gmra.mrb[0].mxu0 %v2610
      %v2849 = vpop.f32.mrb[0].mxu0
      %v2850 = vadd.f32 0.0, %v2849
      %v2851 = vpop.f32.mrb[0].mxu0
      %v2852 = vpop.f32.mrb[0].mxu0
      %v2853 = vadd.f32 0.0, %v2852
      %v2854 = vpop.f32.mrb[0].mxu0
      %2855 = vmatprep.mubr.bf16.mxu0 0
      %2856 = vmatmul.mubr.bf16.gmra.mrb[0].mxu0 %v2619
      %v2857 = vpop.f32.mrb[0].mxu0
      %v2858 = vadd.f32 0.0, %v2857
      %v2859 = vpop.f32.mrb[0].mxu0
      %v2860 = vpop.f32.mrb[0].mxu0
      %v2861 = vadd.f32 0.0, %v2860
      %v2862 = vpop.f32.mrb[0].mxu0
      %2863 = vmatprep.mubr.bf16.mxu0 0
      %2864 = vmatmul.mubr.bf16.gmra.mrb[0].mxu0 %v2628
      %v2865 = vpop.f32.mrb[0].mxu0
      %v2866 = vadd.f32 0.0, %v2865
      %v2867 = vpop.f32.mrb[0].mxu0
      %v2868 = vpop.f32.mrb[0].mxu0
      %v2869 = vadd.f32 0.0, %v2868
      %v2870 = vpop.f32.mrb[0].mxu0
      %2871 = vdwg.mxu0
      %v2872 = vld [vmem:[#allocation2] sm:$0xff]
      %v2873 = vld [vmem:[#allocation2 + $0x8] sm:$0xff]
      %v2874 = vld [vmem:[#allocation2 + $0x10] sm:$0xff]
      %v2875 = vld [vmem:[#allocation2 + $0x18] sm:$0xff]
      %v2876 = vld [vmem:[#allocation2 + $0x20] sm:$0xff]
      %v2877 = vld [vmem:[#allocation2 + $0x28] sm:$0xff]
      %v2878 = vld [vmem:[#allocation2 + $0x30] sm:$0xff]
      %v2879 = vld [vmem:[#allocation2 + $0x38] sm:$0xff]
      %v2880 = vld [vmem:[#allocation2 + $0x40] sm:$0xff]
      %v2881 = vld [vmem:[#allocation2 + $0x48] sm:$0xff]
      %v2882 = vld [vmem:[#allocation2 + $0x50] sm:$0xff]
      %v2883 = vld [vmem:[#allocation2 + $0x58] sm:$0xff]
      %v2884 = vld [vmem:[#allocation2 + $0x60] sm:$0xff]
      %v2885 = vld [vmem:[#allocation2 + $0x68] sm:$0xff]
      %v2886 = vld [vmem:[#allocation2 + $0x70] sm:$0xff]
      %v2887 = vld [vmem:[#allocation2 + $0x78] sm:$0xff]
      %v2888 = vld [vmem:[#allocation2 + $0x80] sm:$0xff]
      %v2889 = vld [vmem:[#allocation2 + $0x88] sm:$0xff]
      %v2890 = vld [vmem:[#allocation2 + $0x90] sm:$0xff]
      %v2891 = vld [vmem:[#allocation2 + $0x98] sm:$0xff]
      %v2892 = vld [vmem:[#allocation2 + $0xa0] sm:$0xff]
      %v2893 = vld [vmem:[#allocation2 + $0xa8] sm:$0xff]
      %v2894 = vld [vmem:[#allocation2 + $0xb0] sm:$0xff]
      %v2895 = vld [vmem:[#allocation2 + $0xb8] sm:$0xff]
      %v2896 = vld [vmem:[#allocation2 + $0xc0] sm:$0xff]
      %v2897 = vld [vmem:[#allocation2 + $0xc8] sm:$0xff]
      %v2898 = vld [vmem:[#allocation2 + $0xd0] sm:$0xff]
      %v2899 = vld [vmem:[#allocation2 + $0xd8] sm:$0xff]
      %v2900 = vld [vmem:[#allocation2 + $0xe0] sm:$0xff]
      %v2901 = vld [vmem:[#allocation2 + $0xe8] sm:$0xff]
      %v2902 = vld [vmem:[#allocation2 + $0xf0] sm:$0xff]
      %v2903 = vld [vmem:[#allocation2 + $0xf8] sm:$0xff]
      %v2904 = vld [vmem:[#allocation2 + $0x100] sm:$0xff]
      %v2905 = vld [vmem:[#allocation2 + $0x108] sm:$0xff]
      %v2906 = vld [vmem:[#allocation2 + $0x110] sm:$0xff]
      %v2907 = vld [vmem:[#allocation2 + $0x118] sm:$0xff]
      %v2908 = vadd.f32 %v2872, %v2730
      %v2909 = vadd.f32 %v2873, %v2733
      %v2910 = vadd.f32 %v2874, %v2738
      %v2911 = vadd.f32 %v2875, %v2741
      %v2912 = vadd.f32 %v2876, %v2746
      %v2913 = vadd.f32 %v2877, %v2749
      %v2914 = vadd.f32 %v2878, %v2754
      %v2915 = vadd.f32 %v2879, %v2757
      %v2916 = vadd.f32 %v2880, %v2762
      %v2917 = vadd.f32 %v2881, %v2765
      %v2918 = vadd.f32 %v2882, %v2770
      %v2919 = vadd.f32 %v2883, %v2773
      %v2920 = vadd.f32 %v2884, %v2778
      %v2921 = vadd.f32 %v2885, %v2781
      %v2922 = vadd.f32 %v2886, %v2786
      %v2923 = vadd.f32 %v2887, %v2789
      %v2924 = vadd.f32 %v2888, %v2794
      %v2925 = vadd.f32 %v2889, %v2797
      %v2926 = vadd.f32 %v2890, %v2802
      %v2927 = vadd.f32 %v2891, %v2805
      %v2928 = vadd.f32 %v2892, %v2810
      %v2929 = vadd.f32 %v2893, %v2813
      %v2930 = vadd.f32 %v2894, %v2818
      %v2931 = vadd.f32 %v2895, %v2821
      %v2932 = vadd.f32 %v2896, %v2826
      %v2933 = vadd.f32 %v2897, %v2829
      %v2934 = vadd.f32 %v2898, %v2834
      %v2935 = vadd.f32 %v2899, %v2837
      %v2936 = vadd.f32 %v2900, %v2842
      %v2937 = vadd.f32 %v2901, %v2845
      %v2938 = vadd.f32 %v2902, %v2850
      %v2939 = vadd.f32 %v2903, %v2853
      %v2940 = vadd.f32 %v2904, %v2858
      %v2941 = vadd.f32 %v2905, %v2861
      %v2942 = vadd.f32 %v2906, %v2866
      %v2943 = vadd.f32 %v2907, %v2869
      %2944 = vst [vmem:[#allocation2] sm:$0xff] %v2908
      %2945 = vst [vmem:[#allocation2 + $0x8] sm:$0xff] %v2909
      %2946 = vst [vmem:[#allocation2 + $0x10] sm:$0xff] %v2910
      %2947 = vst [vmem:[#allocation2 + $0x18] sm:$0xff] %v2911
      %2948 = vst [vmem:[#allocation2 + $0x20] sm:$0xff] %v2912
      %2949 = vst [vmem:[#allocation2 + $0x28] sm:$0xff] %v2913
      %2950 = vst [vmem:[#allocation2 + $0x30] sm:$0xff] %v2914
      %2951 = vst [vmem:[#allocation2 + $0x38] sm:$0xff] %v2915
      %2952 = vst [vmem:[#allocation2 + $0x40] sm:$0xff] %v2916
      %2953 = vst [vmem:[#allocation2 + $0x48] sm:$0xff] %v2917
      %2954 = vst [vmem:[#allocation2 + $0x50] sm:$0xff] %v2918
      %2955 = vst [vmem:[#allocation2 + $0x58] sm:$0xff] %v2919
      %2956 = vst [vmem:[#allocation2 + $0x60] sm:$0xff] %v2920
      %2957 = vst [vmem:[#allocation2 + $0x68] sm:$0xff] %v2921
      %2958 = vst [vmem:[#allocation2 + $0x70] sm:$0xff] %v2922
      %2959 = vst [vmem:[#allocation2 + $0x78] sm:$0xff] %v2923
      %2960 = vst [vmem:[#allocation2 + $0x80] sm:$0xff] %v2924
      %2961 = vst [vmem:[#allocation2 + $0x88] sm:$0xff] %v2925
      %2962 = vst [vmem:[#allocation2 + $0x90] sm:$0xff] %v2926
      %2963 = vst [vmem:[#allocation2 + $0x98] sm:$0xff] %v2927
      %2964 = vst [vmem:[#allocation2 + $0xa0] sm:$0xff] %v2928
      %2965 = vst [vmem:[#allocation2 + $0xa8] sm:$0xff] %v2929
      %2966 = vst [vmem:[#allocation2 + $0xb0] sm:$0xff] %v2930
      %2967 = vst [vmem:[#allocation2 + $0xb8] sm:$0xff] %v2931
      %2968 = vst [vmem:[#allocation2 + $0xc0] sm:$0xff] %v2932
      %2969 = vst [vmem:[#allocation2 + $0xc8] sm:$0xff] %v2933
      %2970 = vst [vmem:[#allocation2 + $0xd0] sm:$0xff] %v2934
      %2971 = vst [vmem:[#allocation2 + $0xd8] sm:$0xff] %v2935
      %2972 = vst [vmem:[#allocation2 + $0xe0] sm:$0xff] %v2936
      %2973 = vst [vmem:[#allocation2 + $0xe8] sm:$0xff] %v2937
      %2974 = vst [vmem:[#allocation2 + $0xf0] sm:$0xff] %v2938
      %2975 = vst [vmem:[#allocation2 + $0xf8] sm:$0xff] %v2939
      %2976 = vst [vmem:[#allocation2 + $0x100] sm:$0xff] %v2940
      %2977 = vst [vmem:[#allocation2 + $0x108] sm:$0xff] %v2941
      %2978 = vst [vmem:[#allocation2 + $0x110] sm:$0xff] %v2942
      %2979 = vst [vmem:[#allocation2 + $0x118] sm:$0xff] %v2943
      %v2980 = vld [vmem:[%s165 + $0x8] sm:$0xc]
      %v2981 = vld [vmem:[%s165 + $0xc] sm:$0xf]
      %v2982 = vld [vmem:[%s165 + $0x10] sm:$0xf]
      %v2983 = vld [vmem:[%s165 + $0x14] sm:$0xf]
      %v2984 = vld [vmem:[%s165 + $0x18] sm:$0xf]
      %v2985 = vld [vmem:[%s165 + $0x1c] sm:$0xf]
      %v2986 = vld [vmem:[%s165 + $0x20] sm:$0xf]
      %v2987 = vld [vmem:[%s165 + $0x24] sm:$0xf]
      %v2988 = vld [vmem:[%s165 + $0x28] sm:$0xf]
      %v2989 = vld [vmem:[%s165 + $0x2c] sm:$0xf]
      %v2990 = vld [vmem:[%s165 + $0x30] sm:$0xf]
      %v2991 = vld [vmem:[%s165 + $0x34] sm:$0xf]
      %v2992 = vld [vmem:[%s165 + $0x38] sm:$0xf]
      %v2993 = vld [vmem:[%s165 + $0x3c] sm:$0xf]
      %v2994 = vld [vmem:[%s165 + $0x40] sm:$0xf]
      %v2995 = vld [vmem:[%s165 + $0x44] sm:$0xf]
      %v2996 = vld [vmem:[%s165 + $0x48] sm:$0xf]
      %v2997 = vld [vmem:[%s165 + $0x4c] sm:$0xf]
      %v2998 = vld [vmem:[%s165 + $0x50] sm:$0xf]
      %v2999 = vld [vmem:[%s165 + $0x54] sm:$0xf]
      %v3000 = vld [vmem:[%s165 + $0x58] sm:$0xf]
      %v3001 = vld [vmem:[%s165 + $0x5c] sm:$0xf]
      %v3002 = vld [vmem:[%s165 + $0x60] sm:$0xf]
      %v3003 = vld [vmem:[%s165 + $0x64] sm:$0xf]
      %v3004 = vld [vmem:[%s165 + $0x68] sm:$0xf]
      %v3005 = vld [vmem:[%s165 + $0x6c] sm:$0xf]
      %v3006 = vld [vmem:[%s165 + $0x70] sm:$0xf]
      %v3007 = vld [vmem:[%s165 + $0x74] sm:$0xf]
      %v3008 = vld [vmem:[%s165 + $0x78] sm:$0xf]
      %v3009 = vld [vmem:[%s165 + $0x7c] sm:$0xf]
      %v3010 = vld [vmem:[%s165 + $0x80] sm:$0xf]
      %v3011 = vld [vmem:[%s165 + $0x84] sm:$0xf]
      %v3012 = vld [vmem:[%s165 + $0x88] sm:$0xf]
      %v3013 = vld [vmem:[%s165 + $0x8c] sm:$0xf]
      %v3014 = vld [vmem:[%s165 + $0x90] sm:$0xf]
      %v3015 = vld [vmem:[%s165 + $0x94] sm:$0xf]
      %v3016 = vld [vmem:[%s165 + $0x98] sm:$0x3]
      %s3017 = scalar_lea.vmem %s1, 320
      %v3018 = vld [vmem:[%s3017] sm:$0xf]
      %v3019 = vld [vmem:[%s3017 + $0x4] sm:$0xf]
      %v3020 = vld [vmem:[%s3017 + $0x8] sm:$0xf]
      %v3021 = vld [vmem:[%s3017 + $0xc] sm:$0xf]
      %v3022 = vld [vmem:[%s3017 + $0x10] sm:$0xf]
      %v3023 = vld [vmem:[%s3017 + $0x14] sm:$0xf]
      %v3024 = vld [vmem:[%s3017 + $0x18] sm:$0xf]
      %v3025 = vld [vmem:[%s3017 + $0x1c] sm:$0xf]
      %v3026 = vld [vmem:[%s3017 + $0x20] sm:$0xf]
      %v3027 = vld [vmem:[%s3017 + $0x24] sm:$0xf]
      %v3028 = vld [vmem:[%s3017 + $0x28] sm:$0xf]
      %v3029 = vld [vmem:[%s3017 + $0x2c] sm:$0xf]
      %v3030 = vld [vmem:[%s3017 + $0x30] sm:$0xf]
      %v3031 = vld [vmem:[%s3017 + $0x34] sm:$0xf]
      %v3032 = vld [vmem:[%s3017 + $0x38] sm:$0xf]
      %v3033 = vld [vmem:[%s3017 + $0x3c] sm:$0xf]
      %v3071 = vunpack.c.l.b16 %v2980
      %v3072 = vunpack.c.l.b16 %v2981
      %v3073 = vunpack.c.l.b16 %v2982
      %v3074 = vunpack.c.l.b16 %v2983
      %v3075 = vunpack.c.l.b16 %v2984
      %v3076 = vunpack.c.l.b16 %v2985
      %v3077 = vunpack.c.l.b16 %v2986
      %v3078 = vunpack.c.l.b16 %v2987
      %v3079 = vunpack.c.l.b16 %v2988
      %v3080 = vunpack.c.l.b16 %v2989
      %v3081 = vunpack.c.l.b16 %v2990
      %v3082 = vunpack.c.l.b16 %v2991
      %v3083 = vunpack.c.l.b16 %v2992
      %v3084 = vunpack.c.l.b16 %v2993
      %v3085 = vunpack.c.l.b16 %v2994
      %v3086 = vunpack.c.l.b16 %v2995
      %v3087 = vunpack.c.l.b16 %v2996
      %v3088 = vunpack.c.l.b16 %v2997
      %v3089 = vunpack.c.l.b16 %v2998
      %v3090 = vunpack.c.l.b16 %v2999
      %v3091 = vunpack.c.l.b16 %v3000
      %v3092 = vunpack.c.l.b16 %v3001
      %v3093 = vunpack.c.l.b16 %v3002
      %v3094 = vunpack.c.l.b16 %v3003
      %v3095 = vunpack.c.l.b16 %v3004
      %v3096 = vunpack.c.l.b16 %v3005
      %v3097 = vunpack.c.l.b16 %v3006
      %v3098 = vunpack.c.l.b16 %v3007
      %v3099 = vunpack.c.l.b16 %v3008
      %v3100 = vunpack.c.l.b16 %v3009
      %v3101 = vunpack.c.l.b16 %v3010
      %v3102 = vunpack.c.l.b16 %v3011
      %v3103 = vunpack.c.l.b16 %v3012
      %v3104 = vunpack.c.l.b16 %v3013
      %v3105 = vunpack.c.l.b16 %v3014
      %v3106 = vunpack.c.l.b16 %v3015
      %v3107 = vunpack.c.l.b16 %v3016
      %v3108 = vpack.c.b16 %v3072, %v3071
      %v3109 = vpack.c.b16 %v3074, %v3073
      %v3110 = vpack.c.b16 %v3076, %v3075
      %v3111 = vpack.c.b16 %v3078, %v3077
      %v3112 = vpack.c.b16 %v3080, %v3079
      %v3113 = vpack.c.b16 %v3082, %v3081
      %v3114 = vpack.c.b16 %v3084, %v3083
      %v3115 = vpack.c.b16 %v3086, %v3085
      %v3116 = vpack.c.b16 %v3088, %v3087
      %v3117 = vpack.c.b16 %v3090, %v3089
      %v3118 = vpack.c.b16 %v3092, %v3091
      %v3119 = vpack.c.b16 %v3094, %v3093
      %v3120 = vpack.c.b16 %v3096, %v3095
      %v3121 = vpack.c.b16 %v3098, %v3097
      %v3122 = vpack.c.b16 %v3100, %v3099
      %v3123 = vpack.c.b16 %v3102, %v3101
      %v3124 = vpack.c.b16 %v3104, %v3103
      %v3125 = vpack.c.b16 %v3106, %v3105
      %v3126 = vpack.c.b16 %v3107, %v3107
      %vm3127 = vcmask 1045504
      %v3128 = vrot.slane %v3108, 2
      %v3129 = vrot.slane %v3109, 2
      %v3130 = vsel %vm3127, %v3128, %v3129
      %v3131 = vrot.slane %v3110, 2
      %v3132 = vsel %vm3127, %v3129, %v3131
      %v3133 = vrot.slane %v3111, 2
      %v3134 = vsel %vm3127, %v3131, %v3133
      %v3135 = vrot.slane %v3112, 2
      %v3136 = vsel %vm3127, %v3133, %v3135
      %v3137 = vrot.slane %v3113, 2
      %v3138 = vsel %vm3127, %v3135, %v3137
      %v3139 = vrot.slane %v3114, 2
      %v3140 = vsel %vm3127, %v3137, %v3139
      %v3141 = vrot.slane %v3115, 2
      %v3142 = vsel %vm3127, %v3139, %v3141
      %v3143 = vrot.slane %v3116, 2
      %v3144 = vsel %vm3127, %v3141, %v3143
      %v3145 = vrot.slane %v3117, 2
      %v3146 = vsel %vm3127, %v3143, %v3145
      %v3147 = vrot.slane %v3118, 2
      %v3148 = vsel %vm3127, %v3145, %v3147
      %v3149 = vrot.slane %v3119, 2
      %v3150 = vsel %vm3127, %v3147, %v3149
      %v3151 = vrot.slane %v3120, 2
      %v3152 = vsel %vm3127, %v3149, %v3151
      %v3153 = vrot.slane %v3121, 2
      %v3154 = vsel %vm3127, %v3151, %v3153
      %v3155 = vrot.slane %v3122, 2
      %v3156 = vsel %vm3127, %v3153, %v3155
      %v3157 = vrot.slane %v3123, 2
      %v3158 = vsel %vm3127, %v3155, %v3157
      %v3159 = vrot.slane %v3124, 2
      %v3160 = vsel %vm3127, %v3157, %v3159
      %v3161 = vrot.slane %v3125, 2
      %v3162 = vsel %vm3127, %v3159, %v3161
      %v3163 = vrot.slane %v3126, 2
      %v3164 = vsel %vm3127, %v3161, %v3163
      %v3199 = vunpack.c.l.b16 %v3018
      %v3200 = vunpack.c.l.b16 %v3019
      %v3201 = vunpack.c.l.b16 %v3020
      %v3202 = vunpack.c.l.b16 %v3021
      %v3203 = vunpack.c.l.b16 %v3022
      %v3204 = vunpack.c.l.b16 %v3023
      %v3205 = vunpack.c.l.b16 %v3024
      %v3206 = vunpack.c.l.b16 %v3025
      %v3207 = vunpack.c.l.b16 %v3026
      %v3208 = vunpack.c.l.b16 %v3027
      %v3209 = vunpack.c.l.b16 %v3028
      %v3210 = vunpack.c.l.b16 %v3029
      %v3211 = vunpack.c.l.b16 %v3030
      %v3212 = vunpack.c.l.b16 %v3031
      %v3213 = vunpack.c.l.b16 %v3032
      %v3214 = vunpack.c.l.b16 %v3033
      %v3215 = vpack.c.b16 %v3200, %v3199
      %v3216 = vpack.c.b16 %v3202, %v3201
      %v3217 = vpack.c.b16 %v3204, %v3203
      %v3218 = vpack.c.b16 %v3206, %v3205
      %v3219 = vpack.c.b16 %v3208, %v3207
      %v3220 = vpack.c.b16 %v3210, %v3209
      %v3221 = vpack.c.b16 %v3212, %v3211
      %v3222 = vpack.c.b16 %v3214, %v3213
      %3231 = vmatprep.subr.bf16.mxu0 0
      %3232 = vmatpush1.bf16.msra.mxu0 %v3215
      %3233 = vmatprep.subr.bf16.mxu0 0
      %3234 = vmatpush1.bf16.msra.mxu0 %v3216
      %3235 = vmatprep.subr.bf16.mxu0 0
      %3236 = vmatpush1.bf16.msra.mxu0 %v3217
      %3237 = vmatprep.subr.bf16.mxu0 0
      %3238 = vmatpush1.bf16.msra.mxu0 %v3218
      %3239 = vmatprep.subr.bf16.mxu0 0
      %3240 = vmatpush1.bf16.msra.mxu0 %v3219
      %3241 = vmatprep.subr.bf16.mxu0 0
      %3242 = vmatpush1.bf16.msra.mxu0 %v3220
      %3243 = vmatprep.subr.bf16.mxu0 0
      %3244 = vmatpush1.bf16.msra.mxu0 %v3221
      %3245 = vmatprep.subr.bf16.mxu0 0
      %3246 = vmatpush1.bf16.msra.mxu0 %v3222
      %3247 = vmatprep.subr.bf16.mxu0 0
      %3248 = vmatpush1.bf16.msra.mxu0 0
      %3249 = vmatprep.subr.bf16.mxu0 0
      %3250 = vmatpush1.bf16.msra.mxu0 0
      %3251 = vmatprep.subr.bf16.mxu0 0
      %3252 = vmatpush1.bf16.msra.mxu0 0
      %3253 = vmatprep.subr.bf16.mxu0 0
      %3254 = vmatpush1.bf16.msra.mxu0 0
      %3255 = vmatprep.subr.bf16.mxu0 0
      %3256 = vmatpush1.bf16.msra.mxu0 0
      %3257 = vmatprep.subr.bf16.mxu0 0
      %3258 = vmatpush1.bf16.msra.mxu0 0
      %3259 = vmatprep.subr.bf16.mxu0 0
      %3260 = vmatpush1.bf16.msra.mxu0 0
      %3261 = vmatprep.subr.bf16.mxu0 0
      %3262 = vmatpush1.bf16.msra.mxu0 0
      %3263 = vmatprep.mubr.bf16.mxu0 0
      %3264 = vmatmul.mubr.bf16.gmra.mrb[0].mxu0 %v3130
      %v3265 = vpop.f32.mrb[0].mxu0
      %v3266 = vadd.f32 0.0, %v3265
      %v3267 = vpop.f32.mrb[0].mxu0
      %v3268 = vpop.f32.mrb[0].mxu0
      %v3269 = vadd.f32 0.0, %v3268
      %v3270 = vpop.f32.mrb[0].mxu0
      %3271 = vmatprep.mubr.bf16.mxu0 0
      %3272 = vmatmul.mubr.bf16.gmra.mrb[0].mxu0 %v3132
      %v3273 = vpop.f32.mrb[0].mxu0
      %v3274 = vadd.f32 0.0, %v3273
      %v3275 = vpop.f32.mrb[0].mxu0
      %v3276 = vpop.f32.mrb[0].mxu0
      %v3277 = vadd.f32 0.0, %v3276
      %v3278 = vpop.f32.mrb[0].mxu0
      %3279 = vmatprep.mubr.bf16.mxu0 0
      %3280 = vmatmul.mubr.bf16.gmra.mrb[0].mxu0 %v3134
      %v3281 = vpop.f32.mrb[0].mxu0
      %v3282 = vadd.f32 0.0, %v3281
      %v3283 = vpop.f32.mrb[0].mxu0
      %v3284 = vpop.f32.mrb[0].mxu0
      %v3285 = vadd.f32 0.0, %v3284
      %v3286 = vpop.f32.mrb[0].mxu0
      %3287 = vmatprep.mubr.bf16.mxu0 0
      %3288 = vmatmul.mubr.bf16.gmra.mrb[0].mxu0 %v3136
      %v3289 = vpop.f32.mrb[0].mxu0
      %v3290 = vadd.f32 0.0, %v3289
      %v3291 = vpop.f32.mrb[0].mxu0
      %v3292 = vpop.f32.mrb[0].mxu0
      %v3293 = vadd.f32 0.0, %v3292
      %v3294 = vpop.f32.mrb[0].mxu0
      %3295 = vmatprep.mubr.bf16.mxu0 0
      %3296 = vmatmul.mubr.bf16.gmra.mrb[0].mxu0 %v3138
      %v3297 = vpop.f32.mrb[0].mxu0
      %v3298 = vadd.f32 0.0, %v3297
      %v3299 = vpop.f32.mrb[0].mxu0
      %v3300 = vpop.f32.mrb[0].mxu0
      %v3301 = vadd.f32 0.0, %v3300
      %v3302 = vpop.f32.mrb[0].mxu0
      %3303 = vmatprep.mubr.bf16.mxu0 0
      %3304 = vmatmul.mubr.bf16.gmra.mrb[0].mxu0 %v3140
      %v3305 = vpop.f32.mrb[0].mxu0
      %v3306 = vadd.f32 0.0, %v3305
      %v3307 = vpop.f32.mrb[0].mxu0
      %v3308 = vpop.f32.mrb[0].mxu0
      %v3309 = vadd.f32 0.0, %v3308
      %v3310 = vpop.f32.mrb[0].mxu0
      %3311 = vmatprep.mubr.bf16.mxu0 0
      %3312 = vmatmul.mubr.bf16.gmra.mrb[0].mxu0 %v3142
      %v3313 = vpop.f32.mrb[0].mxu0
      %v3314 = vadd.f32 0.0, %v3313
      %v3315 = vpop.f32.mrb[0].mxu0
      %v3316 = vpop.f32.mrb[0].mxu0
      %v3317 = vadd.f32 0.0, %v3316
      %v3318 = vpop.f32.mrb[0].mxu0
      %3319 = vmatprep.mubr.bf16.mxu0 0
      %3320 = vmatmul.mubr.bf16.gmra.mrb[0].mxu0 %v3144
      %v3321 = vpop.f32.mrb[0].mxu0
      %v3322 = vadd.f32 0.0, %v3321
      %v3323 = vpop.f32.mrb[0].mxu0
      %v3324 = vpop.f32.mrb[0].mxu0
      %v3325 = vadd.f32 0.0, %v3324
      %v3326 = vpop.f32.mrb[0].mxu0
      %3327 = vmatprep.mubr.bf16.mxu0 0
      %3328 = vmatmul.mubr.bf16.gmra.mrb[0].mxu0 %v3146
      %v3329 = vpop.f32.mrb[0].mxu0
      %v3330 = vadd.f32 0.0, %v3329
      %v3331 = vpop.f32.mrb[0].mxu0
      %v3332 = vpop.f32.mrb[0].mxu0
      %v3333 = vadd.f32 0.0, %v3332
      %v3334 = vpop.f32.mrb[0].mxu0
      %3335 = vmatprep.mubr.bf16.mxu0 0
      %3336 = vmatmul.mubr.bf16.gmra.mrb[0].mxu0 %v3148
      %v3337 = vpop.f32.mrb[0].mxu0
      %v3338 = vadd.f32 0.0, %v3337
      %v3339 = vpop.f32.mrb[0].mxu0
      %v3340 = vpop.f32.mrb[0].mxu0
      %v3341 = vadd.f32 0.0, %v3340
      %v3342 = vpop.f32.mrb[0].mxu0
      %3343 = vmatprep.mubr.bf16.mxu0 0
      %3344 = vmatmul.mubr.bf16.gmra.mrb[0].mxu0 %v3150
      %v3345 = vpop.f32.mrb[0].mxu0
      %v3346 = vadd.f32 0.0, %v3345
      %v3347 = vpop.f32.mrb[0].mxu0
      %v3348 = vpop.f32.mrb[0].mxu0
      %v3349 = vadd.f32 0.0, %v3348
      %v3350 = vpop.f32.mrb[0].mxu0
      %3351 = vmatprep.mubr.bf16.mxu0 0
      %3352 = vmatmul.mubr.bf16.gmra.mrb[0].mxu0 %v3152
      %v3353 = vpop.f32.mrb[0].mxu0
      %v3354 = vadd.f32 0.0, %v3353
      %v3355 = vpop.f32.mrb[0].mxu0
      %v3356 = vpop.f32.mrb[0].mxu0
      %v3357 = vadd.f32 0.0, %v3356
      %v3358 = vpop.f32.mrb[0].mxu0
      %3359 = vmatprep.mubr.bf16.mxu0 0
      %3360 = vmatmul.mubr.bf16.gmra.mrb[0].mxu0 %v3154
      %v3361 = vpop.f32.mrb[0].mxu0
      %v3362 = vadd.f32 0.0, %v3361
      %v3363 = vpop.f32.mrb[0].mxu0
      %v3364 = vpop.f32.mrb[0].mxu0
      %v3365 = vadd.f32 0.0, %v3364
      %v3366 = vpop.f32.mrb[0].mxu0
      %3367 = vmatprep.mubr.bf16.mxu0 0
      %3368 = vmatmul.mubr.bf16.gmra.mrb[0].mxu0 %v3156
      %v3369 = vpop.f32.mrb[0].mxu0
      %v3370 = vadd.f32 0.0, %v3369
      %v3371 = vpop.f32.mrb[0].mxu0
      %v3372 = vpop.f32.mrb[0].mxu0
      %v3373 = vadd.f32 0.0, %v3372
      %v3374 = vpop.f32.mrb[0].mxu0
      %3375 = vmatprep.mubr.bf16.mxu0 0
      %3376 = vmatmul.mubr.bf16.gmra.mrb[0].mxu0 %v3158
      %v3377 = vpop.f32.mrb[0].mxu0
      %v3378 = vadd.f32 0.0, %v3377
      %v3379 = vpop.f32.mrb[0].mxu0
      %v3380 = vpop.f32.mrb[0].mxu0
      %v3381 = vadd.f32 0.0, %v3380
      %v3382 = vpop.f32.mrb[0].mxu0
      %3383 = vmatprep.mubr.bf16.mxu0 0
      %3384 = vmatmul.mubr.bf16.gmra.mrb[0].mxu0 %v3160
      %v3385 = vpop.f32.mrb[0].mxu0
      %v3386 = vadd.f32 0.0, %v3385
      %v3387 = vpop.f32.mrb[0].mxu0
      %v3388 = vpop.f32.mrb[0].mxu0
      %v3389 = vadd.f32 0.0, %v3388
      %v3390 = vpop.f32.mrb[0].mxu0
      %3391 = vmatprep.mubr.bf16.mxu0 0
      %3392 = vmatmul.mubr.bf16.gmra.mrb[0].mxu0 %v3162
      %v3393 = vpop.f32.mrb[0].mxu0
      %v3394 = vadd.f32 0.0, %v3393
      %v3395 = vpop.f32.mrb[0].mxu0
      %v3396 = vpop.f32.mrb[0].mxu0
      %v3397 = vadd.f32 0.0, %v3396
      %v3398 = vpop.f32.mrb[0].mxu0
      %3399 = vmatprep.mubr.bf16.mxu0 0
      %3400 = vmatmul.mubr.bf16.gmra.mrb[0].mxu0 %v3164
      %v3401 = vpop.f32.mrb[0].mxu0
      %v3402 = vadd.f32 0.0, %v3401
      %v3403 = vpop.f32.mrb[0].mxu0
      %v3404 = vpop.f32.mrb[0].mxu0
      %v3405 = vadd.f32 0.0, %v3404
      %v3406 = vpop.f32.mrb[0].mxu0
      %3407 = vdwg.mxu0
      %v3408 = vld [vmem:[#allocation2] sm:$0xff]
      %v3409 = vld [vmem:[#allocation2 + $0x8] sm:$0xff]
      %v3410 = vld [vmem:[#allocation2 + $0x10] sm:$0xff]
      %v3411 = vld [vmem:[#allocation2 + $0x18] sm:$0xff]
      %v3412 = vld [vmem:[#allocation2 + $0x20] sm:$0xff]
      %v3413 = vld [vmem:[#allocation2 + $0x28] sm:$0xff]
      %v3414 = vld [vmem:[#allocation2 + $0x30] sm:$0xff]
      %v3415 = vld [vmem:[#allocation2 + $0x38] sm:$0xff]
      %v3416 = vld [vmem:[#allocation2 + $0x40] sm:$0xff]
      %v3417 = vld [vmem:[#allocation2 + $0x48] sm:$0xff]
      %v3418 = vld [vmem:[#allocation2 + $0x50] sm:$0xff]
      %v3419 = vld [vmem:[#allocation2 + $0x58] sm:$0xff]
      %v3420 = vld [vmem:[#allocation2 + $0x60] sm:$0xff]
      %v3421 = vld [vmem:[#allocation2 + $0x68] sm:$0xff]
      %v3422 = vld [vmem:[#allocation2 + $0x70] sm:$0xff]
      %v3423 = vld [vmem:[#allocation2 + $0x78] sm:$0xff]
      %v3424 = vld [vmem:[#allocation2 + $0x80] sm:$0xff]
      %v3425 = vld [vmem:[#allocation2 + $0x88] sm:$0xff]
      %v3426 = vld [vmem:[#allocation2 + $0x90] sm:$0xff]
      %v3427 = vld [vmem:[#allocation2 + $0x98] sm:$0xff]
      %v3428 = vld [vmem:[#allocation2 + $0xa0] sm:$0xff]
      %v3429 = vld [vmem:[#allocation2 + $0xa8] sm:$0xff]
      %v3430 = vld [vmem:[#allocation2 + $0xb0] sm:$0xff]
      %v3431 = vld [vmem:[#allocation2 + $0xb8] sm:$0xff]
      %v3432 = vld [vmem:[#allocation2 + $0xc0] sm:$0xff]
      %v3433 = vld [vmem:[#allocation2 + $0xc8] sm:$0xff]
      %v3434 = vld [vmem:[#allocation2 + $0xd0] sm:$0xff]
      %v3435 = vld [vmem:[#allocation2 + $0xd8] sm:$0xff]
      %v3436 = vld [vmem:[#allocation2 + $0xe0] sm:$0xff]
      %v3437 = vld [vmem:[#allocation2 + $0xe8] sm:$0xff]
      %v3438 = vld [vmem:[#allocation2 + $0xf0] sm:$0xff]
      %v3439 = vld [vmem:[#allocation2 + $0xf8] sm:$0xff]
      %v3440 = vld [vmem:[#allocation2 + $0x100] sm:$0xff]
      %v3441 = vld [vmem:[#allocation2 + $0x108] sm:$0xff]
      %v3442 = vld [vmem:[#allocation2 + $0x110] sm:$0xff]
      %v3443 = vld [vmem:[#allocation2 + $0x118] sm:$0xff]
      %v3444 = vadd.f32 %v3408, %v3266
      %v3445 = vadd.f32 %v3409, %v3269
      %v3446 = vadd.f32 %v3410, %v3274
      %v3447 = vadd.f32 %v3411, %v3277
      %v3448 = vadd.f32 %v3412, %v3282
      %v3449 = vadd.f32 %v3413, %v3285
      %v3450 = vadd.f32 %v3414, %v3290
      %v3451 = vadd.f32 %v3415, %v3293
      %v3452 = vadd.f32 %v3416, %v3298
      %v3453 = vadd.f32 %v3417, %v3301
      %v3454 = vadd.f32 %v3418, %v3306
      %v3455 = vadd.f32 %v3419, %v3309
      %v3456 = vadd.f32 %v3420, %v3314
      %v3457 = vadd.f32 %v3421, %v3317
      %v3458 = vadd.f32 %v3422, %v3322
      %v3459 = vadd.f32 %v3423, %v3325
      %v3460 = vadd.f32 %v3424, %v3330
      %v3461 = vadd.f32 %v3425, %v3333
      %v3462 = vadd.f32 %v3426, %v3338
      %v3463 = vadd.f32 %v3427, %v3341
      %v3464 = vadd.f32 %v3428, %v3346
      %v3465 = vadd.f32 %v3429, %v3349
      %v3466 = vadd.f32 %v3430, %v3354
      %v3467 = vadd.f32 %v3431, %v3357
      %v3468 = vadd.f32 %v3432, %v3362
      %v3469 = vadd.f32 %v3433, %v3365
      %v3470 = vadd.f32 %v3434, %v3370
      %v3471 = vadd.f32 %v3435, %v3373
      %v3472 = vadd.f32 %v3436, %v3378
      %v3473 = vadd.f32 %v3437, %v3381
      %v3474 = vadd.f32 %v3438, %v3386
      %v3475 = vadd.f32 %v3439, %v3389
      %v3476 = vadd.f32 %v3440, %v3394
      %v3477 = vadd.f32 %v3441, %v3397
      %v3478 = vadd.f32 %v3442, %v3402
      %v3479 = vadd.f32 %v3443, %v3405
      %3480 = vst [vmem:[#allocation2] sm:$0xff] %v3444
      %3481 = vst [vmem:[#allocation2 + $0x8] sm:$0xff] %v3445
      %3482 = vst [vmem:[#allocation2 + $0x10] sm:$0xff] %v3446
      %3483 = vst [vmem:[#allocation2 + $0x18] sm:$0xff] %v3447
      %3484 = vst [vmem:[#allocation2 + $0x20] sm:$0xff] %v3448
      %3485 = vst [vmem:[#allocation2 + $0x28] sm:$0xff] %v3449
      %3486 = vst [vmem:[#allocation2 + $0x30] sm:$0xff] %v3450
      %3487 = vst [vmem:[#allocation2 + $0x38] sm:$0xff] %v3451
      %3488 = vst [vmem:[#allocation2 + $0x40] sm:$0xff] %v3452
      %3489 = vst [vmem:[#allocation2 + $0x48] sm:$0xff] %v3453
      %3490 = vst [vmem:[#allocation2 + $0x50] sm:$0xff] %v3454
      %3491 = vst [vmem:[#allocation2 + $0x58] sm:$0xff] %v3455
      %3492 = vst [vmem:[#allocation2 + $0x60] sm:$0xff] %v3456
      %3493 = vst [vmem:[#allocation2 + $0x68] sm:$0xff] %v3457
      %3494 = vst [vmem:[#allocation2 + $0x70] sm:$0xff] %v3458
      %3495 = vst [vmem:[#allocation2 + $0x78] sm:$0xff] %v3459
      %3496 = vst [vmem:[#allocation2 + $0x80] sm:$0xff] %v3460
      %3497 = vst [vmem:[#allocation2 + $0x88] sm:$0xff] %v3461
      %3498 = vst [vmem:[#allocation2 + $0x90] sm:$0xff] %v3462
      %3499 = vst [vmem:[#allocation2 + $0x98] sm:$0xff] %v3463
      %3500 = vst [vmem:[#allocation2 + $0xa0] sm:$0xff] %v3464
      %3501 = vst [vmem:[#allocation2 + $0xa8] sm:$0xff] %v3465
      %3502 = vst [vmem:[#allocation2 + $0xb0] sm:$0xff] %v3466
      %3503 = vst [vmem:[#allocation2 + $0xb8] sm:$0xff] %v3467
      %3504 = vst [vmem:[#allocation2 + $0xc0] sm:$0xff] %v3468
      %3505 = vst [vmem:[#allocation2 + $0xc8] sm:$0xff] %v3469
      %3506 = vst [vmem:[#allocation2 + $0xd0] sm:$0xff] %v3470
      %3507 = vst [vmem:[#allocation2 + $0xd8] sm:$0xff] %v3471
      %3508 = vst [vmem:[#allocation2 + $0xe0] sm:$0xff] %v3472
      %3509 = vst [vmem:[#allocation2 + $0xe8] sm:$0xff] %v3473
      %3510 = vst [vmem:[#allocation2 + $0xf0] sm:$0xff] %v3474
      %3511 = vst [vmem:[#allocation2 + $0xf8] sm:$0xff] %v3475
      %3512 = vst [vmem:[#allocation2 + $0x100] sm:$0xff] %v3476
      %3513 = vst [vmem:[#allocation2 + $0x108] sm:$0xff] %v3477
      %3514 = vst [vmem:[#allocation2 + $0x110] sm:$0xff] %v3478
      %3515 = vst [vmem:[#allocation2 + $0x118] sm:$0xff] %v3479
      %v3516 = vld [vmem:[%s165 + $0x10] sm:$0xc]
      %v3517 = vld [vmem:[%s165 + $0x14] sm:$0xf]
      %v3518 = vld [vmem:[%s165 + $0x18] sm:$0xf]
      %v3519 = vld [vmem:[%s165 + $0x1c] sm:$0xf]
      %v3520 = vld [vmem:[%s165 + $0x20] sm:$0xf]
      %v3521 = vld [vmem:[%s165 + $0x24] sm:$0xf]
      %v3522 = vld [vmem:[%s165 + $0x28] sm:$0xf]
      %v3523 = vld [vmem:[%s165 + $0x2c] sm:$0xf]
      %v3524 = vld [vmem:[%s165 + $0x30] sm:$0xf]
      %v3525 = vld [vmem:[%s165 + $0x34] sm:$0xf]
      %v3526 = vld [vmem:[%s165 + $0x38] sm:$0xf]
      %v3527 = vld [vmem:[%s165 + $0x3c] sm:$0xf]
      %v3528 = vld [vmem:[%s165 + $0x40] sm:$0xf]
      %v3529 = vld [vmem:[%s165 + $0x44] sm:$0xf]
      %v3530 = vld [vmem:[%s165 + $0x48] sm:$0xf]
      %v3531 = vld [vmem:[%s165 + $0x4c] sm:$0xf]
      %v3532 = vld [vmem:[%s165 + $0x50] sm:$0xf]
      %v3533 = vld [vmem:[%s165 + $0x54] sm:$0xf]
      %v3534 = vld [vmem:[%s165 + $0x58] sm:$0xf]
      %v3535 = vld [vmem:[%s165 + $0x5c] sm:$0xf]
      %v3536 = vld [vmem:[%s165 + $0x60] sm:$0xf]
      %v3537 = vld [vmem:[%s165 + $0x64] sm:$0xf]
      %v3538 = vld [vmem:[%s165 + $0x68] sm:$0xf]
      %v3539 = vld [vmem:[%s165 + $0x6c] sm:$0xf]
      %v3540 = vld [vmem:[%s165 + $0x70] sm:$0xf]
      %v3541 = vld [vmem:[%s165 + $0x74] sm:$0xf]
      %v3542 = vld [vmem:[%s165 + $0x78] sm:$0xf]
      %v3543 = vld [vmem:[%s165 + $0x7c] sm:$0xf]
      %v3544 = vld [vmem:[%s165 + $0x80] sm:$0xf]
      %v3545 = vld [vmem:[%s165 + $0x84] sm:$0xf]
      %v3546 = vld [vmem:[%s165 + $0x88] sm:$0xf]
      %v3547 = vld [vmem:[%s165 + $0x8c] sm:$0xf]
      %v3548 = vld [vmem:[%s165 + $0x90] sm:$0xf]
      %v3549 = vld [vmem:[%s165 + $0x94] sm:$0xf]
      %v3550 = vld [vmem:[%s165 + $0x98] sm:$0xf]
      %v3551 = vld [vmem:[%s165 + $0x9c] sm:$0xf]
      %v3552 = vld [vmem:[%s165 + $0xa0] sm:$0x3]
      %s3553 = scalar_lea.vmem %s1, 384
      %v3554 = vld [vmem:[%s3553] sm:$0xf]
      %v3555 = vld [vmem:[%s3553 + $0x4] sm:$0xf]
      %v3556 = vld [vmem:[%s3553 + $0x8] sm:$0xf]
      %v3557 = vld [vmem:[%s3553 + $0xc] sm:$0xf]
      %v3558 = vld [vmem:[%s3553 + $0x10] sm:$0xf]
      %v3559 = vld [vmem:[%s3553 + $0x14] sm:$0xf]
      %v3560 = vld [vmem:[%s3553 + $0x18] sm:$0xf]
      %v3561 = vld [vmem:[%s3553 + $0x1c] sm:$0xf]
      %v3562 = vld [vmem:[%s3553 + $0x20] sm:$0xf]
      %v3563 = vld [vmem:[%s3553 + $0x24] sm:$0xf]
      %v3564 = vld [vmem:[%s3553 + $0x28] sm:$0xf]
      %v3565 = vld [vmem:[%s3553 + $0x2c] sm:$0xf]
      %v3566 = vld [vmem:[%s3553 + $0x30] sm:$0xf]
      %v3567 = vld [vmem:[%s3553 + $0x34] sm:$0xf]
      %v3568 = vld [vmem:[%s3553 + $0x38] sm:$0xf]
      %v3569 = vld [vmem:[%s3553 + $0x3c] sm:$0xf]
      %v3607 = vunpack.c.l.b16 %v3516
      %v3608 = vunpack.c.l.b16 %v3517
      %v3609 = vunpack.c.l.b16 %v3518
      %v3610 = vunpack.c.l.b16 %v3519
      %v3611 = vunpack.c.l.b16 %v3520
      %v3612 = vunpack.c.l.b16 %v3521
      %v3613 = vunpack.c.l.b16 %v3522
      %v3614 = vunpack.c.l.b16 %v3523
      %v3615 = vunpack.c.l.b16 %v3524
      %v3616 = vunpack.c.l.b16 %v3525
      %v3617 = vunpack.c.l.b16 %v3526
      %v3618 = vunpack.c.l.b16 %v3527
      %v3619 = vunpack.c.l.b16 %v3528
      %v3620 = vunpack.c.l.b16 %v3529
      %v3621 = vunpack.c.l.b16 %v3530
      %v3622 = vunpack.c.l.b16 %v3531
      %v3623 = vunpack.c.l.b16 %v3532
      %v3624 = vunpack.c.l.b16 %v3533
      %v3625 = vunpack.c.l.b16 %v3534
      %v3626 = vunpack.c.l.b16 %v3535
      %v3627 = vunpack.c.l.b16 %v3536
      %v3628 = vunpack.c.l.b16 %v3537
      %v3629 = vunpack.c.l.b16 %v3538
      %v3630 = vunpack.c.l.b16 %v3539
      %v3631 = vunpack.c.l.b16 %v3540
      %v3632 = vunpack.c.l.b16 %v3541
      %v3633 = vunpack.c.l.b16 %v3542
      %v3634 = vunpack.c.l.b16 %v3543
      %v3635 = vunpack.c.l.b16 %v3544
      %v3636 = vunpack.c.l.b16 %v3545
      %v3637 = vunpack.c.l.b16 %v3546
      %v3638 = vunpack.c.l.b16 %v3547
      %v3639 = vunpack.c.l.b16 %v3548
      %v3640 = vunpack.c.l.b16 %v3549
      %v3641 = vunpack.c.l.b16 %v3550
      %v3642 = vunpack.c.l.b16 %v3551
      %v3643 = vunpack.c.l.b16 %v3552
      %v3644 = vpack.c.b16 %v3608, %v3607
      %v3645 = vpack.c.b16 %v3610, %v3609
      %v3646 = vpack.c.b16 %v3612, %v3611
      %v3647 = vpack.c.b16 %v3614, %v3613
      %v3648 = vpack.c.b16 %v3616, %v3615
      %v3649 = vpack.c.b16 %v3618, %v3617
      %v3650 = vpack.c.b16 %v3620, %v3619
      %v3651 = vpack.c.b16 %v3622, %v3621
      %v3652 = vpack.c.b16 %v3624, %v3623
      %v3653 = vpack.c.b16 %v3626, %v3625
      %v3654 = vpack.c.b16 %v3628, %v3627
      %v3655 = vpack.c.b16 %v3630, %v3629
      %v3656 = vpack.c.b16 %v3632, %v3631
      %v3657 = vpack.c.b16 %v3634, %v3633
      %v3658 = vpack.c.b16 %v3636, %v3635
      %v3659 = vpack.c.b16 %v3638, %v3637
      %v3660 = vpack.c.b16 %v3640, %v3639
      %v3661 = vpack.c.b16 %v3642, %v3641
      %v3662 = vpack.c.b16 %v3643, %v3643
      %v3663 = vrot.slane %v3644, 2
      %v3664 = vrot.slane %v3645, 2
      %v3665 = vsel %vm3127, %v3663, %v3664
      %v3666 = vrot.slane %v3646, 2
      %v3667 = vsel %vm3127, %v3664, %v3666
      %v3668 = vrot.slane %v3647, 2
      %v3669 = vsel %vm3127, %v3666, %v3668
      %v3670 = vrot.slane %v3648, 2
      %v3671 = vsel %vm3127, %v3668, %v3670
      %v3672 = vrot.slane %v3649, 2
      %v3673 = vsel %vm3127, %v3670, %v3672
      %v3674 = vrot.slane %v3650, 2
      %v3675 = vsel %vm3127, %v3672, %v3674
      %v3676 = vrot.slane %v3651, 2
      %v3677 = vsel %vm3127, %v3674, %v3676
      %v3678 = vrot.slane %v3652, 2
      %v3679 = vsel %vm3127, %v3676, %v3678
      %v3680 = vrot.slane %v3653, 2
      %v3681 = vsel %vm3127, %v3678, %v3680
      %v3682 = vrot.slane %v3654, 2
      %v3683 = vsel %vm3127, %v3680, %v3682
      %v3684 = vrot.slane %v3655, 2
      %v3685 = vsel %vm3127, %v3682, %v3684
      %v3686 = vrot.slane %v3656, 2
      %v3687 = vsel %vm3127, %v3684, %v3686
      %v3688 = vrot.slane %v3657, 2
      %v3689 = vsel %vm3127, %v3686, %v3688
      %v3690 = vrot.slane %v3658, 2
      %v3691 = vsel %vm3127, %v3688, %v3690
      %v3692 = vrot.slane %v3659, 2
      %v3693 = vsel %vm3127, %v3690, %v3692
      %v3694 = vrot.slane %v3660, 2
      %v3695 = vsel %vm3127, %v3692, %v3694
      %v3696 = vrot.slane %v3661, 2
      %v3697 = vsel %vm3127, %v3694, %v3696
      %v3698 = vrot.slane %v3662, 2
      %v3699 = vsel %vm3127, %v3696, %v3698
      %v3734 = vunpack.c.l.b16 %v3554
      %v3735 = vunpack.c.l.b16 %v3555
      %v3736 = vunpack.c.l.b16 %v3556
      %v3737 = vunpack.c.l.b16 %v3557
      %v3738 = vunpack.c.l.b16 %v3558
      %v3739 = vunpack.c.l.b16 %v3559
      %v3740 = vunpack.c.l.b16 %v3560
      %v3741 = vunpack.c.l.b16 %v3561
      %v3742 = vunpack.c.l.b16 %v3562
      %v3743 = vunpack.c.l.b16 %v3563
      %v3744 = vunpack.c.l.b16 %v3564
      %v3745 = vunpack.c.l.b16 %v3565
      %v3746 = vunpack.c.l.b16 %v3566
      %v3747 = vunpack.c.l.b16 %v3567
      %v3748 = vunpack.c.l.b16 %v3568
      %v3749 = vunpack.c.l.b16 %v3569
      %v3750 = vpack.c.b16 %v3735, %v3734
      %v3751 = vpack.c.b16 %v3737, %v3736
      %v3752 = vpack.c.b16 %v3739, %v3738
      %v3753 = vpack.c.b16 %v3741, %v3740
      %v3754 = vpack.c.b16 %v3743, %v3742
      %v3755 = vpack.c.b16 %v3745, %v3744
      %v3756 = vpack.c.b16 %v3747, %v3746
      %v3757 = vpack.c.b16 %v3749, %v3748
      %3766 = vmatprep.subr.bf16.mxu0 0
      %3767 = vmatpush1.bf16.msra.mxu0 %v3750
      %3768 = vmatprep.subr.bf16.mxu0 0
      %3769 = vmatpush1.bf16.msra.mxu0 %v3751
      %3770 = vmatprep.subr.bf16.mxu0 0
      %3771 = vmatpush1.bf16.msra.mxu0 %v3752
      %3772 = vmatprep.subr.bf16.mxu0 0
      %3773 = vmatpush1.bf16.msra.mxu0 %v3753
      %3774 = vmatprep.subr.bf16.mxu0 0
      %3775 = vmatpush1.bf16.msra.mxu0 %v3754
      %3776 = vmatprep.subr.bf16.mxu0 0
      %3777 = vmatpush1.bf16.msra.mxu0 %v3755
      %3778 = vmatprep.subr.bf16.mxu0 0
      %3779 = vmatpush1.bf16.msra.mxu0 %v3756
      %3780 = vmatprep.subr.bf16.mxu0 0
      %3781 = vmatpush1.bf16.msra.mxu0 %v3757
      %3782 = vmatprep.subr.bf16.mxu0 0
      %3783 = vmatpush1.bf16.msra.mxu0 0
      %3784 = vmatprep.subr.bf16.mxu0 0
      %3785 = vmatpush1.bf16.msra.mxu0 0
      %3786 = vmatprep.subr.bf16.mxu0 0
      %3787 = vmatpush1.bf16.msra.mxu0 0
      %3788 = vmatprep.subr.bf16.mxu0 0
      %3789 = vmatpush1.bf16.msra.mxu0 0
      %3790 = vmatprep.subr.bf16.mxu0 0
      %3791 = vmatpush1.bf16.msra.mxu0 0
      %3792 = vmatprep.subr.bf16.mxu0 0
      %3793 = vmatpush1.bf16.msra.mxu0 0
      %3794 = vmatprep.subr.bf16.mxu0 0
      %3795 = vmatpush1.bf16.msra.mxu0 0
      %3796 = vmatprep.subr.bf16.mxu0 0
      %3797 = vmatpush1.bf16.msra.mxu0 0
      %3798 = vmatprep.mubr.bf16.mxu0 0
      %3799 = vmatmul.mubr.bf16.gmra.mrb[0].mxu0 %v3665
      %v3800 = vpop.f32.mrb[0].mxu0
      %v3801 = vadd.f32 0.0, %v3800
      %v3802 = vpop.f32.mrb[0].mxu0
      %v3803 = vpop.f32.mrb[0].mxu0
      %v3804 = vadd.f32 0.0, %v3803
      %v3805 = vpop.f32.mrb[0].mxu0
      %3806 = vmatprep.mubr.bf16.mxu0 0
      %3807 = vmatmul.mubr.bf16.gmra.mrb[0].mxu0 %v3667
      %v3808 = vpop.f32.mrb[0].mxu0
      %v3809 = vadd.f32 0.0, %v3808
      %v3810 = vpop.f32.mrb[0].mxu0
      %v3811 = vpop.f32.mrb[0].mxu0
      %v3812 = vadd.f32 0.0, %v3811
      %v3813 = vpop.f32.mrb[0].mxu0
      %3814 = vmatprep.mubr.bf16.mxu0 0
      %3815 = vmatmul.mubr.bf16.gmra.mrb[0].mxu0 %v3669
      %v3816 = vpop.f32.mrb[0].mxu0
      %v3817 = vadd.f32 0.0, %v3816
      %v3818 = vpop.f32.mrb[0].mxu0
      %v3819 = vpop.f32.mrb[0].mxu0
      %v3820 = vadd.f32 0.0, %v3819
      %v3821 = vpop.f32.mrb[0].mxu0
      %3822 = vmatprep.mubr.bf16.mxu0 0
      %3823 = vmatmul.mubr.bf16.gmra.mrb[0].mxu0 %v3671
      %v3824 = vpop.f32.mrb[0].mxu0
      %v3825 = vadd.f32 0.0, %v3824
      %v3826 = vpop.f32.mrb[0].mxu0
      %v3827 = vpop.f32.mrb[0].mxu0
      %v3828 = vadd.f32 0.0, %v3827
      %v3829 = vpop.f32.mrb[0].mxu0
      %3830 = vmatprep.mubr.bf16.mxu0 0
      %3831 = vmatmul.mubr.bf16.gmra.mrb[0].mxu0 %v3673
      %v3832 = vpop.f32.mrb[0].mxu0
      %v3833 = vadd.f32 0.0, %v3832
      %v3834 = vpop.f32.mrb[0].mxu0
      %v3835 = vpop.f32.mrb[0].mxu0
      %v3836 = vadd.f32 0.0, %v3835
      %v3837 = vpop.f32.mrb[0].mxu0
      %3838 = vmatprep.mubr.bf16.mxu0 0
      %3839 = vmatmul.mubr.bf16.gmra.mrb[0].mxu0 %v3675
      %v3840 = vpop.f32.mrb[0].mxu0
      %v3841 = vadd.f32 0.0, %v3840
      %v3842 = vpop.f32.mrb[0].mxu0
      %v3843 = vpop.f32.mrb[0].mxu0
      %v3844 = vadd.f32 0.0, %v3843
      %v3845 = vpop.f32.mrb[0].mxu0
      %3846 = vmatprep.mubr.bf16.mxu0 0
      %3847 = vmatmul.mubr.bf16.gmra.mrb[0].mxu0 %v3677
      %v3848 = vpop.f32.mrb[0].mxu0
      %v3849 = vadd.f32 0.0, %v3848
      %v3850 = vpop.f32.mrb[0].mxu0
      %v3851 = vpop.f32.mrb[0].mxu0
      %v3852 = vadd.f32 0.0, %v3851
      %v3853 = vpop.f32.mrb[0].mxu0
      %3854 = vmatprep.mubr.bf16.mxu0 0
      %3855 = vmatmul.mubr.bf16.gmra.mrb[0].mxu0 %v3679
      %v3856 = vpop.f32.mrb[0].mxu0
      %v3857 = vadd.f32 0.0, %v3856
      %v3858 = vpop.f32.mrb[0].mxu0
      %v3859 = vpop.f32.mrb[0].mxu0
      %v3860 = vadd.f32 0.0, %v3859
      %v3861 = vpop.f32.mrb[0].mxu0
      %3862 = vmatprep.mubr.bf16.mxu0 0
      %3863 = vmatmul.mubr.bf16.gmra.mrb[0].mxu0 %v3681
      %v3864 = vpop.f32.mrb[0].mxu0
      %v3865 = vadd.f32 0.0, %v3864
      %v3866 = vpop.f32.mrb[0].mxu0
      %v3867 = vpop.f32.mrb[0].mxu0
      %v3868 = vadd.f32 0.0, %v3867
      %v3869 = vpop.f32.mrb[0].mxu0
      %3870 = vmatprep.mubr.bf16.mxu0 0
      %3871 = vmatmul.mubr.bf16.gmra.mrb[0].mxu0 %v3683
      %v3872 = vpop.f32.mrb[0].mxu0
      %v3873 = vadd.f32 0.0, %v3872
      %v3874 = vpop.f32.mrb[0].mxu0
      %v3875 = vpop.f32.mrb[0].mxu0
      %v3876 = vadd.f32 0.0, %v3875
      %v3877 = vpop.f32.mrb[0].mxu0
      %3878 = vmatprep.mubr.bf16.mxu0 0
      %3879 = vmatmul.mubr.bf16.gmra.mrb[0].mxu0 %v3685
      %v3880 = vpop.f32.mrb[0].mxu0
      %v3881 = vadd.f32 0.0, %v3880
      %v3882 = vpop.f32.mrb[0].mxu0
      %v3883 = vpop.f32.mrb[0].mxu0
      %v3884 = vadd.f32 0.0, %v3883
      %v3885 = vpop.f32.mrb[0].mxu0
      %3886 = vmatprep.mubr.bf16.mxu0 0
      %3887 = vmatmul.mubr.bf16.gmra.mrb[0].mxu0 %v3687
      %v3888 = vpop.f32.mrb[0].mxu0
      %v3889 = vadd.f32 0.0, %v3888
      %v3890 = vpop.f32.mrb[0].mxu0
      %v3891 = vpop.f32.mrb[0].mxu0
      %v3892 = vadd.f32 0.0, %v3891
      %v3893 = vpop.f32.mrb[0].mxu0
      %3894 = vmatprep.mubr.bf16.mxu0 0
      %3895 = vmatmul.mubr.bf16.gmra.mrb[0].mxu0 %v3689
      %v3896 = vpop.f32.mrb[0].mxu0
      %v3897 = vadd.f32 0.0, %v3896
      %v3898 = vpop.f32.mrb[0].mxu0
      %v3899 = vpop.f32.mrb[0].mxu0
      %v3900 = vadd.f32 0.0, %v3899
      %v3901 = vpop.f32.mrb[0].mxu0
      %3902 = vmatprep.mubr.bf16.mxu0 0
      %3903 = vmatmul.mubr.bf16.gmra.mrb[0].mxu0 %v3691
      %v3904 = vpop.f32.mrb[0].mxu0
      %v3905 = vadd.f32 0.0, %v3904
      %v3906 = vpop.f32.mrb[0].mxu0
      %v3907 = vpop.f32.mrb[0].mxu0
      %v3908 = vadd.f32 0.0, %v3907
      %v3909 = vpop.f32.mrb[0].mxu0
      %3910 = vmatprep.mubr.bf16.mxu0 0
      %3911 = vmatmul.mubr.bf16.gmra.mrb[0].mxu0 %v3693
      %v3912 = vpop.f32.mrb[0].mxu0
      %v3913 = vadd.f32 0.0, %v3912
      %v3914 = vpop.f32.mrb[0].mxu0
      %v3915 = vpop.f32.mrb[0].mxu0
      %v3916 = vadd.f32 0.0, %v3915
      %v3917 = vpop.f32.mrb[0].mxu0
      %3918 = vmatprep.mubr.bf16.mxu0 0
      %3919 = vmatmul.mubr.bf16.gmra.mrb[0].mxu0 %v3695
      %v3920 = vpop.f32.mrb[0].mxu0
      %v3921 = vadd.f32 0.0, %v3920
      %v3922 = vpop.f32.mrb[0].mxu0
      %v3923 = vpop.f32.mrb[0].mxu0
      %v3924 = vadd.f32 0.0, %v3923
      %v3925 = vpop.f32.mrb[0].mxu0
      %3926 = vmatprep.mubr.bf16.mxu0 0
      %3927 = vmatmul.mubr.bf16.gmra.mrb[0].mxu0 %v3697
      %v3928 = vpop.f32.mrb[0].mxu0
      %v3929 = vadd.f32 0.0, %v3928
      %v3930 = vpop.f32.mrb[0].mxu0
      %v3931 = vpop.f32.mrb[0].mxu0
      %v3932 = vadd.f32 0.0, %v3931
      %v3933 = vpop.f32.mrb[0].mxu0
      %3934 = vmatprep.mubr.bf16.mxu0 0
      %3935 = vmatmul.mubr.bf16.gmra.mrb[0].mxu0 %v3699
      %v3936 = vpop.f32.mrb[0].mxu0
      %v3937 = vadd.f32 0.0, %v3936
      %v3938 = vpop.f32.mrb[0].mxu0
      %v3939 = vpop.f32.mrb[0].mxu0
      %v3940 = vadd.f32 0.0, %v3939
      %v3941 = vpop.f32.mrb[0].mxu0
      %3942 = vdwg.mxu0
      %v3943 = vld [vmem:[#allocation2] sm:$0xff]
      %v3944 = vld [vmem:[#allocation2 + $0x8] sm:$0xff]
      %v3945 = vld [vmem:[#allocation2 + $0x10] sm:$0xff]
      %v3946 = vld [vmem:[#allocation2 + $0x18] sm:$0xff]
      %v3947 = vld [vmem:[#allocation2 + $0x20] sm:$0xff]
      %v3948 = vld [vmem:[#allocation2 + $0x28] sm:$0xff]
      %v3949 = vld [vmem:[#allocation2 + $0x30] sm:$0xff]
      %v3950 = vld [vmem:[#allocation2 + $0x38] sm:$0xff]
      %v3951 = vld [vmem:[#allocation2 + $0x40] sm:$0xff]
      %v3952 = vld [vmem:[#allocation2 + $0x48] sm:$0xff]
      %v3953 = vld [vmem:[#allocation2 + $0x50] sm:$0xff]
      %v3954 = vld [vmem:[#allocation2 + $0x58] sm:$0xff]
      %v3955 = vld [vmem:[#allocation2 + $0x60] sm:$0xff]
      %v3956 = vld [vmem:[#allocation2 + $0x68] sm:$0xff]
      %v3957 = vld [vmem:[#allocation2 + $0x70] sm:$0xff]
      %v3958 = vld [vmem:[#allocation2 + $0x78] sm:$0xff]
      %v3959 = vld [vmem:[#allocation2 + $0x80] sm:$0xff]
      %v3960 = vld [vmem:[#allocation2 + $0x88] sm:$0xff]
      %v3961 = vld [vmem:[#allocation2 + $0x90] sm:$0xff]
      %v3962 = vld [vmem:[#allocation2 + $0x98] sm:$0xff]
      %v3963 = vld [vmem:[#allocation2 + $0xa0] sm:$0xff]
      %v3964 = vld [vmem:[#allocation2 + $0xa8] sm:$0xff]
      %v3965 = vld [vmem:[#allocation2 + $0xb0] sm:$0xff]
      %v3966 = vld [vmem:[#allocation2 + $0xb8] sm:$0xff]
      %v3967 = vld [vmem:[#allocation2 + $0xc0] sm:$0xff]
      %v3968 = vld [vmem:[#allocation2 + $0xc8] sm:$0xff]
      %v3969 = vld [vmem:[#allocation2 + $0xd0] sm:$0xff]
      %v3970 = vld [vmem:[#allocation2 + $0xd8] sm:$0xff]
      %v3971 = vld [vmem:[#allocation2 + $0xe0] sm:$0xff]
      %v3972 = vld [vmem:[#allocation2 + $0xe8] sm:$0xff]
      %v3973 = vld [vmem:[#allocation2 + $0xf0] sm:$0xff]
      %v3974 = vld [vmem:[#allocation2 + $0xf8] sm:$0xff]
      %v3975 = vld [vmem:[#allocation2 + $0x100] sm:$0xff]
      %v3976 = vld [vmem:[#allocation2 + $0x108] sm:$0xff]
      %v3977 = vld [vmem:[#allocation2 + $0x110] sm:$0xff]
      %v3978 = vld [vmem:[#allocation2 + $0x118] sm:$0xff]
      %v3979 = vadd.f32 %v3943, %v3801
      %v3980 = vadd.f32 %v3944, %v3804
      %v3981 = vadd.f32 %v3945, %v3809
      %v3982 = vadd.f32 %v3946, %v3812
      %v3983 = vadd.f32 %v3947, %v3817
      %v3984 = vadd.f32 %v3948, %v3820
      %v3985 = vadd.f32 %v3949, %v3825
      %v3986 = vadd.f32 %v3950, %v3828
      %v3987 = vadd.f32 %v3951, %v3833
      %v3988 = vadd.f32 %v3952, %v3836
      %v3989 = vadd.f32 %v3953, %v3841
      %v3990 = vadd.f32 %v3954, %v3844
      %v3991 = vadd.f32 %v3955, %v3849
      %v3992 = vadd.f32 %v3956, %v3852
      %v3993 = vadd.f32 %v3957, %v3857
      %v3994 = vadd.f32 %v3958, %v3860
      %v3995 = vadd.f32 %v3959, %v3865
      %v3996 = vadd.f32 %v3960, %v3868
      %v3997 = vadd.f32 %v3961, %v3873
      %v3998 = vadd.f32 %v3962, %v3876
      %v3999 = vadd.f32 %v3963, %v3881
      %v4000 = vadd.f32 %v3964, %v3884
      %v4001 = vadd.f32 %v3965, %v3889
      %v4002 = vadd.f32 %v3966, %v3892
      %v4003 = vadd.f32 %v3967, %v3897
      %v4004 = vadd.f32 %v3968, %v3900
      %v4005 = vadd.f32 %v3969, %v3905
      %v4006 = vadd.f32 %v3970, %v3908
      %v4007 = vadd.f32 %v3971, %v3913
      %v4008 = vadd.f32 %v3972, %v3916
      %v4009 = vadd.f32 %v3973, %v3921
      %v4010 = vadd.f32 %v3974, %v3924
      %v4011 = vadd.f32 %v3975, %v3929
      %v4012 = vadd.f32 %v3976, %v3932
      %v4013 = vadd.f32 %v3977, %v3937
      %v4014 = vadd.f32 %v3978, %v3940
      %4015 = vst [vmem:[#allocation2] sm:$0xff] %v3979
      %4016 = vst [vmem:[#allocation2 + $0x8] sm:$0xff] %v3980
      %4017 = vst [vmem:[#allocation2 + $0x10] sm:$0xff] %v3981
      %4018 = vst [vmem:[#allocation2 + $0x18] sm:$0xff] %v3982
      %4019 = vst [vmem:[#allocation2 + $0x20] sm:$0xff] %v3983
      %4020 = vst [vmem:[#allocation2 + $0x28] sm:$0xff] %v3984
      %4021 = vst [vmem:[#allocation2 + $0x30] sm:$0xff] %v3985
      %4022 = vst [vmem:[#allocation2 + $0x38] sm:$0xff] %v3986
      %4023 = vst [vmem:[#allocation2 + $0x40] sm:$0xff] %v3987
      %4024 = vst [vmem:[#allocation2 + $0x48] sm:$0xff] %v3988
      %4025 = vst [vmem:[#allocation2 + $0x50] sm:$0xff] %v3989
      %4026 = vst [vmem:[#allocation2 + $0x58] sm:$0xff] %v3990
      %4027 = vst [vmem:[#allocation2 + $0x60] sm:$0xff] %v3991
      %4028 = vst [vmem:[#allocation2 + $0x68] sm:$0xff] %v3992
      %4029 = vst [vmem:[#allocation2 + $0x70] sm:$0xff] %v3993
      %4030 = vst [vmem:[#allocation2 + $0x78] sm:$0xff] %v3994
      %4031 = vst [vmem:[#allocation2 + $0x80] sm:$0xff] %v3995
      %4032 = vst [vmem:[#allocation2 + $0x88] sm:$0xff] %v3996
      %4033 = vst [vmem:[#allocation2 + $0x90] sm:$0xff] %v3997
      %4034 = vst [vmem:[#allocation2 + $0x98] sm:$0xff] %v3998
      %4035 = vst [vmem:[#allocation2 + $0xa0] sm:$0xff] %v3999
      %4036 = vst [vmem:[#allocation2 + $0xa8] sm:$0xff] %v4000
      %4037 = vst [vmem:[#allocation2 + $0xb0] sm:$0xff] %v4001
      %4038 = vst [vmem:[#allocation2 + $0xb8] sm:$0xff] %v4002
      %4039 = vst [vmem:[#allocation2 + $0xc0] sm:$0xff] %v4003
      %4040 = vst [vmem:[#allocation2 + $0xc8] sm:$0xff] %v4004
      %4041 = vst [vmem:[#allocation2 + $0xd0] sm:$0xff] %v4005
      %4042 = vst [vmem:[#allocation2 + $0xd8] sm:$0xff] %v4006
      %4043 = vst [vmem:[#allocation2 + $0xe0] sm:$0xff] %v4007
      %4044 = vst [vmem:[#allocation2 + $0xe8] sm:$0xff] %v4008
      %4045 = vst [vmem:[#allocation2 + $0xf0] sm:$0xff] %v4009
      %4046 = vst [vmem:[#allocation2 + $0xf8] sm:$0xff] %v4010
      %4047 = vst [vmem:[#allocation2 + $0x100] sm:$0xff] %v4011
      %4048 = vst [vmem:[#allocation2 + $0x108] sm:$0xff] %v4012
      %4049 = vst [vmem:[#allocation2 + $0x110] sm:$0xff] %v4013
      %4050 = vst [vmem:[#allocation2 + $0x118] sm:$0xff] %v4014
      %v4051 = vld [vmem:[%s165 + $0x10] sm:$0xc]
      %v4052 = vld [vmem:[%s165 + $0x14] sm:$0xf]
      %v4053 = vld [vmem:[%s165 + $0x18] sm:$0xf]
      %v4054 = vld [vmem:[%s165 + $0x1c] sm:$0xf]
      %v4055 = vld [vmem:[%s165 + $0x20] sm:$0xf]
      %v4056 = vld [vmem:[%s165 + $0x24] sm:$0xf]
      %v4057 = vld [vmem:[%s165 + $0x28] sm:$0xf]
      %v4058 = vld [vmem:[%s165 + $0x2c] sm:$0xf]
      %v4059 = vld [vmem:[%s165 + $0x30] sm:$0xf]
      %v4060 = vld [vmem:[%s165 + $0x34] sm:$0xf]
      %v4061 = vld [vmem:[%s165 + $0x38] sm:$0xf]
      %v4062 = vld [vmem:[%s165 + $0x3c] sm:$0xf]
      %v4063 = vld [vmem:[%s165 + $0x40] sm:$0xf]
      %v4064 = vld [vmem:[%s165 + $0x44] sm:$0xf]
      %v4065 = vld [vmem:[%s165 + $0x48] sm:$0xf]
      %v4066 = vld [vmem:[%s165 + $0x4c] sm:$0xf]
      %v4067 = vld [vmem:[%s165 + $0x50] sm:$0xf]
      %v4068 = vld [vmem:[%s165 + $0x54] sm:$0xf]
      %v4069 = vld [vmem:[%s165 + $0x58] sm:$0xf]
      %v4070 = vld [vmem:[%s165 + $0x5c] sm:$0xf]
      %v4071 = vld [vmem:[%s165 + $0x60] sm:$0xf]
      %v4072 = vld [vmem:[%s165 + $0x64] sm:$0xf]
      %v4073 = vld [vmem:[%s165 + $0x68] sm:$0xf]
      %v4074 = vld [vmem:[%s165 + $0x6c] sm:$0xf]
      %v4075 = vld [vmem:[%s165 + $0x70] sm:$0xf]
      %v4076 = vld [vmem:[%s165 + $0x74] sm:$0xf]
      %v4077 = vld [vmem:[%s165 + $0x78] sm:$0xf]
      %v4078 = vld [vmem:[%s165 + $0x7c] sm:$0xf]
      %v4079 = vld [vmem:[%s165 + $0x80] sm:$0xf]
      %v4080 = vld [vmem:[%s165 + $0x84] sm:$0xf]
      %v4081 = vld [vmem:[%s165 + $0x88] sm:$0xf]
      %v4082 = vld [vmem:[%s165 + $0x8c] sm:$0xf]
      %v4083 = vld [vmem:[%s165 + $0x90] sm:$0xf]
      %v4084 = vld [vmem:[%s165 + $0x94] sm:$0xf]
      %v4085 = vld [vmem:[%s165 + $0x98] sm:$0xf]
      %v4086 = vld [vmem:[%s165 + $0x9c] sm:$0xf]
      %v4087 = vld [vmem:[%s165 + $0xa0] sm:$0x7]
      %s4088 = scalar_lea.vmem %s1, 448
      %v4089 = vld [vmem:[%s4088] sm:$0xf]
      %v4090 = vld [vmem:[%s4088 + $0x4] sm:$0xf]
      %v4091 = vld [vmem:[%s4088 + $0x8] sm:$0xf]
      %v4092 = vld [vmem:[%s4088 + $0xc] sm:$0xf]
      %v4093 = vld [vmem:[%s4088 + $0x10] sm:$0xf]
      %v4094 = vld [vmem:[%s4088 + $0x14] sm:$0xf]
      %v4095 = vld [vmem:[%s4088 + $0x18] sm:$0xf]
      %v4096 = vld [vmem:[%s4088 + $0x1c] sm:$0xf]
      %v4097 = vld [vmem:[%s4088 + $0x20] sm:$0xf]
      %v4098 = vld [vmem:[%s4088 + $0x24] sm:$0xf]
      %v4099 = vld [vmem:[%s4088 + $0x28] sm:$0xf]
      %v4100 = vld [vmem:[%s4088 + $0x2c] sm:$0xf]
      %v4101 = vld [vmem:[%s4088 + $0x30] sm:$0xf]
      %v4102 = vld [vmem:[%s4088 + $0x34] sm:$0xf]
      %v4103 = vld [vmem:[%s4088 + $0x38] sm:$0xf]
      %v4104 = vld [vmem:[%s4088 + $0x3c] sm:$0xf]
      %v4142 = vunpack.c.l.b16 %v4051
      %v4143 = vunpack.c.l.b16 %v4052
      %v4144 = vunpack.c.l.b16 %v4053
      %v4145 = vunpack.c.l.b16 %v4054
      %v4146 = vunpack.c.l.b16 %v4055
      %v4147 = vunpack.c.l.b16 %v4056
      %v4148 = vunpack.c.l.b16 %v4057
      %v4149 = vunpack.c.l.b16 %v4058
      %v4150 = vunpack.c.l.b16 %v4059
      %v4151 = vunpack.c.l.b16 %v4060
      %v4152 = vunpack.c.l.b16 %v4061
      %v4153 = vunpack.c.l.b16 %v4062
      %v4154 = vunpack.c.l.b16 %v4063
      %v4155 = vunpack.c.l.b16 %v4064
      %v4156 = vunpack.c.l.b16 %v4065
      %v4157 = vunpack.c.l.b16 %v4066
      %v4158 = vunpack.c.l.b16 %v4067
      %v4159 = vunpack.c.l.b16 %v4068
      %v4160 = vunpack.c.l.b16 %v4069
      %v4161 = vunpack.c.l.b16 %v4070
      %v4162 = vunpack.c.l.b16 %v4071
      %v4163 = vunpack.c.l.b16 %v4072
      %v4164 = vunpack.c.l.b16 %v4073
      %v4165 = vunpack.c.l.b16 %v4074
      %v4166 = vunpack.c.l.b16 %v4075
      %v4167 = vunpack.c.l.b16 %v4076
      %v4168 = vunpack.c.l.b16 %v4077
      %v4169 = vunpack.c.l.b16 %v4078
      %v4170 = vunpack.c.l.b16 %v4079
      %v4171 = vunpack.c.l.b16 %v4080
      %v4172 = vunpack.c.l.b16 %v4081
      %v4173 = vunpack.c.l.b16 %v4082
      %v4174 = vunpack.c.l.b16 %v4083
      %v4175 = vunpack.c.l.b16 %v4084
      %v4176 = vunpack.c.l.b16 %v4085
      %v4177 = vunpack.c.l.b16 %v4086
      %v4178 = vunpack.c.l.b16 %v4087
      %v4179 = vpack.c.b16 %v4143, %v4142
      %v4180 = vpack.c.b16 %v4145, %v4144
      %v4181 = vpack.c.b16 %v4147, %v4146
      %v4182 = vpack.c.b16 %v4149, %v4148
      %v4183 = vpack.c.b16 %v4151, %v4150
      %v4184 = vpack.c.b16 %v4153, %v4152
      %v4185 = vpack.c.b16 %v4155, %v4154
      %v4186 = vpack.c.b16 %v4157, %v4156
      %v4187 = vpack.c.b16 %v4159, %v4158
      %v4188 = vpack.c.b16 %v4161, %v4160
      %v4189 = vpack.c.b16 %v4163, %v4162
      %v4190 = vpack.c.b16 %v4165, %v4164
      %v4191 = vpack.c.b16 %v4167, %v4166
      %v4192 = vpack.c.b16 %v4169, %v4168
      %v4193 = vpack.c.b16 %v4171, %v4170
      %v4194 = vpack.c.b16 %v4173, %v4172
      %v4195 = vpack.c.b16 %v4175, %v4174
      %v4196 = vpack.c.b16 %v4177, %v4176
      %v4197 = vpack.c.b16 %v4178, %v4178
      %vm4198 = vsmask.f32 5376
      %v4200 = vshrl.u32 %v4179, 16
      %v4202 = vrot.slane %v4200, 2
      %v4203 = vshll.u32 %v4179, 16
      %v4205 = vrot.slane %v4203, 3
      %v4206 = vor.u32 %v4202, %v4205
      %v4208 = vshrl.u32 %v4180, 16
      %v4210 = vrot.slane %v4208, 2
      %v4211 = vshll.u32 %v4180, 16
      %v4213 = vrot.slane %v4211, 3
      %v4214 = vor.u32 %v4210, %v4213
      %v4215 = vsel %vm4198, %v4206, %v4214
      %v4217 = vshrl.u32 %v4181, 16
      %v4219 = vrot.slane %v4217, 2
      %v4220 = vshll.u32 %v4181, 16
      %v4222 = vrot.slane %v4220, 3
      %v4223 = vor.u32 %v4219, %v4222
      %v4224 = vsel %vm4198, %v4214, %v4223
      %v4226 = vshrl.u32 %v4182, 16
      %v4228 = vrot.slane %v4226, 2
      %v4229 = vshll.u32 %v4182, 16
      %v4231 = vrot.slane %v4229, 3
      %v4232 = vor.u32 %v4228, %v4231
      %v4233 = vsel %vm4198, %v4223, %v4232
      %v4235 = vshrl.u32 %v4183, 16
      %v4237 = vrot.slane %v4235, 2
      %v4238 = vshll.u32 %v4183, 16
      %v4240 = vrot.slane %v4238, 3
      %v4241 = vor.u32 %v4237, %v4240
      %v4242 = vsel %vm4198, %v4232, %v4241
      %v4244 = vshrl.u32 %v4184, 16
      %v4246 = vrot.slane %v4244, 2
      %v4247 = vshll.u32 %v4184, 16
      %v4249 = vrot.slane %v4247, 3
      %v4250 = vor.u32 %v4246, %v4249
      %v4251 = vsel %vm4198, %v4241, %v4250
      %v4253 = vshrl.u32 %v4185, 16
      %v4255 = vrot.slane %v4253, 2
      %v4256 = vshll.u32 %v4185, 16
      %v4258 = vrot.slane %v4256, 3
      %v4259 = vor.u32 %v4255, %v4258
      %v4260 = vsel %vm4198, %v4250, %v4259
      %v4262 = vshrl.u32 %v4186, 16
      %v4264 = vrot.slane %v4262, 2
      %v4265 = vshll.u32 %v4186, 16
      %v4267 = vrot.slane %v4265, 3
      %v4268 = vor.u32 %v4264, %v4267
      %v4269 = vsel %vm4198, %v4259, %v4268
      %v4271 = vshrl.u32 %v4187, 16
      %v4273 = vrot.slane %v4271, 2
      %v4274 = vshll.u32 %v4187, 16
      %v4276 = vrot.slane %v4274, 3
      %v4277 = vor.u32 %v4273, %v4276
      %v4278 = vsel %vm4198, %v4268, %v4277
      %v4280 = vshrl.u32 %v4188, 16
      %v4282 = vrot.slane %v4280, 2
      %v4283 = vshll.u32 %v4188, 16
      %v4285 = vrot.slane %v4283, 3
      %v4286 = vor.u32 %v4282, %v4285
      %v4287 = vsel %vm4198, %v4277, %v4286
      %v4289 = vshrl.u32 %v4189, 16
      %v4291 = vrot.slane %v4289, 2
      %v4292 = vshll.u32 %v4189, 16
      %v4294 = vrot.slane %v4292, 3
      %v4295 = vor.u32 %v4291, %v4294
      %v4296 = vsel %vm4198, %v4286, %v4295
      %v4298 = vshrl.u32 %v4190, 16
      %v4300 = vrot.slane %v4298, 2
      %v4301 = vshll.u32 %v4190, 16
      %v4303 = vrot.slane %v4301, 3
      %v4304 = vor.u32 %v4300, %v4303
      %v4305 = vsel %vm4198, %v4295, %v4304
      %v4307 = vshrl.u32 %v4191, 16
      %v4309 = vrot.slane %v4307, 2
      %v4310 = vshll.u32 %v4191, 16
      %v4312 = vrot.slane %v4310, 3
      %v4313 = vor.u32 %v4309, %v4312
      %v4314 = vsel %vm4198, %v4304, %v4313
      %v4316 = vshrl.u32 %v4192, 16
      %v4318 = vrot.slane %v4316, 2
      %v4319 = vshll.u32 %v4192, 16
      %v4321 = vrot.slane %v4319, 3
      %v4322 = vor.u32 %v4318, %v4321
      %v4323 = vsel %vm4198, %v4313, %v4322
      %v4325 = vshrl.u32 %v4193, 16
      %v4327 = vrot.slane %v4325, 2
      %v4328 = vshll.u32 %v4193, 16
      %v4330 = vrot.slane %v4328, 3
      %v4331 = vor.u32 %v4327, %v4330
      %v4332 = vsel %vm4198, %v4322, %v4331
      %v4334 = vshrl.u32 %v4194, 16
      %v4336 = vrot.slane %v4334, 2
      %v4337 = vshll.u32 %v4194, 16
      %v4339 = vrot.slane %v4337, 3
      %v4340 = vor.u32 %v4336, %v4339
      %v4341 = vsel %vm4198, %v4331, %v4340
      %v4343 = vshrl.u32 %v4195, 16
      %v4345 = vrot.slane %v4343, 2
      %v4346 = vshll.u32 %v4195, 16
      %v4348 = vrot.slane %v4346, 3
      %v4349 = vor.u32 %v4345, %v4348
      %v4350 = vsel %vm4198, %v4340, %v4349
      %v4352 = vshrl.u32 %v4196, 16
      %v4354 = vrot.slane %v4352, 2
      %v4355 = vshll.u32 %v4196, 16
      %v4357 = vrot.slane %v4355, 3
      %v4358 = vor.u32 %v4354, %v4357
      %v4359 = vsel %vm4198, %v4349, %v4358
      %v4361 = vshrl.u32 %v4197, 16
      %v4363 = vrot.slane %v4361, 2
      %v4364 = vshll.u32 %v4197, 16
      %v4366 = vrot.slane %v4364, 3
      %v4367 = vor.u32 %v4363, %v4366
      %v4368 = vsel %vm4198, %v4358, %v4367
      %v4403 = vunpack.c.l.b16 %v4089
      %v4404 = vunpack.c.l.b16 %v4090
      %v4405 = vunpack.c.l.b16 %v4091
      %v4406 = vunpack.c.l.b16 %v4092
      %v4407 = vunpack.c.l.b16 %v4093
      %v4408 = vunpack.c.l.b16 %v4094
      %v4409 = vunpack.c.l.b16 %v4095
      %v4410 = vunpack.c.l.b16 %v4096
      %v4411 = vunpack.c.l.b16 %v4097
      %v4412 = vunpack.c.l.b16 %v4098
      %v4413 = vunpack.c.l.b16 %v4099
      %v4414 = vunpack.c.l.b16 %v4100
      %v4415 = vunpack.c.l.b16 %v4101
      %v4416 = vunpack.c.l.b16 %v4102
      %v4417 = vunpack.c.l.b16 %v4103
      %v4418 = vunpack.c.l.b16 %v4104
      %v4419 = vpack.c.b16 %v4404, %v4403
      %v4420 = vpack.c.b16 %v4406, %v4405
      %v4421 = vpack.c.b16 %v4408, %v4407
      %v4422 = vpack.c.b16 %v4410, %v4409
      %v4423 = vpack.c.b16 %v4412, %v4411
      %v4424 = vpack.c.b16 %v4414, %v4413
      %v4425 = vpack.c.b16 %v4416, %v4415
      %v4426 = vpack.c.b16 %v4418, %v4417
      %4435 = vmatprep.subr.bf16.mxu0 0
      %4436 = vmatpush1.bf16.msra.mxu0 %v4419
      %4437 = vmatprep.subr.bf16.mxu0 0
      %4438 = vmatpush1.bf16.msra.mxu0 %v4420
      %4439 = vmatprep.subr.bf16.mxu0 0
      %4440 = vmatpush1.bf16.msra.mxu0 %v4421
      %4441 = vmatprep.subr.bf16.mxu0 0
      %4442 = vmatpush1.bf16.msra.mxu0 %v4422
      %4443 = vmatprep.subr.bf16.mxu0 0
      %4444 = vmatpush1.bf16.msra.mxu0 %v4423
      %4445 = vmatprep.subr.bf16.mxu0 0
      %4446 = vmatpush1.bf16.msra.mxu0 %v4424
      %4447 = vmatprep.subr.bf16.mxu0 0
      %4448 = vmatpush1.bf16.msra.mxu0 %v4425
      %4449 = vmatprep.subr.bf16.mxu0 0
      %4450 = vmatpush1.bf16.msra.mxu0 %v4426
      %4451 = vmatprep.subr.bf16.mxu0 0
      %4452 = vmatpush1.bf16.msra.mxu0 0
      %4453 = vmatprep.subr.bf16.mxu0 0
      %4454 = vmatpush1.bf16.msra.mxu0 0
      %4455 = vmatprep.subr.bf16.mxu0 0
      %4456 = vmatpush1.bf16.msra.mxu0 0
      %4457 = vmatprep.subr.bf16.mxu0 0
      %4458 = vmatpush1.bf16.msra.mxu0 0
      %4459 = vmatprep.subr.bf16.mxu0 0
      %4460 = vmatpush1.bf16.msra.mxu0 0
      %4461 = vmatprep.subr.bf16.mxu0 0
      %4462 = vmatpush1.bf16.msra.mxu0 0
      %4463 = vmatprep.subr.bf16.mxu0 0
      %4464 = vmatpush1.bf16.msra.mxu0 0
      %4465 = vmatprep.subr.bf16.mxu0 0
      %4466 = vmatpush1.bf16.msra.mxu0 0
      %4467 = vmatprep.mubr.bf16.mxu0 0
      %4468 = vmatmul.mubr.bf16.gmra.mrb[0].mxu0 %v4215
      %v4469 = vpop.f32.mrb[0].mxu0
      %v4470 = vadd.f32 0.0, %v4469
      %v4471 = vpop.f32.mrb[0].mxu0
      %v4472 = vpop.f32.mrb[0].mxu0
      %v4473 = vadd.f32 0.0, %v4472
      %v4474 = vpop.f32.mrb[0].mxu0
      %4475 = vmatprep.mubr.bf16.mxu0 0
      %4476 = vmatmul.mubr.bf16.gmra.mrb[0].mxu0 %v4224
      %v4477 = vpop.f32.mrb[0].mxu0
      %v4478 = vadd.f32 0.0, %v4477
      %v4479 = vpop.f32.mrb[0].mxu0
      %v4480 = vpop.f32.mrb[0].mxu0
      %v4481 = vadd.f32 0.0, %v4480
      %v4482 = vpop.f32.mrb[0].mxu0
      %4483 = vmatprep.mubr.bf16.mxu0 0
      %4484 = vmatmul.mubr.bf16.gmra.mrb[0].mxu0 %v4233
      %v4485 = vpop.f32.mrb[0].mxu0
      %v4486 = vadd.f32 0.0, %v4485
      %v4487 = vpop.f32.mrb[0].mxu0
      %v4488 = vpop.f32.mrb[0].mxu0
      %v4489 = vadd.f32 0.0, %v4488
      %v4490 = vpop.f32.mrb[0].mxu0
      %4491 = vmatprep.mubr.bf16.mxu0 0
      %4492 = vmatmul.mubr.bf16.gmra.mrb[0].mxu0 %v4242
      %v4493 = vpop.f32.mrb[0].mxu0
      %v4494 = vadd.f32 0.0, %v4493
      %v4495 = vpop.f32.mrb[0].mxu0
      %v4496 = vpop.f32.mrb[0].mxu0
      %v4497 = vadd.f32 0.0, %v4496
      %v4498 = vpop.f32.mrb[0].mxu0
      %4499 = vmatprep.mubr.bf16.mxu0 0
      %4500 = vmatmul.mubr.bf16.gmra.mrb[0].mxu0 %v4251
      %v4501 = vpop.f32.mrb[0].mxu0
      %v4502 = vadd.f32 0.0, %v4501
      %v4503 = vpop.f32.mrb[0].mxu0
      %v4504 = vpop.f32.mrb[0].mxu0
      %v4505 = vadd.f32 0.0, %v4504
      %v4506 = vpop.f32.mrb[0].mxu0
      %4507 = vmatprep.mubr.bf16.mxu0 0
      %4508 = vmatmul.mubr.bf16.gmra.mrb[0].mxu0 %v4260
      %v4509 = vpop.f32.mrb[0].mxu0
      %v4510 = vadd.f32 0.0, %v4509
      %v4511 = vpop.f32.mrb[0].mxu0
      %v4512 = vpop.f32.mrb[0].mxu0
      %v4513 = vadd.f32 0.0, %v4512
      %v4514 = vpop.f32.mrb[0].mxu0
      %4515 = vmatprep.mubr.bf16.mxu0 0
      %4516 = vmatmul.mubr.bf16.gmra.mrb[0].mxu0 %v4269
      %v4517 = vpop.f32.mrb[0].mxu0
      %v4518 = vadd.f32 0.0, %v4517
      %v4519 = vpop.f32.mrb[0].mxu0
      %v4520 = vpop.f32.mrb[0].mxu0
      %v4521 = vadd.f32 0.0, %v4520
      %v4522 = vpop.f32.mrb[0].mxu0
      %4523 = vmatprep.mubr.bf16.mxu0 0
      %4524 = vmatmul.mubr.bf16.gmra.mrb[0].mxu0 %v4278
      %v4525 = vpop.f32.mrb[0].mxu0
      %v4526 = vadd.f32 0.0, %v4525
      %v4527 = vpop.f32.mrb[0].mxu0
      %v4528 = vpop.f32.mrb[0].mxu0
      %v4529 = vadd.f32 0.0, %v4528
      %v4530 = vpop.f32.mrb[0].mxu0
      %4531 = vmatprep.mubr.bf16.mxu0 0
      %4532 = vmatmul.mubr.bf16.gmra.mrb[0].mxu0 %v4287
      %v4533 = vpop.f32.mrb[0].mxu0
      %v4534 = vadd.f32 0.0, %v4533
      %v4535 = vpop.f32.mrb[0].mxu0
      %v4536 = vpop.f32.mrb[0].mxu0
      %v4537 = vadd.f32 0.0, %v4536
      %v4538 = vpop.f32.mrb[0].mxu0
      %4539 = vmatprep.mubr.bf16.mxu0 0
      %4540 = vmatmul.mubr.bf16.gmra.mrb[0].mxu0 %v4296
      %v4541 = vpop.f32.mrb[0].mxu0
      %v4542 = vadd.f32 0.0, %v4541
      %v4543 = vpop.f32.mrb[0].mxu0
      %v4544 = vpop.f32.mrb[0].mxu0
      %v4545 = vadd.f32 0.0, %v4544
      %v4546 = vpop.f32.mrb[0].mxu0
      %4547 = vmatprep.mubr.bf16.mxu0 0
      %4548 = vmatmul.mubr.bf16.gmra.mrb[0].mxu0 %v4305
      %v4549 = vpop.f32.mrb[0].mxu0
      %v4550 = vadd.f32 0.0, %v4549
      %v4551 = vpop.f32.mrb[0].mxu0
      %v4552 = vpop.f32.mrb[0].mxu0
      %v4553 = vadd.f32 0.0, %v4552
      %v4554 = vpop.f32.mrb[0].mxu0
      %4555 = vmatprep.mubr.bf16.mxu0 0
      %4556 = vmatmul.mubr.bf16.gmra.mrb[0].mxu0 %v4314
      %v4557 = vpop.f32.mrb[0].mxu0
      %v4558 = vadd.f32 0.0, %v4557
      %v4559 = vpop.f32.mrb[0].mxu0
      %v4560 = vpop.f32.mrb[0].mxu0
      %v4561 = vadd.f32 0.0, %v4560
      %v4562 = vpop.f32.mrb[0].mxu0
      %4563 = vmatprep.mubr.bf16.mxu0 0
      %4564 = vmatmul.mubr.bf16.gmra.mrb[0].mxu0 %v4323
      %v4565 = vpop.f32.mrb[0].mxu0
      %v4566 = vadd.f32 0.0, %v4565
      %v4567 = vpop.f32.mrb[0].mxu0
      %v4568 = vpop.f32.mrb[0].mxu0
      %v4569 = vadd.f32 0.0, %v4568
      %v4570 = vpop.f32.mrb[0].mxu0
      %4571 = vmatprep.mubr.bf16.mxu0 0
      %4572 = vmatmul.mubr.bf16.gmra.mrb[0].mxu0 %v4332
      %v4573 = vpop.f32.mrb[0].mxu0
      %v4574 = vadd.f32 0.0, %v4573
      %v4575 = vpop.f32.mrb[0].mxu0
      %v4576 = vpop.f32.mrb[0].mxu0
      %v4577 = vadd.f32 0.0, %v4576
      %v4578 = vpop.f32.mrb[0].mxu0
      %4579 = vmatprep.mubr.bf16.mxu0 0
      %4580 = vmatmul.mubr.bf16.gmra.mrb[0].mxu0 %v4341
      %v4581 = vpop.f32.mrb[0].mxu0
      %v4582 = vadd.f32 0.0, %v4581
      %v4583 = vpop.f32.mrb[0].mxu0
      %v4584 = vpop.f32.mrb[0].mxu0
      %v4585 = vadd.f32 0.0, %v4584
      %v4586 = vpop.f32.mrb[0].mxu0
      %4587 = vmatprep.mubr.bf16.mxu0 0
      %4588 = vmatmul.mubr.bf16.gmra.mrb[0].mxu0 %v4350
      %v4589 = vpop.f32.mrb[0].mxu0
      %v4590 = vadd.f32 0.0, %v4589
      %v4591 = vpop.f32.mrb[0].mxu0
      %v4592 = vpop.f32.mrb[0].mxu0
      %v4593 = vadd.f32 0.0, %v4592
      %v4594 = vpop.f32.mrb[0].mxu0
      %4595 = vmatprep.mubr.bf16.mxu0 0
      %4596 = vmatmul.mubr.bf16.gmra.mrb[0].mxu0 %v4359
      %v4597 = vpop.f32.mrb[0].mxu0
      %v4598 = vadd.f32 0.0, %v4597
      %v4599 = vpop.f32.mrb[0].mxu0
      %v4600 = vpop.f32.mrb[0].mxu0
      %v4601 = vadd.f32 0.0, %v4600
      %v4602 = vpop.f32.mrb[0].mxu0
      %4603 = vmatprep.mubr.bf16.mxu0 0
      %4604 = vmatmul.mubr.bf16.gmra.mrb[0].mxu0 %v4368
      %v4605 = vpop.f32.mrb[0].mxu0
      %v4606 = vadd.f32 0.0, %v4605
      %v4607 = vpop.f32.mrb[0].mxu0
      %v4608 = vpop.f32.mrb[0].mxu0
      %v4609 = vadd.f32 0.0, %v4608
      %v4610 = vpop.f32.mrb[0].mxu0
      %4611 = vdwg.mxu0
      %v4612 = vld [vmem:[#allocation2] sm:$0xff]
      %v4613 = vld [vmem:[#allocation2 + $0x8] sm:$0xff]
      %v4614 = vld [vmem:[#allocation2 + $0x10] sm:$0xff]
      %v4615 = vld [vmem:[#allocation2 + $0x18] sm:$0xff]
      %v4616 = vld [vmem:[#allocation2 + $0x20] sm:$0xff]
      %v4617 = vld [vmem:[#allocation2 + $0x28] sm:$0xff]
      %v4618 = vld [vmem:[#allocation2 + $0x30] sm:$0xff]
      %v4619 = vld [vmem:[#allocation2 + $0x38] sm:$0xff]
      %v4620 = vld [vmem:[#allocation2 + $0x40] sm:$0xff]
      %v4621 = vld [vmem:[#allocation2 + $0x48] sm:$0xff]
      %v4622 = vld [vmem:[#allocation2 + $0x50] sm:$0xff]
      %v4623 = vld [vmem:[#allocation2 + $0x58] sm:$0xff]
      %v4624 = vld [vmem:[#allocation2 + $0x60] sm:$0xff]
      %v4625 = vld [vmem:[#allocation2 + $0x68] sm:$0xff]
      %v4626 = vld [vmem:[#allocation2 + $0x70] sm:$0xff]
      %v4627 = vld [vmem:[#allocation2 + $0x78] sm:$0xff]
      %v4628 = vld [vmem:[#allocation2 + $0x80] sm:$0xff]
      %v4629 = vld [vmem:[#allocation2 + $0x88] sm:$0xff]
      %v4630 = vld [vmem:[#allocation2 + $0x90] sm:$0xff]
      %v4631 = vld [vmem:[#allocation2 + $0x98] sm:$0xff]
      %v4632 = vld [vmem:[#allocation2 + $0xa0] sm:$0xff]
      %v4633 = vld [vmem:[#allocation2 + $0xa8] sm:$0xff]
      %v4634 = vld [vmem:[#allocation2 + $0xb0] sm:$0xff]
      %v4635 = vld [vmem:[#allocation2 + $0xb8] sm:$0xff]
      %v4636 = vld [vmem:[#allocation2 + $0xc0] sm:$0xff]
      %v4637 = vld [vmem:[#allocation2 + $0xc8] sm:$0xff]
      %v4638 = vld [vmem:[#allocation2 + $0xd0] sm:$0xff]
      %v4639 = vld [vmem:[#allocation2 + $0xd8] sm:$0xff]
      %v4640 = vld [vmem:[#allocation2 + $0xe0] sm:$0xff]
      %v4641 = vld [vmem:[#allocation2 + $0xe8] sm:$0xff]
      %v4642 = vld [vmem:[#allocation2 + $0xf0] sm:$0xff]
      %v4643 = vld [vmem:[#allocation2 + $0xf8] sm:$0xff]
      %v4644 = vld [vmem:[#allocation2 + $0x100] sm:$0xff]
      %v4645 = vld [vmem:[#allocation2 + $0x108] sm:$0xff]
      %v4646 = vld [vmem:[#allocation2 + $0x110] sm:$0xff]
      %v4647 = vld [vmem:[#allocation2 + $0x118] sm:$0xff]
      %v4648 = vadd.f32 %v4612, %v4470
      %v4649 = vadd.f32 %v4613, %v4473
      %v4650 = vadd.f32 %v4614, %v4478
      %v4651 = vadd.f32 %v4615, %v4481
      %v4652 = vadd.f32 %v4616, %v4486
      %v4653 = vadd.f32 %v4617, %v4489
      %v4654 = vadd.f32 %v4618, %v4494
      %v4655 = vadd.f32 %v4619, %v4497
      %v4656 = vadd.f32 %v4620, %v4502
      %v4657 = vadd.f32 %v4621, %v4505
      %v4658 = vadd.f32 %v4622, %v4510
      %v4659 = vadd.f32 %v4623, %v4513
      %v4660 = vadd.f32 %v4624, %v4518
      %v4661 = vadd.f32 %v4625, %v4521
      %v4662 = vadd.f32 %v4626, %v4526
      %v4663 = vadd.f32 %v4627, %v4529
      %v4664 = vadd.f32 %v4628, %v4534
      %v4665 = vadd.f32 %v4629, %v4537
      %v4666 = vadd.f32 %v4630, %v4542
      %v4667 = vadd.f32 %v4631, %v4545
      %v4668 = vadd.f32 %v4632, %v4550
      %v4669 = vadd.f32 %v4633, %v4553
      %v4670 = vadd.f32 %v4634, %v4558
      %v4671 = vadd.f32 %v4635, %v4561
      %v4672 = vadd.f32 %v4636, %v4566
      %v4673 = vadd.f32 %v4637, %v4569
      %v4674 = vadd.f32 %v4638, %v4574
      %v4675 = vadd.f32 %v4639, %v4577
      %v4676 = vadd.f32 %v4640, %v4582
      %v4677 = vadd.f32 %v4641, %v4585
      %v4678 = vadd.f32 %v4642, %v4590
      %v4679 = vadd.f32 %v4643, %v4593
      %v4680 = vadd.f32 %v4644, %v4598
      %v4681 = vadd.f32 %v4645, %v4601
      %v4682 = vadd.f32 %v4646, %v4606
      %v4683 = vadd.f32 %v4647, %v4609
      %4684 = vst [vmem:[#allocation2] sm:$0xff] %v4648
      %4685 = vst [vmem:[#allocation2 + $0x8] sm:$0xff] %v4649
      %4686 = vst [vmem:[#allocation2 + $0x10] sm:$0xff] %v4650
      %4687 = vst [vmem:[#allocation2 + $0x18] sm:$0xff] %v4651
      %4688 = vst [vmem:[#allocation2 + $0x20] sm:$0xff] %v4652
      %4689 = vst [vmem:[#allocation2 + $0x28] sm:$0xff] %v4653
      %4690 = vst [vmem:[#allocation2 + $0x30] sm:$0xff] %v4654
      %4691 = vst [vmem:[#allocation2 + $0x38] sm:$0xff] %v4655
      %4692 = vst [vmem:[#allocation2 + $0x40] sm:$0xff] %v4656
      %4693 = vst [vmem:[#allocation2 + $0x48] sm:$0xff] %v4657
      %4694 = vst [vmem:[#allocation2 + $0x50] sm:$0xff] %v4658
      %4695 = vst [vmem:[#allocation2 + $0x58] sm:$0xff] %v4659
      %4696 = vst [vmem:[#allocation2 + $0x60] sm:$0xff] %v4660
      %4697 = vst [vmem:[#allocation2 + $0x68] sm:$0xff] %v4661
      %4698 = vst [vmem:[#allocation2 + $0x70] sm:$0xff] %v4662
      %4699 = vst [vmem:[#allocation2 + $0x78] sm:$0xff] %v4663
      %4700 = vst [vmem:[#allocation2 + $0x80] sm:$0xff] %v4664
      %4701 = vst [vmem:[#allocation2 + $0x88] sm:$0xff] %v4665
      %4702 = vst [vmem:[#allocation2 + $0x90] sm:$0xff] %v4666
      %4703 = vst [vmem:[#allocation2 + $0x98] sm:$0xff] %v4667
      %4704 = vst [vmem:[#allocation2 + $0xa0] sm:$0xff] %v4668
      %4705 = vst [vmem:[#allocation2 + $0xa8] sm:$0xff] %v4669
      %4706 = vst [vmem:[#allocation2 + $0xb0] sm:$0xff] %v4670
      %4707 = vst [vmem:[#allocation2 + $0xb8] sm:$0xff] %v4671
      %4708 = vst [vmem:[#allocation2 + $0xc0] sm:$0xff] %v4672
      %4709 = vst [vmem:[#allocation2 + $0xc8] sm:$0xff] %v4673
      %4710 = vst [vmem:[#allocation2 + $0xd0] sm:$0xff] %v4674
      %4711 = vst [vmem:[#allocation2 + $0xd8] sm:$0xff] %v4675
      %4712 = vst [vmem:[#allocation2 + $0xe0] sm:$0xff] %v4676
      %4713 = vst [vmem:[#allocation2 + $0xe8] sm:$0xff] %v4677
      %4714 = vst [vmem:[#allocation2 + $0xf0] sm:$0xff] %v4678
      %4715 = vst [vmem:[#allocation2 + $0xf8] sm:$0xff] %v4679
      %4716 = vst [vmem:[#allocation2 + $0x100] sm:$0xff] %v4680
      %4717 = vst [vmem:[#allocation2 + $0x108] sm:$0xff] %v4681
      %4718 = vst [vmem:[#allocation2 + $0x110] sm:$0xff] %v4682
      %4719 = vst [vmem:[#allocation2 + $0x118] sm:$0xff] %v4683
      %v4720 = vld [vmem:[%s165 + $0x10] sm:$0x8]
      %v4721 = vld [vmem:[%s165 + $0x14] sm:$0xf]
      %v4722 = vld [vmem:[%s165 + $0x18] sm:$0xf]
      %v4723 = vld [vmem:[%s165 + $0x1c] sm:$0xf]
      %v4724 = vld [vmem:[%s165 + $0x20] sm:$0xf]
      %v4725 = vld [vmem:[%s165 + $0x24] sm:$0xf]
      %v4726 = vld [vmem:[%s165 + $0x28] sm:$0xf]
      %v4727 = vld [vmem:[%s165 + $0x2c] sm:$0xf]
      %v4728 = vld [vmem:[%s165 + $0x30] sm:$0xf]
      %v4729 = vld [vmem:[%s165 + $0x34] sm:$0xf]
      %v4730 = vld [vmem:[%s165 + $0x38] sm:$0xf]
      %v4731 = vld [vmem:[%s165 + $0x3c] sm:$0xf]
      %v4732 = vld [vmem:[%s165 + $0x40] sm:$0xf]
      %v4733 = vld [vmem:[%s165 + $0x44] sm:$0xf]
      %v4734 = vld [vmem:[%s165 + $0x48] sm:$0xf]
      %v4735 = vld [vmem:[%s165 + $0x4c] sm:$0xf]
      %v4736 = vld [vmem:[%s165 + $0x50] sm:$0xf]
      %v4737 = vld [vmem:[%s165 + $0x54] sm:$0xf]
      %v4738 = vld [vmem:[%s165 + $0x58] sm:$0xf]
      %v4739 = vld [vmem:[%s165 + $0x5c] sm:$0xf]
      %v4740 = vld [vmem:[%s165 + $0x60] sm:$0xf]
      %v4741 = vld [vmem:[%s165 + $0x64] sm:$0xf]
      %v4742 = vld [vmem:[%s165 + $0x68] sm:$0xf]
      %v4743 = vld [vmem:[%s165 + $0x6c] sm:$0xf]
      %v4744 = vld [vmem:[%s165 + $0x70] sm:$0xf]
      %v4745 = vld [vmem:[%s165 + $0x74] sm:$0xf]
      %v4746 = vld [vmem:[%s165 + $0x78] sm:$0xf]
      %v4747 = vld [vmem:[%s165 + $0x7c] sm:$0xf]
      %v4748 = vld [vmem:[%s165 + $0x80] sm:$0xf]
      %v4749 = vld [vmem:[%s165 + $0x84] sm:$0xf]
      %v4750 = vld [vmem:[%s165 + $0x88] sm:$0xf]
      %v4751 = vld [vmem:[%s165 + $0x8c] sm:$0xf]
      %v4752 = vld [vmem:[%s165 + $0x90] sm:$0xf]
      %v4753 = vld [vmem:[%s165 + $0x94] sm:$0xf]
      %v4754 = vld [vmem:[%s165 + $0x98] sm:$0xf]
      %v4755 = vld [vmem:[%s165 + $0x9c] sm:$0xf]
      %v4756 = vld [vmem:[%s165 + $0xa0] sm:$0x7]
      %s4757 = scalar_lea.vmem %s1, 512
      %v4758 = vld [vmem:[%s4757] sm:$0xf]
      %v4759 = vld [vmem:[%s4757 + $0x4] sm:$0xf]
      %v4760 = vld [vmem:[%s4757 + $0x8] sm:$0xf]
      %v4761 = vld [vmem:[%s4757 + $0xc] sm:$0xf]
      %v4762 = vld [vmem:[%s4757 + $0x10] sm:$0xf]
      %v4763 = vld [vmem:[%s4757 + $0x14] sm:$0xf]
      %v4764 = vld [vmem:[%s4757 + $0x18] sm:$0xf]
      %v4765 = vld [vmem:[%s4757 + $0x1c] sm:$0xf]
      %v4766 = vld [vmem:[%s4757 + $0x20] sm:$0xf]
      %v4767 = vld [vmem:[%s4757 + $0x24] sm:$0xf]
      %v4768 = vld [vmem:[%s4757 + $0x28] sm:$0xf]
      %v4769 = vld [vmem:[%s4757 + $0x2c] sm:$0xf]
      %v4770 = vld [vmem:[%s4757 + $0x30] sm:$0xf]
      %v4771 = vld [vmem:[%s4757 + $0x34] sm:$0xf]
      %v4772 = vld [vmem:[%s4757 + $0x38] sm:$0xf]
      %v4773 = vld [vmem:[%s4757 + $0x3c] sm:$0xf]
      %v4811 = vunpack.c.l.b16 %v4720
      %v4812 = vunpack.c.l.b16 %v4721
      %v4813 = vunpack.c.l.b16 %v4722
      %v4814 = vunpack.c.l.b16 %v4723
      %v4815 = vunpack.c.l.b16 %v4724
      %v4816 = vunpack.c.l.b16 %v4725
      %v4817 = vunpack.c.l.b16 %v4726
      %v4818 = vunpack.c.l.b16 %v4727
      %v4819 = vunpack.c.l.b16 %v4728
      %v4820 = vunpack.c.l.b16 %v4729
      %v4821 = vunpack.c.l.b16 %v4730
      %v4822 = vunpack.c.l.b16 %v4731
      %v4823 = vunpack.c.l.b16 %v4732
      %v4824 = vunpack.c.l.b16 %v4733
      %v4825 = vunpack.c.l.b16 %v4734
      %v4826 = vunpack.c.l.b16 %v4735
      %v4827 = vunpack.c.l.b16 %v4736
      %v4828 = vunpack.c.l.b16 %v4737
      %v4829 = vunpack.c.l.b16 %v4738
      %v4830 = vunpack.c.l.b16 %v4739
      %v4831 = vunpack.c.l.b16 %v4740
      %v4832 = vunpack.c.l.b16 %v4741
      %v4833 = vunpack.c.l.b16 %v4742
      %v4834 = vunpack.c.l.b16 %v4743
      %v4835 = vunpack.c.l.b16 %v4744
      %v4836 = vunpack.c.l.b16 %v4745
      %v4837 = vunpack.c.l.b16 %v4746
      %v4838 = vunpack.c.l.b16 %v4747
      %v4839 = vunpack.c.l.b16 %v4748
      %v4840 = vunpack.c.l.b16 %v4749
      %v4841 = vunpack.c.l.b16 %v4750
      %v4842 = vunpack.c.l.b16 %v4751
      %v4843 = vunpack.c.l.b16 %v4752
      %v4844 = vunpack.c.l.b16 %v4753
      %v4845 = vunpack.c.l.b16 %v4754
      %v4846 = vunpack.c.l.b16 %v4755
      %v4847 = vunpack.c.l.b16 %v4756
      %v4848 = vpack.c.b16 %v4812, %v4811
      %v4849 = vpack.c.b16 %v4814, %v4813
      %v4850 = vpack.c.b16 %v4816, %v4815
      %v4851 = vpack.c.b16 %v4818, %v4817
      %v4852 = vpack.c.b16 %v4820, %v4819
      %v4853 = vpack.c.b16 %v4822, %v4821
      %v4854 = vpack.c.b16 %v4824, %v4823
      %v4855 = vpack.c.b16 %v4826, %v4825
      %v4856 = vpack.c.b16 %v4828, %v4827
      %v4857 = vpack.c.b16 %v4830, %v4829
      %v4858 = vpack.c.b16 %v4832, %v4831
      %v4859 = vpack.c.b16 %v4834, %v4833
      %v4860 = vpack.c.b16 %v4836, %v4835
      %v4861 = vpack.c.b16 %v4838, %v4837
      %v4862 = vpack.c.b16 %v4840, %v4839
      %v4863 = vpack.c.b16 %v4842, %v4841
      %v4864 = vpack.c.b16 %v4844, %v4843
      %v4865 = vpack.c.b16 %v4846, %v4845
      %v4866 = vpack.c.b16 %v4847, %v4847
      %vm4867 = vcmask 1044480
      %v4868 = vrot.slane %v4848, 3
      %v4869 = vrot.slane %v4849, 3
      %v4870 = vsel %vm4867, %v4868, %v4869
      %v4871 = vrot.slane %v4850, 3
      %v4872 = vsel %vm4867, %v4869, %v4871
      %v4873 = vrot.slane %v4851, 3
      %v4874 = vsel %vm4867, %v4871, %v4873
      %v4875 = vrot.slane %v4852, 3
      %v4876 = vsel %vm4867, %v4873, %v4875
      %v4877 = vrot.slane %v4853, 3
      %v4878 = vsel %vm4867, %v4875, %v4877
      %v4879 = vrot.slane %v4854, 3
      %v4880 = vsel %vm4867, %v4877, %v4879
      %v4881 = vrot.slane %v4855, 3
      %v4882 = vsel %vm4867, %v4879, %v4881
      %v4883 = vrot.slane %v4856, 3
      %v4884 = vsel %vm4867, %v4881, %v4883
      %v4885 = vrot.slane %v4857, 3
      %v4886 = vsel %vm4867, %v4883, %v4885
      %v4887 = vrot.slane %v4858, 3
      %v4888 = vsel %vm4867, %v4885, %v4887
      %v4889 = vrot.slane %v4859, 3
      %v4890 = vsel %vm4867, %v4887, %v4889
      %v4891 = vrot.slane %v4860, 3
      %v4892 = vsel %vm4867, %v4889, %v4891
      %v4893 = vrot.slane %v4861, 3
      %v4894 = vsel %vm4867, %v4891, %v4893
      %v4895 = vrot.slane %v4862, 3
      %v4896 = vsel %vm4867, %v4893, %v4895
      %v4897 = vrot.slane %v4863, 3
      %v4898 = vsel %vm4867, %v4895, %v4897
      %v4899 = vrot.slane %v4864, 3
      %v4900 = vsel %vm4867, %v4897, %v4899
      %v4901 = vrot.slane %v4865, 3
      %v4902 = vsel %vm4867, %v4899, %v4901
      %v4903 = vrot.slane %v4866, 3
      %v4904 = vsel %vm4867, %v4901, %v4903
      %v4939 = vunpack.c.l.b16 %v4758
      %v4940 = vunpack.c.l.b16 %v4759
      %v4941 = vunpack.c.l.b16 %v4760
      %v4942 = vunpack.c.l.b16 %v4761
      %v4943 = vunpack.c.l.b16 %v4762
      %v4944 = vunpack.c.l.b16 %v4763
      %v4945 = vunpack.c.l.b16 %v4764
      %v4946 = vunpack.c.l.b16 %v4765
      %v4947 = vunpack.c.l.b16 %v4766
      %v4948 = vunpack.c.l.b16 %v4767
      %v4949 = vunpack.c.l.b16 %v4768
      %v4950 = vunpack.c.l.b16 %v4769
      %v4951 = vunpack.c.l.b16 %v4770
      %v4952 = vunpack.c.l.b16 %v4771
      %v4953 = vunpack.c.l.b16 %v4772
      %v4954 = vunpack.c.l.b16 %v4773
      %v4955 = vpack.c.b16 %v4940, %v4939
      %v4956 = vpack.c.b16 %v4942, %v4941
      %v4957 = vpack.c.b16 %v4944, %v4943
      %v4958 = vpack.c.b16 %v4946, %v4945
      %v4959 = vpack.c.b16 %v4948, %v4947
      %v4960 = vpack.c.b16 %v4950, %v4949
      %v4961 = vpack.c.b16 %v4952, %v4951
      %v4962 = vpack.c.b16 %v4954, %v4953
      %4971 = vmatprep.subr.bf16.mxu0 0
      %4972 = vmatpush1.bf16.msra.mxu0 %v4955
      %4973 = vmatprep.subr.bf16.mxu0 0
      %4974 = vmatpush1.bf16.msra.mxu0 %v4956
      %4975 = vmatprep.subr.bf16.mxu0 0
      %4976 = vmatpush1.bf16.msra.mxu0 %v4957
      %4977 = vmatprep.subr.bf16.mxu0 0
      %4978 = vmatpush1.bf16.msra.mxu0 %v4958
      %4979 = vmatprep.subr.bf16.mxu0 0
      %4980 = vmatpush1.bf16.msra.mxu0 %v4959
      %4981 = vmatprep.subr.bf16.mxu0 0
      %4982 = vmatpush1.bf16.msra.mxu0 %v4960
      %4983 = vmatprep.subr.bf16.mxu0 0
      %4984 = vmatpush1.bf16.msra.mxu0 %v4961
      %4985 = vmatprep.subr.bf16.mxu0 0
      %4986 = vmatpush1.bf16.msra.mxu0 %v4962
      %4987 = vmatprep.subr.bf16.mxu0 0
      %4988 = vmatpush1.bf16.msra.mxu0 0
      %4989 = vmatprep.subr.bf16.mxu0 0
      %4990 = vmatpush1.bf16.msra.mxu0 0
      %4991 = vmatprep.subr.bf16.mxu0 0
      %4992 = vmatpush1.bf16.msra.mxu0 0
      %4993 = vmatprep.subr.bf16.mxu0 0
      %4994 = vmatpush1.bf16.msra.mxu0 0
      %4995 = vmatprep.subr.bf16.mxu0 0
      %4996 = vmatpush1.bf16.msra.mxu0 0
      %4997 = vmatprep.subr.bf16.mxu0 0
      %4998 = vmatpush1.bf16.msra.mxu0 0
      %4999 = vmatprep.subr.bf16.mxu0 0
      %5000 = vmatpush1.bf16.msra.mxu0 0
      %5001 = vmatprep.subr.bf16.mxu0 0
      %5002 = vmatpush1.bf16.msra.mxu0 0
      %5003 = vmatprep.mubr.bf16.mxu0 0
      %5004 = vmatmul.mubr.bf16.gmra.mrb[0].mxu0 %v4870
      %v5005 = vpop.f32.mrb[0].mxu0
      %v5006 = vadd.f32 0.0, %v5005
      %v5007 = vpop.f32.mrb[0].mxu0
      %v5008 = vpop.f32.mrb[0].mxu0
      %v5009 = vadd.f32 0.0, %v5008
      %v5010 = vpop.f32.mrb[0].mxu0
      %5011 = vmatprep.mubr.bf16.mxu0 0
      %5012 = vmatmul.mubr.bf16.gmra.mrb[0].mxu0 %v4872
      %v5013 = vpop.f32.mrb[0].mxu0
      %v5014 = vadd.f32 0.0, %v5013
      %v5015 = vpop.f32.mrb[0].mxu0
      %v5016 = vpop.f32.mrb[0].mxu0
      %v5017 = vadd.f32 0.0, %v5016
      %v5018 = vpop.f32.mrb[0].mxu0
      %5019 = vmatprep.mubr.bf16.mxu0 0
      %5020 = vmatmul.mubr.bf16.gmra.mrb[0].mxu0 %v4874
      %v5021 = vpop.f32.mrb[0].mxu0
      %v5022 = vadd.f32 0.0, %v5021
      %v5023 = vpop.f32.mrb[0].mxu0
      %v5024 = vpop.f32.mrb[0].mxu0
      %v5025 = vadd.f32 0.0, %v5024
      %v5026 = vpop.f32.mrb[0].mxu0
      %5027 = vmatprep.mubr.bf16.mxu0 0
      %5028 = vmatmul.mubr.bf16.gmra.mrb[0].mxu0 %v4876
      %v5029 = vpop.f32.mrb[0].mxu0
      %v5030 = vadd.f32 0.0, %v5029
      %v5031 = vpop.f32.mrb[0].mxu0
      %v5032 = vpop.f32.mrb[0].mxu0
      %v5033 = vadd.f32 0.0, %v5032
      %v5034 = vpop.f32.mrb[0].mxu0
      %5035 = vmatprep.mubr.bf16.mxu0 0
      %5036 = vmatmul.mubr.bf16.gmra.mrb[0].mxu0 %v4878
      %v5037 = vpop.f32.mrb[0].mxu0
      %v5038 = vadd.f32 0.0, %v5037
      %v5039 = vpop.f32.mrb[0].mxu0
      %v5040 = vpop.f32.mrb[0].mxu0
      %v5041 = vadd.f32 0.0, %v5040
      %v5042 = vpop.f32.mrb[0].mxu0
      %5043 = vmatprep.mubr.bf16.mxu0 0
      %5044 = vmatmul.mubr.bf16.gmra.mrb[0].mxu0 %v4880
      %v5045 = vpop.f32.mrb[0].mxu0
      %v5046 = vadd.f32 0.0, %v5045
      %v5047 = vpop.f32.mrb[0].mxu0
      %v5048 = vpop.f32.mrb[0].mxu0
      %v5049 = vadd.f32 0.0, %v5048
      %v5050 = vpop.f32.mrb[0].mxu0
      %5051 = vmatprep.mubr.bf16.mxu0 0
      %5052 = vmatmul.mubr.bf16.gmra.mrb[0].mxu0 %v4882
      %v5053 = vpop.f32.mrb[0].mxu0
      %v5054 = vadd.f32 0.0, %v5053
      %v5055 = vpop.f32.mrb[0].mxu0
      %v5056 = vpop.f32.mrb[0].mxu0
      %v5057 = vadd.f32 0.0, %v5056
      %v5058 = vpop.f32.mrb[0].mxu0
      %5059 = vmatprep.mubr.bf16.mxu0 0
      %5060 = vmatmul.mubr.bf16.gmra.mrb[0].mxu0 %v4884
      %v5061 = vpop.f32.mrb[0].mxu0
      %v5062 = vadd.f32 0.0, %v5061
      %v5063 = vpop.f32.mrb[0].mxu0
      %v5064 = vpop.f32.mrb[0].mxu0
      %v5065 = vadd.f32 0.0, %v5064
      %v5066 = vpop.f32.mrb[0].mxu0
      %5067 = vmatprep.mubr.bf16.mxu0 0
      %5068 = vmatmul.mubr.bf16.gmra.mrb[0].mxu0 %v4886
      %v5069 = vpop.f32.mrb[0].mxu0
      %v5070 = vadd.f32 0.0, %v5069
      %v5071 = vpop.f32.mrb[0].mxu0
      %v5072 = vpop.f32.mrb[0].mxu0
      %v5073 = vadd.f32 0.0, %v5072
      %v5074 = vpop.f32.mrb[0].mxu0
      %5075 = vmatprep.mubr.bf16.mxu0 0
      %5076 = vmatmul.mubr.bf16.gmra.mrb[0].mxu0 %v4888
      %v5077 = vpop.f32.mrb[0].mxu0
      %v5078 = vadd.f32 0.0, %v5077
      %v5079 = vpop.f32.mrb[0].mxu0
      %v5080 = vpop.f32.mrb[0].mxu0
      %v5081 = vadd.f32 0.0, %v5080
      %v5082 = vpop.f32.mrb[0].mxu0
      %5083 = vmatprep.mubr.bf16.mxu0 0
      %5084 = vmatmul.mubr.bf16.gmra.mrb[0].mxu0 %v4890
      %v5085 = vpop.f32.mrb[0].mxu0
      %v5086 = vadd.f32 0.0, %v5085
      %v5087 = vpop.f32.mrb[0].mxu0
      %v5088 = vpop.f32.mrb[0].mxu0
      %v5089 = vadd.f32 0.0, %v5088
      %v5090 = vpop.f32.mrb[0].mxu0
      %5091 = vmatprep.mubr.bf16.mxu0 0
      %5092 = vmatmul.mubr.bf16.gmra.mrb[0].mxu0 %v4892
      %v5093 = vpop.f32.mrb[0].mxu0
      %v5094 = vadd.f32 0.0, %v5093
      %v5095 = vpop.f32.mrb[0].mxu0
      %v5096 = vpop.f32.mrb[0].mxu0
      %v5097 = vadd.f32 0.0, %v5096
      %v5098 = vpop.f32.mrb[0].mxu0
      %5099 = vmatprep.mubr.bf16.mxu0 0
      %5100 = vmatmul.mubr.bf16.gmra.mrb[0].mxu0 %v4894
      %v5101 = vpop.f32.mrb[0].mxu0
      %v5102 = vadd.f32 0.0, %v5101
      %v5103 = vpop.f32.mrb[0].mxu0
      %v5104 = vpop.f32.mrb[0].mxu0
      %v5105 = vadd.f32 0.0, %v5104
      %v5106 = vpop.f32.mrb[0].mxu0
      %5107 = vmatprep.mubr.bf16.mxu0 0
      %5108 = vmatmul.mubr.bf16.gmra.mrb[0].mxu0 %v4896
      %v5109 = vpop.f32.mrb[0].mxu0
      %v5110 = vadd.f32 0.0, %v5109
      %v5111 = vpop.f32.mrb[0].mxu0
      %v5112 = vpop.f32.mrb[0].mxu0
      %v5113 = vadd.f32 0.0, %v5112
      %v5114 = vpop.f32.mrb[0].mxu0
      %5115 = vmatprep.mubr.bf16.mxu0 0
      %5116 = vmatmul.mubr.bf16.gmra.mrb[0].mxu0 %v4898
      %v5117 = vpop.f32.mrb[0].mxu0
      %v5118 = vadd.f32 0.0, %v5117
      %v5119 = vpop.f32.mrb[0].mxu0
      %v5120 = vpop.f32.mrb[0].mxu0
      %v5121 = vadd.f32 0.0, %v5120
      %v5122 = vpop.f32.mrb[0].mxu0
      %5123 = vmatprep.mubr.bf16.mxu0 0
      %5124 = vmatmul.mubr.bf16.gmra.mrb[0].mxu0 %v4900
      %v5125 = vpop.f32.mrb[0].mxu0
      %v5126 = vadd.f32 0.0, %v5125
      %v5127 = vpop.f32.mrb[0].mxu0
      %v5128 = vpop.f32.mrb[0].mxu0
      %v5129 = vadd.f32 0.0, %v5128
      %v5130 = vpop.f32.mrb[0].mxu0
      %5131 = vmatprep.mubr.bf16.mxu0 0
      %5132 = vmatmul.mubr.bf16.gmra.mrb[0].mxu0 %v4902
      %v5133 = vpop.f32.mrb[0].mxu0
      %v5134 = vadd.f32 0.0, %v5133
      %v5135 = vpop.f32.mrb[0].mxu0
      %v5136 = vpop.f32.mrb[0].mxu0
      %v5137 = vadd.f32 0.0, %v5136
      %v5138 = vpop.f32.mrb[0].mxu0
      %5139 = vmatprep.mubr.bf16.mxu0 0
      %5140 = vmatmul.mubr.bf16.gmra.mrb[0].mxu0 %v4904
      %v5141 = vpop.f32.mrb[0].mxu0
      %v5142 = vadd.f32 0.0, %v5141
      %v5143 = vpop.f32.mrb[0].mxu0
      %v5144 = vpop.f32.mrb[0].mxu0
      %v5145 = vadd.f32 0.0, %v5144
      %v5146 = vpop.f32.mrb[0].mxu0
      %5147 = vdwg.mxu0
      %v5148 = vld [vmem:[#allocation2] sm:$0xff]
      %v5149 = vld [vmem:[#allocation2 + $0x8] sm:$0xff]
      %v5150 = vld [vmem:[#allocation2 + $0x10] sm:$0xff]
      %v5151 = vld [vmem:[#allocation2 + $0x18] sm:$0xff]
      %v5152 = vld [vmem:[#allocation2 + $0x20] sm:$0xff]
      %v5153 = vld [vmem:[#allocation2 + $0x28] sm:$0xff]
      %v5154 = vld [vmem:[#allocation2 + $0x30] sm:$0xff]
      %v5155 = vld [vmem:[#allocation2 + $0x38] sm:$0xff]
      %v5156 = vld [vmem:[#allocation2 + $0x40] sm:$0xff]
      %v5157 = vld [vmem:[#allocation2 + $0x48] sm:$0xff]
      %v5158 = vld [vmem:[#allocation2 + $0x50] sm:$0xff]
      %v5159 = vld [vmem:[#allocation2 + $0x58] sm:$0xff]
      %v5160 = vld [vmem:[#allocation2 + $0x60] sm:$0xff]
      %v5161 = vld [vmem:[#allocation2 + $0x68] sm:$0xff]
      %v5162 = vld [vmem:[#allocation2 + $0x70] sm:$0xff]
      %v5163 = vld [vmem:[#allocation2 + $0x78] sm:$0xff]
      %v5164 = vld [vmem:[#allocation2 + $0x80] sm:$0xff]
      %v5165 = vld [vmem:[#allocation2 + $0x88] sm:$0xff]
      %v5166 = vld [vmem:[#allocation2 + $0x90] sm:$0xff]
      %v5167 = vld [vmem:[#allocation2 + $0x98] sm:$0xff]
      %v5168 = vld [vmem:[#allocation2 + $0xa0] sm:$0xff]
      %v5169 = vld [vmem:[#allocation2 + $0xa8] sm:$0xff]
      %v5170 = vld [vmem:[#allocation2 + $0xb0] sm:$0xff]
      %v5171 = vld [vmem:[#allocation2 + $0xb8] sm:$0xff]
      %v5172 = vld [vmem:[#allocation2 + $0xc0] sm:$0xff]
      %v5173 = vld [vmem:[#allocation2 + $0xc8] sm:$0xff]
      %v5174 = vld [vmem:[#allocation2 + $0xd0] sm:$0xff]
      %v5175 = vld [vmem:[#allocation2 + $0xd8] sm:$0xff]
      %v5176 = vld [vmem:[#allocation2 + $0xe0] sm:$0xff]
      %v5177 = vld [vmem:[#allocation2 + $0xe8] sm:$0xff]
      %v5178 = vld [vmem:[#allocation2 + $0xf0] sm:$0xff]
      %v5179 = vld [vmem:[#allocation2 + $0xf8] sm:$0xff]
      %v5180 = vld [vmem:[#allocation2 + $0x100] sm:$0xff]
      %v5181 = vld [vmem:[#allocation2 + $0x108] sm:$0xff]
      %v5182 = vld [vmem:[#allocation2 + $0x110] sm:$0xff]
      %v5183 = vld [vmem:[#allocation2 + $0x118] sm:$0xff]
      %v5184 = vadd.f32 %v5148, %v5006
      %v5185 = vadd.f32 %v5149, %v5009
      %v5186 = vadd.f32 %v5150, %v5014
      %v5187 = vadd.f32 %v5151, %v5017
      %v5188 = vadd.f32 %v5152, %v5022
      %v5189 = vadd.f32 %v5153, %v5025
      %v5190 = vadd.f32 %v5154, %v5030
      %v5191 = vadd.f32 %v5155, %v5033
      %v5192 = vadd.f32 %v5156, %v5038
      %v5193 = vadd.f32 %v5157, %v5041
      %v5194 = vadd.f32 %v5158, %v5046
      %v5195 = vadd.f32 %v5159, %v5049
      %v5196 = vadd.f32 %v5160, %v5054
      %v5197 = vadd.f32 %v5161, %v5057
      %v5198 = vadd.f32 %v5162, %v5062
      %v5199 = vadd.f32 %v5163, %v5065
      %v5200 = vadd.f32 %v5164, %v5070
      %v5201 = vadd.f32 %v5165, %v5073
      %v5202 = vadd.f32 %v5166, %v5078
      %v5203 = vadd.f32 %v5167, %v5081
      %v5204 = vadd.f32 %v5168, %v5086
      %v5205 = vadd.f32 %v5169, %v5089
      %v5206 = vadd.f32 %v5170, %v5094
      %v5207 = vadd.f32 %v5171, %v5097
      %v5208 = vadd.f32 %v5172, %v5102
      %v5209 = vadd.f32 %v5173, %v5105
      %v5210 = vadd.f32 %v5174, %v5110
      %v5211 = vadd.f32 %v5175, %v5113
      %v5212 = vadd.f32 %v5176, %v5118
      %v5213 = vadd.f32 %v5177, %v5121
      %v5214 = vadd.f32 %v5178, %v5126
      %v5215 = vadd.f32 %v5179, %v5129
      %v5216 = vadd.f32 %v5180, %v5134
      %v5217 = vadd.f32 %v5181, %v5137
      %v5218 = vadd.f32 %v5182, %v5142
      %v5219 = vadd.f32 %v5183, %v5145
      %5220 = vst [vmem:[#allocation2] sm:$0xff] %v5184
      %5221 = vst [vmem:[#allocation2 + $0x8] sm:$0xff] %v5185
      %5222 = vst [vmem:[#allocation2 + $0x10] sm:$0xff] %v5186
      %5223 = vst [vmem:[#allocation2 + $0x18] sm:$0xff] %v5187
      %5224 = vst [vmem:[#allocation2 + $0x20] sm:$0xff] %v5188
      %5225 = vst [vmem:[#allocation2 + $0x28] sm:$0xff] %v5189
      %5226 = vst [vmem:[#allocation2 + $0x30] sm:$0xff] %v5190
      %5227 = vst [vmem:[#allocation2 + $0x38] sm:$0xff] %v5191
      %5228 = vst [vmem:[#allocation2 + $0x40] sm:$0xff] %v5192
      %5229 = vst [vmem:[#allocation2 + $0x48] sm:$0xff] %v5193
      %5230 = vst [vmem:[#allocation2 + $0x50] sm:$0xff] %v5194
      %5231 = vst [vmem:[#allocation2 + $0x58] sm:$0xff] %v5195
      %5232 = vst [vmem:[#allocation2 + $0x60] sm:$0xff] %v5196
      %5233 = vst [vmem:[#allocation2 + $0x68] sm:$0xff] %v5197
      %5234 = vst [vmem:[#allocation2 + $0x70] sm:$0xff] %v5198
      %5235 = vst [vmem:[#allocation2 + $0x78] sm:$0xff] %v5199
      %5236 = vst [vmem:[#allocation2 + $0x80] sm:$0xff] %v5200
      %5237 = vst [vmem:[#allocation2 + $0x88] sm:$0xff] %v5201
      %5238 = vst [vmem:[#allocation2 + $0x90] sm:$0xff] %v5202
      %5239 = vst [vmem:[#allocation2 + $0x98] sm:$0xff] %v5203
      %5240 = vst [vmem:[#allocation2 + $0xa0] sm:$0xff] %v5204
      %5241 = vst [vmem:[#allocation2 + $0xa8] sm:$0xff] %v5205
      %5242 = vst [vmem:[#allocation2 + $0xb0] sm:$0xff] %v5206
      %5243 = vst [vmem:[#allocation2 + $0xb8] sm:$0xff] %v5207
      %5244 = vst [vmem:[#allocation2 + $0xc0] sm:$0xff] %v5208
      %5245 = vst [vmem:[#allocation2 + $0xc8] sm:$0xff] %v5209
      %5246 = vst [vmem:[#allocation2 + $0xd0] sm:$0xff] %v5210
      %5247 = vst [vmem:[#allocation2 + $0xd8] sm:$0xff] %v5211
      %5248 = vst [vmem:[#allocation2 + $0xe0] sm:$0xff] %v5212
      %5249 = vst [vmem:[#allocation2 + $0xe8] sm:$0xff] %v5213
      %5250 = vst [vmem:[#allocation2 + $0xf0] sm:$0xff] %v5214
      %5251 = vst [vmem:[#allocation2 + $0xf8] sm:$0xff] %v5215
      %5252 = vst [vmem:[#allocation2 + $0x100] sm:$0xff] %v5216
      %5253 = vst [vmem:[#allocation2 + $0x108] sm:$0xff] %v5217
      %5254 = vst [vmem:[#allocation2 + $0x110] sm:$0xff] %v5218
      %5255 = vst [vmem:[#allocation2 + $0x118] sm:$0xff] %v5219
      %v5256 = vld [vmem:[#allocation2] sm:$0xff]
      %v5257 = vld [vmem:[#allocation2 + $0x8] sm:$0xff]
      %v5258 = vld [vmem:[#allocation2 + $0x10] sm:$0xff]
      %v5259 = vld [vmem:[#allocation2 + $0x18] sm:$0xff]
      %v5260 = vld [vmem:[#allocation2 + $0x20] sm:$0xff]
      %v5261 = vld [vmem:[#allocation2 + $0x28] sm:$0xff]
      %v5262 = vld [vmem:[#allocation2 + $0x30] sm:$0xff]
      %v5263 = vld [vmem:[#allocation2 + $0x38] sm:$0xff]
      %v5264 = vld [vmem:[#allocation2 + $0x40] sm:$0xff]
      %v5265 = vld [vmem:[#allocation2 + $0x48] sm:$0xff]
      %v5266 = vld [vmem:[#allocation2 + $0x50] sm:$0xff]
      %v5267 = vld [vmem:[#allocation2 + $0x58] sm:$0xff]
      %v5268 = vld [vmem:[#allocation2 + $0x60] sm:$0xff]
      %v5269 = vld [vmem:[#allocation2 + $0x68] sm:$0xff]
      %v5270 = vld [vmem:[#allocation2 + $0x70] sm:$0xff]
      %v5271 = vld [vmem:[#allocation2 + $0x78] sm:$0xff]
      %v5272 = vld [vmem:[#allocation2 + $0x80] sm:$0xff]
      %v5273 = vld [vmem:[#allocation2 + $0x88] sm:$0xff]
      %v5274 = vld [vmem:[#allocation2 + $0x90] sm:$0xff]
      %v5275 = vld [vmem:[#allocation2 + $0x98] sm:$0xff]
      %v5276 = vld [vmem:[#allocation2 + $0xa0] sm:$0xff]
      %v5277 = vld [vmem:[#allocation2 + $0xa8] sm:$0xff]
      %v5278 = vld [vmem:[#allocation2 + $0xb0] sm:$0xff]
      %v5279 = vld [vmem:[#allocation2 + $0xb8] sm:$0xff]
      %v5280 = vld [vmem:[#allocation2 + $0xc0] sm:$0xff]
      %v5281 = vld [vmem:[#allocation2 + $0xc8] sm:$0xff]
      %v5282 = vld [vmem:[#allocation2 + $0xd0] sm:$0xff]
      %v5283 = vld [vmem:[#allocation2 + $0xd8] sm:$0xff]
      %v5284 = vld [vmem:[#allocation2 + $0xe0] sm:$0xff]
      %v5285 = vld [vmem:[#allocation2 + $0xe8] sm:$0xff]
      %v5286 = vld [vmem:[#allocation2 + $0xf0] sm:$0xff]
      %v5287 = vld [vmem:[#allocation2 + $0xf8] sm:$0xff]
      %v5288 = vld [vmem:[#allocation2 + $0x100] sm:$0xff]
      %v5289 = vld [vmem:[#allocation2 + $0x108] sm:$0xff]
      %v5290 = vld [vmem:[#allocation2 + $0x110] sm:$0xff]
      %v5291 = vld [vmem:[#allocation2 + $0x118] sm:$0xff]
      %v5292 = vld [vmem:[%s2] sm:$0x1]
      %v5294 = vlaneseq
      %v5295 = vshrl.u32 %v5294, 7
      %v5296 = vsub.s32 0, %v5295
      %v5297 = vrot.slane %v5292, %v5296
      %v5299 = vadd.f32 %v5256, %v5297
      %v5300 = vadd.f32 %v5257, %v5297
      %v5301 = vadd.f32 %v5258, %v5297
      %v5302 = vadd.f32 %v5259, %v5297
      %v5303 = vadd.f32 %v5260, %v5297
      %v5304 = vadd.f32 %v5261, %v5297
      %v5305 = vadd.f32 %v5262, %v5297
      %v5306 = vadd.f32 %v5263, %v5297
      %v5307 = vadd.f32 %v5264, %v5297
      %v5308 = vadd.f32 %v5265, %v5297
      %v5309 = vadd.f32 %v5266, %v5297
      %v5310 = vadd.f32 %v5267, %v5297
      %v5311 = vadd.f32 %v5268, %v5297
      %v5312 = vadd.f32 %v5269, %v5297
      %v5313 = vadd.f32 %v5270, %v5297
      %v5314 = vadd.f32 %v5271, %v5297
      %v5315 = vadd.f32 %v5272, %v5297
      %v5316 = vadd.f32 %v5273, %v5297
      %v5317 = vadd.f32 %v5274, %v5297
      %v5318 = vadd.f32 %v5275, %v5297
      %v5319 = vadd.f32 %v5276, %v5297
      %v5320 = vadd.f32 %v5277, %v5297
      %v5321 = vadd.f32 %v5278, %v5297
      %v5322 = vadd.f32 %v5279, %v5297
      %v5323 = vadd.f32 %v5280, %v5297
      %v5324 = vadd.f32 %v5281, %v5297
      %v5325 = vadd.f32 %v5282, %v5297
      %v5326 = vadd.f32 %v5283, %v5297
      %v5327 = vadd.f32 %v5284, %v5297
      %v5328 = vadd.f32 %v5285, %v5297
      %v5329 = vadd.f32 %v5286, %v5297
      %v5330 = vadd.f32 %v5287, %v5297
      %v5331 = vadd.f32 %v5288, %v5297
      %v5332 = vadd.f32 %v5289, %v5297
      %v5333 = vadd.f32 %v5290, %v5297
      %v5334 = vadd.f32 %v5291, %v5297
      %v5335 = vmax.f32 %v5299, 0.0
      %v5336 = vmax.f32 %v5300, 0.0
      %v5337 = vmax.f32 %v5301, 0.0
      %v5338 = vmax.f32 %v5302, 0.0
      %v5339 = vmax.f32 %v5303, 0.0
      %v5340 = vmax.f32 %v5304, 0.0
      %v5341 = vmax.f32 %v5305, 0.0
      %v5342 = vmax.f32 %v5306, 0.0
      %v5343 = vmax.f32 %v5307, 0.0
      %v5344 = vmax.f32 %v5308, 0.0
      %v5345 = vmax.f32 %v5309, 0.0
      %v5346 = vmax.f32 %v5310, 0.0
      %v5347 = vmax.f32 %v5311, 0.0
      %v5348 = vmax.f32 %v5312, 0.0
      %v5349 = vmax.f32 %v5313, 0.0
      %v5350 = vmax.f32 %v5314, 0.0
      %v5351 = vmax.f32 %v5315, 0.0
      %v5352 = vmax.f32 %v5316, 0.0
      %v5353 = vmax.f32 %v5317, 0.0
      %v5354 = vmax.f32 %v5318, 0.0
      %v5355 = vmax.f32 %v5319, 0.0
      %v5356 = vmax.f32 %v5320, 0.0
      %v5357 = vmax.f32 %v5321, 0.0
      %v5358 = vmax.f32 %v5322, 0.0
      %v5359 = vmax.f32 %v5323, 0.0
      %v5360 = vmax.f32 %v5324, 0.0
      %v5361 = vmax.f32 %v5325, 0.0
      %v5362 = vmax.f32 %v5326, 0.0
      %v5363 = vmax.f32 %v5327, 0.0
      %v5364 = vmax.f32 %v5328, 0.0
      %v5365 = vmax.f32 %v5329, 0.0
      %v5366 = vmax.f32 %v5330, 0.0
      %v5367 = vmax.f32 %v5331, 0.0
      %v5368 = vmax.f32 %v5332, 0.0
      %v5369 = vmax.f32 %v5333, 0.0
      %v5370 = vmax.f32 %v5334, 0.0
      %v5371 = vpack.c.bf16 %v5336, %v5335
      %v5372 = vpack.c.bf16 %v5338, %v5337
      %v5373 = vpack.c.bf16 %v5340, %v5339
      %v5374 = vpack.c.bf16 %v5342, %v5341
      %v5375 = vpack.c.bf16 %v5344, %v5343
      %v5376 = vpack.c.bf16 %v5346, %v5345
      %v5377 = vpack.c.bf16 %v5348, %v5347
      %v5378 = vpack.c.bf16 %v5350, %v5349
      %v5379 = vpack.c.bf16 %v5352, %v5351
      %v5380 = vpack.c.bf16 %v5354, %v5353
      %v5381 = vpack.c.bf16 %v5356, %v5355
      %v5382 = vpack.c.bf16 %v5358, %v5357
      %v5383 = vpack.c.bf16 %v5360, %v5359
      %v5384 = vpack.c.bf16 %v5362, %v5361
      %v5385 = vpack.c.bf16 %v5364, %v5363
      %v5386 = vpack.c.bf16 %v5366, %v5365
      %v5387 = vpack.c.bf16 %v5368, %v5367
      %v5388 = vpack.c.bf16 %v5370, %v5369
      %v5390 = vunpack.c.l.b16 %v5371
      %v5391 = vunpack.c.h.b16 %v5371
      %v5392 = vpack.c.b16 %v5390, %v5390
      %v5393 = vpack.c.b16 %v5391, %v5391
      %5396 = vst [vmem:[%s170] sm:$0xf] %v5392
      %5397 = vst [vmem:[%s170 + $0x4] sm:$0xf] %v5393
      %v5400 = vunpack.c.l.b16 %v5372
      %v5401 = vunpack.c.h.b16 %v5372
      %v5402 = vunpack.c.l.b16 %v5373
      %v5403 = vpack.c.b16 %v5400, %v5400
      %v5404 = vpack.c.b16 %v5401, %v5401
      %v5405 = vpack.c.b16 %v5402, %v5402
      %vm5406 = vcmask 1042432
      %vm5407 = vcmask 1046532
      %vm5408 = vmor %vm5406, %vm5407
      %v5409 = vrot.slane %v5403, 5
      %v5410 = vrot.slane %v5409, 4
      %v5411 = vrot.slane %v5404, 5
      %v5412 = vsel %vm5408, %v5410, %v5411
      %v5413 = vrot.slane %v5411, 4
      %v5414 = vrot.slane %v5405, 5
      %v5415 = vsel %vm5408, %v5413, %v5414
      %s5418 = scalar_lea.vmem %s170, 8
      %5419 = vst [vmem:[%s5418] sm:$0xf] %v5412
      %5420 = vst [vmem:[%s5418 + $0x4] sm:$0xf] %v5415
      %v5422 = vunpack.c.h.b16 %v5373
      %v5423 = vunpack.c.l.b16 %v5374
      %v5424 = vpack.c.b16 %v5422, %v5422
      %v5425 = vpack.c.b16 %v5423, %v5423
      %vm5426 = vcmask 1041408
      %vm5427 = vcmask 1045508
      %vm5428 = vmor %vm5426, %vm5427
      %v5429 = vrot.slane %v5405, 6
      %v5430 = vrot.slane %v5429, 4
      %v5431 = vrot.slane %v5424, 6
      %v5432 = vsel %vm5428, %v5430, %v5431
      %v5433 = vrot.slane %v5431, 4
      %v5434 = vrot.slane %v5425, 6
      %v5435 = vsel %vm5428, %v5433, %v5434
      %s5438 = scalar_lea.vmem %s170, 16
      %5439 = vst [vmem:[%s5438] sm:$0xf] %v5432
      %5440 = vst [vmem:[%s5438 + $0x4] sm:$0xf] %v5435
      %v5442 = vunpack.c.h.b16 %v5374
      %v5443 = vunpack.c.l.b16 %v5375
      %v5444 = vpack.c.b16 %v5442, %v5442
      %v5445 = vpack.c.b16 %v5443, %v5443
      %vm5446 = vcmask 1040384
      %vm5447 = vcmask 1044484
      %vm5448 = vmor %vm5446, %vm5447
      %v5449 = vrot.slane %v5425, 7
      %v5450 = vrot.slane %v5449, 4
      %v5451 = vrot.slane %v5444, 7
      %v5452 = vsel %vm5448, %v5450, %v5451
      %v5453 = vrot.slane %v5451, 4
      %v5454 = vrot.slane %v5445, 7
      %v5455 = vsel %vm5448, %v5453, %v5454
      %s5458 = scalar_lea.vmem %s170, 24
      %5459 = vst [vmem:[%s5458] sm:$0xf] %v5452
      %5460 = vst [vmem:[%s5458 + $0x4] sm:$0xf] %v5455
      %v5462 = vunpack.c.h.b16 %v5375
      %v5463 = vunpack.c.l.b16 %v5376
      %v5464 = vpack.c.b16 %v5462, %v5462
      %v5465 = vpack.c.b16 %v5463, %v5463
      %s5468 = scalar_lea.vmem %s170, 32
      %5469 = vst [vmem:[%s5468] sm:$0xf] %v5464
      %5470 = vst [vmem:[%s5468 + $0x4] sm:$0xf] %v5465
      %v5472 = vunpack.c.h.b16 %v5376
      %v5473 = vunpack.c.l.b16 %v5377
      %v5474 = vunpack.c.h.b16 %v5377
      %v5475 = vpack.c.b16 %v5472, %v5472
      %v5476 = vpack.c.b16 %v5473, %v5473
      %v5477 = vpack.c.b16 %v5474, %v5474
      %v5478 = vrot.slane %v5475, 5
      %v5479 = vrot.slane %v5478, 4
      %v5480 = vrot.slane %v5476, 5
      %v5481 = vsel %vm5408, %v5479, %v5480
      %v5482 = vrot.slane %v5480, 4
      %v5483 = vrot.slane %v5477, 5
      %v5484 = vsel %vm5408, %v5482, %v5483
      %s5487 = scalar_lea.vmem %s170, 40
      %5488 = vst [vmem:[%s5487] sm:$0xf] %v5481
      %5489 = vst [vmem:[%s5487 + $0x4] sm:$0xf] %v5484
      %v5491 = vunpack.c.l.b16 %v5378
      %v5492 = vunpack.c.h.b16 %v5378
      %v5493 = vpack.c.b16 %v5491, %v5491
      %v5494 = vpack.c.b16 %v5492, %v5492
      %v5495 = vrot.slane %v5477, 6
      %v5496 = vrot.slane %v5495, 4
      %v5497 = vrot.slane %v5493, 6
      %v5498 = vsel %vm5428, %v5496, %v5497
      %v5499 = vrot.slane %v5497, 4
      %v5500 = vrot.slane %v5494, 6
      %v5501 = vsel %vm5428, %v5499, %v5500
      %s5504 = scalar_lea.vmem %s170, 48
      %5505 = vst [vmem:[%s5504] sm:$0xf] %v5498
      %5506 = vst [vmem:[%s5504 + $0x4] sm:$0xf] %v5501
      %v5508 = vunpack.c.l.b16 %v5379
      %v5509 = vunpack.c.h.b16 %v5379
      %v5510 = vpack.c.b16 %v5508, %v5508
      %v5511 = vpack.c.b16 %v5509, %v5509
      %v5512 = vrot.slane %v5494, 7
      %v5513 = vrot.slane %v5512, 4
      %v5514 = vrot.slane %v5510, 7
      %v5515 = vsel %vm5448, %v5513, %v5514
      %v5516 = vrot.slane %v5514, 4
      %v5517 = vrot.slane %v5511, 7
      %v5518 = vsel %vm5448, %v5516, %v5517
      %s5521 = scalar_lea.vmem %s170, 56
      %5522 = vst [vmem:[%s5521] sm:$0xf] %v5515
      %5523 = vst [vmem:[%s5521 + $0x4] sm:$0xf] %v5518
      %v5525 = vunpack.c.l.b16 %v5380
      %v5526 = vunpack.c.h.b16 %v5380
      %v5527 = vpack.c.b16 %v5525, %v5525
      %v5528 = vpack.c.b16 %v5526, %v5526
      %s5531 = scalar_lea.vmem %s170, 64
      %5532 = vst [vmem:[%s5531] sm:$0xf] %v5527
      %5533 = vst [vmem:[%s5531 + $0x4] sm:$0xf] %v5528
      %v5536 = vunpack.c.l.b16 %v5381
      %v5537 = vunpack.c.h.b16 %v5381
      %v5538 = vunpack.c.l.b16 %v5382
      %v5539 = vpack.c.b16 %v5536, %v5536
      %v5540 = vpack.c.b16 %v5537, %v5537
      %v5541 = vpack.c.b16 %v5538, %v5538
      %v5542 = vrot.slane %v5539, 5
      %v5543 = vrot.slane %v5542, 4
      %v5544 = vrot.slane %v5540, 5
      %v5545 = vsel %vm5408, %v5543, %v5544
      %v5546 = vrot.slane %v5544, 4
      %v5547 = vrot.slane %v5541, 5
      %v5548 = vsel %vm5408, %v5546, %v5547
      %s5551 = scalar_lea.vmem %s170, 72
      %5552 = vst [vmem:[%s5551] sm:$0xf] %v5545
      %5553 = vst [vmem:[%s5551 + $0x4] sm:$0xf] %v5548
      %v5555 = vunpack.c.h.b16 %v5382
      %v5556 = vunpack.c.l.b16 %v5383
      %v5557 = vpack.c.b16 %v5555, %v5555
      %v5558 = vpack.c.b16 %v5556, %v5556
      %v5559 = vrot.slane %v5541, 6
      %v5560 = vrot.slane %v5559, 4
      %v5561 = vrot.slane %v5557, 6
      %v5562 = vsel %vm5428, %v5560, %v5561
      %v5563 = vrot.slane %v5561, 4
      %v5564 = vrot.slane %v5558, 6
      %v5565 = vsel %vm5428, %v5563, %v5564
      %s5568 = scalar_lea.vmem %s170, 80
      %5569 = vst [vmem:[%s5568] sm:$0xf] %v5562
      %5570 = vst [vmem:[%s5568 + $0x4] sm:$0xf] %v5565
      %v5572 = vunpack.c.h.b16 %v5383
      %v5573 = vunpack.c.l.b16 %v5384
      %v5574 = vpack.c.b16 %v5572, %v5572
      %v5575 = vpack.c.b16 %v5573, %v5573
      %v5576 = vrot.slane %v5558, 7
      %v5577 = vrot.slane %v5576, 4
      %v5578 = vrot.slane %v5574, 7
      %v5579 = vsel %vm5448, %v5577, %v5578
      %v5580 = vrot.slane %v5578, 4
      %v5581 = vrot.slane %v5575, 7
      %v5582 = vsel %vm5448, %v5580, %v5581
      %s5585 = scalar_lea.vmem %s170, 88
      %5586 = vst [vmem:[%s5585] sm:$0xf] %v5579
      %5587 = vst [vmem:[%s5585 + $0x4] sm:$0xf] %v5582
      %v5589 = vunpack.c.h.b16 %v5384
      %v5590 = vunpack.c.l.b16 %v5385
      %v5591 = vpack.c.b16 %v5589, %v5589
      %v5592 = vpack.c.b16 %v5590, %v5590
      %s5595 = scalar_lea.vmem %s170, 96
      %5596 = vst [vmem:[%s5595] sm:$0xf] %v5591
      %5597 = vst [vmem:[%s5595 + $0x4] sm:$0xf] %v5592
      %v5599 = vunpack.c.h.b16 %v5385
      %v5600 = vunpack.c.l.b16 %v5386
      %v5601 = vunpack.c.h.b16 %v5386
      %v5602 = vpack.c.b16 %v5599, %v5599
      %v5603 = vpack.c.b16 %v5600, %v5600
      %v5604 = vpack.c.b16 %v5601, %v5601
      %v5605 = vrot.slane %v5602, 5
      %v5606 = vrot.slane %v5605, 4
      %v5607 = vrot.slane %v5603, 5
      %v5608 = vsel %vm5408, %v5606, %v5607
      %v5609 = vrot.slane %v5607, 4
      %v5610 = vrot.slane %v5604, 5
      %v5611 = vsel %vm5408, %v5609, %v5610
      %s5614 = scalar_lea.vmem %s170, 104
      %5615 = vst [vmem:[%s5614] sm:$0xf] %v5608
      %5616 = vst [vmem:[%s5614 + $0x4] sm:$0xf] %v5611
      %v5618 = vunpack.c.l.b16 %v5387
      %v5619 = vunpack.c.h.b16 %v5387
      %v5620 = vpack.c.b16 %v5618, %v5618
      %v5621 = vpack.c.b16 %v5619, %v5619
      %v5622 = vrot.slane %v5604, 6
      %v5623 = vrot.slane %v5622, 4
      %v5624 = vrot.slane %v5620, 6
      %v5625 = vsel %vm5428, %v5623, %v5624
      %v5626 = vrot.slane %v5624, 4
      %v5627 = vrot.slane %v5621, 6
      %v5628 = vsel %vm5428, %v5626, %v5627
      %s5631 = scalar_lea.vmem %s170, 112
      %5632 = vst [vmem:[%s5631] sm:$0xf] %v5625
      %5633 = vst [vmem:[%s5631 + $0x4] sm:$0xf] %v5628
      %v5635 = vunpack.c.l.b16 %v5388
      %v5636 = vunpack.c.h.b16 %v5388
      %v5637 = vpack.c.b16 %v5635, %v5635
      %v5638 = vpack.c.b16 %v5636, %v5636
      %v5639 = vrot.slane %v5621, 7
      %v5640 = vrot.slane %v5639, 4
      %v5641 = vrot.slane %v5637, 7
      %v5642 = vsel %vm5448, %v5640, %v5641
      %v5643 = vrot.slane %v5641, 4
      %v5644 = vrot.slane %v5638, 7
      %v5645 = vsel %vm5448, %v5643, %v5644
      %s5648 = scalar_lea.vmem %s170, 120
      %5649 = vst [vmem:[%s5648] sm:$0xf] %v5642
      %5650 = vst [vmem:[%s5648 + $0x4] sm:$0xf] %v5645
      %p5651 = scmp.lt.s32.totalorder %s14, 1
      %s5652 = scalar_select %p5651, %s14, 1
      %s5653 = smul.addr %s5652, 32
      %s5654 = smul.addr %s5653, 4
      %s5655 = scalar_lea.vmem %s3, %s5654
      // Predicated region
      $region33: #{_lambda_.9} parent=31 // pred_check
        %p5656 = pneg %p100
      $region34: #{_lambda_.9} parent=31 // pred_check_branch
        %5658 = sbr.rel (%p5656) target = $region36
      $region35: #{_lambda_.9} parent=31 // pred_region
        _
      $region36: #{_lambda_.9} parent=31 // pred_fallthru
        _
    $region32: #{_lambda_.9} parent=5 // pred_fallthru
      _
    %p5659 = scmp.le.s32.totalorder 2, %s9
    // Predicated region
    $region37: #{_lambda_.9} parent=5 // pred_check
      %p5660 = pneg %p5659
    $region38: #{_lambda_.9} parent=5 // pred_check_branch
      %5662 = sbr.rel (%p5660) target = $region40
    $region39: #{_lambda_.9} parent=5 // pred_region
      %s5663 = ssub.s32 %s9, 2
      // Predicated region
      $region41: #{_lambda_.9} parent=39 // pred_check
        %p5664 = pneg %p106
      $region42: #{_lambda_.9} parent=39 // pred_check_branch
        %5666 = sbr.rel (%p5664) target = $region44
      $region43: #{_lambda_.9} parent=39 // pred_region
        %p5667 = scmp.lt.s32.totalorder %s15, 1
        %s5668 = scalar_select %p5667, %s15, 1
        %s5669 = smul.addr %s5668, 32
        %s5670 = smul.addr %s5669, 4
        %s5671 = scalar_lea.vmem %s3, %s5670
      $region44: #{_lambda_.9} parent=39 // pred_fallthru
        _
    $region40: #{_lambda_.9} parent=5 // pred_fallthru
      _
  $region6: #{_lambda_.9} parent=0 // loop_footer
    %s13 = sadd.s32 1, %s9
  $region7: #{_lambda_.9} parent=0 // loop_footer_branch
    %8 = sbr.rel target = $region3
  $region8: #{_lambda_.9} parent=0 // loop_exit
    _

</llo_original>
